<compile_context>
chip_gen: v6e
topology: v6e:2x2x1
jax: 0.10.0
libtpu: 0.0.40
codegen_flags: <defaults>
</compile_context>

<pallas_src>
from functools import partial

import numpy as np
import jax
import jax.numpy as jnp
from jax import lax
from jax.experimental import pallas as pl
from jax.experimental.pallas import tpu as pltpu

N_WIRES = 4
DIM = 16  # 2 ** N_WIRES


# ------------------------------ fused Pallas kernel -------------------------

def _qdeq_fused_kernel(xt_ref, pt_ref, wc_ref, m2t_ref, wcls_ref, bcls_ref,
                       logp_ref, res_ref, *, n_layer, compute_residual):
    nb = xt_ref.shape[1]          # batch block (lanes)

    # ImgFilter: avg_pool2d(x, 6).view(bsz,16), feature-major:
    #   u1s (16, Nb) = P^T (16,784) @ x_t (784, Nb).
    # P^T holds exact 0/1 indicators (bf16-safe); scale by 1/36 in f32.
    u1s = jnp.dot(pt_ref[...], xt_ref[...],
                  preferred_element_type=jnp.float32) * (1.0 / 36.0)

    # Per-basis-state bit masks on sublanes (wire 0 = MSB, torchquantum
    # ordering), hoisted out of all loops.
    iota = lax.broadcasted_iota(jnp.int32, (DIM, 1), 0)
    bit_masks = [((iota >> (N_WIRES - 1 - w)) & 1) == 1 for w in range(N_WIRES)]

    wc = wc_ref[...]      # (32, 32)  [[Ur, -Ui], [Ui, Ur]]
    m2t = m2t_ref[...]    # (16, 32)  [M^T | M^T]  (measure + pairsum + x8 up)

    def qfc(z):
        # encoder angles (feature-major)
        x = z + u1s                               # (16, Nb)
        ch = jnp.cos(0.5 * x)                     # full-tile EUP ops
        sh = jnp.sin(0.5 * x)

        # Encoder '4x4_ryzxy': RY(x[0:4]) RZ(x[4:8]) RX(x[8:12]) RY(x[12:16])
        # per wire, vectorized across all 4 wires on (4, Nb) tiles.
        ca, cb, cc, cd = ch[0:4], ch[4:8], ch[8:12], ch[12:16]
        sa, sb, sc, sd = sh[0:4], sh[4:8], sh[8:12], sh[12:16]
        # RY(a)|0> = (ca, sa) ; RZ(b)
        v0r, v0i = ca * cb, -(ca * sb)
        v1r, v1i = sa * cb, sa * sb
        # RX(c)
        w0r = cc * v0r + sc * v1i
        w0i = cc * v0i - sc * v1r
        w1r = sc * v0i + cc * v1r
        w1i = cc * v1i - sc * v0r
        # RY(d)
        p0r, p0i = cd * w0r - sd * w1r, cd * w0i - sd * w1i
        p1r, p1i = sd * w0r + cd * w1r, sd * w0i + cd * w1i

        # Kronecker expansion: 16 basis-state amplitudes on sublanes.
        # TODO(synk): optional MXU offload of this select (constant (128,16)
        # selection matmul) only if VALU still binds after these changes.
        psi_re = None
        psi_im = None
        for w in range(N_WIRES):
            fr = jnp.where(bit_masks[w], p1r[w:w + 1, :], p0r[w:w + 1, :])
            fi = jnp.where(bit_masks[w], p1i[w:w + 1, :], p0i[w:w + 1, :])
            if w == 0:
                psi_re, psi_im = fr, fi
            else:
                psi_re, psi_im = (psi_re * fr - psi_im * fi,
                                  psi_re * fi + psi_im * fr)

        # Fixed QLayer unitary (column convention psi_out = U @ psi) as ONE
        # packed real matmul:
        #   [out_re; out_im] (32, Nb) = [[Ur,-Ui],[Ui,Ur]] @ [psi_re; psi_im]
        psi = jnp.concatenate([psi_re, psi_im], axis=0)          # (32, Nb)
        po = jnp.dot(wc, psi, preferred_element_type=jnp.float32)
        sq = po * po                                             # (32, Nb)

        # |amp|^2 halves-add + MeasureAll(PauliZ) + reshape(bsz,2,2).sum(-1)
        # + Upsample(x8, nearest), all folded into one constant matmul.
        return jnp.dot(m2t, sq, preferred_element_type=jnp.float32)   # (16, Nb)

    # direct / pretrain branch: z1s = func(z1s, u1s) repeated n_layer times
    z = jnp.zeros((DIM, nb), jnp.float32)
    for _ in range(n_layer):
        z = qfc(z)

    # DEQ residual (reference expression is shape-inconsistent for bsz>1; we
    # use the DEQ-intended per-sample ||f(z*)-z*|| / (||z*|| + 1e-9), reduced
    # to a mean in the wrapper).
    if compute_residual:
        z1 = qfc(z)
        num = jnp.sqrt(jnp.sum((z1 - z) ** 2, axis=0, keepdims=True))
        den = jnp.sqrt(jnp.sum(z * z, axis=0, keepdims=True)) + 1e-9
        res_ref[...] = num / den                                 # (1, Nb)
    else:
        res_ref[...] = jnp.zeros_like(res_ref)

    # TODO(synk): VariationalDropout is undefined in the reference snippet;
    # treated as identity (eval mode).

    # CLS head: ReLU -> Linear(16, 2) -> log_softmax  (feature-major)
    h = jnp.maximum(z, 0.0)
    logits = jnp.dot(wcls_ref[...], h,
                     preferred_element_type=jnp.float32) + bcls_ref[...]   # (2, Nb)
    mx = jnp.max(logits, axis=0, keepdims=True)
    lse = mx + jnp.log(jnp.sum(jnp.exp(logits - mx), axis=0, keepdims=True))
    logp_ref[...] = logits - lse


# --------------------- host-side constant construction ----------------------

def build_pool_matrix_t(H, W):
    """(16, H*W) 0/1 matrix Pt with (Pt @ x_col) / 36 == avg_pool2d(x,6).view(16)."""
    P = np.zeros((H * W, DIM), dtype=np.float32)
    for i in range(4):
        for j in range(4):
            for r in range(6 * i, 6 * i + 6):
                for c in range(6 * j, 6 * j + 6):
                    P[r * W + c, 4 * i + j] = 1.0          # scaled by 1/36 in-kernel
    return jnp.asarray(P.T)


def build_measure_upsample_matrix_t():
    """(16, 32) M2t: M2t @ [sq_re; sq_im] == upsample8(pairwise-summed <PauliZ>)."""
    M = np.zeros((DIM, DIM), dtype=np.float32)
    for i in range(DIM):
        s = [1.0 - 2.0 * ((i >> (N_WIRES - 1 - w)) & 1) for w in range(N_WIRES)]
        M[i, 0:8] = s[0] + s[1]
        M[i, 8:16] = s[2] + s[3]
    Mt = M.T
    return jnp.asarray(np.concatenate([Mt, Mt], axis=1))


def _kron_all(mats):
    out = mats[0]
    for m in mats[1:]:
        out = np.kron(out, m)
    return out


def _embed_1q(g, wire, n=N_WIRES):
    mats = [np.eye(2, dtype=np.complex64) for _ in range(n)]
    mats[wire] = g
    return _kron_all(mats)


def _embed_ctrl(g, control, target, n=N_WIRES):
    P0 = np.array([[1, 0], [0, 0]], dtype=np.complex64)
    P1 = np.array([[0, 0], [0, 1]], dtype=np.complex64)
    m0 = [np.eye(2, dtype=np.complex64) for _ in range(n)]
    m0[control] = P0
    m1 = [np.eye(2, dtype=np.complex64) for _ in range(n)]
    m1[control] = P1
    m1[target] = g
    return _kron_all(m0) + _kron_all(m1)


def _rx(t):
    c, s = np.cos(t / 2), np.sin(t / 2)
    return np.array([[c, -1j * s], [-1j * s, c]], dtype=np.complex64)


def _ry(t):
    c, s = np.cos(t / 2), np.sin(t / 2)
    return np.array([[c, -s], [s, c]], dtype=np.complex64)


def _rz(t):
    return np.array([[np.exp(-1j * t / 2), 0], [0, np.exp(1j * t / 2)]],
                    dtype=np.complex64)


def build_qlayer_matrix():
    """Fixed 16x16 unitary of QFCModel.QLayer, packed for one real matmul.

    Returns Wc = [[Ur, -Ui], [Ui, Ur]] (32, 32) with U = Ur + iUi so that
    [out_re; out_im] = Wc @ [psi_re; psi_im] implements psi_out = U @ psi.
    """
    rng = np.random.RandomState(1111)
    U = np.eye(DIM, dtype=np.complex64)
    # TODO(synk): torchquantum RandomLayer(n_ops=50, seed=1111) exact op sequence
    # is not reproducible without torchquantum; deterministic stand-in below.
    gates1q = [_rx, _ry, _rz]
    for _ in range(50):
        kind = rng.randint(0, 4)
        theta = rng.uniform(-np.pi, np.pi)
        if kind < 3:
            w = rng.randint(0, N_WIRES)
            G = _embed_1q(gates1q[kind](theta), w)
        else:
            c, t = rng.choice(N_WIRES, size=2, replace=False)
            G = _embed_ctrl(_rx(theta), int(c), int(t))
        U = G @ U
    # trainable gates (deterministic init angles)
    th_rx0, th_ry0, th_rz0, th_crx0 = rng.uniform(-np.pi, np.pi, size=4)
    U = _embed_1q(_rx(th_rx0), 0) @ U
    U = _embed_1q(_ry(th_ry0), 1) @ U
    U = _embed_1q(_rz(th_rz0), 3) @ U
    U = _embed_ctrl(_rx(th_crx0), 0, 2) @ U
    H2 = (1.0 / np.sqrt(2)) * np.array([[1, 1], [1, -1]], dtype=np.complex64)
    SX = 0.5 * np.array([[1 + 1j, 1 - 1j], [1 - 1j, 1 + 1j]], dtype=np.complex64)
    X = np.array([[0, 1], [1, 0]], dtype=np.complex64)
    U = _embed_1q(H2, 3) @ U
    U = _embed_1q(SX, 2) @ U
    U = _embed_ctrl(X, 3, 0) @ U
    Ur = np.real(U).astype(np.float32)
    Ui = np.imag(U).astype(np.float32)
    Wc = np.block([[Ur, -Ui], [Ui, Ur]]).astype(np.float32)
    return jnp.asarray(Wc)


# ------------------------------- full forward -------------------------------

@partial(jax.jit, static_argnames=("n_layer", "block_b", "compute_residual"))
def qdeq_forward(x, target, wc, m2t, wcls_t, bcls, n_layer=4, block_b=256,
                 compute_residual=True):
    bsz, _, Hs, Ws = x.shape
    HW = Hs * Ws

    # Pre-transpose x to feature-major (784, bsz_pad) and stream it as bf16
    # (essentially all of the kernel's HBM traffic).
    bsz_pad = ((bsz + block_b - 1) // block_b) * block_b
    x_flat = x.reshape(bsz, HW).astype(jnp.bfloat16)
    if bsz_pad != bsz:
        x_flat = jnp.pad(x_flat, ((0, bsz_pad - bsz), (0, 0)))
    xt = x_flat.T                                        # (HW, bsz_pad) bf16
    pt = build_pool_matrix_t(Hs, Ws).astype(jnp.bfloat16)  # (16, HW) 0/1

    kernel = partial(_qdeq_fused_kernel, n_layer=n_layer,
                     compute_residual=compute_residual)
    grid = (bsz_pad // block_b,)
    logp_t, res_t = pl.pallas_call(
        kernel,
        out_shape=(jax.ShapeDtypeStruct((2, bsz_pad), jnp.float32),
                   jax.ShapeDtypeStruct((1, bsz_pad), jnp.float32)),
        grid=grid,
        in_specs=[pl.BlockSpec((HW, block_b), lambda i: (0, i)),
                  pl.BlockSpec((DIM, HW), lambda i: (0, 0)),
                  pl.BlockSpec((2 * DIM, 2 * DIM), lambda i: (0, 0)),
                  pl.BlockSpec((DIM, 2 * DIM), lambda i: (0, 0)),
                  pl.BlockSpec((2, DIM), lambda i: (0, 0)),
                  pl.BlockSpec((2, 1), lambda i: (0, 0))],
        out_specs=(pl.BlockSpec((2, block_b), lambda i: (0, i)),
                   pl.BlockSpec((1, block_b), lambda i: (0, i))),
        compiler_params=pltpu.CompilerParams(
            dimension_semantics=("parallel",),
            vmem_limit_bytes=32 * 1024 * 1024),
    )(xt, pt, wc, m2t, wcls_t, bcls)

    # Tiny plain-JAX epilogue on the lane-dense (2, bsz) log-probs.
    logp = logp_t[:, :bsz]                               # (2, bsz)
    residual = jnp.mean(res_t[0, :bsz])
    picked = jnp.take_along_axis(logp, target[None, :], axis=0)[0]
    loss = -jnp.mean(picked)
    pred = jnp.argmax(logp, axis=0)
    acc = jnp.mean((pred == target).astype(jnp.float32))
    jac_loss = jnp.zeros((1, 1), jnp.float32)
    sradius = jnp.zeros((bsz, 1), jnp.float32)
    return loss, acc, residual, jac_loss, sradius


# TODO(synk): implicit-mode fixed-point solver (anderson) and the backward hook
# are not exercised under the default train_step=-1 path and are not translated.

if __name__ == "__main__":
    key = jax.random.PRNGKey(0)
    kx, kw, kb = jax.random.split(key, 3)
    bsz = 2
    x = jax.random.uniform(kx, (bsz, 1, 28, 28), dtype=jnp.float32)  # MNIST-like NCHW
    target = jnp.array([0, 1], dtype=jnp.int32)

    wc = build_qlayer_matrix()                 # (32, 32)
    m2t = build_measure_upsample_matrix_t()    # (16, 32)
    W_cls = jax.random.normal(kw, (16, 2), dtype=jnp.float32) * 0.3
    b_cls = jax.random.normal(kb, (1, 2), dtype=jnp.float32) * 0.1
    wcls_t = W_cls.T                           # (2, 16)
    bcls = b_cls.T                             # (2, 1)

    outs = qdeq_forward(x, target, wc, m2t, wcls_t, bcls, n_layer=4)
    jax.block_until_ready(outs)
    print("KERNEL_OK")
</pallas_src>

<mosaic_0001>
module attributes {stable_mosaic.version = 11 : i64} {
  func.func @_qdeq_fused_kernel(%arg0: i32, %arg1: memref<784x256xbf16, #tpu.memory_space<vmem>>, %arg2: memref<16x784xbf16, #tpu.memory_space<vmem>>, %arg3: memref<32x32xf32, #tpu.memory_space<vmem>>, %arg4: memref<16x32xf32, #tpu.memory_space<vmem>>, %arg5: memref<2x16xf32, #tpu.memory_space<vmem>>, %arg6: memref<2x1xf32, #tpu.memory_space<vmem>>, %arg7: memref<2x256xf32, #tpu.memory_space<vmem>>, %arg8: memref<1x256xf32, #tpu.memory_space<vmem>>) attributes {dimension_semantics = [#tpu.dimension_semantics<parallel>], iteration_bounds = array<i64: 1>, scalar_prefetch = 0 : i64, scratch_operands = 0 : i64, tpu.core_type = #tpu.core_type<tc>, window_params = [{transform_indices = @transform_0, window_bounds = array<i64: 784, 256>}, {pipeline_mode = #tpu.pipeline_mode<synchronous>, transform_indices = @transform_1, window_bounds = array<i64: 16, 784>}, {pipeline_mode = #tpu.pipeline_mode<synchronous>, transform_indices = @transform_2, window_bounds = array<i64: 32, 32>}, {pipeline_mode = #tpu.pipeline_mode<synchronous>, transform_indices = @transform_3, window_bounds = array<i64: 16, 32>}, {pipeline_mode = #tpu.pipeline_mode<synchronous>, transform_indices = @transform_4, window_bounds = array<i64: 2, 16>}, {pipeline_mode = #tpu.pipeline_mode<synchronous>, transform_indices = @transform_5, window_bounds = array<i64: 2, 1>}, {transform_indices = @transform_6, window_bounds = array<i64: 2, 256>}, {transform_indices = @transform_7, window_bounds = array<i64: 1, 256>}]} {
    %c0 = arith.constant 0 : index
    %c0_0 = arith.constant 0 : index
    %0 = vector.load %arg2[%c0, %c0_0] : memref<16x784xbf16, #tpu.memory_space<vmem>>, vector<16x784xbf16>
    %c0_1 = arith.constant 0 : index
    %c0_2 = arith.constant 0 : index
    %1 = vector.load %arg1[%c0_1, %c0_2] : memref<784x256xbf16, #tpu.memory_space<vmem>>, vector<784x256xbf16>
    %cst = arith.constant dense<0.000000e+00> : vector<16x256xf32>
    %2 = tpu.matmul %0, %1, %cst {dimension_numbers = #tpu.dot_dimension_numbers<[1], [0], [0], [1], [0, 0, 1, 1], [], []>} : vector<16x784xbf16>, vector<784x256xbf16>, vector<16x256xf32> -> vector<16x256xf32>
    %cst_3 = arith.constant 0.027777778 : f32
    %3 = vector.broadcast %cst_3 : f32 to vector<16x256xf32>
    %4 = arith.mulf %2, %3 : vector<16x256xf32>
    %5 = tpu.iota {dimensions = array<i32: 0>} : vector<16x1xi32>
    %c3_i32 = arith.constant 3 : i32
    %6 = vector.broadcast %c3_i32 : i32 to vector<16x1xi32>
    %7 = arith.shrsi %5, %6 : vector<16x1xi32>
    %c1_i32 = arith.constant 1 : i32
    %8 = vector.broadcast %c1_i32 : i32 to vector<16x1xi32>
    %9 = arith.andi %7, %8 : vector<16x1xi32>
    %c1_i32_4 = arith.constant 1 : i32
    %10 = vector.broadcast %c1_i32_4 : i32 to vector<16x1xi32>
    %11 = arith.cmpi eq, %9, %10 : vector<16x1xi32>
    %c2_i32 = arith.constant 2 : i32
    %12 = vector.broadcast %c2_i32 : i32 to vector<16x1xi32>
    %13 = arith.shrsi %5, %12 : vector<16x1xi32>
    %c1_i32_5 = arith.constant 1 : i32
    %14 = vector.broadcast %c1_i32_5 : i32 to vector<16x1xi32>
    %15 = arith.andi %13, %14 : vector<16x1xi32>
    %c1_i32_6 = arith.constant 1 : i32
    %16 = vector.broadcast %c1_i32_6 : i32 to vector<16x1xi32>
    %17 = arith.cmpi eq, %15, %16 : vector<16x1xi32>
    %c1_i32_7 = arith.constant 1 : i32
    %18 = vector.broadcast %c1_i32_7 : i32 to vector<16x1xi32>
    %19 = arith.shrsi %5, %18 : vector<16x1xi32>
    %c1_i32_8 = arith.constant 1 : i32
    %20 = vector.broadcast %c1_i32_8 : i32 to vector<16x1xi32>
    %21 = arith.andi %19, %20 : vector<16x1xi32>
    %c1_i32_9 = arith.constant 1 : i32
    %22 = vector.broadcast %c1_i32_9 : i32 to vector<16x1xi32>
    %23 = arith.cmpi eq, %21, %22 : vector<16x1xi32>
    %c0_i32 = arith.constant 0 : i32
    %24 = vector.broadcast %c0_i32 : i32 to vector<16x1xi32>
    %25 = arith.shrsi %5, %24 : vector<16x1xi32>
    %c1_i32_10 = arith.constant 1 : i32
    %26 = vector.broadcast %c1_i32_10 : i32 to vector<16x1xi32>
    %27 = arith.andi %25, %26 : vector<16x1xi32>
    %c1_i32_11 = arith.constant 1 : i32
    %28 = vector.broadcast %c1_i32_11 : i32 to vector<16x1xi32>
    %29 = arith.cmpi eq, %27, %28 : vector<16x1xi32>
    %c0_12 = arith.constant 0 : index
    %c0_13 = arith.constant 0 : index
    %30 = vector.load %arg3[%c0_12, %c0_13] : memref<32x32xf32, #tpu.memory_space<vmem>>, vector<32x32xf32>
    %c0_14 = arith.constant 0 : index
    %c0_15 = arith.constant 0 : index
    %31 = vector.load %arg4[%c0_14, %c0_15] : memref<16x32xf32, #tpu.memory_space<vmem>>, vector<16x32xf32>
    %cst_16 = arith.constant 0.000000e+00 : f32
    %32 = vector.broadcast %cst_16 : f32 to vector<16x256xf32>
    %33 = arith.addf %32, %4 : vector<16x256xf32>
    %cst_17 = arith.constant 5.000000e-01 : f32
    %34 = vector.broadcast %cst_17 : f32 to vector<16x256xf32>
    %35 = arith.mulf %34, %33 : vector<16x256xf32>
    %36 = math.cos %35 : vector<16x256xf32>
    %cst_18 = arith.constant 5.000000e-01 : f32
    %37 = vector.broadcast %cst_18 : f32 to vector<16x256xf32>
    %38 = arith.mulf %37, %33 : vector<16x256xf32>
    %39 = math.sin %38 : vector<16x256xf32>
    %40 = vector.extract_strided_slice %36 {offsets = [0, 0], sizes = [4, 256], strides = [1, 1]} : vector<16x256xf32> to vector<4x256xf32>
    %41 = vector.extract_strided_slice %36 {offsets = [4, 0], sizes = [4, 256], strides = [1, 1]} : vector<16x256xf32> to vector<4x256xf32>
    %42 = vector.extract_strided_slice %36 {offsets = [8, 0], sizes = [4, 256], strides = [1, 1]} : vector<16x256xf32> to vector<4x256xf32>
    %43 = vector.extract_strided_slice %36 {offsets = [12, 0], sizes = [4, 256], strides = [1, 1]} : vector<16x256xf32> to vector<4x256xf32>
    %44 = vector.extract_strided_slice %39 {offsets = [0, 0], sizes = [4, 256], strides = [1, 1]} : vector<16x256xf32> to vector<4x256xf32>
    %45 = vector.extract_strided_slice %39 {offsets = [4, 0], sizes = [4, 256], strides = [1, 1]} : vector<16x256xf32> to vector<4x256xf32>
    %46 = vector.extract_strided_slice %39 {offsets = [8, 0], sizes = [4, 256], strides = [1, 1]} : vector<16x256xf32> to vector<4x256xf32>
    %47 = vector.extract_strided_slice %39 {offsets = [12, 0], sizes = [4, 256], strides = [1, 1]} : vector<16x256xf32> to vector<4x256xf32>
    %48 = arith.mulf %40, %41 : vector<4x256xf32>
    %49 = arith.mulf %40, %45 : vector<4x256xf32>
    %cst_19 = arith.constant 0.000000e+00 : f32
    %50 = vector.broadcast %cst_19 : f32 to vector<4x256xf32>
    %51 = arith.subf %50, %49 : vector<4x256xf32>
    %52 = arith.mulf %44, %41 : vector<4x256xf32>
    %53 = arith.mulf %44, %45 : vector<4x256xf32>
    %54 = arith.mulf %42, %48 : vector<4x256xf32>
    %55 = arith.mulf %46, %53 : vector<4x256xf32>
    %56 = arith.addf %54, %55 : vector<4x256xf32>
    %57 = arith.mulf %42, %51 : vector<4x256xf32>
    %58 = arith.mulf %46, %52 : vector<4x256xf32>
    %59 = arith.subf %57, %58 : vector<4x256xf32>
    %60 = arith.mulf %46, %51 : vector<4x256xf32>
    %61 = arith.mulf %42, %52 : vector<4x256xf32>
    %62 = arith.addf %60, %61 : vector<4x256xf32>
    %63 = arith.mulf %42, %53 : vector<4x256xf32>
    %64 = arith.mulf %46, %48 : vector<4x256xf32>
    %65 = arith.subf %63, %64 : vector<4x256xf32>
    %66 = arith.mulf %43, %56 : vector<4x256xf32>
    %67 = arith.mulf %47, %62 : vector<4x256xf32>
    %68 = arith.subf %66, %67 : vector<4x256xf32>
    %69 = arith.mulf %43, %59 : vector<4x256xf32>
    %70 = arith.mulf %47, %65 : vector<4x256xf32>
    %71 = arith.subf %69, %70 : vector<4x256xf32>
    %72 = arith.mulf %47, %56 : vector<4x256xf32>
    %73 = arith.mulf %43, %62 : vector<4x256xf32>
    %74 = arith.addf %72, %73 : vector<4x256xf32>
    %75 = arith.mulf %47, %59 : vector<4x256xf32>
    %76 = arith.mulf %43, %65 : vector<4x256xf32>
    %77 = arith.addf %75, %76 : vector<4x256xf32>
    %78 = vector.extract_strided_slice %74 {offsets = [0, 0], sizes = [1, 256], strides = [1, 1]} : vector<4x256xf32> to vector<1x256xf32>
    %79 = vector.extract_strided_slice %68 {offsets = [0, 0], sizes = [1, 256], strides = [1, 1]} : vector<4x256xf32> to vector<1x256xf32>
    %80 = vector.shape_cast %11 : vector<16x1xi1> to vector<16x1xi1>
    %81 = vector.broadcast %80 : vector<16x1xi1> to vector<16x256xi1>
    %82 = vector.shape_cast %78 : vector<1x256xf32> to vector<1x256xf32>
    %83 = vector.broadcast %82 : vector<1x256xf32> to vector<16x256xf32>
    %84 = vector.shape_cast %79 : vector<1x256xf32> to vector<1x256xf32>
    %85 = vector.broadcast %84 : vector<1x256xf32> to vector<16x256xf32>
    %86 = arith.select %81, %83, %85 : vector<16x256xi1>, vector<16x256xf32>
    %87 = vector.extract_strided_slice %77 {offsets = [0, 0], sizes = [1, 256], strides = [1, 1]} : vector<4x256xf32> to vector<1x256xf32>
    %88 = vector.extract_strided_slice %71 {offsets = [0, 0], sizes = [1, 256], strides = [1, 1]} : vector<4x256xf32> to vector<1x256xf32>
    %89 = vector.shape_cast %11 : vector<16x1xi1> to vector<16x1xi1>
    %90 = vector.broadcast %89 : vector<16x1xi1> to vector<16x256xi1>
    %91 = vector.shape_cast %87 : vector<1x256xf32> to vector<1x256xf32>
    %92 = vector.broadcast %91 : vector<1x256xf32> to vector<16x256xf32>
    %93 = vector.shape_cast %88 : vector<1x256xf32> to vector<1x256xf32>
    %94 = vector.broadcast %93 : vector<1x256xf32> to vector<16x256xf32>
    %95 = arith.select %90, %92, %94 : vector<16x256xi1>, vector<16x256xf32>
    %96 = vector.extract_strided_slice %74 {offsets = [1, 0], sizes = [1, 256], strides = [1, 1]} : vector<4x256xf32> to vector<1x256xf32>
    %97 = vector.extract_strided_slice %68 {offsets = [1, 0], sizes = [1, 256], strides = [1, 1]} : vector<4x256xf32> to vector<1x256xf32>
    %98 = vector.shape_cast %17 : vector<16x1xi1> to vector<16x1xi1>
    %99 = vector.broadcast %98 : vector<16x1xi1> to vector<16x256xi1>
    %100 = vector.shape_cast %96 : vector<1x256xf32> to vector<1x256xf32>
    %101 = vector.broadcast %100 : vector<1x256xf32> to vector<16x256xf32>
    %102 = vector.shape_cast %97 : vector<1x256xf32> to vector<1x256xf32>
    %103 = vector.broadcast %102 : vector<1x256xf32> to vector<16x256xf32>
    %104 = arith.select %99, %101, %103 : vector<16x256xi1>, vector<16x256xf32>
    %105 = vector.extract_strided_slice %77 {offsets = [1, 0], sizes = [1, 256], strides = [1, 1]} : vector<4x256xf32> to vector<1x256xf32>
    %106 = vector.extract_strided_slice %71 {offsets = [1, 0], sizes = [1, 256], strides = [1, 1]} : vector<4x256xf32> to vector<1x256xf32>
    %107 = vector.shape_cast %17 : vector<16x1xi1> to vector<16x1xi1>
    %108 = vector.broadcast %107 : vector<16x1xi1> to vector<16x256xi1>
    %109 = vector.shape_cast %105 : vector<1x256xf32> to vector<1x256xf32>
    %110 = vector.broadcast %109 : vector<1x256xf32> to vector<16x256xf32>
    %111 = vector.shape_cast %106 : vector<1x256xf32> to vector<1x256xf32>
    %112 = vector.broadcast %111 : vector<1x256xf32> to vector<16x256xf32>
    %113 = arith.select %108, %110, %112 : vector<16x256xi1>, vector<16x256xf32>
    %114 = arith.mulf %86, %104 : vector<16x256xf32>
    %115 = arith.mulf %95, %113 : vector<16x256xf32>
    %116 = arith.subf %114, %115 : vector<16x256xf32>
    %117 = arith.mulf %86, %113 : vector<16x256xf32>
    %118 = arith.mulf %95, %104 : vector<16x256xf32>
    %119 = arith.addf %117, %118 : vector<16x256xf32>
    %120 = vector.extract_strided_slice %74 {offsets = [2, 0], sizes = [1, 256], strides = [1, 1]} : vector<4x256xf32> to vector<1x256xf32>
    %121 = vector.extract_strided_slice %68 {offsets = [2, 0], sizes = [1, 256], strides = [1, 1]} : vector<4x256xf32> to vector<1x256xf32>
    %122 = vector.shape_cast %23 : vector<16x1xi1> to vector<16x1xi1>
    %123 = vector.broadcast %122 : vector<16x1xi1> to vector<16x256xi1>
    %124 = vector.shape_cast %120 : vector<1x256xf32> to vector<1x256xf32>
    %125 = vector.broadcast %124 : vector<1x256xf32> to vector<16x256xf32>
    %126 = vector.shape_cast %121 : vector<1x256xf32> to vector<1x256xf32>
    %127 = vector.broadcast %126 : vector<1x256xf32> to vector<16x256xf32>
    %128 = arith.select %123, %125, %127 : vector<16x256xi1>, vector<16x256xf32>
    %129 = vector.extract_strided_slice %77 {offsets = [2, 0], sizes = [1, 256], strides = [1, 1]} : vector<4x256xf32> to vector<1x256xf32>
    %130 = vector.extract_strided_slice %71 {offsets = [2, 0], sizes = [1, 256], strides = [1, 1]} : vector<4x256xf32> to vector<1x256xf32>
    %131 = vector.shape_cast %23 : vector<16x1xi1> to vector<16x1xi1>
    %132 = vector.broadcast %131 : vector<16x1xi1> to vector<16x256xi1>
    %133 = vector.shape_cast %129 : vector<1x256xf32> to vector<1x256xf32>
    %134 = vector.broadcast %133 : vector<1x256xf32> to vector<16x256xf32>
    %135 = vector.shape_cast %130 : vector<1x256xf32> to vector<1x256xf32>
    %136 = vector.broadcast %135 : vector<1x256xf32> to vector<16x256xf32>
    %137 = arith.select %132, %134, %136 : vector<16x256xi1>, vector<16x256xf32>
    %138 = arith.mulf %116, %128 : vector<16x256xf32>
    %139 = arith.mulf %119, %137 : vector<16x256xf32>
    %140 = arith.subf %138, %139 : vector<16x256xf32>
    %141 = arith.mulf %116, %137 : vector<16x256xf32>
    %142 = arith.mulf %119, %128 : vector<16x256xf32>
    %143 = arith.addf %141, %142 : vector<16x256xf32>
    %144 = vector.extract_strided_slice %74 {offsets = [3, 0], sizes = [1, 256], strides = [1, 1]} : vector<4x256xf32> to vector<1x256xf32>
    %145 = vector.extract_strided_slice %68 {offsets = [3, 0], sizes = [1, 256], strides = [1, 1]} : vector<4x256xf32> to vector<1x256xf32>
    %146 = vector.shape_cast %29 : vector<16x1xi1> to vector<16x1xi1>
    %147 = vector.broadcast %146 : vector<16x1xi1> to vector<16x256xi1>
    %148 = vector.shape_cast %144 : vector<1x256xf32> to vector<1x256xf32>
    %149 = vector.broadcast %148 : vector<1x256xf32> to vector<16x256xf32>
    %150 = vector.shape_cast %145 : vector<1x256xf32> to vector<1x256xf32>
    %151 = vector.broadcast %150 : vector<1x256xf32> to vector<16x256xf32>
    %152 = arith.select %147, %149, %151 : vector<16x256xi1>, vector<16x256xf32>
    %153 = vector.extract_strided_slice %77 {offsets = [3, 0], sizes = [1, 256], strides = [1, 1]} : vector<4x256xf32> to vector<1x256xf32>
    %154 = vector.extract_strided_slice %71 {offsets = [3, 0], sizes = [1, 256], strides = [1, 1]} : vector<4x256xf32> to vector<1x256xf32>
    %155 = vector.shape_cast %29 : vector<16x1xi1> to vector<16x1xi1>
    %156 = vector.broadcast %155 : vector<16x1xi1> to vector<16x256xi1>
    %157 = vector.shape_cast %153 : vector<1x256xf32> to vector<1x256xf32>
    %158 = vector.broadcast %157 : vector<1x256xf32> to vector<16x256xf32>
    %159 = vector.shape_cast %154 : vector<1x256xf32> to vector<1x256xf32>
    %160 = vector.broadcast %159 : vector<1x256xf32> to vector<16x256xf32>
    %161 = arith.select %156, %158, %160 : vector<16x256xi1>, vector<16x256xf32>
    %162 = arith.mulf %140, %152 : vector<16x256xf32>
    %163 = arith.mulf %143, %161 : vector<16x256xf32>
    %164 = arith.subf %162, %163 : vector<16x256xf32>
    %165 = arith.mulf %140, %161 : vector<16x256xf32>
    %166 = arith.mulf %143, %152 : vector<16x256xf32>
    %167 = arith.addf %165, %166 : vector<16x256xf32>
    %168 = tpu.concatenate %164, %167 in 0 : vector<16x256xf32>, vector<16x256xf32> -> vector<32x256xf32>
    %cst_20 = arith.constant dense<0.000000e+00> : vector<32x256xf32>
    %169 = tpu.matmul %30, %168, %cst_20 {dimension_numbers = #tpu.dot_dimension_numbers<[1], [0], [0], [1], [0, 0, 1, 1], [], []>} : vector<32x32xf32>, vector<32x256xf32>, vector<32x256xf32> -> vector<32x256xf32>
    %170 = arith.mulf %169, %169 : vector<32x256xf32>
    %cst_21 = arith.constant dense<0.000000e+00> : vector<16x256xf32>
    %171 = tpu.matmul %31, %170, %cst_21 {dimension_numbers = #tpu.dot_dimension_numbers<[1], [0], [0], [1], [0, 0, 1, 1], [], []>} : vector<16x32xf32>, vector<32x256xf32>, vector<16x256xf32> -> vector<16x256xf32>
    %172 = arith.addf %171, %4 : vector<16x256xf32>
    %cst_22 = arith.constant 5.000000e-01 : f32
    %173 = vector.broadcast %cst_22 : f32 to vector<16x256xf32>
    %174 = arith.mulf %173, %172 : vector<16x256xf32>
    %175 = math.cos %174 : vector<16x256xf32>
    %cst_23 = arith.constant 5.000000e-01 : f32
    %176 = vector.broadcast %cst_23 : f32 to vector<16x256xf32>
    %177 = arith.mulf %176, %172 : vector<16x256xf32>
    %178 = math.sin %177 : vector<16x256xf32>
    %179 = vector.extract_strided_slice %175 {offsets = [0, 0], sizes = [4, 256], strides = [1, 1]} : vector<16x256xf32> to vector<4x256xf32>
    %180 = vector.extract_strided_slice %175 {offsets = [4, 0], sizes = [4, 256], strides = [1, 1]} : vector<16x256xf32> to vector<4x256xf32>
    %181 = vector.extract_strided_slice %175 {offsets = [8, 0], sizes = [4, 256], strides = [1, 1]} : vector<16x256xf32> to vector<4x256xf32>
    %182 = vector.extract_strided_slice %175 {offsets = [12, 0], sizes = [4, 256], strides = [1, 1]} : vector<16x256xf32> to vector<4x256xf32>
    %183 = vector.extract_strided_slice %178 {offsets = [0, 0], sizes = [4, 256], strides = [1, 1]} : vector<16x256xf32> to vector<4x256xf32>
    %184 = vector.extract_strided_slice %178 {offsets = [4, 0], sizes = [4, 256], strides = [1, 1]} : vector<16x256xf32> to vector<4x256xf32>
    %185 = vector.extract_strided_slice %178 {offsets = [8, 0], sizes = [4, 256], strides = [1, 1]} : vector<16x256xf32> to vector<4x256xf32>
    %186 = vector.extract_strided_slice %178 {offsets = [12, 0], sizes = [4, 256], strides = [1, 1]} : vector<16x256xf32> to vector<4x256xf32>
    %187 = arith.mulf %179, %180 : vector<4x256xf32>
    %188 = arith.mulf %179, %184 : vector<4x256xf32>
    %cst_24 = arith.constant 0.000000e+00 : f32
    %189 = vector.broadcast %cst_24 : f32 to vector<4x256xf32>
    %190 = arith.subf %189, %188 : vector<4x256xf32>
    %191 = arith.mulf %183, %180 : vector<4x256xf32>
    %192 = arith.mulf %183, %184 : vector<4x256xf32>
    %193 = arith.mulf %181, %187 : vector<4x256xf32>
    %194 = arith.mulf %185, %192 : vector<4x256xf32>
    %195 = arith.addf %193, %194 : vector<4x256xf32>
    %196 = arith.mulf %181, %190 : vector<4x256xf32>
    %197 = arith.mulf %185, %191 : vector<4x256xf32>
    %198 = arith.subf %196, %197 : vector<4x256xf32>
    %199 = arith.mulf %185, %190 : vector<4x256xf32>
    %200 = arith.mulf %181, %191 : vector<4x256xf32>
    %201 = arith.addf %199, %200 : vector<4x256xf32>
    %202 = arith.mulf %181, %192 : vector<4x256xf32>
    %203 = arith.mulf %185, %187 : vector<4x256xf32>
    %204 = arith.subf %202, %203 : vector<4x256xf32>
    %205 = arith.mulf %182, %195 : vector<4x256xf32>
    %206 = arith.mulf %186, %201 : vector<4x256xf32>
    %207 = arith.subf %205, %206 : vector<4x256xf32>
    %208 = arith.mulf %182, %198 : vector<4x256xf32>
    %209 = arith.mulf %186, %204 : vector<4x256xf32>
    %210 = arith.subf %208, %209 : vector<4x256xf32>
    %211 = arith.mulf %186, %195 : vector<4x256xf32>
    %212 = arith.mulf %182, %201 : vector<4x256xf32>
    %213 = arith.addf %211, %212 : vector<4x256xf32>
    %214 = arith.mulf %186, %198 : vector<4x256xf32>
    %215 = arith.mulf %182, %204 : vector<4x256xf32>
    %216 = arith.addf %214, %215 : vector<4x256xf32>
    %217 = vector.extract_strided_slice %213 {offsets = [0, 0], sizes = [1, 256], strides = [1, 1]} : vector<4x256xf32> to vector<1x256xf32>
    %218 = vector.extract_strided_slice %207 {offsets = [0, 0], sizes = [1, 256], strides = [1, 1]} : vector<4x256xf32> to vector<1x256xf32>
    %219 = vector.shape_cast %11 : vector<16x1xi1> to vector<16x1xi1>
    %220 = vector.broadcast %219 : vector<16x1xi1> to vector<16x256xi1>
    %221 = vector.shape_cast %217 : vector<1x256xf32> to vector<1x256xf32>
    %222 = vector.broadcast %221 : vector<1x256xf32> to vector<16x256xf32>
    %223 = vector.shape_cast %218 : vector<1x256xf32> to vector<1x256xf32>
    %224 = vector.broadcast %223 : vector<1x256xf32> to vector<16x256xf32>
    %225 = arith.select %220, %222, %224 : vector<16x256xi1>, vector<16x256xf32>
    %226 = vector.extract_strided_slice %216 {offsets = [0, 0], sizes = [1, 256], strides = [1, 1]} : vector<4x256xf32> to vector<1x256xf32>
    %227 = vector.extract_strided_slice %210 {offsets = [0, 0], sizes = [1, 256], strides = [1, 1]} : vector<4x256xf32> to vector<1x256xf32>
    %228 = vector.shape_cast %11 : vector<16x1xi1> to vector<16x1xi1>
    %229 = vector.broadcast %228 : vector<16x1xi1> to vector<16x256xi1>
    %230 = vector.shape_cast %226 : vector<1x256xf32> to vector<1x256xf32>
    %231 = vector.broadcast %230 : vector<1x256xf32> to vector<16x256xf32>
    %232 = vector.shape_cast %227 : vector<1x256xf32> to vector<1x256xf32>
    %233 = vector.broadcast %232 : vector<1x256xf32> to vector<16x256xf32>
    %234 = arith.select %229, %231, %233 : vector<16x256xi1>, vector<16x256xf32>
    %235 = vector.extract_strided_slice %213 {offsets = [1, 0], sizes = [1, 256], strides = [1, 1]} : vector<4x256xf32> to vector<1x256xf32>
    %236 = vector.extract_strided_slice %207 {offsets = [1, 0], sizes = [1, 256], strides = [1, 1]} : vector<4x256xf32> to vector<1x256xf32>
    %237 = vector.shape_cast %17 : vector<16x1xi1> to vector<16x1xi1>
    %238 = vector.broadcast %237 : vector<16x1xi1> to vector<16x256xi1>
    %239 = vector.shape_cast %235 : vector<1x256xf32> to vector<1x256xf32>
    %240 = vector.broadcast %239 : vector<1x256xf32> to vector<16x256xf32>
    %241 = vector.shape_cast %236 : vector<1x256xf32> to vector<1x256xf32>
    %242 = vector.broadcast %241 : vector<1x256xf32> to vector<16x256xf32>
    %243 = arith.select %238, %240, %242 : vector<16x256xi1>, vector<16x256xf32>
    %244 = vector.extract_strided_slice %216 {offsets = [1, 0], sizes = [1, 256], strides = [1, 1]} : vector<4x256xf32> to vector<1x256xf32>
    %245 = vector.extract_strided_slice %210 {offsets = [1, 0], sizes = [1, 256], strides = [1, 1]} : vector<4x256xf32> to vector<1x256xf32>
    %246 = vector.shape_cast %17 : vector<16x1xi1> to vector<16x1xi1>
    %247 = vector.broadcast %246 : vector<16x1xi1> to vector<16x256xi1>
    %248 = vector.shape_cast %244 : vector<1x256xf32> to vector<1x256xf32>
    %249 = vector.broadcast %248 : vector<1x256xf32> to vector<16x256xf32>
    %250 = vector.shape_cast %245 : vector<1x256xf32> to vector<1x256xf32>
    %251 = vector.broadcast %250 : vector<1x256xf32> to vector<16x256xf32>
    %252 = arith.select %247, %249, %251 : vector<16x256xi1>, vector<16x256xf32>
    %253 = arith.mulf %225, %243 : vector<16x256xf32>
    %254 = arith.mulf %234, %252 : vector<16x256xf32>
    %255 = arith.subf %253, %254 : vector<16x256xf32>
    %256 = arith.mulf %225, %252 : vector<16x256xf32>
    %257 = arith.mulf %234, %243 : vector<16x256xf32>
    %258 = arith.addf %256, %257 : vector<16x256xf32>
    %259 = vector.extract_strided_slice %213 {offsets = [2, 0], sizes = [1, 256], strides = [1, 1]} : vector<4x256xf32> to vector<1x256xf32>
    %260 = vector.extract_strided_slice %207 {offsets = [2, 0], sizes = [1, 256], strides = [1, 1]} : vector<4x256xf32> to vector<1x256xf32>
    %261 = vector.shape_cast %23 : vector<16x1xi1> to vector<16x1xi1>
    %262 = vector.broadcast %261 : vector<16x1xi1> to vector<16x256xi1>
    %263 = vector.shape_cast %259 : vector<1x256xf32> to vector<1x256xf32>
    %264 = vector.broadcast %263 : vector<1x256xf32> to vector<16x256xf32>
    %265 = vector.shape_cast %260 : vector<1x256xf32> to vector<1x256xf32>
    %266 = vector.broadcast %265 : vector<1x256xf32> to vector<16x256xf32>
    %267 = arith.select %262, %264, %266 : vector<16x256xi1>, vector<16x256xf32>
    %268 = vector.extract_strided_slice %216 {offsets = [2, 0], sizes = [1, 256], strides = [1, 1]} : vector<4x256xf32> to vector<1x256xf32>
    %269 = vector.extract_strided_slice %210 {offsets = [2, 0], sizes = [1, 256], strides = [1, 1]} : vector<4x256xf32> to vector<1x256xf32>
    %270 = vector.shape_cast %23 : vector<16x1xi1> to vector<16x1xi1>
    %271 = vector.broadcast %270 : vector<16x1xi1> to vector<16x256xi1>
    %272 = vector.shape_cast %268 : vector<1x256xf32> to vector<1x256xf32>
    %273 = vector.broadcast %272 : vector<1x256xf32> to vector<16x256xf32>
    %274 = vector.shape_cast %269 : vector<1x256xf32> to vector<1x256xf32>
    %275 = vector.broadcast %274 : vector<1x256xf32> to vector<16x256xf32>
    %276 = arith.select %271, %273, %275 : vector<16x256xi1>, vector<16x256xf32>
    %277 = arith.mulf %255, %267 : vector<16x256xf32>
    %278 = arith.mulf %258, %276 : vector<16x256xf32>
    %279 = arith.subf %277, %278 : vector<16x256xf32>
    %280 = arith.mulf %255, %276 : vector<16x256xf32>
    %281 = arith.mulf %258, %267 : vector<16x256xf32>
    %282 = arith.addf %280, %281 : vector<16x256xf32>
    %283 = vector.extract_strided_slice %213 {offsets = [3, 0], sizes = [1, 256], strides = [1, 1]} : vector<4x256xf32> to vector<1x256xf32>
    %284 = vector.extract_strided_slice %207 {offsets = [3, 0], sizes = [1, 256], strides = [1, 1]} : vector<4x256xf32> to vector<1x256xf32>
    %285 = vector.shape_cast %29 : vector<16x1xi1> to vector<16x1xi1>
    %286 = vector.broadcast %285 : vector<16x1xi1> to vector<16x256xi1>
    %287 = vector.shape_cast %283 : vector<1x256xf32> to vector<1x256xf32>
    %288 = vector.broadcast %287 : vector<1x256xf32> to vector<16x256xf32>
    %289 = vector.shape_cast %284 : vector<1x256xf32> to vector<1x256xf32>
    %290 = vector.broadcast %289 : vector<1x256xf32> to vector<16x256xf32>
    %291 = arith.select %286, %288, %290 : vector<16x256xi1>, vector<16x256xf32>
    %292 = vector.extract_strided_slice %216 {offsets = [3, 0], sizes = [1, 256], strides = [1, 1]} : vector<4x256xf32> to vector<1x256xf32>
    %293 = vector.extract_strided_slice %210 {offsets = [3, 0], sizes = [1, 256], strides = [1, 1]} : vector<4x256xf32> to vector<1x256xf32>
    %294 = vector.shape_cast %29 : vector<16x1xi1> to vector<16x1xi1>
    %295 = vector.broadcast %294 : vector<16x1xi1> to vector<16x256xi1>
    %296 = vector.shape_cast %292 : vector<1x256xf32> to vector<1x256xf32>
    %297 = vector.broadcast %296 : vector<1x256xf32> to vector<16x256xf32>
    %298 = vector.shape_cast %293 : vector<1x256xf32> to vector<1x256xf32>
    %299 = vector.broadcast %298 : vector<1x256xf32> to vector<16x256xf32>
    %300 = arith.select %295, %297, %299 : vector<16x256xi1>, vector<16x256xf32>
    %301 = arith.mulf %279, %291 : vector<16x256xf32>
    %302 = arith.mulf %282, %300 : vector<16x256xf32>
    %303 = arith.subf %301, %302 : vector<16x256xf32>
    %304 = arith.mulf %279, %300 : vector<16x256xf32>
    %305 = arith.mulf %282, %291 : vector<16x256xf32>
    %306 = arith.addf %304, %305 : vector<16x256xf32>
    %307 = tpu.concatenate %303, %306 in 0 : vector<16x256xf32>, vector<16x256xf32> -> vector<32x256xf32>
    %cst_25 = arith.constant dense<0.000000e+00> : vector<32x256xf32>
    %308 = tpu.matmul %30, %307, %cst_25 {dimension_numbers = #tpu.dot_dimension_numbers<[1], [0], [0], [1], [0, 0, 1, 1], [], []>} : vector<32x32xf32>, vector<32x256xf32>, vector<32x256xf32> -> vector<32x256xf32>
    %309 = arith.mulf %308, %308 : vector<32x256xf32>
    %cst_26 = arith.constant dense<0.000000e+00> : vector<16x256xf32>
    %310 = tpu.matmul %31, %309, %cst_26 {dimension_numbers = #tpu.dot_dimension_numbers<[1], [0], [0], [1], [0, 0, 1, 1], [], []>} : vector<16x32xf32>, vector<32x256xf32>, vector<16x256xf32> -> vector<16x256xf32>
    %311 = arith.addf %310, %4 : vector<16x256xf32>
    %cst_27 = arith.constant 5.000000e-01 : f32
    %312 = vector.broadcast %cst_27 : f32 to vector<16x256xf32>
    %313 = arith.mulf %312, %311 : vector<16x256xf32>
    %314 = math.cos %313 : vector<16x256xf32>
    %cst_28 = arith.constant 5.000000e-01 : f32
    %315 = vector.broadcast %cst_28 : f32 to vector<16x256xf32>
    %316 = arith.mulf %315, %311 : vector<16x256xf32>
    %317 = math.sin %316 : vector<16x256xf32>
    %318 = vector.extract_strided_slice %314 {offsets = [0, 0], sizes = [4, 256], strides = [1, 1]} : vector<16x256xf32> to vector<4x256xf32>
    %319 = vector.extract_strided_slice %314 {offsets = [4, 0], sizes = [4, 256], strides = [1, 1]} : vector<16x256xf32> to vector<4x256xf32>
    %320 = vector.extract_strided_slice %314 {offsets = [8, 0], sizes = [4, 256], strides = [1, 1]} : vector<16x256xf32> to vector<4x256xf32>
    %321 = vector.extract_strided_slice %314 {offsets = [12, 0], sizes = [4, 256], strides = [1, 1]} : vector<16x256xf32> to vector<4x256xf32>
    %322 = vector.extract_strided_slice %317 {offsets = [0, 0], sizes = [4, 256], strides = [1, 1]} : vector<16x256xf32> to vector<4x256xf32>
    %323 = vector.extract_strided_slice %317 {offsets = [4, 0], sizes = [4, 256], strides = [1, 1]} : vector<16x256xf32> to vector<4x256xf32>
    %324 = vector.extract_strided_slice %317 {offsets = [8, 0], sizes = [4, 256], strides = [1, 1]} : vector<16x256xf32> to vector<4x256xf32>
    %325 = vector.extract_strided_slice %317 {offsets = [12, 0], sizes = [4, 256], strides = [1, 1]} : vector<16x256xf32> to vector<4x256xf32>
    %326 = arith.mulf %318, %319 : vector<4x256xf32>
    %327 = arith.mulf %318, %323 : vector<4x256xf32>
    %cst_29 = arith.constant 0.000000e+00 : f32
    %328 = vector.broadcast %cst_29 : f32 to vector<4x256xf32>
    %329 = arith.subf %328, %327 : vector<4x256xf32>
    %330 = arith.mulf %322, %319 : vector<4x256xf32>
    %331 = arith.mulf %322, %323 : vector<4x256xf32>
    %332 = arith.mulf %320, %326 : vector<4x256xf32>
    %333 = arith.mulf %324, %331 : vector<4x256xf32>
    %334 = arith.addf %332, %333 : vector<4x256xf32>
    %335 = arith.mulf %320, %329 : vector<4x256xf32>
    %336 = arith.mulf %324, %330 : vector<4x256xf32>
    %337 = arith.subf %335, %336 : vector<4x256xf32>
    %338 = arith.mulf %324, %329 : vector<4x256xf32>
    %339 = arith.mulf %320, %330 : vector<4x256xf32>
    %340 = arith.addf %338, %339 : vector<4x256xf32>
    %341 = arith.mulf %320, %331 : vector<4x256xf32>
    %342 = arith.mulf %324, %326 : vector<4x256xf32>
    %343 = arith.subf %341, %342 : vector<4x256xf32>
    %344 = arith.mulf %321, %334 : vector<4x256xf32>
    %345 = arith.mulf %325, %340 : vector<4x256xf32>
    %346 = arith.subf %344, %345 : vector<4x256xf32>
    %347 = arith.mulf %321, %337 : vector<4x256xf32>
    %348 = arith.mulf %325, %343 : vector<4x256xf32>
    %349 = arith.subf %347, %348 : vector<4x256xf32>
    %350 = arith.mulf %325, %334 : vector<4x256xf32>
    %351 = arith.mulf %321, %340 : vector<4x256xf32>
    %352 = arith.addf %350, %351 : vector<4x256xf32>
    %353 = arith.mulf %325, %337 : vector<4x256xf32>
    %354 = arith.mulf %321, %343 : vector<4x256xf32>
    %355 = arith.addf %353, %354 : vector<4x256xf32>
    %356 = vector.extract_strided_slice %352 {offsets = [0, 0], sizes = [1, 256], strides = [1, 1]} : vector<4x256xf32> to vector<1x256xf32>
    %357 = vector.extract_strided_slice %346 {offsets = [0, 0], sizes = [1, 256], strides = [1, 1]} : vector<4x256xf32> to vector<1x256xf32>
    %358 = vector.shape_cast %11 : vector<16x1xi1> to vector<16x1xi1>
    %359 = vector.broadcast %358 : vector<16x1xi1> to vector<16x256xi1>
    %360 = vector.shape_cast %356 : vector<1x256xf32> to vector<1x256xf32>
    %361 = vector.broadcast %360 : vector<1x256xf32> to vector<16x256xf32>
    %362 = vector.shape_cast %357 : vector<1x256xf32> to vector<1x256xf32>
    %363 = vector.broadcast %362 : vector<1x256xf32> to vector<16x256xf32>
    %364 = arith.select %359, %361, %363 : vector<16x256xi1>, vector<16x256xf32>
    %365 = vector.extract_strided_slice %355 {offsets = [0, 0], sizes = [1, 256], strides = [1, 1]} : vector<4x256xf32> to vector<1x256xf32>
    %366 = vector.extract_strided_slice %349 {offsets = [0, 0], sizes = [1, 256], strides = [1, 1]} : vector<4x256xf32> to vector<1x256xf32>
    %367 = vector.shape_cast %11 : vector<16x1xi1> to vector<16x1xi1>
    %368 = vector.broadcast %367 : vector<16x1xi1> to vector<16x256xi1>
    %369 = vector.shape_cast %365 : vector<1x256xf32> to vector<1x256xf32>
    %370 = vector.broadcast %369 : vector<1x256xf32> to vector<16x256xf32>
    %371 = vector.shape_cast %366 : vector<1x256xf32> to vector<1x256xf32>
    %372 = vector.broadcast %371 : vector<1x256xf32> to vector<16x256xf32>
    %373 = arith.select %368, %370, %372 : vector<16x256xi1>, vector<16x256xf32>
    %374 = vector.extract_strided_slice %352 {offsets = [1, 0], sizes = [1, 256], strides = [1, 1]} : vector<4x256xf32> to vector<1x256xf32>
    %375 = vector.extract_strided_slice %346 {offsets = [1, 0], sizes = [1, 256], strides = [1, 1]} : vector<4x256xf32> to vector<1x256xf32>
    %376 = vector.shape_cast %17 : vector<16x1xi1> to vector<16x1xi1>
    %377 = vector.broadcast %376 : vector<16x1xi1> to vector<16x256xi1>
    %378 = vector.shape_cast %374 : vector<1x256xf32> to vector<1x256xf32>
    %379 = vector.broadcast %378 : vector<1x256xf32> to vector<16x256xf32>
    %380 = vector.shape_cast %375 : vector<1x256xf32> to vector<1x256xf32>
    %381 = vector.broadcast %380 : vector<1x256xf32> to vector<16x256xf32>
    %382 = arith.select %377, %379, %381 : vector<16x256xi1>, vector<16x256xf32>
    %383 = vector.extract_strided_slice %355 {offsets = [1, 0], sizes = [1, 256], strides = [1, 1]} : vector<4x256xf32> to vector<1x256xf32>
    %384 = vector.extract_strided_slice %349 {offsets = [1, 0], sizes = [1, 256], strides = [1, 1]} : vector<4x256xf32> to vector<1x256xf32>
    %385 = vector.shape_cast %17 : vector<16x1xi1> to vector<16x1xi1>
    %386 = vector.broadcast %385 : vector<16x1xi1> to vector<16x256xi1>
    %387 = vector.shape_cast %383 : vector<1x256xf32> to vector<1x256xf32>
    %388 = vector.broadcast %387 : vector<1x256xf32> to vector<16x256xf32>
    %389 = vector.shape_cast %384 : vector<1x256xf32> to vector<1x256xf32>
    %390 = vector.broadcast %389 : vector<1x256xf32> to vector<16x256xf32>
    %391 = arith.select %386, %388, %390 : vector<16x256xi1>, vector<16x256xf32>
    %392 = arith.mulf %364, %382 : vector<16x256xf32>
    %393 = arith.mulf %373, %391 : vector<16x256xf32>
    %394 = arith.subf %392, %393 : vector<16x256xf32>
    %395 = arith.mulf %364, %391 : vector<16x256xf32>
    %396 = arith.mulf %373, %382 : vector<16x256xf32>
    %397 = arith.addf %395, %396 : vector<16x256xf32>
    %398 = vector.extract_strided_slice %352 {offsets = [2, 0], sizes = [1, 256], strides = [1, 1]} : vector<4x256xf32> to vector<1x256xf32>
    %399 = vector.extract_strided_slice %346 {offsets = [2, 0], sizes = [1, 256], strides = [1, 1]} : vector<4x256xf32> to vector<1x256xf32>
    %400 = vector.shape_cast %23 : vector<16x1xi1> to vector<16x1xi1>
    %401 = vector.broadcast %400 : vector<16x1xi1> to vector<16x256xi1>
    %402 = vector.shape_cast %398 : vector<1x256xf32> to vector<1x256xf32>
    %403 = vector.broadcast %402 : vector<1x256xf32> to vector<16x256xf32>
    %404 = vector.shape_cast %399 : vector<1x256xf32> to vector<1x256xf32>
    %405 = vector.broadcast %404 : vector<1x256xf32> to vector<16x256xf32>
    %406 = arith.select %401, %403, %405 : vector<16x256xi1>, vector<16x256xf32>
    %407 = vector.extract_strided_slice %355 {offsets = [2, 0], sizes = [1, 256], strides = [1, 1]} : vector<4x256xf32> to vector<1x256xf32>
    %408 = vector.extract_strided_slice %349 {offsets = [2, 0], sizes = [1, 256], strides = [1, 1]} : vector<4x256xf32> to vector<1x256xf32>
    %409 = vector.shape_cast %23 : vector<16x1xi1> to vector<16x1xi1>
    %410 = vector.broadcast %409 : vector<16x1xi1> to vector<16x256xi1>
    %411 = vector.shape_cast %407 : vector<1x256xf32> to vector<1x256xf32>
    %412 = vector.broadcast %411 : vector<1x256xf32> to vector<16x256xf32>
    %413 = vector.shape_cast %408 : vector<1x256xf32> to vector<1x256xf32>
    %414 = vector.broadcast %413 : vector<1x256xf32> to vector<16x256xf32>
    %415 = arith.select %410, %412, %414 : vector<16x256xi1>, vector<16x256xf32>
    %416 = arith.mulf %394, %406 : vector<16x256xf32>
    %417 = arith.mulf %397, %415 : vector<16x256xf32>
    %418 = arith.subf %416, %417 : vector<16x256xf32>
    %419 = arith.mulf %394, %415 : vector<16x256xf32>
    %420 = arith.mulf %397, %406 : vector<16x256xf32>
    %421 = arith.addf %419, %420 : vector<16x256xf32>
    %422 = vector.extract_strided_slice %352 {offsets = [3, 0], sizes = [1, 256], strides = [1, 1]} : vector<4x256xf32> to vector<1x256xf32>
    %423 = vector.extract_strided_slice %346 {offsets = [3, 0], sizes = [1, 256], strides = [1, 1]} : vector<4x256xf32> to vector<1x256xf32>
    %424 = vector.shape_cast %29 : vector<16x1xi1> to vector<16x1xi1>
    %425 = vector.broadcast %424 : vector<16x1xi1> to vector<16x256xi1>
    %426 = vector.shape_cast %422 : vector<1x256xf32> to vector<1x256xf32>
    %427 = vector.broadcast %426 : vector<1x256xf32> to vector<16x256xf32>
    %428 = vector.shape_cast %423 : vector<1x256xf32> to vector<1x256xf32>
    %429 = vector.broadcast %428 : vector<1x256xf32> to vector<16x256xf32>
    %430 = arith.select %425, %427, %429 : vector<16x256xi1>, vector<16x256xf32>
    %431 = vector.extract_strided_slice %355 {offsets = [3, 0], sizes = [1, 256], strides = [1, 1]} : vector<4x256xf32> to vector<1x256xf32>
    %432 = vector.extract_strided_slice %349 {offsets = [3, 0], sizes = [1, 256], strides = [1, 1]} : vector<4x256xf32> to vector<1x256xf32>
    %433 = vector.shape_cast %29 : vector<16x1xi1> to vector<16x1xi1>
    %434 = vector.broadcast %433 : vector<16x1xi1> to vector<16x256xi1>
    %435 = vector.shape_cast %431 : vector<1x256xf32> to vector<1x256xf32>
    %436 = vector.broadcast %435 : vector<1x256xf32> to vector<16x256xf32>
    %437 = vector.shape_cast %432 : vector<1x256xf32> to vector<1x256xf32>
    %438 = vector.broadcast %437 : vector<1x256xf32> to vector<16x256xf32>
    %439 = arith.select %434, %436, %438 : vector<16x256xi1>, vector<16x256xf32>
    %440 = arith.mulf %418, %430 : vector<16x256xf32>
    %441 = arith.mulf %421, %439 : vector<16x256xf32>
    %442 = arith.subf %440, %441 : vector<16x256xf32>
    %443 = arith.mulf %418, %439 : vector<16x256xf32>
    %444 = arith.mulf %421, %430 : vector<16x256xf32>
    %445 = arith.addf %443, %444 : vector<16x256xf32>
    %446 = tpu.concatenate %442, %445 in 0 : vector<16x256xf32>, vector<16x256xf32> -> vector<32x256xf32>
    %cst_30 = arith.constant dense<0.000000e+00> : vector<32x256xf32>
    %447 = tpu.matmul %30, %446, %cst_30 {dimension_numbers = #tpu.dot_dimension_numbers<[1], [0], [0], [1], [0, 0, 1, 1], [], []>} : vector<32x32xf32>, vector<32x256xf32>, vector<32x256xf32> -> vector<32x256xf32>
    %448 = arith.mulf %447, %447 : vector<32x256xf32>
    %cst_31 = arith.constant dense<0.000000e+00> : vector<16x256xf32>
    %449 = tpu.matmul %31, %448, %cst_31 {dimension_numbers = #tpu.dot_dimension_numbers<[1], [0], [0], [1], [0, 0, 1, 1], [], []>} : vector<16x32xf32>, vector<32x256xf32>, vector<16x256xf32> -> vector<16x256xf32>
    %450 = arith.addf %449, %4 : vector<16x256xf32>
    %cst_32 = arith.constant 5.000000e-01 : f32
    %451 = vector.broadcast %cst_32 : f32 to vector<16x256xf32>
    %452 = arith.mulf %451, %450 : vector<16x256xf32>
    %453 = math.cos %452 : vector<16x256xf32>
    %cst_33 = arith.constant 5.000000e-01 : f32
    %454 = vector.broadcast %cst_33 : f32 to vector<16x256xf32>
    %455 = arith.mulf %454, %450 : vector<16x256xf32>
    %456 = math.sin %455 : vector<16x256xf32>
    %457 = vector.extract_strided_slice %453 {offsets = [0, 0], sizes = [4, 256], strides = [1, 1]} : vector<16x256xf32> to vector<4x256xf32>
    %458 = vector.extract_strided_slice %453 {offsets = [4, 0], sizes = [4, 256], strides = [1, 1]} : vector<16x256xf32> to vector<4x256xf32>
    %459 = vector.extract_strided_slice %453 {offsets = [8, 0], sizes = [4, 256], strides = [1, 1]} : vector<16x256xf32> to vector<4x256xf32>
    %460 = vector.extract_strided_slice %453 {offsets = [12, 0], sizes = [4, 256], strides = [1, 1]} : vector<16x256xf32> to vector<4x256xf32>
    %461 = vector.extract_strided_slice %456 {offsets = [0, 0], sizes = [4, 256], strides = [1, 1]} : vector<16x256xf32> to vector<4x256xf32>
    %462 = vector.extract_strided_slice %456 {offsets = [4, 0], sizes = [4, 256], strides = [1, 1]} : vector<16x256xf32> to vector<4x256xf32>
    %463 = vector.extract_strided_slice %456 {offsets = [8, 0], sizes = [4, 256], strides = [1, 1]} : vector<16x256xf32> to vector<4x256xf32>
    %464 = vector.extract_strided_slice %456 {offsets = [12, 0], sizes = [4, 256], strides = [1, 1]} : vector<16x256xf32> to vector<4x256xf32>
    %465 = arith.mulf %457, %458 : vector<4x256xf32>
    %466 = arith.mulf %457, %462 : vector<4x256xf32>
    %cst_34 = arith.constant 0.000000e+00 : f32
    %467 = vector.broadcast %cst_34 : f32 to vector<4x256xf32>
    %468 = arith.subf %467, %466 : vector<4x256xf32>
    %469 = arith.mulf %461, %458 : vector<4x256xf32>
    %470 = arith.mulf %461, %462 : vector<4x256xf32>
    %471 = arith.mulf %459, %465 : vector<4x256xf32>
    %472 = arith.mulf %463, %470 : vector<4x256xf32>
    %473 = arith.addf %471, %472 : vector<4x256xf32>
    %474 = arith.mulf %459, %468 : vector<4x256xf32>
    %475 = arith.mulf %463, %469 : vector<4x256xf32>
    %476 = arith.subf %474, %475 : vector<4x256xf32>
    %477 = arith.mulf %463, %468 : vector<4x256xf32>
    %478 = arith.mulf %459, %469 : vector<4x256xf32>
    %479 = arith.addf %477, %478 : vector<4x256xf32>
    %480 = arith.mulf %459, %470 : vector<4x256xf32>
    %481 = arith.mulf %463, %465 : vector<4x256xf32>
    %482 = arith.subf %480, %481 : vector<4x256xf32>
    %483 = arith.mulf %460, %473 : vector<4x256xf32>
    %484 = arith.mulf %464, %479 : vector<4x256xf32>
    %485 = arith.subf %483, %484 : vector<4x256xf32>
    %486 = arith.mulf %460, %476 : vector<4x256xf32>
    %487 = arith.mulf %464, %482 : vector<4x256xf32>
    %488 = arith.subf %486, %487 : vector<4x256xf32>
    %489 = arith.mulf %464, %473 : vector<4x256xf32>
    %490 = arith.mulf %460, %479 : vector<4x256xf32>
    %491 = arith.addf %489, %490 : vector<4x256xf32>
    %492 = arith.mulf %464, %476 : vector<4x256xf32>
    %493 = arith.mulf %460, %482 : vector<4x256xf32>
    %494 = arith.addf %492, %493 : vector<4x256xf32>
    %495 = vector.extract_strided_slice %491 {offsets = [0, 0], sizes = [1, 256], strides = [1, 1]} : vector<4x256xf32> to vector<1x256xf32>
    %496 = vector.extract_strided_slice %485 {offsets = [0, 0], sizes = [1, 256], strides = [1, 1]} : vector<4x256xf32> to vector<1x256xf32>
    %497 = vector.shape_cast %11 : vector<16x1xi1> to vector<16x1xi1>
    %498 = vector.broadcast %497 : vector<16x1xi1> to vector<16x256xi1>
    %499 = vector.shape_cast %495 : vector<1x256xf32> to vector<1x256xf32>
    %500 = vector.broadcast %499 : vector<1x256xf32> to vector<16x256xf32>
    %501 = vector.shape_cast %496 : vector<1x256xf32> to vector<1x256xf32>
    %502 = vector.broadcast %501 : vector<1x256xf32> to vector<16x256xf32>
    %503 = arith.select %498, %500, %502 : vector<16x256xi1>, vector<16x256xf32>
    %504 = vector.extract_strided_slice %494 {offsets = [0, 0], sizes = [1, 256], strides = [1, 1]} : vector<4x256xf32> to vector<1x256xf32>
    %505 = vector.extract_strided_slice %488 {offsets = [0, 0], sizes = [1, 256], strides = [1, 1]} : vector<4x256xf32> to vector<1x256xf32>
    %506 = vector.shape_cast %11 : vector<16x1xi1> to vector<16x1xi1>
    %507 = vector.broadcast %506 : vector<16x1xi1> to vector<16x256xi1>
    %508 = vector.shape_cast %504 : vector<1x256xf32> to vector<1x256xf32>
    %509 = vector.broadcast %508 : vector<1x256xf32> to vector<16x256xf32>
    %510 = vector.shape_cast %505 : vector<1x256xf32> to vector<1x256xf32>
    %511 = vector.broadcast %510 : vector<1x256xf32> to vector<16x256xf32>
    %512 = arith.select %507, %509, %511 : vector<16x256xi1>, vector<16x256xf32>
    %513 = vector.extract_strided_slice %491 {offsets = [1, 0], sizes = [1, 256], strides = [1, 1]} : vector<4x256xf32> to vector<1x256xf32>
    %514 = vector.extract_strided_slice %485 {offsets = [1, 0], sizes = [1, 256], strides = [1, 1]} : vector<4x256xf32> to vector<1x256xf32>
    %515 = vector.shape_cast %17 : vector<16x1xi1> to vector<16x1xi1>
    %516 = vector.broadcast %515 : vector<16x1xi1> to vector<16x256xi1>
    %517 = vector.shape_cast %513 : vector<1x256xf32> to vector<1x256xf32>
    %518 = vector.broadcast %517 : vector<1x256xf32> to vector<16x256xf32>
    %519 = vector.shape_cast %514 : vector<1x256xf32> to vector<1x256xf32>
    %520 = vector.broadcast %519 : vector<1x256xf32> to vector<16x256xf32>
    %521 = arith.select %516, %518, %520 : vector<16x256xi1>, vector<16x256xf32>
    %522 = vector.extract_strided_slice %494 {offsets = [1, 0], sizes = [1, 256], strides = [1, 1]} : vector<4x256xf32> to vector<1x256xf32>
    %523 = vector.extract_strided_slice %488 {offsets = [1, 0], sizes = [1, 256], strides = [1, 1]} : vector<4x256xf32> to vector<1x256xf32>
    %524 = vector.shape_cast %17 : vector<16x1xi1> to vector<16x1xi1>
    %525 = vector.broadcast %524 : vector<16x1xi1> to vector<16x256xi1>
    %526 = vector.shape_cast %522 : vector<1x256xf32> to vector<1x256xf32>
    %527 = vector.broadcast %526 : vector<1x256xf32> to vector<16x256xf32>
    %528 = vector.shape_cast %523 : vector<1x256xf32> to vector<1x256xf32>
    %529 = vector.broadcast %528 : vector<1x256xf32> to vector<16x256xf32>
    %530 = arith.select %525, %527, %529 : vector<16x256xi1>, vector<16x256xf32>
    %531 = arith.mulf %503, %521 : vector<16x256xf32>
    %532 = arith.mulf %512, %530 : vector<16x256xf32>
    %533 = arith.subf %531, %532 : vector<16x256xf32>
    %534 = arith.mulf %503, %530 : vector<16x256xf32>
    %535 = arith.mulf %512, %521 : vector<16x256xf32>
    %536 = arith.addf %534, %535 : vector<16x256xf32>
    %537 = vector.extract_strided_slice %491 {offsets = [2, 0], sizes = [1, 256], strides = [1, 1]} : vector<4x256xf32> to vector<1x256xf32>
    %538 = vector.extract_strided_slice %485 {offsets = [2, 0], sizes = [1, 256], strides = [1, 1]} : vector<4x256xf32> to vector<1x256xf32>
    %539 = vector.shape_cast %23 : vector<16x1xi1> to vector<16x1xi1>
    %540 = vector.broadcast %539 : vector<16x1xi1> to vector<16x256xi1>
    %541 = vector.shape_cast %537 : vector<1x256xf32> to vector<1x256xf32>
    %542 = vector.broadcast %541 : vector<1x256xf32> to vector<16x256xf32>
    %543 = vector.shape_cast %538 : vector<1x256xf32> to vector<1x256xf32>
    %544 = vector.broadcast %543 : vector<1x256xf32> to vector<16x256xf32>
    %545 = arith.select %540, %542, %544 : vector<16x256xi1>, vector<16x256xf32>
    %546 = vector.extract_strided_slice %494 {offsets = [2, 0], sizes = [1, 256], strides = [1, 1]} : vector<4x256xf32> to vector<1x256xf32>
    %547 = vector.extract_strided_slice %488 {offsets = [2, 0], sizes = [1, 256], strides = [1, 1]} : vector<4x256xf32> to vector<1x256xf32>
    %548 = vector.shape_cast %23 : vector<16x1xi1> to vector<16x1xi1>
    %549 = vector.broadcast %548 : vector<16x1xi1> to vector<16x256xi1>
    %550 = vector.shape_cast %546 : vector<1x256xf32> to vector<1x256xf32>
    %551 = vector.broadcast %550 : vector<1x256xf32> to vector<16x256xf32>
    %552 = vector.shape_cast %547 : vector<1x256xf32> to vector<1x256xf32>
    %553 = vector.broadcast %552 : vector<1x256xf32> to vector<16x256xf32>
    %554 = arith.select %549, %551, %553 : vector<16x256xi1>, vector<16x256xf32>
    %555 = arith.mulf %533, %545 : vector<16x256xf32>
    %556 = arith.mulf %536, %554 : vector<16x256xf32>
    %557 = arith.subf %555, %556 : vector<16x256xf32>
    %558 = arith.mulf %533, %554 : vector<16x256xf32>
    %559 = arith.mulf %536, %545 : vector<16x256xf32>
    %560 = arith.addf %558, %559 : vector<16x256xf32>
    %561 = vector.extract_strided_slice %491 {offsets = [3, 0], sizes = [1, 256], strides = [1, 1]} : vector<4x256xf32> to vector<1x256xf32>
    %562 = vector.extract_strided_slice %485 {offsets = [3, 0], sizes = [1, 256], strides = [1, 1]} : vector<4x256xf32> to vector<1x256xf32>
    %563 = vector.shape_cast %29 : vector<16x1xi1> to vector<16x1xi1>
    %564 = vector.broadcast %563 : vector<16x1xi1> to vector<16x256xi1>
    %565 = vector.shape_cast %561 : vector<1x256xf32> to vector<1x256xf32>
    %566 = vector.broadcast %565 : vector<1x256xf32> to vector<16x256xf32>
    %567 = vector.shape_cast %562 : vector<1x256xf32> to vector<1x256xf32>
    %568 = vector.broadcast %567 : vector<1x256xf32> to vector<16x256xf32>
    %569 = arith.select %564, %566, %568 : vector<16x256xi1>, vector<16x256xf32>
    %570 = vector.extract_strided_slice %494 {offsets = [3, 0], sizes = [1, 256], strides = [1, 1]} : vector<4x256xf32> to vector<1x256xf32>
    %571 = vector.extract_strided_slice %488 {offsets = [3, 0], sizes = [1, 256], strides = [1, 1]} : vector<4x256xf32> to vector<1x256xf32>
    %572 = vector.shape_cast %29 : vector<16x1xi1> to vector<16x1xi1>
    %573 = vector.broadcast %572 : vector<16x1xi1> to vector<16x256xi1>
    %574 = vector.shape_cast %570 : vector<1x256xf32> to vector<1x256xf32>
    %575 = vector.broadcast %574 : vector<1x256xf32> to vector<16x256xf32>
    %576 = vector.shape_cast %571 : vector<1x256xf32> to vector<1x256xf32>
    %577 = vector.broadcast %576 : vector<1x256xf32> to vector<16x256xf32>
    %578 = arith.select %573, %575, %577 : vector<16x256xi1>, vector<16x256xf32>
    %579 = arith.mulf %557, %569 : vector<16x256xf32>
    %580 = arith.mulf %560, %578 : vector<16x256xf32>
    %581 = arith.subf %579, %580 : vector<16x256xf32>
    %582 = arith.mulf %557, %578 : vector<16x256xf32>
    %583 = arith.mulf %560, %569 : vector<16x256xf32>
    %584 = arith.addf %582, %583 : vector<16x256xf32>
    %585 = tpu.concatenate %581, %584 in 0 : vector<16x256xf32>, vector<16x256xf32> -> vector<32x256xf32>
    %cst_35 = arith.constant dense<0.000000e+00> : vector<32x256xf32>
    %586 = tpu.matmul %30, %585, %cst_35 {dimension_numbers = #tpu.dot_dimension_numbers<[1], [0], [0], [1], [0, 0, 1, 1], [], []>} : vector<32x32xf32>, vector<32x256xf32>, vector<32x256xf32> -> vector<32x256xf32>
    %587 = arith.mulf %586, %586 : vector<32x256xf32>
    %cst_36 = arith.constant dense<0.000000e+00> : vector<16x256xf32>
    %588 = tpu.matmul %31, %587, %cst_36 {dimension_numbers = #tpu.dot_dimension_numbers<[1], [0], [0], [1], [0, 0, 1, 1], [], []>} : vector<16x32xf32>, vector<32x256xf32>, vector<16x256xf32> -> vector<16x256xf32>
    %589 = arith.addf %588, %4 : vector<16x256xf32>
    %cst_37 = arith.constant 5.000000e-01 : f32
    %590 = vector.broadcast %cst_37 : f32 to vector<16x256xf32>
    %591 = arith.mulf %590, %589 : vector<16x256xf32>
    %592 = math.cos %591 : vector<16x256xf32>
    %cst_38 = arith.constant 5.000000e-01 : f32
    %593 = vector.broadcast %cst_38 : f32 to vector<16x256xf32>
    %594 = arith.mulf %593, %589 : vector<16x256xf32>
    %595 = math.sin %594 : vector<16x256xf32>
    %596 = vector.extract_strided_slice %592 {offsets = [0, 0], sizes = [4, 256], strides = [1, 1]} : vector<16x256xf32> to vector<4x256xf32>
    %597 = vector.extract_strided_slice %592 {offsets = [4, 0], sizes = [4, 256], strides = [1, 1]} : vector<16x256xf32> to vector<4x256xf32>
    %598 = vector.extract_strided_slice %592 {offsets = [8, 0], sizes = [4, 256], strides = [1, 1]} : vector<16x256xf32> to vector<4x256xf32>
    %599 = vector.extract_strided_slice %592 {offsets = [12, 0], sizes = [4, 256], strides = [1, 1]} : vector<16x256xf32> to vector<4x256xf32>
    %600 = vector.extract_strided_slice %595 {offsets = [0, 0], sizes = [4, 256], strides = [1, 1]} : vector<16x256xf32> to vector<4x256xf32>
    %601 = vector.extract_strided_slice %595 {offsets = [4, 0], sizes = [4, 256], strides = [1, 1]} : vector<16x256xf32> to vector<4x256xf32>
    %602 = vector.extract_strided_slice %595 {offsets = [8, 0], sizes = [4, 256], strides = [1, 1]} : vector<16x256xf32> to vector<4x256xf32>
    %603 = vector.extract_strided_slice %595 {offsets = [12, 0], sizes = [4, 256], strides = [1, 1]} : vector<16x256xf32> to vector<4x256xf32>
    %604 = arith.mulf %596, %597 : vector<4x256xf32>
    %605 = arith.mulf %596, %601 : vector<4x256xf32>
    %cst_39 = arith.constant 0.000000e+00 : f32
    %606 = vector.broadcast %cst_39 : f32 to vector<4x256xf32>
    %607 = arith.subf %606, %605 : vector<4x256xf32>
    %608 = arith.mulf %600, %597 : vector<4x256xf32>
    %609 = arith.mulf %600, %601 : vector<4x256xf32>
    %610 = arith.mulf %598, %604 : vector<4x256xf32>
    %611 = arith.mulf %602, %609 : vector<4x256xf32>
    %612 = arith.addf %610, %611 : vector<4x256xf32>
    %613 = arith.mulf %598, %607 : vector<4x256xf32>
    %614 = arith.mulf %602, %608 : vector<4x256xf32>
    %615 = arith.subf %613, %614 : vector<4x256xf32>
    %616 = arith.mulf %602, %607 : vector<4x256xf32>
    %617 = arith.mulf %598, %608 : vector<4x256xf32>
    %618 = arith.addf %616, %617 : vector<4x256xf32>
    %619 = arith.mulf %598, %609 : vector<4x256xf32>
    %620 = arith.mulf %602, %604 : vector<4x256xf32>
    %621 = arith.subf %619, %620 : vector<4x256xf32>
    %622 = arith.mulf %599, %612 : vector<4x256xf32>
    %623 = arith.mulf %603, %618 : vector<4x256xf32>
    %624 = arith.subf %622, %623 : vector<4x256xf32>
    %625 = arith.mulf %599, %615 : vector<4x256xf32>
    %626 = arith.mulf %603, %621 : vector<4x256xf32>
    %627 = arith.subf %625, %626 : vector<4x256xf32>
    %628 = arith.mulf %603, %612 : vector<4x256xf32>
    %629 = arith.mulf %599, %618 : vector<4x256xf32>
    %630 = arith.addf %628, %629 : vector<4x256xf32>
    %631 = arith.mulf %603, %615 : vector<4x256xf32>
    %632 = arith.mulf %599, %621 : vector<4x256xf32>
    %633 = arith.addf %631, %632 : vector<4x256xf32>
    %634 = vector.extract_strided_slice %630 {offsets = [0, 0], sizes = [1, 256], strides = [1, 1]} : vector<4x256xf32> to vector<1x256xf32>
    %635 = vector.extract_strided_slice %624 {offsets = [0, 0], sizes = [1, 256], strides = [1, 1]} : vector<4x256xf32> to vector<1x256xf32>
    %636 = vector.shape_cast %11 : vector<16x1xi1> to vector<16x1xi1>
    %637 = vector.broadcast %636 : vector<16x1xi1> to vector<16x256xi1>
    %638 = vector.shape_cast %634 : vector<1x256xf32> to vector<1x256xf32>
    %639 = vector.broadcast %638 : vector<1x256xf32> to vector<16x256xf32>
    %640 = vector.shape_cast %635 : vector<1x256xf32> to vector<1x256xf32>
    %641 = vector.broadcast %640 : vector<1x256xf32> to vector<16x256xf32>
    %642 = arith.select %637, %639, %641 : vector<16x256xi1>, vector<16x256xf32>
    %643 = vector.extract_strided_slice %633 {offsets = [0, 0], sizes = [1, 256], strides = [1, 1]} : vector<4x256xf32> to vector<1x256xf32>
    %644 = vector.extract_strided_slice %627 {offsets = [0, 0], sizes = [1, 256], strides = [1, 1]} : vector<4x256xf32> to vector<1x256xf32>
    %645 = vector.shape_cast %11 : vector<16x1xi1> to vector<16x1xi1>
    %646 = vector.broadcast %645 : vector<16x1xi1> to vector<16x256xi1>
    %647 = vector.shape_cast %643 : vector<1x256xf32> to vector<1x256xf32>
    %648 = vector.broadcast %647 : vector<1x256xf32> to vector<16x256xf32>
    %649 = vector.shape_cast %644 : vector<1x256xf32> to vector<1x256xf32>
    %650 = vector.broadcast %649 : vector<1x256xf32> to vector<16x256xf32>
    %651 = arith.select %646, %648, %650 : vector<16x256xi1>, vector<16x256xf32>
    %652 = vector.extract_strided_slice %630 {offsets = [1, 0], sizes = [1, 256], strides = [1, 1]} : vector<4x256xf32> to vector<1x256xf32>
    %653 = vector.extract_strided_slice %624 {offsets = [1, 0], sizes = [1, 256], strides = [1, 1]} : vector<4x256xf32> to vector<1x256xf32>
    %654 = vector.shape_cast %17 : vector<16x1xi1> to vector<16x1xi1>
    %655 = vector.broadcast %654 : vector<16x1xi1> to vector<16x256xi1>
    %656 = vector.shape_cast %652 : vector<1x256xf32> to vector<1x256xf32>
    %657 = vector.broadcast %656 : vector<1x256xf32> to vector<16x256xf32>
    %658 = vector.shape_cast %653 : vector<1x256xf32> to vector<1x256xf32>
    %659 = vector.broadcast %658 : vector<1x256xf32> to vector<16x256xf32>
    %660 = arith.select %655, %657, %659 : vector<16x256xi1>, vector<16x256xf32>
    %661 = vector.extract_strided_slice %633 {offsets = [1, 0], sizes = [1, 256], strides = [1, 1]} : vector<4x256xf32> to vector<1x256xf32>
    %662 = vector.extract_strided_slice %627 {offsets = [1, 0], sizes = [1, 256], strides = [1, 1]} : vector<4x256xf32> to vector<1x256xf32>
    %663 = vector.shape_cast %17 : vector<16x1xi1> to vector<16x1xi1>
    %664 = vector.broadcast %663 : vector<16x1xi1> to vector<16x256xi1>
    %665 = vector.shape_cast %661 : vector<1x256xf32> to vector<1x256xf32>
    %666 = vector.broadcast %665 : vector<1x256xf32> to vector<16x256xf32>
    %667 = vector.shape_cast %662 : vector<1x256xf32> to vector<1x256xf32>
    %668 = vector.broadcast %667 : vector<1x256xf32> to vector<16x256xf32>
    %669 = arith.select %664, %666, %668 : vector<16x256xi1>, vector<16x256xf32>
    %670 = arith.mulf %642, %660 : vector<16x256xf32>
    %671 = arith.mulf %651, %669 : vector<16x256xf32>
    %672 = arith.subf %670, %671 : vector<16x256xf32>
    %673 = arith.mulf %642, %669 : vector<16x256xf32>
    %674 = arith.mulf %651, %660 : vector<16x256xf32>
    %675 = arith.addf %673, %674 : vector<16x256xf32>
    %676 = vector.extract_strided_slice %630 {offsets = [2, 0], sizes = [1, 256], strides = [1, 1]} : vector<4x256xf32> to vector<1x256xf32>
    %677 = vector.extract_strided_slice %624 {offsets = [2, 0], sizes = [1, 256], strides = [1, 1]} : vector<4x256xf32> to vector<1x256xf32>
    %678 = vector.shape_cast %23 : vector<16x1xi1> to vector<16x1xi1>
    %679 = vector.broadcast %678 : vector<16x1xi1> to vector<16x256xi1>
    %680 = vector.shape_cast %676 : vector<1x256xf32> to vector<1x256xf32>
    %681 = vector.broadcast %680 : vector<1x256xf32> to vector<16x256xf32>
    %682 = vector.shape_cast %677 : vector<1x256xf32> to vector<1x256xf32>
    %683 = vector.broadcast %682 : vector<1x256xf32> to vector<16x256xf32>
    %684 = arith.select %679, %681, %683 : vector<16x256xi1>, vector<16x256xf32>
    %685 = vector.extract_strided_slice %633 {offsets = [2, 0], sizes = [1, 256], strides = [1, 1]} : vector<4x256xf32> to vector<1x256xf32>
    %686 = vector.extract_strided_slice %627 {offsets = [2, 0], sizes = [1, 256], strides = [1, 1]} : vector<4x256xf32> to vector<1x256xf32>
    %687 = vector.shape_cast %23 : vector<16x1xi1> to vector<16x1xi1>
    %688 = vector.broadcast %687 : vector<16x1xi1> to vector<16x256xi1>
    %689 = vector.shape_cast %685 : vector<1x256xf32> to vector<1x256xf32>
    %690 = vector.broadcast %689 : vector<1x256xf32> to vector<16x256xf32>
    %691 = vector.shape_cast %686 : vector<1x256xf32> to vector<1x256xf32>
    %692 = vector.broadcast %691 : vector<1x256xf32> to vector<16x256xf32>
    %693 = arith.select %688, %690, %692 : vector<16x256xi1>, vector<16x256xf32>
    %694 = arith.mulf %672, %684 : vector<16x256xf32>
    %695 = arith.mulf %675, %693 : vector<16x256xf32>
    %696 = arith.subf %694, %695 : vector<16x256xf32>
    %697 = arith.mulf %672, %693 : vector<16x256xf32>
    %698 = arith.mulf %675, %684 : vector<16x256xf32>
    %699 = arith.addf %697, %698 : vector<16x256xf32>
    %700 = vector.extract_strided_slice %630 {offsets = [3, 0], sizes = [1, 256], strides = [1, 1]} : vector<4x256xf32> to vector<1x256xf32>
    %701 = vector.extract_strided_slice %624 {offsets = [3, 0], sizes = [1, 256], strides = [1, 1]} : vector<4x256xf32> to vector<1x256xf32>
    %702 = vector.shape_cast %29 : vector<16x1xi1> to vector<16x1xi1>
    %703 = vector.broadcast %702 : vector<16x1xi1> to vector<16x256xi1>
    %704 = vector.shape_cast %700 : vector<1x256xf32> to vector<1x256xf32>
    %705 = vector.broadcast %704 : vector<1x256xf32> to vector<16x256xf32>
    %706 = vector.shape_cast %701 : vector<1x256xf32> to vector<1x256xf32>
    %707 = vector.broadcast %706 : vector<1x256xf32> to vector<16x256xf32>
    %708 = arith.select %703, %705, %707 : vector<16x256xi1>, vector<16x256xf32>
    %709 = vector.extract_strided_slice %633 {offsets = [3, 0], sizes = [1, 256], strides = [1, 1]} : vector<4x256xf32> to vector<1x256xf32>
    %710 = vector.extract_strided_slice %627 {offsets = [3, 0], sizes = [1, 256], strides = [1, 1]} : vector<4x256xf32> to vector<1x256xf32>
    %711 = vector.shape_cast %29 : vector<16x1xi1> to vector<16x1xi1>
    %712 = vector.broadcast %711 : vector<16x1xi1> to vector<16x256xi1>
    %713 = vector.shape_cast %709 : vector<1x256xf32> to vector<1x256xf32>
    %714 = vector.broadcast %713 : vector<1x256xf32> to vector<16x256xf32>
    %715 = vector.shape_cast %710 : vector<1x256xf32> to vector<1x256xf32>
    %716 = vector.broadcast %715 : vector<1x256xf32> to vector<16x256xf32>
    %717 = arith.select %712, %714, %716 : vector<16x256xi1>, vector<16x256xf32>
    %718 = arith.mulf %696, %708 : vector<16x256xf32>
    %719 = arith.mulf %699, %717 : vector<16x256xf32>
    %720 = arith.subf %718, %719 : vector<16x256xf32>
    %721 = arith.mulf %696, %717 : vector<16x256xf32>
    %722 = arith.mulf %699, %708 : vector<16x256xf32>
    %723 = arith.addf %721, %722 : vector<16x256xf32>
    %724 = tpu.concatenate %720, %723 in 0 : vector<16x256xf32>, vector<16x256xf32> -> vector<32x256xf32>
    %cst_40 = arith.constant dense<0.000000e+00> : vector<32x256xf32>
    %725 = tpu.matmul %30, %724, %cst_40 {dimension_numbers = #tpu.dot_dimension_numbers<[1], [0], [0], [1], [0, 0, 1, 1], [], []>} : vector<32x32xf32>, vector<32x256xf32>, vector<32x256xf32> -> vector<32x256xf32>
    %726 = arith.mulf %725, %725 : vector<32x256xf32>
    %cst_41 = arith.constant dense<0.000000e+00> : vector<16x256xf32>
    %727 = tpu.matmul %31, %726, %cst_41 {dimension_numbers = #tpu.dot_dimension_numbers<[1], [0], [0], [1], [0, 0, 1, 1], [], []>} : vector<16x32xf32>, vector<32x256xf32>, vector<16x256xf32> -> vector<16x256xf32>
    %728 = arith.subf %727, %588 : vector<16x256xf32>
    %729 = arith.mulf %728, %728 : vector<16x256xf32>
    %cst_42 = arith.constant dense<0.000000e+00> : vector<256xf32>
    %730 = vector.multi_reduction <add>, %729, %cst_42 [0] : vector<16x256xf32> to vector<256xf32>
    %731 = vector.shape_cast %730 : vector<256xf32> to vector<1x256xf32>
    %732 = math.sqrt %731 : vector<1x256xf32>
    %733 = arith.mulf %588, %588 : vector<16x256xf32>
    %cst_43 = arith.constant dense<0.000000e+00> : vector<256xf32>
    %734 = vector.multi_reduction <add>, %733, %cst_43 [0] : vector<16x256xf32> to vector<256xf32>
    %735 = vector.shape_cast %734 : vector<256xf32> to vector<1x256xf32>
    %736 = math.sqrt %735 : vector<1x256xf32>
    %cst_44 = arith.constant 9.99999971E-10 : f32
    %737 = vector.broadcast %cst_44 : f32 to vector<1x256xf32>
    %738 = arith.addf %736, %737 : vector<1x256xf32>
    %739 = arith.divf %732, %738 : vector<1x256xf32>
    %c0_45 = arith.constant 0 : index
    %c0_46 = arith.constant 0 : index
    %740 = vector.load %arg8[%c0_45, %c0_46] : memref<1x256xf32, #tpu.memory_space<vmem>>, vector<1x256xf32>
    tpu.vector_store %arg8[%c0_45, %c0_46], %739 {strides = array<i32>} : memref<1x256xf32, #tpu.memory_space<vmem>>, vector<1x256xf32>,
    %cst_47 = arith.constant 0.000000e+00 : f32
    %741 = vector.broadcast %cst_47 : f32 to vector<16x256xf32>
    %742 = arith.maximumf %588, %741 : vector<16x256xf32>
    %c0_48 = arith.constant 0 : index
    %c0_49 = arith.constant 0 : index
    %743 = vector.load %arg5[%c0_48, %c0_49] : memref<2x16xf32, #tpu.memory_space<vmem>>, vector<2x16xf32>
    %cst_50 = arith.constant dense<0.000000e+00> : vector<2x256xf32>
    %744 = tpu.matmul %743, %742, %cst_50 {dimension_numbers = #tpu.dot_dimension_numbers<[1], [0], [0], [1], [0, 0, 1, 1], [], []>} : vector<2x16xf32>, vector<16x256xf32>, vector<2x256xf32> -> vector<2x256xf32>
    %c0_51 = arith.constant 0 : index
    %c0_52 = arith.constant 0 : index
    %745 = vector.load %arg6[%c0_51, %c0_52] : memref<2x1xf32, #tpu.memory_space<vmem>>, vector<2x1xf32>
    %746 = vector.broadcast %745 : vector<2x1xf32> to vector<2x256xf32>
    %747 = arith.addf %744, %746 : vector<2x256xf32>
    %cst_53 = arith.constant dense<0xFF800000> : vector<256xf32>
    %748 = vector.multi_reduction <maximumf>, %747, %cst_53 [0] : vector<2x256xf32> to vector<256xf32>
    %749 = vector.shape_cast %748 : vector<256xf32> to vector<1x256xf32>
    %750 = vector.broadcast %749 : vector<1x256xf32> to vector<2x256xf32>
    %751 = arith.subf %747, %750 : vector<2x256xf32>
    %752 = math.exp %751 : vector<2x256xf32>
    %cst_54 = arith.constant dense<0.000000e+00> : vector<256xf32>
    %753 = vector.multi_reduction <add>, %752, %cst_54 [0] : vector<2x256xf32> to vector<256xf32>
    %754 = vector.shape_cast %753 : vector<256xf32> to vector<1x256xf32>
    %755 = math.log %754 : vector<1x256xf32>
    %756 = arith.addf %749, %755 : vector<1x256xf32>
    %757 = vector.broadcast %756 : vector<1x256xf32> to vector<2x256xf32>
    %758 = arith.subf %747, %757 : vector<2x256xf32>
    %c0_55 = arith.constant 0 : index
    %c0_56 = arith.constant 0 : index
    %759 = vector.load %arg7[%c0_55, %c0_56] : memref<2x256xf32, #tpu.memory_space<vmem>>, vector<2x256xf32>
    tpu.vector_store %arg7[%c0_55, %c0_56], %758 {strides = array<i32>} : memref<2x256xf32, #tpu.memory_space<vmem>>, vector<2x256xf32>,
    return
  }
  func.func @transform_0(%arg0: i32) -> (i32, i32) {
    %c0_i32 = arith.constant 0 : i32
    %c0_i32_0 = arith.constant 0 : i32
    return %c0_i32, %arg0 : i32, i32
  }
  func.func @transform_1(%arg0: i32) -> (i32, i32) {
    %c0_i32 = arith.constant 0 : i32
    %c0_i32_0 = arith.constant 0 : i32
    %c0_i32_1 = arith.constant 0 : i32
    return %c0_i32, %c0_i32_0 : i32, i32
  }
  func.func @transform_2(%arg0: i32) -> (i32, i32) {
    %c0_i32 = arith.constant 0 : i32
    %c0_i32_0 = arith.constant 0 : i32
    %c0_i32_1 = arith.constant 0 : i32
    return %c0_i32, %c0_i32_0 : i32, i32
  }
  func.func @transform_3(%arg0: i32) -> (i32, i32) {
    %c0_i32 = arith.constant 0 : i32
    %c0_i32_0 = arith.constant 0 : i32
    %c0_i32_1 = arith.constant 0 : i32
    return %c0_i32, %c0_i32_0 : i32, i32
  }
  func.func @transform_4(%arg0: i32) -> (i32, i32) {
    %c0_i32 = arith.constant 0 : i32
    %c0_i32_0 = arith.constant 0 : i32
    %c0_i32_1 = arith.constant 0 : i32
    return %c0_i32, %c0_i32_0 : i32, i32
  }
  func.func @transform_5(%arg0: i32) -> (i32, i32) {
    %c0_i32 = arith.constant 0 : i32
    %c0_i32_0 = arith.constant 0 : i32
    %c0_i32_1 = arith.constant 0 : i32
    return %c0_i32, %c0_i32_0 : i32, i32
  }
  func.func @transform_6(%arg0: i32) -> (i32, i32) {
    %c0_i32 = arith.constant 0 : i32
    %c0_i32_0 = arith.constant 0 : i32
    return %c0_i32, %arg0 : i32, i32
  }
  func.func @transform_7(%arg0: i32) -> (i32, i32) {
    %c0_i32 = arith.constant 0 : i32
    %c0_i32_0 = arith.constant 0 : i32
    return %c0_i32, %arg0 : i32, i32
  }
}

</mosaic_0001>

<llo_original>
// kernel: qdeq_forward.1
$region0: #{qdeq_forward.1}
  #allocation0 [shape = 'u32[]', space=smem, size = 0x4, offset = 0x4, fixed_abs, tag = 'smem constant byte address 0x4 - core index']
  #allocation1 [shape = 'u32[144,128]{1,0:T(1,128)}', space=vmem, size = 0x12000, scoped, tag = 'internal scratch']
  %s0 = inlined_call_operand.vmem [shape: bf16[784,256], index: 0, kind: input, shape index: {}]
  %s1 = inlined_call_operand.vmem [shape: bf16[16,784], index: 1, kind: input, shape index: {}]
  %s2 = inlined_call_operand.vmem [shape: f32[32,32], index: 2, kind: input, shape index: {}]
  %s3 = inlined_call_operand.vmem [shape: f32[16,32], index: 3, kind: input, shape index: {}]
  %s4 = inlined_call_operand.vmem [shape: f32[2,16], index: 4, kind: input, shape index: {}]
  %s5 = inlined_call_operand.vmem [shape: f32[2,1], index: 5, kind: input, shape index: {}]
  %s6 = inlined_call_operand.vmem [shape: f32[2,256], index: 6, kind: output, shape index: {0}]
  %s7 = inlined_call_operand.vmem [shape: f32[1,256], index: 7, kind: output, shape index: {1}]
  %8 = xla_tuple %s6, %s7
  %s9 = sld [smem:[#allocation0]]
  $region42: #{qdeq_forward.1} parent=0
    _
  %s11 = ssub.s32 1, %s9
  %s12 = scalar_select 0, %s11, %s9
  // Predicated region
  $region2: #{qdeq_forward.1} parent=0 // pred_check
    _
  $region3: #{qdeq_forward.1} parent=0 // pred_check_branch
    %14 = sbr.rel (0) target = $region5
  $region4: #{qdeq_forward.1} parent=0 // pred_region
    _
  $region5: #{qdeq_forward.1} parent=0 // pred_fallthru
    _
  // Predicated region
  $region6: #{qdeq_forward.1} parent=0 // pred_check
    _
  $region7: #{qdeq_forward.1} parent=0 // pred_check_branch
    %16 = sbr.rel (0) target = $region9
  $region8: #{qdeq_forward.1} parent=0 // pred_region
    _
  $region9: #{qdeq_forward.1} parent=0 // pred_fallthru
    _
  // Predicated region
  $region10: #{qdeq_forward.1} parent=0 // pred_check
    _
  $region11: #{qdeq_forward.1} parent=0 // pred_check_branch
    %18 = sbr.rel (0) target = $region13
  $region12: #{qdeq_forward.1} parent=0 // pred_region
    _
  $region13: #{qdeq_forward.1} parent=0 // pred_fallthru
    _
  // Predicated region
  $region14: #{qdeq_forward.1} parent=0 // pred_check
    _
  $region15: #{qdeq_forward.1} parent=0 // pred_check_branch
    %20 = sbr.rel (0) target = $region17
  $region16: #{qdeq_forward.1} parent=0 // pred_region
    _
  $region17: #{qdeq_forward.1} parent=0 // pred_fallthru
    _
  // Predicated region
  $region18: #{qdeq_forward.1} parent=0 // pred_check
    _
  $region19: #{qdeq_forward.1} parent=0 // pred_check_branch
    %22 = sbr.rel (0) target = $region21
  $region20: #{qdeq_forward.1} parent=0 // pred_region
    _
  $region21: #{qdeq_forward.1} parent=0 // pred_fallthru
    _
  // Predicated region
  $region22: #{qdeq_forward.1} parent=0 // pred_check
    _
  $region23: #{qdeq_forward.1} parent=0 // pred_check_branch
    %24 = sbr.rel (0) target = $region25
  $region24: #{qdeq_forward.1} parent=0 // pred_region
    _
  $region25: #{qdeq_forward.1} parent=0 // pred_fallthru
    _
  %v26 = vld [vmem:[%s1] sm:$0xff]
  %v27 = vld [vmem:[%s1 + $0x8] sm:$0xff]
  %v28 = vld [vmem:[%s1 + $0x10] sm:$0xff]
  %v29 = vld [vmem:[%s1 + $0x18] sm:$0xf]
  %v30 = vld [vmem:[%s1 + $0x1c] sm:$0xff]
  %v31 = vld [vmem:[%s1 + $0x24] sm:$0xff]
  %v32 = vld [vmem:[%s1 + $0x2c] sm:$0xff]
  %v33 = vld [vmem:[%s1 + $0x34] sm:$0xf]
  %v34 = vld [vmem:[%s0] sm:$0xff]
  %v35 = vld [vmem:[%s0 + $0x8] sm:$0xff]
  %v36 = vld [vmem:[%s0 + $0x10] sm:$0xff]
  %v37 = vld [vmem:[%s0 + $0x18] sm:$0xff]
  %v38 = vld [vmem:[%s0 + $0x20] sm:$0xff]
  %v39 = vld [vmem:[%s0 + $0x28] sm:$0xff]
  %v40 = vld [vmem:[%s0 + $0x30] sm:$0xff]
  %v41 = vld [vmem:[%s0 + $0x38] sm:$0xff]
  %v42 = vld [vmem:[%s0 + $0x40] sm:$0xff]
  %v43 = vld [vmem:[%s0 + $0x48] sm:$0xff]
  %v44 = vld [vmem:[%s0 + $0x50] sm:$0xff]
  %v45 = vld [vmem:[%s0 + $0x58] sm:$0xff]
  %v46 = vld [vmem:[%s0 + $0x60] sm:$0xff]
  %v47 = vld [vmem:[%s0 + $0x68] sm:$0xff]
  %v48 = vld [vmem:[%s0 + $0x70] sm:$0xff]
  %v49 = vld [vmem:[%s0 + $0x78] sm:$0xff]
  %v50 = vld [vmem:[%s0 + $0x80] sm:$0xff]
  %v51 = vld [vmem:[%s0 + $0x88] sm:$0xff]
  %v52 = vld [vmem:[%s0 + $0x90] sm:$0xff]
  %v53 = vld [vmem:[%s0 + $0x98] sm:$0xff]
  %v54 = vld [vmem:[%s0 + $0xa0] sm:$0xff]
  %v55 = vld [vmem:[%s0 + $0xa8] sm:$0xff]
  %v56 = vld [vmem:[%s0 + $0xb0] sm:$0xff]
  %v57 = vld [vmem:[%s0 + $0xb8] sm:$0xff]
  %v58 = vld [vmem:[%s0 + $0xc0] sm:$0xff]
  %v59 = vld [vmem:[%s0 + $0xc8] sm:$0xff]
  %v60 = vld [vmem:[%s0 + $0xd0] sm:$0xff]
  %v61 = vld [vmem:[%s0 + $0xd8] sm:$0xff]
  %v62 = vld [vmem:[%s0 + $0xe0] sm:$0xff]
  %v63 = vld [vmem:[%s0 + $0xe8] sm:$0xff]
  %v64 = vld [vmem:[%s0 + $0xf0] sm:$0xff]
  %v65 = vld [vmem:[%s0 + $0xf8] sm:$0xff]
  %v66 = vld [vmem:[%s0 + $0x100] sm:$0xff]
  %v67 = vld [vmem:[%s0 + $0x108] sm:$0xff]
  %v68 = vld [vmem:[%s0 + $0x110] sm:$0xff]
  %v69 = vld [vmem:[%s0 + $0x118] sm:$0xff]
  %v70 = vld [vmem:[%s0 + $0x120] sm:$0xff]
  %v71 = vld [vmem:[%s0 + $0x128] sm:$0xff]
  %v72 = vld [vmem:[%s0 + $0x130] sm:$0xff]
  %v73 = vld [vmem:[%s0 + $0x138] sm:$0xff]
  %v74 = vld [vmem:[%s0 + $0x140] sm:$0xff]
  %v75 = vld [vmem:[%s0 + $0x148] sm:$0xff]
  %v76 = vld [vmem:[%s0 + $0x150] sm:$0xff]
  %v77 = vld [vmem:[%s0 + $0x158] sm:$0xff]
  %v78 = vld [vmem:[%s0 + $0x160] sm:$0xff]
  %v79 = vld [vmem:[%s0 + $0x168] sm:$0xff]
  %v80 = vld [vmem:[%s0 + $0x170] sm:$0xff]
  %v81 = vld [vmem:[%s0 + $0x178] sm:$0xff]
  %v82 = vld [vmem:[%s0 + $0x180] sm:$0xff]
  %v83 = vld [vmem:[%s0 + $0x188] sm:$0xff]
  %v84 = vld [vmem:[%s0 + $0x190] sm:$0xff]
  %v85 = vld [vmem:[%s0 + $0x198] sm:$0xff]
  %v86 = vld [vmem:[%s0 + $0x1a0] sm:$0xff]
  %v87 = vld [vmem:[%s0 + $0x1a8] sm:$0xff]
  %v88 = vld [vmem:[%s0 + $0x1b0] sm:$0xff]
  %v89 = vld [vmem:[%s0 + $0x1b8] sm:$0xff]
  %v90 = vld [vmem:[%s0 + $0x1c0] sm:$0xff]
  %v91 = vld [vmem:[%s0 + $0x1c8] sm:$0xff]
  %v92 = vld [vmem:[%s0 + $0x1d0] sm:$0xff]
  %v93 = vld [vmem:[%s0 + $0x1d8] sm:$0xff]
  %v94 = vld [vmem:[%s0 + $0x1e0] sm:$0xff]
  %v95 = vld [vmem:[%s0 + $0x1e8] sm:$0xff]
  %v96 = vld [vmem:[%s0 + $0x1f0] sm:$0xff]
  %v97 = vld [vmem:[%s0 + $0x1f8] sm:$0xff]
  %v98 = vld [vmem:[%s0 + $0x200] sm:$0xff]
  %v99 = vld [vmem:[%s0 + $0x208] sm:$0xff]
  %v100 = vld [vmem:[%s0 + $0x210] sm:$0xff]
  %v101 = vld [vmem:[%s0 + $0x218] sm:$0xff]
  %v102 = vld [vmem:[%s0 + $0x220] sm:$0xff]
  %v103 = vld [vmem:[%s0 + $0x228] sm:$0xff]
  %v104 = vld [vmem:[%s0 + $0x230] sm:$0xff]
  %v105 = vld [vmem:[%s0 + $0x238] sm:$0xff]
  %v106 = vld [vmem:[%s0 + $0x240] sm:$0xff]
  %v107 = vld [vmem:[%s0 + $0x248] sm:$0xff]
  %v108 = vld [vmem:[%s0 + $0x250] sm:$0xff]
  %v109 = vld [vmem:[%s0 + $0x258] sm:$0xff]
  %v110 = vld [vmem:[%s0 + $0x260] sm:$0xff]
  %v111 = vld [vmem:[%s0 + $0x268] sm:$0xff]
  %v112 = vld [vmem:[%s0 + $0x270] sm:$0xff]
  %v113 = vld [vmem:[%s0 + $0x278] sm:$0xff]
  %v114 = vld [vmem:[%s0 + $0x280] sm:$0xff]
  %v115 = vld [vmem:[%s0 + $0x288] sm:$0xff]
  %v116 = vld [vmem:[%s0 + $0x290] sm:$0xff]
  %v117 = vld [vmem:[%s0 + $0x298] sm:$0xff]
  %v118 = vld [vmem:[%s0 + $0x2a0] sm:$0xff]
  %v119 = vld [vmem:[%s0 + $0x2a8] sm:$0xff]
  %v120 = vld [vmem:[%s0 + $0x2b0] sm:$0xff]
  %v121 = vld [vmem:[%s0 + $0x2b8] sm:$0xff]
  %v122 = vld [vmem:[%s0 + $0x2c0] sm:$0xff]
  %v123 = vld [vmem:[%s0 + $0x2c8] sm:$0xff]
  %v124 = vld [vmem:[%s0 + $0x2d0] sm:$0xff]
  %v125 = vld [vmem:[%s0 + $0x2d8] sm:$0xff]
  %v126 = vld [vmem:[%s0 + $0x2e0] sm:$0xff]
  %v127 = vld [vmem:[%s0 + $0x2e8] sm:$0xff]
  %v128 = vld [vmem:[%s0 + $0x2f0] sm:$0xff]
  %v129 = vld [vmem:[%s0 + $0x2f8] sm:$0xff]
  %v130 = vld [vmem:[%s0 + $0x300] sm:$0xff]
  %v131 = vld [vmem:[%s0 + $0x308] sm:$0xff]
  %v140 = vunpack.c.l.b16 %v26
  %v141 = vunpack.c.h.b16 %v26
  %v142 = vunpack.c.l.b16 %v27
  %v143 = vunpack.c.h.b16 %v27
  %v144 = vunpack.c.l.b16 %v28
  %v145 = vunpack.c.h.b16 %v28
  %v146 = vunpack.c.l.b16 %v29
  %v147 = vunpack.c.l.b16 %v30
  %v148 = vunpack.c.h.b16 %v30
  %v149 = vunpack.c.l.b16 %v31
  %v150 = vunpack.c.h.b16 %v31
  %v151 = vunpack.c.l.b16 %v32
  %v152 = vunpack.c.h.b16 %v32
  %v153 = vunpack.c.l.b16 %v33
  %v154 = vpack.c.b16 %v147, %v140
  %v155 = vpack.c.b16 %v148, %v141
  %v156 = vpack.c.b16 %v149, %v142
  %v157 = vpack.c.b16 %v150, %v143
  %v158 = vpack.c.b16 %v151, %v144
  %v159 = vpack.c.b16 %v152, %v145
  %v160 = vpack.c.b16 %v153, %v146
  %v265 = vunpack.c.l.b16 %v34
  %v266 = vunpack.c.h.b16 %v34
  %v267 = vunpack.c.l.b16 %v35
  %v268 = vunpack.c.h.b16 %v35
  %v269 = vunpack.c.l.b16 %v36
  %v270 = vunpack.c.h.b16 %v36
  %v271 = vunpack.c.l.b16 %v37
  %v272 = vunpack.c.h.b16 %v37
  %v273 = vunpack.c.l.b16 %v38
  %v274 = vunpack.c.h.b16 %v38
  %v275 = vunpack.c.l.b16 %v39
  %v276 = vunpack.c.h.b16 %v39
  %v277 = vunpack.c.l.b16 %v40
  %v278 = vunpack.c.h.b16 %v40
  %v279 = vunpack.c.l.b16 %v41
  %v280 = vunpack.c.h.b16 %v41
  %v281 = vunpack.c.l.b16 %v42
  %v282 = vunpack.c.h.b16 %v42
  %v283 = vunpack.c.l.b16 %v43
  %v284 = vunpack.c.h.b16 %v43
  %v285 = vunpack.c.l.b16 %v44
  %v286 = vunpack.c.h.b16 %v44
  %v287 = vunpack.c.l.b16 %v45
  %v288 = vunpack.c.h.b16 %v45
  %v289 = vunpack.c.l.b16 %v46
  %v290 = vunpack.c.h.b16 %v46
  %v291 = vunpack.c.l.b16 %v47
  %v292 = vunpack.c.h.b16 %v47
  %v293 = vunpack.c.l.b16 %v48
  %v294 = vunpack.c.h.b16 %v48
  %v295 = vunpack.c.l.b16 %v49
  %v296 = vunpack.c.h.b16 %v49
  %v297 = vunpack.c.l.b16 %v50
  %v298 = vunpack.c.h.b16 %v50
  %v299 = vunpack.c.l.b16 %v51
  %v300 = vunpack.c.h.b16 %v51
  %v301 = vunpack.c.l.b16 %v52
  %v302 = vunpack.c.h.b16 %v52
  %v303 = vunpack.c.l.b16 %v53
  %v304 = vunpack.c.h.b16 %v53
  %v305 = vunpack.c.l.b16 %v54
  %v306 = vunpack.c.h.b16 %v54
  %v307 = vunpack.c.l.b16 %v55
  %v308 = vunpack.c.h.b16 %v55
  %v309 = vunpack.c.l.b16 %v56
  %v310 = vunpack.c.h.b16 %v56
  %v311 = vunpack.c.l.b16 %v57
  %v312 = vunpack.c.h.b16 %v57
  %v313 = vunpack.c.l.b16 %v58
  %v314 = vunpack.c.h.b16 %v58
  %v315 = vunpack.c.l.b16 %v59
  %v316 = vunpack.c.h.b16 %v59
  %v317 = vunpack.c.l.b16 %v60
  %v318 = vunpack.c.h.b16 %v60
  %v319 = vunpack.c.l.b16 %v61
  %v320 = vunpack.c.h.b16 %v61
  %v321 = vunpack.c.l.b16 %v62
  %v322 = vunpack.c.h.b16 %v62
  %v323 = vunpack.c.l.b16 %v63
  %v324 = vunpack.c.h.b16 %v63
  %v325 = vunpack.c.l.b16 %v64
  %v326 = vunpack.c.h.b16 %v64
  %v327 = vunpack.c.l.b16 %v65
  %v328 = vunpack.c.h.b16 %v65
  %v329 = vunpack.c.l.b16 %v66
  %v330 = vunpack.c.h.b16 %v66
  %v331 = vunpack.c.l.b16 %v67
  %v332 = vunpack.c.h.b16 %v67
  %v333 = vunpack.c.l.b16 %v68
  %v334 = vunpack.c.h.b16 %v68
  %v335 = vunpack.c.l.b16 %v69
  %v336 = vunpack.c.h.b16 %v69
  %v337 = vunpack.c.l.b16 %v70
  %v338 = vunpack.c.h.b16 %v70
  %v339 = vunpack.c.l.b16 %v71
  %v340 = vunpack.c.h.b16 %v71
  %v341 = vunpack.c.l.b16 %v72
  %v342 = vunpack.c.h.b16 %v72
  %v343 = vunpack.c.l.b16 %v73
  %v344 = vunpack.c.h.b16 %v73
  %v345 = vunpack.c.l.b16 %v74
  %v346 = vunpack.c.h.b16 %v74
  %v347 = vunpack.c.l.b16 %v75
  %v348 = vunpack.c.h.b16 %v75
  %v349 = vunpack.c.l.b16 %v76
  %v350 = vunpack.c.h.b16 %v76
  %v351 = vunpack.c.l.b16 %v77
  %v352 = vunpack.c.h.b16 %v77
  %v353 = vunpack.c.l.b16 %v78
  %v354 = vunpack.c.h.b16 %v78
  %v355 = vunpack.c.l.b16 %v79
  %v356 = vunpack.c.h.b16 %v79
  %v357 = vunpack.c.l.b16 %v80
  %v358 = vunpack.c.h.b16 %v80
  %v359 = vunpack.c.l.b16 %v81
  %v360 = vunpack.c.h.b16 %v81
  %v361 = vunpack.c.l.b16 %v82
  %v362 = vunpack.c.h.b16 %v82
  %v363 = vunpack.c.l.b16 %v83
  %v364 = vunpack.c.h.b16 %v83
  %v365 = vunpack.c.l.b16 %v84
  %v366 = vunpack.c.h.b16 %v84
  %v367 = vunpack.c.l.b16 %v85
  %v368 = vunpack.c.h.b16 %v85
  %v369 = vunpack.c.l.b16 %v86
  %v370 = vunpack.c.h.b16 %v86
  %v371 = vunpack.c.l.b16 %v87
  %v372 = vunpack.c.h.b16 %v87
  %v373 = vunpack.c.l.b16 %v88
  %v374 = vunpack.c.h.b16 %v88
  %v375 = vunpack.c.l.b16 %v89
  %v376 = vunpack.c.h.b16 %v89
  %v377 = vunpack.c.l.b16 %v90
  %v378 = vunpack.c.h.b16 %v90
  %v379 = vunpack.c.l.b16 %v91
  %v380 = vunpack.c.h.b16 %v91
  %v381 = vunpack.c.l.b16 %v92
  %v382 = vunpack.c.h.b16 %v92
  %v383 = vunpack.c.l.b16 %v93
  %v384 = vunpack.c.h.b16 %v93
  %v385 = vunpack.c.l.b16 %v94
  %v386 = vunpack.c.h.b16 %v94
  %v387 = vunpack.c.l.b16 %v95
  %v388 = vunpack.c.h.b16 %v95
  %v389 = vunpack.c.l.b16 %v96
  %v390 = vunpack.c.h.b16 %v96
  %v391 = vunpack.c.l.b16 %v97
  %v392 = vunpack.c.h.b16 %v97
  %v393 = vunpack.c.l.b16 %v98
  %v394 = vunpack.c.h.b16 %v98
  %v395 = vunpack.c.l.b16 %v99
  %v396 = vunpack.c.h.b16 %v99
  %v397 = vunpack.c.l.b16 %v100
  %v398 = vunpack.c.h.b16 %v100
  %v399 = vunpack.c.l.b16 %v101
  %v400 = vunpack.c.h.b16 %v101
  %v401 = vunpack.c.l.b16 %v102
  %v402 = vunpack.c.h.b16 %v102
  %v403 = vunpack.c.l.b16 %v103
  %v404 = vunpack.c.h.b16 %v103
  %v405 = vunpack.c.l.b16 %v104
  %v406 = vunpack.c.h.b16 %v104
  %v407 = vunpack.c.l.b16 %v105
  %v408 = vunpack.c.h.b16 %v105
  %v409 = vunpack.c.l.b16 %v106
  %v410 = vunpack.c.h.b16 %v106
  %v411 = vunpack.c.l.b16 %v107
  %v412 = vunpack.c.h.b16 %v107
  %v413 = vunpack.c.l.b16 %v108
  %v414 = vunpack.c.h.b16 %v108
  %v415 = vunpack.c.l.b16 %v109
  %v416 = vunpack.c.h.b16 %v109
  %v417 = vunpack.c.l.b16 %v110
  %v418 = vunpack.c.h.b16 %v110
  %v419 = vunpack.c.l.b16 %v111
  %v420 = vunpack.c.h.b16 %v111
  %v421 = vunpack.c.l.b16 %v112
  %v422 = vunpack.c.h.b16 %v112
  %v423 = vunpack.c.l.b16 %v113
  %v424 = vunpack.c.h.b16 %v113
  %v425 = vunpack.c.l.b16 %v114
  %v426 = vunpack.c.h.b16 %v114
  %v427 = vunpack.c.l.b16 %v115
  %v428 = vunpack.c.h.b16 %v115
  %v429 = vunpack.c.l.b16 %v116
  %v430 = vunpack.c.h.b16 %v116
  %v431 = vunpack.c.l.b16 %v117
  %v432 = vunpack.c.h.b16 %v117
  %v433 = vunpack.c.l.b16 %v118
  %v434 = vunpack.c.h.b16 %v118
  %v435 = vunpack.c.l.b16 %v119
  %v436 = vunpack.c.h.b16 %v119
  %v437 = vunpack.c.l.b16 %v120
  %v438 = vunpack.c.h.b16 %v120
  %v439 = vunpack.c.l.b16 %v121
  %v440 = vunpack.c.h.b16 %v121
  %v441 = vunpack.c.l.b16 %v122
  %v442 = vunpack.c.h.b16 %v122
  %v443 = vunpack.c.l.b16 %v123
  %v444 = vunpack.c.h.b16 %v123
  %v445 = vunpack.c.l.b16 %v124
  %v446 = vunpack.c.h.b16 %v124
  %v447 = vunpack.c.l.b16 %v125
  %v448 = vunpack.c.h.b16 %v125
  %v449 = vunpack.c.l.b16 %v126
  %v450 = vunpack.c.h.b16 %v126
  %v451 = vunpack.c.l.b16 %v127
  %v452 = vunpack.c.h.b16 %v127
  %v453 = vunpack.c.l.b16 %v128
  %v454 = vunpack.c.h.b16 %v128
  %v455 = vunpack.c.l.b16 %v129
  %v456 = vunpack.c.h.b16 %v129
  %v457 = vunpack.c.l.b16 %v130
  %v458 = vunpack.c.h.b16 %v130
  %v459 = vunpack.c.l.b16 %v131
  %v460 = vunpack.c.h.b16 %v131
  %v461 = vpack.c.b16 %v267, %v265
  %v462 = vpack.c.b16 %v268, %v266
  %v463 = vpack.c.b16 %v271, %v269
  %v464 = vpack.c.b16 %v272, %v270
  %v465 = vpack.c.b16 %v275, %v273
  %v466 = vpack.c.b16 %v276, %v274
  %v467 = vpack.c.b16 %v279, %v277
  %v468 = vpack.c.b16 %v280, %v278
  %v469 = vpack.c.b16 %v283, %v281
  %v470 = vpack.c.b16 %v284, %v282
  %v471 = vpack.c.b16 %v287, %v285
  %v472 = vpack.c.b16 %v288, %v286
  %v473 = vpack.c.b16 %v291, %v289
  %v474 = vpack.c.b16 %v292, %v290
  %v475 = vpack.c.b16 %v295, %v293
  %v476 = vpack.c.b16 %v296, %v294
  %v477 = vpack.c.b16 %v299, %v297
  %v478 = vpack.c.b16 %v300, %v298
  %v479 = vpack.c.b16 %v303, %v301
  %v480 = vpack.c.b16 %v304, %v302
  %v481 = vpack.c.b16 %v307, %v305
  %v482 = vpack.c.b16 %v308, %v306
  %v483 = vpack.c.b16 %v311, %v309
  %v484 = vpack.c.b16 %v312, %v310
  %v485 = vpack.c.b16 %v315, %v313
  %v486 = vpack.c.b16 %v316, %v314
  %v487 = vpack.c.b16 %v319, %v317
  %v488 = vpack.c.b16 %v320, %v318
  %v489 = vpack.c.b16 %v323, %v321
  %v490 = vpack.c.b16 %v324, %v322
  %v491 = vpack.c.b16 %v327, %v325
  %v492 = vpack.c.b16 %v328, %v326
  %v493 = vpack.c.b16 %v331, %v329
  %v494 = vpack.c.b16 %v332, %v330
  %v495 = vpack.c.b16 %v335, %v333
  %v496 = vpack.c.b16 %v336, %v334
  %v497 = vpack.c.b16 %v339, %v337
  %v498 = vpack.c.b16 %v340, %v338
  %v499 = vpack.c.b16 %v343, %v341
  %v500 = vpack.c.b16 %v344, %v342
  %v501 = vpack.c.b16 %v347, %v345
  %v502 = vpack.c.b16 %v348, %v346
  %v503 = vpack.c.b16 %v351, %v349
  %v504 = vpack.c.b16 %v352, %v350
  %v505 = vpack.c.b16 %v355, %v353
  %v506 = vpack.c.b16 %v356, %v354
  %v507 = vpack.c.b16 %v359, %v357
  %v508 = vpack.c.b16 %v360, %v358
  %v509 = vpack.c.b16 %v363, %v361
  %v510 = vpack.c.b16 %v364, %v362
  %v511 = vpack.c.b16 %v367, %v365
  %v512 = vpack.c.b16 %v368, %v366
  %v513 = vpack.c.b16 %v371, %v369
  %v514 = vpack.c.b16 %v372, %v370
  %v515 = vpack.c.b16 %v375, %v373
  %v516 = vpack.c.b16 %v376, %v374
  %v517 = vpack.c.b16 %v379, %v377
  %v518 = vpack.c.b16 %v380, %v378
  %v519 = vpack.c.b16 %v383, %v381
  %v520 = vpack.c.b16 %v384, %v382
  %v521 = vpack.c.b16 %v387, %v385
  %v522 = vpack.c.b16 %v388, %v386
  %v523 = vpack.c.b16 %v391, %v389
  %v524 = vpack.c.b16 %v392, %v390
  %v525 = vpack.c.b16 %v395, %v393
  %v526 = vpack.c.b16 %v396, %v394
  %v527 = vpack.c.b16 %v399, %v397
  %v528 = vpack.c.b16 %v400, %v398
  %v529 = vpack.c.b16 %v403, %v401
  %v530 = vpack.c.b16 %v404, %v402
  %v531 = vpack.c.b16 %v407, %v405
  %v532 = vpack.c.b16 %v408, %v406
  %v533 = vpack.c.b16 %v411, %v409
  %v534 = vpack.c.b16 %v412, %v410
  %v535 = vpack.c.b16 %v415, %v413
  %v536 = vpack.c.b16 %v416, %v414
  %v537 = vpack.c.b16 %v419, %v417
  %v538 = vpack.c.b16 %v420, %v418
  %v539 = vpack.c.b16 %v423, %v421
  %v540 = vpack.c.b16 %v424, %v422
  %v541 = vpack.c.b16 %v427, %v425
  %v542 = vpack.c.b16 %v428, %v426
  %v543 = vpack.c.b16 %v431, %v429
  %v544 = vpack.c.b16 %v432, %v430
  %v545 = vpack.c.b16 %v435, %v433
  %v546 = vpack.c.b16 %v436, %v434
  %v547 = vpack.c.b16 %v439, %v437
  %v548 = vpack.c.b16 %v440, %v438
  %v549 = vpack.c.b16 %v443, %v441
  %v550 = vpack.c.b16 %v444, %v442
  %v551 = vpack.c.b16 %v447, %v445
  %v552 = vpack.c.b16 %v448, %v446
  %v553 = vpack.c.b16 %v451, %v449
  %v554 = vpack.c.b16 %v452, %v450
  %v555 = vpack.c.b16 %v455, %v453
  %v556 = vpack.c.b16 %v456, %v454
  %v557 = vpack.c.b16 %v459, %v457
  %v558 = vpack.c.b16 %v460, %v458
  %vm657 = vcmask 130048
  %v659 = vsel %vm657, %v160, 0
  %661 = vmatprep.subr.bf16.mxu0 %v476
  %662 = vmatpush1.bf16.msra.mxu0 %v475
  %663 = vmatprep.subr.bf16.mxu0 %v474
  %664 = vmatpush1.bf16.msra.mxu0 %v473
  %665 = vmatprep.subr.bf16.mxu0 %v472
  %666 = vmatpush1.bf16.msra.mxu0 %v471
  %667 = vmatprep.subr.bf16.mxu0 %v470
  %668 = vmatpush1.bf16.msra.mxu0 %v469
  %669 = vmatprep.subr.bf16.mxu0 %v468
  %670 = vmatpush1.bf16.msra.mxu0 %v467
  %671 = vmatprep.subr.bf16.mxu0 %v466
  %672 = vmatpush1.bf16.msra.mxu0 %v465
  %673 = vmatprep.subr.bf16.mxu0 %v464
  %674 = vmatpush1.bf16.msra.mxu0 %v463
  %675 = vmatprep.subr.bf16.mxu0 %v462
  %676 = vmatpush1.bf16.msra.mxu0 %v461
  %677 = vmatprep.subr.bf16.mxu0 %v492
  %678 = vmatpush2.bf16.msra.mxu0 %v491
  %679 = vmatprep.subr.bf16.mxu0 %v490
  %680 = vmatpush2.bf16.msra.mxu0 %v489
  %681 = vmatprep.subr.bf16.mxu0 %v488
  %682 = vmatpush2.bf16.msra.mxu0 %v487
  %683 = vmatprep.subr.bf16.mxu0 %v486
  %684 = vmatpush2.bf16.msra.mxu0 %v485
  %685 = vmatprep.subr.bf16.mxu0 %v484
  %686 = vmatpush2.bf16.msra.mxu0 %v483
  %687 = vmatprep.subr.bf16.mxu0 %v482
  %688 = vmatpush2.bf16.msra.mxu0 %v481
  %689 = vmatprep.subr.bf16.mxu0 %v480
  %690 = vmatpush2.bf16.msra.mxu0 %v479
  %691 = vmatprep.subr.bf16.mxu0 %v478
  %692 = vmatpush2.bf16.msra.mxu0 %v477
  %693 = vmatprep.mubr.bf16.mxu0 %v155
  %694 = vmatmul.mubr.bf16.gmra.mxu0 %v154
  %v695 = vpop.f32.mrf.mxu0
  %v696 = vadd.f32 0.0, %v695
  %v697 = vpop.f32.mrf.mxu0
  %v698 = vadd.f32 0.0, %v697
  %v699 = vpop.f32.mrf.mxu0
  %v700 = vadd.f32 0.0, %v699
  %v701 = vpop.f32.mrf.mxu0
  %v702 = vadd.f32 0.0, %v701
  %703 = vdwg.mxu0
  %704 = vmatprep.subr.bf16.mxu0 %v508
  %705 = vmatpush1.bf16.msra.mxu0 %v507
  %706 = vmatprep.subr.bf16.mxu0 %v506
  %707 = vmatpush1.bf16.msra.mxu0 %v505
  %708 = vmatprep.subr.bf16.mxu0 %v504
  %709 = vmatpush1.bf16.msra.mxu0 %v503
  %710 = vmatprep.subr.bf16.mxu0 %v502
  %711 = vmatpush1.bf16.msra.mxu0 %v501
  %712 = vmatprep.subr.bf16.mxu0 %v500
  %713 = vmatpush1.bf16.msra.mxu0 %v499
  %714 = vmatprep.subr.bf16.mxu0 %v498
  %715 = vmatpush1.bf16.msra.mxu0 %v497
  %716 = vmatprep.subr.bf16.mxu0 %v496
  %717 = vmatpush1.bf16.msra.mxu0 %v495
  %718 = vmatprep.subr.bf16.mxu0 %v494
  %719 = vmatpush1.bf16.msra.mxu0 %v493
  %720 = vmatprep.subr.bf16.mxu0 %v524
  %721 = vmatpush2.bf16.msra.mxu0 %v523
  %722 = vmatprep.subr.bf16.mxu0 %v522
  %723 = vmatpush2.bf16.msra.mxu0 %v521
  %724 = vmatprep.subr.bf16.mxu0 %v520
  %725 = vmatpush2.bf16.msra.mxu0 %v519
  %726 = vmatprep.subr.bf16.mxu0 %v518
  %727 = vmatpush2.bf16.msra.mxu0 %v517
  %728 = vmatprep.subr.bf16.mxu0 %v516
  %729 = vmatpush2.bf16.msra.mxu0 %v515
  %730 = vmatprep.subr.bf16.mxu0 %v514
  %731 = vmatpush2.bf16.msra.mxu0 %v513
  %732 = vmatprep.subr.bf16.mxu0 %v512
  %733 = vmatpush2.bf16.msra.mxu0 %v511
  %734 = vmatprep.subr.bf16.mxu0 %v510
  %735 = vmatpush2.bf16.msra.mxu0 %v509
  %736 = vmatprep.mubr.bf16.mxu0 %v157
  %737 = vmatmul.mubr.bf16.gmra.mxu0 %v156
  %v738 = vpop.f32.mrf.mxu0
  %v739 = vadd.f32 %v696, %v738
  %v740 = vpop.f32.mrf.mxu0
  %v741 = vadd.f32 %v698, %v740
  %v742 = vpop.f32.mrf.mxu0
  %v743 = vadd.f32 %v700, %v742
  %v744 = vpop.f32.mrf.mxu0
  %v745 = vadd.f32 %v702, %v744
  %746 = vdwg.mxu0
  %747 = vmatprep.subr.bf16.mxu0 %v540
  %748 = vmatpush1.bf16.msra.mxu0 %v539
  %749 = vmatprep.subr.bf16.mxu0 %v538
  %750 = vmatpush1.bf16.msra.mxu0 %v537
  %751 = vmatprep.subr.bf16.mxu0 %v536
  %752 = vmatpush1.bf16.msra.mxu0 %v535
  %753 = vmatprep.subr.bf16.mxu0 %v534
  %754 = vmatpush1.bf16.msra.mxu0 %v533
  %755 = vmatprep.subr.bf16.mxu0 %v532
  %756 = vmatpush1.bf16.msra.mxu0 %v531
  %757 = vmatprep.subr.bf16.mxu0 %v530
  %758 = vmatpush1.bf16.msra.mxu0 %v529
  %759 = vmatprep.subr.bf16.mxu0 %v528
  %760 = vmatpush1.bf16.msra.mxu0 %v527
  %761 = vmatprep.subr.bf16.mxu0 %v526
  %762 = vmatpush1.bf16.msra.mxu0 %v525
  %763 = vmatprep.subr.bf16.mxu0 %v556
  %764 = vmatpush2.bf16.msra.mxu0 %v555
  %765 = vmatprep.subr.bf16.mxu0 %v554
  %766 = vmatpush2.bf16.msra.mxu0 %v553
  %767 = vmatprep.subr.bf16.mxu0 %v552
  %768 = vmatpush2.bf16.msra.mxu0 %v551
  %769 = vmatprep.subr.bf16.mxu0 %v550
  %770 = vmatpush2.bf16.msra.mxu0 %v549
  %771 = vmatprep.subr.bf16.mxu0 %v548
  %772 = vmatpush2.bf16.msra.mxu0 %v547
  %773 = vmatprep.subr.bf16.mxu0 %v546
  %774 = vmatpush2.bf16.msra.mxu0 %v545
  %775 = vmatprep.subr.bf16.mxu0 %v544
  %776 = vmatpush2.bf16.msra.mxu0 %v543
  %777 = vmatprep.subr.bf16.mxu0 %v542
  %778 = vmatpush2.bf16.msra.mxu0 %v541
  %779 = vmatprep.mubr.bf16.mxu0 %v159
  %780 = vmatmul.mubr.bf16.gmra.mxu0 %v158
  %v781 = vpop.f32.mrf.mxu0
  %v782 = vadd.f32 %v739, %v781
  %v783 = vpop.f32.mrf.mxu0
  %v784 = vadd.f32 %v741, %v783
  %v785 = vpop.f32.mrf.mxu0
  %v786 = vadd.f32 %v743, %v785
  %v787 = vpop.f32.mrf.mxu0
  %v788 = vadd.f32 %v745, %v787
  %789 = vdwg.mxu0
  %790 = vmatprep.subr.bf16.mxu0 0
  %791 = vmatpush1.bf16.msra.mxu0 0
  %792 = vmatprep.subr.bf16.mxu0 0
  %793 = vmatpush1.bf16.msra.mxu0 0
  %794 = vmatprep.subr.bf16.mxu0 0
  %795 = vmatpush1.bf16.msra.mxu0 0
  %796 = vmatprep.subr.bf16.mxu0 0
  %797 = vmatpush1.bf16.msra.mxu0 0
  %798 = vmatprep.subr.bf16.mxu0 0
  %799 = vmatpush1.bf16.msra.mxu0 0
  %800 = vmatprep.subr.bf16.mxu0 0
  %801 = vmatpush1.bf16.msra.mxu0 0
  %802 = vmatprep.subr.bf16.mxu0 0
  %803 = vmatpush1.bf16.msra.mxu0 0
  %804 = vmatprep.subr.bf16.mxu0 %v558
  %805 = vmatpush1.bf16.msra.mxu0 %v557
  %806 = vmatprep.subr.bf16.mxu0 0
  %807 = vmatpush2.bf16.msra.mxu0 0
  %808 = vmatprep.subr.bf16.mxu0 0
  %809 = vmatpush2.bf16.msra.mxu0 0
  %810 = vmatprep.subr.bf16.mxu0 0
  %811 = vmatpush2.bf16.msra.mxu0 0
  %812 = vmatprep.subr.bf16.mxu0 0
  %813 = vmatpush2.bf16.msra.mxu0 0
  %814 = vmatprep.subr.bf16.mxu0 0
  %815 = vmatpush2.bf16.msra.mxu0 0
  %816 = vmatprep.subr.bf16.mxu0 0
  %817 = vmatpush2.bf16.msra.mxu0 0
  %818 = vmatprep.subr.bf16.mxu0 0
  %819 = vmatpush2.bf16.msra.mxu0 0
  %820 = vmatprep.subr.bf16.mxu0 0
  %821 = vmatpush2.bf16.msra.mxu0 0
  %822 = vmatprep.mubr.bf16.mxu0 0
  %823 = vmatmul.mubr.bf16.gmra.mxu0 %v659
  %v824 = vpop.f32.mrf.mxu0
  %v825 = vadd.f32 %v782, %v824
  %v826 = vpop.f32.mrf.mxu0
  %v827 = vadd.f32 %v784, %v826
  %v828 = vpop.f32.mrf.mxu0
  %v829 = vadd.f32 %v786, %v828
  %v830 = vpop.f32.mrf.mxu0
  %v831 = vadd.f32 %v788, %v830
  %832 = vdwg.mxu0
  %v833 = vmul.f32 %v825, 0.027777778
  %v834 = vmul.f32 %v827, 0.027777778
  %v835 = vmul.f32 %v829, 0.027777778
  %v836 = vmul.f32 %v831, 0.027777778
  %v837 = vlaneseq
  %v838 = vshrl.u32 %v837, 7
  %v839 = vadd.s32 %v838, 8
  %v840 = vshra.s32 %v838, 3
  %v841 = vshra.s32 %v839, 3
  %v842 = vand.u32 %v840, 1
  %v843 = vand.u32 %v841, 1
  %vm844 = vcmp.eq.s32.totalorder %v842, 1
  %vm845 = vcmp.eq.s32.totalorder %v843, 1
  %v846 = vshra.s32 %v838, 2
  %v847 = vshra.s32 %v839, 2
  %v848 = vand.u32 %v846, 1
  %v849 = vand.u32 %v847, 1
  %vm850 = vcmp.eq.s32.totalorder %v848, 1
  %vm851 = vcmp.eq.s32.totalorder %v849, 1
  %v852 = vshra.s32 %v838, 1
  %v853 = vshra.s32 %v839, 1
  %v854 = vand.u32 %v852, 1
  %v855 = vand.u32 %v853, 1
  %vm856 = vcmp.eq.s32.totalorder %v854, 1
  %vm857 = vcmp.eq.s32.totalorder %v855, 1
  %v858 = vand.u32 %v838, 1
  %v859 = vand.u32 %v839, 1
  %vm860 = vcmp.eq.s32.totalorder %v858, 1
  %vm861 = vcmp.eq.s32.totalorder %v859, 1
  %v862 = vld [vmem:[%s2] sm:$0xff]
  %v863 = vld [vmem:[%s2 + $0x8] sm:$0xff]
  %v864 = vld [vmem:[%s2 + $0x10] sm:$0xff]
  %v865 = vld [vmem:[%s2 + $0x18] sm:$0xff]
  %v866 = vld [vmem:[%s3] sm:$0xff]
  %v867 = vld [vmem:[%s3 + $0x8] sm:$0xff]
  %v868 = vadd.f32 %v833, 0.0
  %v869 = vadd.f32 %v834, 0.0
  %v870 = vadd.f32 %v835, 0.0
  %v871 = vadd.f32 %v836, 0.0
  %v872 = vmul.f32 %v868, 0.5
  %v873 = vmul.f32 %v869, 0.5
  %v874 = vmul.f32 %v870, 0.5
  %v875 = vmul.f32 %v871, 0.5
  %v876 = vand.u32 2147483647, %v872
  %vm877 = vcmp.le.f32.partialorder %v876, 0.7853982
  %vm878 = vcmp.lt.s32.totalorder %v872, 0
  %v879 = vand.u32 %v872, 2139095040
  %v880 = vshrl.u32 %v879, 23
  %v881 = vsub.s32 %v880, 127
  %v882 = vand.u32 2147483647, %v872
  %v883 = vand.u32 %v882, 8388607
  %v884 = vor.u32 %v883, 8388608
  %v885 = vsub.s32 0, %v884
  %v886 = vadd.s32 %v881, 1
  %vm887 = vcmp.gt.s32.totalorder %v886, 0
  %v888 = vsel %vm887, %v886, 0
  %v889 = vshrl.u32 %v888, 5
  %v890 = vand.u32 %v888, 31
  %v891 = vsub.s32 32, %v890
  %v892 = vshrl.u32 683565275, %v891
  %v893 = vshll.u32 683565275, %v890
  %v894 = vshrl.u32 2475754826, %v891
  %v895 = vor.u32 %v893, %v894
  %v896 = vshll.u32 2475754826, %v890
  %v897 = vshrl.u32 2131351028, %v891
  %v898 = vor.u32 %v896, %v897
  %v899 = vshll.u32 2131351028, %v890
  %v900 = vshrl.u32 2102212464, %v891
  %v901 = vor.u32 %v899, %v900
  %v902 = vshll.u32 2102212464, %v890
  %v903 = vshrl.u32 920167782, %v891
  %v904 = vor.u32 %v902, %v903
  %v905 = vshll.u32 920167782, %v890
  %v906 = vshrl.u32 1326507024, %v891
  %v907 = vor.u32 %v905, %v906
  %vm908 = vcmp.lt.s32.totalorder %v889, 1
  %vm909 = vcmp.lt.s32.totalorder %v889, 2
  %vm910 = vcmp.lt.s32.totalorder %v889, 3
  %vm911 = vcmp.lt.s32.totalorder %v889, 4
  %v912 = vsel %vm908, %v892, %v895
  %v913 = vsel %vm911, %v901, 2102212464
  %v914 = vsel %vm910, %v898, %v913
  %v915 = vsel %vm909, %v912, %v914
  %v916 = vsel %vm908, %v895, %v898
  %v917 = vsel %vm911, %v904, 920167782
  %v918 = vsel %vm910, %v901, %v917
  %v919 = vsel %vm909, %v916, %v918
  %v920 = vsel %vm908, %v898, %v901
  %v921 = vsel %vm911, %v907, 1326507024
  %v922 = vsel %vm910, %v904, %v921
  %v923 = vsel %vm909, %v920, %v922
  %v924 = vshll.u32 %v884, 8
  %v925 = vmul.u32.u64.compose %v924, %v923
  %v926 = vextract.low.u32 %v925
  %v927 = vextract.high.u32 %v925
  %v928 = vmul.u32.u64.compose %v924, %v919
  %v929 = vextract.low.u32 %v928
  %v930 = vextract.high.u32 %v928
  %v931 = vmul.u32 %v924, %v915
  %v932 = vadd.s32 %v927, %v929
  %vm933 = vc.u32 %v927, %v929
  %v934 = vadd.s32 %v930, 1
  %v935 = vsel %vm933, %v934, %v930
  %v936 = vadd.s32 %v931, %v935
  %v937 = vadd.s32 %v936, 536870912
  %v938 = vshrl.u32 %v937, 30
  %v939 = vshll.u32 %v938, 30
  %v940 = vsub.s32 %v936, %v939
  %vm941 = vcmp.lt.s32.totalorder %v940, 0
  %v942 = vsub.s32 0, %v940
  %v943 = vsel %vm941, %v942, %v940
  %v944 = vclz %v943
  %v945 = vsub.s32 %v944, 2
  %vm946 = vcmp.gt.s32.totalorder 0, %v945
  %v947 = vsel %vm946, 0, %v945
  %v948 = vsub.s32 32, %v947
  %v949 = vshll.u32 %v940, %v947
  %v950 = vshrl.u32 %v932, %v948
  %v951 = vor.u32 %v949, %v950
  %v952 = vsub.s32 4294967266, %v947
  %v953 = vadd.s32 %v952, 127
  %v954 = vshll.u32 %v953, 23
  %v955 = vor.u32 4788187, %v954
  %v956 = vand.u32 2147483647, %v955
  %v958 = vcvt.s32.f32 %v951
  %v959 = vmul.f32 %v958, %v956
  %v960 = vxor.u32 %v959, 2147483648
  %v961 = vsel %vm878, %v960, %v959
  %v962 = vsub.s32 4, %v938
  %v963 = vsel %vm878, %v962, %v938
  %v964 = vsel %vm877, %v872, %v961
  %v965 = vsel %vm877, 0, %v963
  %v966 = vcosq.f32.pop %v964
  %v967 = vsinq.f32.pop %v964
  %vm968 = vweird.f32 %v872
  %v969 = vand.u32 %v965, 3
  %vm970 = vcmp.lt.s32.totalorder %v969, 2
  %vm971 = vcmp.eq.s32.totalorder %v969, 0
  %v972 = vxor.u32 %v967, 2147483648
  %v973 = vsel %vm971, %v966, %v972
  %vm974 = vcmp.eq.s32.totalorder %v969, 2
  %v975 = vxor.u32 %v966, 2147483648
  %v976 = vsel %vm974, %v975, %v967
  %v977 = vsel %vm970, %v973, %v976
  %v978 = vsel %vm968, nan, %v977
  %v979 = vand.u32 2147483647, %v873
  %vm980 = vcmp.le.f32.partialorder %v979, 0.7853982
  %vm981 = vcmp.lt.s32.totalorder %v873, 0
  %v982 = vand.u32 %v873, 2139095040
  %v983 = vshrl.u32 %v982, 23
  %v984 = vsub.s32 %v983, 127
  %v985 = vand.u32 2147483647, %v873
  %v986 = vand.u32 %v985, 8388607
  %v987 = vor.u32 %v986, 8388608
  %v988 = vsub.s32 0, %v987
  %v989 = vadd.s32 %v984, 1
  %vm990 = vcmp.gt.s32.totalorder %v989, 0
  %v991 = vsel %vm990, %v989, 0
  %v992 = vshrl.u32 %v991, 5
  %v993 = vand.u32 %v991, 31
  %v994 = vsub.s32 32, %v993
  %v995 = vshrl.u32 683565275, %v994
  %v996 = vshll.u32 683565275, %v993
  %v997 = vshrl.u32 2475754826, %v994
  %v998 = vor.u32 %v996, %v997
  %v999 = vshll.u32 2475754826, %v993
  %v1000 = vshrl.u32 2131351028, %v994
  %v1001 = vor.u32 %v999, %v1000
  %v1002 = vshll.u32 2131351028, %v993
  %v1003 = vshrl.u32 2102212464, %v994
  %v1004 = vor.u32 %v1002, %v1003
  %v1005 = vshll.u32 2102212464, %v993
  %v1006 = vshrl.u32 920167782, %v994
  %v1007 = vor.u32 %v1005, %v1006
  %v1008 = vshll.u32 920167782, %v993
  %v1009 = vshrl.u32 1326507024, %v994
  %v1010 = vor.u32 %v1008, %v1009
  %vm1011 = vcmp.lt.s32.totalorder %v992, 1
  %vm1012 = vcmp.lt.s32.totalorder %v992, 2
  %vm1013 = vcmp.lt.s32.totalorder %v992, 3
  %vm1014 = vcmp.lt.s32.totalorder %v992, 4
  %v1015 = vsel %vm1011, %v995, %v998
  %v1016 = vsel %vm1014, %v1004, 2102212464
  %v1017 = vsel %vm1013, %v1001, %v1016
  %v1018 = vsel %vm1012, %v1015, %v1017
  %v1019 = vsel %vm1011, %v998, %v1001
  %v1020 = vsel %vm1014, %v1007, 920167782
  %v1021 = vsel %vm1013, %v1004, %v1020
  %v1022 = vsel %vm1012, %v1019, %v1021
  %v1023 = vsel %vm1011, %v1001, %v1004
  %v1024 = vsel %vm1014, %v1010, 1326507024
  %v1025 = vsel %vm1013, %v1007, %v1024
  %v1026 = vsel %vm1012, %v1023, %v1025
  %v1027 = vshll.u32 %v987, 8
  %v1028 = vmul.u32.u64.compose %v1027, %v1026
  %v1029 = vextract.low.u32 %v1028
  %v1030 = vextract.high.u32 %v1028
  %v1031 = vmul.u32.u64.compose %v1027, %v1022
  %v1032 = vextract.low.u32 %v1031
  %v1033 = vextract.high.u32 %v1031
  %v1034 = vmul.u32 %v1027, %v1018
  %v1035 = vadd.s32 %v1030, %v1032
  %vm1036 = vc.u32 %v1030, %v1032
  %v1037 = vadd.s32 %v1033, 1
  %v1038 = vsel %vm1036, %v1037, %v1033
  %v1039 = vadd.s32 %v1034, %v1038
  %v1040 = vadd.s32 %v1039, 536870912
  %v1041 = vshrl.u32 %v1040, 30
  %v1042 = vshll.u32 %v1041, 30
  %v1043 = vsub.s32 %v1039, %v1042
  %vm1044 = vcmp.lt.s32.totalorder %v1043, 0
  %v1045 = vsub.s32 0, %v1043
  %v1046 = vsel %vm1044, %v1045, %v1043
  %v1047 = vclz %v1046
  %v1048 = vsub.s32 %v1047, 2
  %vm1049 = vcmp.gt.s32.totalorder 0, %v1048
  %v1050 = vsel %vm1049, 0, %v1048
  %v1051 = vsub.s32 32, %v1050
  %v1052 = vshll.u32 %v1043, %v1050
  %v1053 = vshrl.u32 %v1035, %v1051
  %v1054 = vor.u32 %v1052, %v1053
  %v1055 = vsub.s32 4294967266, %v1050
  %v1056 = vadd.s32 %v1055, 127
  %v1057 = vshll.u32 %v1056, 23
  %v1058 = vor.u32 4788187, %v1057
  %v1059 = vand.u32 2147483647, %v1058
  %v1061 = vcvt.s32.f32 %v1054
  %v1062 = vmul.f32 %v1061, %v1059
  %v1063 = vxor.u32 %v1062, 2147483648
  %v1064 = vsel %vm981, %v1063, %v1062
  %v1065 = vsub.s32 4, %v1041
  %v1066 = vsel %vm981, %v1065, %v1041
  %v1067 = vsel %vm980, %v873, %v1064
  %v1068 = vsel %vm980, 0, %v1066
  %v1069 = vcosq.f32.pop %v1067
  %v1070 = vsinq.f32.pop %v1067
  %vm1071 = vweird.f32 %v873
  %v1072 = vand.u32 %v1068, 3
  %vm1073 = vcmp.lt.s32.totalorder %v1072, 2
  %vm1074 = vcmp.eq.s32.totalorder %v1072, 0
  %v1075 = vxor.u32 %v1070, 2147483648
  %v1076 = vsel %vm1074, %v1069, %v1075
  %vm1077 = vcmp.eq.s32.totalorder %v1072, 2
  %v1078 = vxor.u32 %v1069, 2147483648
  %v1079 = vsel %vm1077, %v1078, %v1070
  %v1080 = vsel %vm1073, %v1076, %v1079
  %v1081 = vsel %vm1071, nan, %v1080
  %v1082 = vand.u32 2147483647, %v874
  %vm1083 = vcmp.le.f32.partialorder %v1082, 0.7853982
  %vm1084 = vcmp.lt.s32.totalorder %v874, 0
  %v1085 = vand.u32 %v874, 2139095040
  %v1086 = vshrl.u32 %v1085, 23
  %v1087 = vsub.s32 %v1086, 127
  %v1088 = vand.u32 2147483647, %v874
  %v1089 = vand.u32 %v1088, 8388607
  %v1090 = vor.u32 %v1089, 8388608
  %v1091 = vsub.s32 0, %v1090
  %v1092 = vadd.s32 %v1087, 1
  %vm1093 = vcmp.gt.s32.totalorder %v1092, 0
  %v1094 = vsel %vm1093, %v1092, 0
  %v1095 = vshrl.u32 %v1094, 5
  %v1096 = vand.u32 %v1094, 31
  %v1097 = vsub.s32 32, %v1096
  %v1098 = vshrl.u32 683565275, %v1097
  %v1099 = vshll.u32 683565275, %v1096
  %v1100 = vshrl.u32 2475754826, %v1097
  %v1101 = vor.u32 %v1099, %v1100
  %v1102 = vshll.u32 2475754826, %v1096
  %v1103 = vshrl.u32 2131351028, %v1097
  %v1104 = vor.u32 %v1102, %v1103
  %v1105 = vshll.u32 2131351028, %v1096
  %v1106 = vshrl.u32 2102212464, %v1097
  %v1107 = vor.u32 %v1105, %v1106
  %v1108 = vshll.u32 2102212464, %v1096
  %v1109 = vshrl.u32 920167782, %v1097
  %v1110 = vor.u32 %v1108, %v1109
  %v1111 = vshll.u32 920167782, %v1096
  %v1112 = vshrl.u32 1326507024, %v1097
  %v1113 = vor.u32 %v1111, %v1112
  %vm1114 = vcmp.lt.s32.totalorder %v1095, 1
  %vm1115 = vcmp.lt.s32.totalorder %v1095, 2
  %vm1116 = vcmp.lt.s32.totalorder %v1095, 3
  %vm1117 = vcmp.lt.s32.totalorder %v1095, 4
  %v1118 = vsel %vm1114, %v1098, %v1101
  %v1119 = vsel %vm1117, %v1107, 2102212464
  %v1120 = vsel %vm1116, %v1104, %v1119
  %v1121 = vsel %vm1115, %v1118, %v1120
  %v1122 = vsel %vm1114, %v1101, %v1104
  %v1123 = vsel %vm1117, %v1110, 920167782
  %v1124 = vsel %vm1116, %v1107, %v1123
  %v1125 = vsel %vm1115, %v1122, %v1124
  %v1126 = vsel %vm1114, %v1104, %v1107
  %v1127 = vsel %vm1117, %v1113, 1326507024
  %v1128 = vsel %vm1116, %v1110, %v1127
  %v1129 = vsel %vm1115, %v1126, %v1128
  %v1130 = vshll.u32 %v1090, 8
  %v1131 = vmul.u32.u64.compose %v1130, %v1129
  %v1132 = vextract.low.u32 %v1131
  %v1133 = vextract.high.u32 %v1131
  %v1134 = vmul.u32.u64.compose %v1130, %v1125
  %v1135 = vextract.low.u32 %v1134
  %v1136 = vextract.high.u32 %v1134
  %v1137 = vmul.u32 %v1130, %v1121
  %v1138 = vadd.s32 %v1133, %v1135
  %vm1139 = vc.u32 %v1133, %v1135
  %v1140 = vadd.s32 %v1136, 1
  %v1141 = vsel %vm1139, %v1140, %v1136
  %v1142 = vadd.s32 %v1137, %v1141
  %v1143 = vadd.s32 %v1142, 536870912
  %v1144 = vshrl.u32 %v1143, 30
  %v1145 = vshll.u32 %v1144, 30
  %v1146 = vsub.s32 %v1142, %v1145
  %vm1147 = vcmp.lt.s32.totalorder %v1146, 0
  %v1148 = vsub.s32 0, %v1146
  %v1149 = vsel %vm1147, %v1148, %v1146
  %v1150 = vclz %v1149
  %v1151 = vsub.s32 %v1150, 2
  %vm1152 = vcmp.gt.s32.totalorder 0, %v1151
  %v1153 = vsel %vm1152, 0, %v1151
  %v1154 = vsub.s32 32, %v1153
  %v1155 = vshll.u32 %v1146, %v1153
  %v1156 = vshrl.u32 %v1138, %v1154
  %v1157 = vor.u32 %v1155, %v1156
  %v1158 = vsub.s32 4294967266, %v1153
  %v1159 = vadd.s32 %v1158, 127
  %v1160 = vshll.u32 %v1159, 23
  %v1161 = vor.u32 4788187, %v1160
  %v1162 = vand.u32 2147483647, %v1161
  %v1164 = vcvt.s32.f32 %v1157
  %v1165 = vmul.f32 %v1164, %v1162
  %v1166 = vxor.u32 %v1165, 2147483648
  %v1167 = vsel %vm1084, %v1166, %v1165
  %v1168 = vsub.s32 4, %v1144
  %v1169 = vsel %vm1084, %v1168, %v1144
  %v1170 = vsel %vm1083, %v874, %v1167
  %v1171 = vsel %vm1083, 0, %v1169
  %v1172 = vcosq.f32.pop %v1170
  %v1173 = vsinq.f32.pop %v1170
  %vm1174 = vweird.f32 %v874
  %v1175 = vand.u32 %v1171, 3
  %vm1176 = vcmp.lt.s32.totalorder %v1175, 2
  %vm1177 = vcmp.eq.s32.totalorder %v1175, 0
  %v1178 = vxor.u32 %v1173, 2147483648
  %v1179 = vsel %vm1177, %v1172, %v1178
  %vm1180 = vcmp.eq.s32.totalorder %v1175, 2
  %v1181 = vxor.u32 %v1172, 2147483648
  %v1182 = vsel %vm1180, %v1181, %v1173
  %v1183 = vsel %vm1176, %v1179, %v1182
  %v1184 = vsel %vm1174, nan, %v1183
  %v1185 = vand.u32 2147483647, %v875
  %vm1186 = vcmp.le.f32.partialorder %v1185, 0.7853982
  %vm1187 = vcmp.lt.s32.totalorder %v875, 0
  %v1188 = vand.u32 %v875, 2139095040
  %v1189 = vshrl.u32 %v1188, 23
  %v1190 = vsub.s32 %v1189, 127
  %v1191 = vand.u32 2147483647, %v875
  %v1192 = vand.u32 %v1191, 8388607
  %v1193 = vor.u32 %v1192, 8388608
  %v1194 = vsub.s32 0, %v1193
  %v1195 = vadd.s32 %v1190, 1
  %vm1196 = vcmp.gt.s32.totalorder %v1195, 0
  %v1197 = vsel %vm1196, %v1195, 0
  %v1198 = vshrl.u32 %v1197, 5
  %v1199 = vand.u32 %v1197, 31
  %v1200 = vsub.s32 32, %v1199
  %v1201 = vshrl.u32 683565275, %v1200
  %v1202 = vshll.u32 683565275, %v1199
  %v1203 = vshrl.u32 2475754826, %v1200
  %v1204 = vor.u32 %v1202, %v1203
  %v1205 = vshll.u32 2475754826, %v1199
  %v1206 = vshrl.u32 2131351028, %v1200
  %v1207 = vor.u32 %v1205, %v1206
  %v1208 = vshll.u32 2131351028, %v1199
  %v1209 = vshrl.u32 2102212464, %v1200
  %v1210 = vor.u32 %v1208, %v1209
  %v1211 = vshll.u32 2102212464, %v1199
  %v1212 = vshrl.u32 920167782, %v1200
  %v1213 = vor.u32 %v1211, %v1212
  %v1214 = vshll.u32 920167782, %v1199
  %v1215 = vshrl.u32 1326507024, %v1200
  %v1216 = vor.u32 %v1214, %v1215
  %vm1217 = vcmp.lt.s32.totalorder %v1198, 1
  %vm1218 = vcmp.lt.s32.totalorder %v1198, 2
  %vm1219 = vcmp.lt.s32.totalorder %v1198, 3
  %vm1220 = vcmp.lt.s32.totalorder %v1198, 4
  %v1221 = vsel %vm1217, %v1201, %v1204
  %v1222 = vsel %vm1220, %v1210, 2102212464
  %v1223 = vsel %vm1219, %v1207, %v1222
  %v1224 = vsel %vm1218, %v1221, %v1223
  %v1225 = vsel %vm1217, %v1204, %v1207
  %v1226 = vsel %vm1220, %v1213, 920167782
  %v1227 = vsel %vm1219, %v1210, %v1226
  %v1228 = vsel %vm1218, %v1225, %v1227
  %v1229 = vsel %vm1217, %v1207, %v1210
  %v1230 = vsel %vm1220, %v1216, 1326507024
  %v1231 = vsel %vm1219, %v1213, %v1230
  %v1232 = vsel %vm1218, %v1229, %v1231
  %v1233 = vshll.u32 %v1193, 8
  %v1234 = vmul.u32.u64.compose %v1233, %v1232
  %v1235 = vextract.low.u32 %v1234
  %v1236 = vextract.high.u32 %v1234
  %v1237 = vmul.u32.u64.compose %v1233, %v1228
  %v1238 = vextract.low.u32 %v1237
  %v1239 = vextract.high.u32 %v1237
  %v1240 = vmul.u32 %v1233, %v1224
  %v1241 = vadd.s32 %v1236, %v1238
  %vm1242 = vc.u32 %v1236, %v1238
  %v1243 = vadd.s32 %v1239, 1
  %v1244 = vsel %vm1242, %v1243, %v1239
  %v1245 = vadd.s32 %v1240, %v1244
  %v1246 = vadd.s32 %v1245, 536870912
  %v1247 = vshrl.u32 %v1246, 30
  %v1248 = vshll.u32 %v1247, 30
  %v1249 = vsub.s32 %v1245, %v1248
  %vm1250 = vcmp.lt.s32.totalorder %v1249, 0
  %v1251 = vsub.s32 0, %v1249
  %v1252 = vsel %vm1250, %v1251, %v1249
  %v1253 = vclz %v1252
  %v1254 = vsub.s32 %v1253, 2
  %vm1255 = vcmp.gt.s32.totalorder 0, %v1254
  %v1256 = vsel %vm1255, 0, %v1254
  %v1257 = vsub.s32 32, %v1256
  %v1258 = vshll.u32 %v1249, %v1256
  %v1259 = vshrl.u32 %v1241, %v1257
  %v1260 = vor.u32 %v1258, %v1259
  %v1261 = vsub.s32 4294967266, %v1256
  %v1262 = vadd.s32 %v1261, 127
  %v1263 = vshll.u32 %v1262, 23
  %v1264 = vor.u32 4788187, %v1263
  %v1265 = vand.u32 2147483647, %v1264
  %v1267 = vcvt.s32.f32 %v1260
  %v1268 = vmul.f32 %v1267, %v1265
  %v1269 = vxor.u32 %v1268, 2147483648
  %v1270 = vsel %vm1187, %v1269, %v1268
  %v1271 = vsub.s32 4, %v1247
  %v1272 = vsel %vm1187, %v1271, %v1247
  %v1273 = vsel %vm1186, %v875, %v1270
  %v1274 = vsel %vm1186, 0, %v1272
  %v1275 = vcosq.f32.pop %v1273
  %v1276 = vsinq.f32.pop %v1273
  %vm1277 = vweird.f32 %v875
  %v1278 = vand.u32 %v1274, 3
  %vm1279 = vcmp.lt.s32.totalorder %v1278, 2
  %vm1280 = vcmp.eq.s32.totalorder %v1278, 0
  %v1281 = vxor.u32 %v1276, 2147483648
  %v1282 = vsel %vm1280, %v1275, %v1281
  %vm1283 = vcmp.eq.s32.totalorder %v1278, 2
  %v1284 = vxor.u32 %v1275, 2147483648
  %v1285 = vsel %vm1283, %v1284, %v1276
  %v1286 = vsel %vm1279, %v1282, %v1285
  %v1287 = vsel %vm1277, nan, %v1286
  %v1288 = vand.u32 2147483647, %v872
  %vm1289 = vcmp.le.f32.partialorder %v1288, 0.7853982
  %vm1290 = vcmp.lt.s32.totalorder %v872, 0
  %v1291 = vand.u32 %v872, 2139095040
  %v1292 = vshrl.u32 %v1291, 23
  %v1293 = vsub.s32 %v1292, 127
  %v1294 = vand.u32 2147483647, %v872
  %v1295 = vand.u32 %v1294, 8388607
  %v1296 = vor.u32 %v1295, 8388608
  %v1297 = vsub.s32 0, %v1296
  %v1298 = vadd.s32 %v1293, 1
  %vm1299 = vcmp.gt.s32.totalorder %v1298, 0
  %v1300 = vsel %vm1299, %v1298, 0
  %v1301 = vshrl.u32 %v1300, 5
  %v1302 = vand.u32 %v1300, 31
  %v1303 = vsub.s32 32, %v1302
  %v1304 = vshrl.u32 683565275, %v1303
  %v1305 = vshll.u32 683565275, %v1302
  %v1306 = vshrl.u32 2475754826, %v1303
  %v1307 = vor.u32 %v1305, %v1306
  %v1308 = vshll.u32 2475754826, %v1302
  %v1309 = vshrl.u32 2131351028, %v1303
  %v1310 = vor.u32 %v1308, %v1309
  %v1311 = vshll.u32 2131351028, %v1302
  %v1312 = vshrl.u32 2102212464, %v1303
  %v1313 = vor.u32 %v1311, %v1312
  %v1314 = vshll.u32 2102212464, %v1302
  %v1315 = vshrl.u32 920167782, %v1303
  %v1316 = vor.u32 %v1314, %v1315
  %v1317 = vshll.u32 920167782, %v1302
  %v1318 = vshrl.u32 1326507024, %v1303
  %v1319 = vor.u32 %v1317, %v1318
  %vm1320 = vcmp.lt.s32.totalorder %v1301, 1
  %vm1321 = vcmp.lt.s32.totalorder %v1301, 2
  %vm1322 = vcmp.lt.s32.totalorder %v1301, 3
  %vm1323 = vcmp.lt.s32.totalorder %v1301, 4
  %v1324 = vsel %vm1320, %v1304, %v1307
  %v1325 = vsel %vm1323, %v1313, 2102212464
  %v1326 = vsel %vm1322, %v1310, %v1325
  %v1327 = vsel %vm1321, %v1324, %v1326
  %v1328 = vsel %vm1320, %v1307, %v1310
  %v1329 = vsel %vm1323, %v1316, 920167782
  %v1330 = vsel %vm1322, %v1313, %v1329
  %v1331 = vsel %vm1321, %v1328, %v1330
  %v1332 = vsel %vm1320, %v1310, %v1313
  %v1333 = vsel %vm1323, %v1319, 1326507024
  %v1334 = vsel %vm1322, %v1316, %v1333
  %v1335 = vsel %vm1321, %v1332, %v1334
  %v1336 = vshll.u32 %v1296, 8
  %v1337 = vmul.u32.u64.compose %v1336, %v1335
  %v1338 = vextract.low.u32 %v1337
  %v1339 = vextract.high.u32 %v1337
  %v1340 = vmul.u32.u64.compose %v1336, %v1331
  %v1341 = vextract.low.u32 %v1340
  %v1342 = vextract.high.u32 %v1340
  %v1343 = vmul.u32 %v1336, %v1327
  %v1344 = vadd.s32 %v1339, %v1341
  %vm1345 = vc.u32 %v1339, %v1341
  %v1346 = vadd.s32 %v1342, 1
  %v1347 = vsel %vm1345, %v1346, %v1342
  %v1348 = vadd.s32 %v1343, %v1347
  %v1349 = vadd.s32 %v1348, 536870912
  %v1350 = vshrl.u32 %v1349, 30
  %v1351 = vshll.u32 %v1350, 30
  %v1352 = vsub.s32 %v1348, %v1351
  %vm1353 = vcmp.lt.s32.totalorder %v1352, 0
  %v1354 = vsub.s32 0, %v1352
  %v1355 = vsel %vm1353, %v1354, %v1352
  %v1356 = vclz %v1355
  %v1357 = vsub.s32 %v1356, 2
  %vm1358 = vcmp.gt.s32.totalorder 0, %v1357
  %v1359 = vsel %vm1358, 0, %v1357
  %v1360 = vsub.s32 32, %v1359
  %v1361 = vshll.u32 %v1352, %v1359
  %v1362 = vshrl.u32 %v1344, %v1360
  %v1363 = vor.u32 %v1361, %v1362
  %v1364 = vsub.s32 4294967266, %v1359
  %v1365 = vadd.s32 %v1364, 127
  %v1366 = vshll.u32 %v1365, 23
  %v1367 = vor.u32 4788187, %v1366
  %v1368 = vand.u32 2147483647, %v1367
  %v1370 = vcvt.s32.f32 %v1363
  %v1371 = vmul.f32 %v1370, %v1368
  %v1372 = vxor.u32 %v1371, 2147483648
  %v1373 = vsel %vm1290, %v1372, %v1371
  %v1374 = vsub.s32 4, %v1350
  %v1375 = vsel %vm1290, %v1374, %v1350
  %v1376 = vsel %vm1289, %v872, %v1373
  %v1377 = vsel %vm1289, 0, %v1375
  %v1378 = vcosq.f32.pop %v1376
  %v1379 = vsinq.f32.pop %v1376
  %vm1380 = vweird.f32 %v872
  %v1381 = vadd.s32 %v1377, 3
  %v1382 = vand.u32 %v1381, 3
  %vm1383 = vcmp.lt.s32.totalorder %v1382, 2
  %vm1384 = vcmp.eq.s32.totalorder %v1382, 0
  %v1385 = vxor.u32 %v1379, 2147483648
  %v1386 = vsel %vm1384, %v1378, %v1385
  %vm1387 = vcmp.eq.s32.totalorder %v1382, 2
  %v1388 = vxor.u32 %v1378, 2147483648
  %v1389 = vsel %vm1387, %v1388, %v1379
  %v1390 = vsel %vm1383, %v1386, %v1389
  %v1391 = vsel %vm1380, nan, %v1390
  %v1392 = vand.u32 2147483647, %v873
  %vm1393 = vcmp.le.f32.partialorder %v1392, 0.7853982
  %vm1394 = vcmp.lt.s32.totalorder %v873, 0
  %v1395 = vand.u32 %v873, 2139095040
  %v1396 = vshrl.u32 %v1395, 23
  %v1397 = vsub.s32 %v1396, 127
  %v1398 = vand.u32 2147483647, %v873
  %v1399 = vand.u32 %v1398, 8388607
  %v1400 = vor.u32 %v1399, 8388608
  %v1401 = vsub.s32 0, %v1400
  %v1402 = vadd.s32 %v1397, 1
  %vm1403 = vcmp.gt.s32.totalorder %v1402, 0
  %v1404 = vsel %vm1403, %v1402, 0
  %v1405 = vshrl.u32 %v1404, 5
  %v1406 = vand.u32 %v1404, 31
  %v1407 = vsub.s32 32, %v1406
  %v1408 = vshrl.u32 683565275, %v1407
  %v1409 = vshll.u32 683565275, %v1406
  %v1410 = vshrl.u32 2475754826, %v1407
  %v1411 = vor.u32 %v1409, %v1410
  %v1412 = vshll.u32 2475754826, %v1406
  %v1413 = vshrl.u32 2131351028, %v1407
  %v1414 = vor.u32 %v1412, %v1413
  %v1415 = vshll.u32 2131351028, %v1406
  %v1416 = vshrl.u32 2102212464, %v1407
  %v1417 = vor.u32 %v1415, %v1416
  %v1418 = vshll.u32 2102212464, %v1406
  %v1419 = vshrl.u32 920167782, %v1407
  %v1420 = vor.u32 %v1418, %v1419
  %v1421 = vshll.u32 920167782, %v1406
  %v1422 = vshrl.u32 1326507024, %v1407
  %v1423 = vor.u32 %v1421, %v1422
  %vm1424 = vcmp.lt.s32.totalorder %v1405, 1
  %vm1425 = vcmp.lt.s32.totalorder %v1405, 2
  %vm1426 = vcmp.lt.s32.totalorder %v1405, 3
  %vm1427 = vcmp.lt.s32.totalorder %v1405, 4
  %v1428 = vsel %vm1424, %v1408, %v1411
  %v1429 = vsel %vm1427, %v1417, 2102212464
  %v1430 = vsel %vm1426, %v1414, %v1429
  %v1431 = vsel %vm1425, %v1428, %v1430
  %v1432 = vsel %vm1424, %v1411, %v1414
  %v1433 = vsel %vm1427, %v1420, 920167782
  %v1434 = vsel %vm1426, %v1417, %v1433
  %v1435 = vsel %vm1425, %v1432, %v1434
  %v1436 = vsel %vm1424, %v1414, %v1417
  %v1437 = vsel %vm1427, %v1423, 1326507024
  %v1438 = vsel %vm1426, %v1420, %v1437
  %v1439 = vsel %vm1425, %v1436, %v1438
  %v1440 = vshll.u32 %v1400, 8
  %v1441 = vmul.u32.u64.compose %v1440, %v1439
  %v1442 = vextract.low.u32 %v1441
  %v1443 = vextract.high.u32 %v1441
  %v1444 = vmul.u32.u64.compose %v1440, %v1435
  %v1445 = vextract.low.u32 %v1444
  %v1446 = vextract.high.u32 %v1444
  %v1447 = vmul.u32 %v1440, %v1431
  %v1448 = vadd.s32 %v1443, %v1445
  %vm1449 = vc.u32 %v1443, %v1445
  %v1450 = vadd.s32 %v1446, 1
  %v1451 = vsel %vm1449, %v1450, %v1446
  %v1452 = vadd.s32 %v1447, %v1451
  %v1453 = vadd.s32 %v1452, 536870912
  %v1454 = vshrl.u32 %v1453, 30
  %v1455 = vshll.u32 %v1454, 30
  %v1456 = vsub.s32 %v1452, %v1455
  %vm1457 = vcmp.lt.s32.totalorder %v1456, 0
  %v1458 = vsub.s32 0, %v1456
  %v1459 = vsel %vm1457, %v1458, %v1456
  %v1460 = vclz %v1459
  %v1461 = vsub.s32 %v1460, 2
  %vm1462 = vcmp.gt.s32.totalorder 0, %v1461
  %v1463 = vsel %vm1462, 0, %v1461
  %v1464 = vsub.s32 32, %v1463
  %v1465 = vshll.u32 %v1456, %v1463
  %v1466 = vshrl.u32 %v1448, %v1464
  %v1467 = vor.u32 %v1465, %v1466
  %v1468 = vsub.s32 4294967266, %v1463
  %v1469 = vadd.s32 %v1468, 127
  %v1470 = vshll.u32 %v1469, 23
  %v1471 = vor.u32 4788187, %v1470
  %v1472 = vand.u32 2147483647, %v1471
  %v1474 = vcvt.s32.f32 %v1467
  %v1475 = vmul.f32 %v1474, %v1472
  %v1476 = vxor.u32 %v1475, 2147483648
  %v1477 = vsel %vm1394, %v1476, %v1475
  %v1478 = vsub.s32 4, %v1454
  %v1479 = vsel %vm1394, %v1478, %v1454
  %v1480 = vsel %vm1393, %v873, %v1477
  %v1481 = vsel %vm1393, 0, %v1479
  %v1482 = vcosq.f32.pop %v1480
  %v1483 = vsinq.f32.pop %v1480
  %vm1484 = vweird.f32 %v873
  %v1485 = vadd.s32 %v1481, 3
  %v1486 = vand.u32 %v1485, 3
  %vm1487 = vcmp.lt.s32.totalorder %v1486, 2
  %vm1488 = vcmp.eq.s32.totalorder %v1486, 0
  %v1489 = vxor.u32 %v1483, 2147483648
  %v1490 = vsel %vm1488, %v1482, %v1489
  %vm1491 = vcmp.eq.s32.totalorder %v1486, 2
  %v1492 = vxor.u32 %v1482, 2147483648
  %v1493 = vsel %vm1491, %v1492, %v1483
  %v1494 = vsel %vm1487, %v1490, %v1493
  %v1495 = vsel %vm1484, nan, %v1494
  %v1496 = vand.u32 2147483647, %v874
  %vm1497 = vcmp.le.f32.partialorder %v1496, 0.7853982
  %vm1498 = vcmp.lt.s32.totalorder %v874, 0
  %v1499 = vand.u32 %v874, 2139095040
  %v1500 = vshrl.u32 %v1499, 23
  %v1501 = vsub.s32 %v1500, 127
  %v1502 = vand.u32 2147483647, %v874
  %v1503 = vand.u32 %v1502, 8388607
  %v1504 = vor.u32 %v1503, 8388608
  %v1505 = vsub.s32 0, %v1504
  %v1506 = vadd.s32 %v1501, 1
  %vm1507 = vcmp.gt.s32.totalorder %v1506, 0
  %v1508 = vsel %vm1507, %v1506, 0
  %v1509 = vshrl.u32 %v1508, 5
  %v1510 = vand.u32 %v1508, 31
  %v1511 = vsub.s32 32, %v1510
  %v1512 = vshrl.u32 683565275, %v1511
  %v1513 = vshll.u32 683565275, %v1510
  %v1514 = vshrl.u32 2475754826, %v1511
  %v1515 = vor.u32 %v1513, %v1514
  %v1516 = vshll.u32 2475754826, %v1510
  %v1517 = vshrl.u32 2131351028, %v1511
  %v1518 = vor.u32 %v1516, %v1517
  %v1519 = vshll.u32 2131351028, %v1510
  %v1520 = vshrl.u32 2102212464, %v1511
  %v1521 = vor.u32 %v1519, %v1520
  %v1522 = vshll.u32 2102212464, %v1510
  %v1523 = vshrl.u32 920167782, %v1511
  %v1524 = vor.u32 %v1522, %v1523
  %v1525 = vshll.u32 920167782, %v1510
  %v1526 = vshrl.u32 1326507024, %v1511
  %v1527 = vor.u32 %v1525, %v1526
  %vm1528 = vcmp.lt.s32.totalorder %v1509, 1
  %vm1529 = vcmp.lt.s32.totalorder %v1509, 2
  %vm1530 = vcmp.lt.s32.totalorder %v1509, 3
  %vm1531 = vcmp.lt.s32.totalorder %v1509, 4
  %v1532 = vsel %vm1528, %v1512, %v1515
  %v1533 = vsel %vm1531, %v1521, 2102212464
  %v1534 = vsel %vm1530, %v1518, %v1533
  %v1535 = vsel %vm1529, %v1532, %v1534
  %v1536 = vsel %vm1528, %v1515, %v1518
  %v1537 = vsel %vm1531, %v1524, 920167782
  %v1538 = vsel %vm1530, %v1521, %v1537
  %v1539 = vsel %vm1529, %v1536, %v1538
  %v1540 = vsel %vm1528, %v1518, %v1521
  %v1541 = vsel %vm1531, %v1527, 1326507024
  %v1542 = vsel %vm1530, %v1524, %v1541
  %v1543 = vsel %vm1529, %v1540, %v1542
  %v1544 = vshll.u32 %v1504, 8
  %v1545 = vmul.u32.u64.compose %v1544, %v1543
  %v1546 = vextract.low.u32 %v1545
  %v1547 = vextract.high.u32 %v1545
  %v1548 = vmul.u32.u64.compose %v1544, %v1539
  %v1549 = vextract.low.u32 %v1548
  %v1550 = vextract.high.u32 %v1548
  %v1551 = vmul.u32 %v1544, %v1535
  %v1552 = vadd.s32 %v1547, %v1549
  %vm1553 = vc.u32 %v1547, %v1549
  %v1554 = vadd.s32 %v1550, 1
  %v1555 = vsel %vm1553, %v1554, %v1550
  %v1556 = vadd.s32 %v1551, %v1555
  %v1557 = vadd.s32 %v1556, 536870912
  %v1558 = vshrl.u32 %v1557, 30
  %v1559 = vshll.u32 %v1558, 30
  %v1560 = vsub.s32 %v1556, %v1559
  %vm1561 = vcmp.lt.s32.totalorder %v1560, 0
  %v1562 = vsub.s32 0, %v1560
  %v1563 = vsel %vm1561, %v1562, %v1560
  %v1564 = vclz %v1563
  %v1565 = vsub.s32 %v1564, 2
  %vm1566 = vcmp.gt.s32.totalorder 0, %v1565
  %v1567 = vsel %vm1566, 0, %v1565
  %v1568 = vsub.s32 32, %v1567
  %v1569 = vshll.u32 %v1560, %v1567
  %v1570 = vshrl.u32 %v1552, %v1568
  %v1571 = vor.u32 %v1569, %v1570
  %v1572 = vsub.s32 4294967266, %v1567
  %v1573 = vadd.s32 %v1572, 127
  %v1574 = vshll.u32 %v1573, 23
  %v1575 = vor.u32 4788187, %v1574
  %v1576 = vand.u32 2147483647, %v1575
  %v1578 = vcvt.s32.f32 %v1571
  %v1579 = vmul.f32 %v1578, %v1576
  %v1580 = vxor.u32 %v1579, 2147483648
  %v1581 = vsel %vm1498, %v1580, %v1579
  %v1582 = vsub.s32 4, %v1558
  %v1583 = vsel %vm1498, %v1582, %v1558
  %v1584 = vsel %vm1497, %v874, %v1581
  %v1585 = vsel %vm1497, 0, %v1583
  %v1586 = vcosq.f32.pop %v1584
  %v1587 = vsinq.f32.pop %v1584
  %vm1588 = vweird.f32 %v874
  %v1589 = vadd.s32 %v1585, 3
  %v1590 = vand.u32 %v1589, 3
  %vm1591 = vcmp.lt.s32.totalorder %v1590, 2
  %vm1592 = vcmp.eq.s32.totalorder %v1590, 0
  %v1593 = vxor.u32 %v1587, 2147483648
  %v1594 = vsel %vm1592, %v1586, %v1593
  %vm1595 = vcmp.eq.s32.totalorder %v1590, 2
  %v1596 = vxor.u32 %v1586, 2147483648
  %v1597 = vsel %vm1595, %v1596, %v1587
  %v1598 = vsel %vm1591, %v1594, %v1597
  %v1599 = vsel %vm1588, nan, %v1598
  %v1600 = vand.u32 2147483647, %v875
  %vm1601 = vcmp.le.f32.partialorder %v1600, 0.7853982
  %vm1602 = vcmp.lt.s32.totalorder %v875, 0
  %v1603 = vand.u32 %v875, 2139095040
  %v1604 = vshrl.u32 %v1603, 23
  %v1605 = vsub.s32 %v1604, 127
  %v1606 = vand.u32 2147483647, %v875
  %v1607 = vand.u32 %v1606, 8388607
  %v1608 = vor.u32 %v1607, 8388608
  %v1609 = vsub.s32 0, %v1608
  %v1610 = vadd.s32 %v1605, 1
  %vm1611 = vcmp.gt.s32.totalorder %v1610, 0
  %v1612 = vsel %vm1611, %v1610, 0
  %v1613 = vshrl.u32 %v1612, 5
  %v1614 = vand.u32 %v1612, 31
  %v1615 = vsub.s32 32, %v1614
  %v1616 = vshrl.u32 683565275, %v1615
  %v1617 = vshll.u32 683565275, %v1614
  %v1618 = vshrl.u32 2475754826, %v1615
  %v1619 = vor.u32 %v1617, %v1618
  %v1620 = vshll.u32 2475754826, %v1614
  %v1621 = vshrl.u32 2131351028, %v1615
  %v1622 = vor.u32 %v1620, %v1621
  %v1623 = vshll.u32 2131351028, %v1614
  %v1624 = vshrl.u32 2102212464, %v1615
  %v1625 = vor.u32 %v1623, %v1624
  %v1626 = vshll.u32 2102212464, %v1614
  %v1627 = vshrl.u32 920167782, %v1615
  %v1628 = vor.u32 %v1626, %v1627
  %v1629 = vshll.u32 920167782, %v1614
  %v1630 = vshrl.u32 1326507024, %v1615
  %v1631 = vor.u32 %v1629, %v1630
  %vm1632 = vcmp.lt.s32.totalorder %v1613, 1
  %vm1633 = vcmp.lt.s32.totalorder %v1613, 2
  %vm1634 = vcmp.lt.s32.totalorder %v1613, 3
  %vm1635 = vcmp.lt.s32.totalorder %v1613, 4
  %v1636 = vsel %vm1632, %v1616, %v1619
  %v1637 = vsel %vm1635, %v1625, 2102212464
  %v1638 = vsel %vm1634, %v1622, %v1637
  %v1639 = vsel %vm1633, %v1636, %v1638
  %v1640 = vsel %vm1632, %v1619, %v1622
  %v1641 = vsel %vm1635, %v1628, 920167782
  %v1642 = vsel %vm1634, %v1625, %v1641
  %v1643 = vsel %vm1633, %v1640, %v1642
  %v1644 = vsel %vm1632, %v1622, %v1625
  %v1645 = vsel %vm1635, %v1631, 1326507024
  %v1646 = vsel %vm1634, %v1628, %v1645
  %v1647 = vsel %vm1633, %v1644, %v1646
  %v1648 = vshll.u32 %v1608, 8
  %v1649 = vmul.u32.u64.compose %v1648, %v1647
  %v1650 = vextract.low.u32 %v1649
  %v1651 = vextract.high.u32 %v1649
  %v1652 = vmul.u32.u64.compose %v1648, %v1643
  %v1653 = vextract.low.u32 %v1652
  %v1654 = vextract.high.u32 %v1652
  %v1655 = vmul.u32 %v1648, %v1639
  %v1656 = vadd.s32 %v1651, %v1653
  %vm1657 = vc.u32 %v1651, %v1653
  %v1658 = vadd.s32 %v1654, 1
  %v1659 = vsel %vm1657, %v1658, %v1654
  %v1660 = vadd.s32 %v1655, %v1659
  %v1661 = vadd.s32 %v1660, 536870912
  %v1662 = vshrl.u32 %v1661, 30
  %v1663 = vshll.u32 %v1662, 30
  %v1664 = vsub.s32 %v1660, %v1663
  %vm1665 = vcmp.lt.s32.totalorder %v1664, 0
  %v1666 = vsub.s32 0, %v1664
  %v1667 = vsel %vm1665, %v1666, %v1664
  %v1668 = vclz %v1667
  %v1669 = vsub.s32 %v1668, 2
  %vm1670 = vcmp.gt.s32.totalorder 0, %v1669
  %v1671 = vsel %vm1670, 0, %v1669
  %v1672 = vsub.s32 32, %v1671
  %v1673 = vshll.u32 %v1664, %v1671
  %v1674 = vshrl.u32 %v1656, %v1672
  %v1675 = vor.u32 %v1673, %v1674
  %v1676 = vsub.s32 4294967266, %v1671
  %v1677 = vadd.s32 %v1676, 127
  %v1678 = vshll.u32 %v1677, 23
  %v1679 = vor.u32 4788187, %v1678
  %v1680 = vand.u32 2147483647, %v1679
  %v1682 = vcvt.s32.f32 %v1675
  %v1683 = vmul.f32 %v1682, %v1680
  %v1684 = vxor.u32 %v1683, 2147483648
  %v1685 = vsel %vm1602, %v1684, %v1683
  %v1686 = vsub.s32 4, %v1662
  %v1687 = vsel %vm1602, %v1686, %v1662
  %v1688 = vsel %vm1601, %v875, %v1685
  %v1689 = vsel %vm1601, 0, %v1687
  %v1690 = vcosq.f32.pop %v1688
  %v1691 = vsinq.f32.pop %v1688
  %vm1692 = vweird.f32 %v875
  %v1693 = vadd.s32 %v1689, 3
  %v1694 = vand.u32 %v1693, 3
  %vm1695 = vcmp.lt.s32.totalorder %v1694, 2
  %vm1696 = vcmp.eq.s32.totalorder %v1694, 0
  %v1697 = vxor.u32 %v1691, 2147483648
  %v1698 = vsel %vm1696, %v1690, %v1697
  %vm1699 = vcmp.eq.s32.totalorder %v1694, 2
  %v1700 = vxor.u32 %v1690, 2147483648
  %v1701 = vsel %vm1699, %v1700, %v1691
  %v1702 = vsel %vm1695, %v1698, %v1701
  %v1703 = vsel %vm1692, nan, %v1702
  %v1706 = vrot.slane %v978, 4
  %v1707 = vrot.slane %v1081, 4
  %v1710 = vmul.f32 %v978, %v1706
  %v1711 = vmul.f32 %v1081, %v1707
  %v1714 = vrot.slane %v1391, 4
  %v1715 = vrot.slane %v1495, 4
  %v1718 = vmul.f32 %v978, %v1714
  %v1719 = vmul.f32 %v1081, %v1715
  %v1720 = vsub.f32 0.0, %v1718
  %v1721 = vsub.f32 0.0, %v1719
  %v1722 = vmul.f32 %v1391, %v1706
  %v1723 = vmul.f32 %v1495, %v1707
  %v1724 = vmul.f32 %v1391, %v1714
  %v1725 = vmul.f32 %v1495, %v1715
  %v1726 = vmul.f32 %v1184, %v1710
  %v1727 = vmul.f32 %v1287, %v1711
  %v1728 = vmul.f32 %v1599, %v1724
  %v1729 = vmul.f32 %v1703, %v1725
  %v1730 = vadd.f32 %v1726, %v1728
  %v1731 = vadd.f32 %v1727, %v1729
  %v1732 = vmul.f32 %v1184, %v1720
  %v1733 = vmul.f32 %v1287, %v1721
  %v1734 = vmul.f32 %v1599, %v1722
  %v1735 = vmul.f32 %v1703, %v1723
  %v1736 = vsub.f32 %v1732, %v1734
  %v1737 = vsub.f32 %v1733, %v1735
  %v1738 = vmul.f32 %v1599, %v1720
  %v1739 = vmul.f32 %v1703, %v1721
  %v1740 = vmul.f32 %v1184, %v1722
  %v1741 = vmul.f32 %v1287, %v1723
  %v1742 = vadd.f32 %v1738, %v1740
  %v1743 = vadd.f32 %v1739, %v1741
  %v1744 = vmul.f32 %v1184, %v1724
  %v1745 = vmul.f32 %v1287, %v1725
  %v1746 = vmul.f32 %v1599, %v1710
  %v1747 = vmul.f32 %v1703, %v1711
  %v1748 = vsub.f32 %v1744, %v1746
  %v1749 = vsub.f32 %v1745, %v1747
  %v1752 = vrot.slane %v1730, 4
  %v1753 = vrot.slane %v1731, 4
  %v1756 = vmul.f32 %v1184, %v1752
  %v1757 = vmul.f32 %v1287, %v1753
  %v1760 = vrot.slane %v1742, 4
  %v1761 = vrot.slane %v1743, 4
  %v1764 = vmul.f32 %v1599, %v1760
  %v1765 = vmul.f32 %v1703, %v1761
  %v1766 = vsub.f32 %v1756, %v1764
  %v1767 = vsub.f32 %v1757, %v1765
  %v1770 = vrot.slane %v1736, 4
  %v1771 = vrot.slane %v1737, 4
  %v1774 = vmul.f32 %v1184, %v1770
  %v1775 = vmul.f32 %v1287, %v1771
  %v1778 = vrot.slane %v1748, 4
  %v1779 = vrot.slane %v1749, 4
  %v1782 = vmul.f32 %v1599, %v1778
  %v1783 = vmul.f32 %v1703, %v1779
  %v1784 = vsub.f32 %v1774, %v1782
  %v1785 = vsub.f32 %v1775, %v1783
  %v1786 = vmul.f32 %v1599, %v1752
  %v1787 = vmul.f32 %v1703, %v1753
  %v1788 = vmul.f32 %v1184, %v1760
  %v1789 = vmul.f32 %v1287, %v1761
  %v1790 = vadd.f32 %v1786, %v1788
  %v1791 = vadd.f32 %v1787, %v1789
  %v1792 = vmul.f32 %v1599, %v1770
  %v1793 = vmul.f32 %v1703, %v1771
  %v1794 = vmul.f32 %v1184, %v1778
  %v1795 = vmul.f32 %v1287, %v1779
  %v1796 = vadd.f32 %v1792, %v1794
  %v1797 = vadd.f32 %v1793, %v1795
  %v1798 = vsel %vm844, 1, 0
  %v1799 = vsel %vm845, 1, 0
  %vm1800 = vcmp.eq.s32.totalorder %v1798, 1
  %vm1801 = vcmp.eq.s32.totalorder %v1799, 1
  %v1802 = vlaneseq
  %v1803 = vshrl.u32 %v1802, 7
  %v1804 = vsub.s32 4, %v1803
  %v1805 = vrot.slane %v1790, %v1804
  %v1806 = vlaneseq
  %v1807 = vshrl.u32 %v1806, 7
  %v1808 = vsub.s32 4, %v1807
  %v1809 = vrot.slane %v1791, %v1808
  %v1810 = vlaneseq
  %v1811 = vshrl.u32 %v1810, 7
  %v1812 = vsub.s32 4, %v1811
  %v1813 = vrot.slane %v1766, %v1812
  %v1814 = vlaneseq
  %v1815 = vshrl.u32 %v1814, 7
  %v1816 = vsub.s32 4, %v1815
  %v1817 = vrot.slane %v1767, %v1816
  %v1818 = vsel %vm1800, %v1805, %v1813
  %v1819 = vsel %vm1800, %v1809, %v1817
  %v1820 = vsel %vm1801, %v1805, %v1813
  %v1821 = vsel %vm1801, %v1809, %v1817
  %v1822 = vlaneseq
  %v1823 = vshrl.u32 %v1822, 7
  %v1824 = vsub.s32 4, %v1823
  %v1825 = vrot.slane %v1796, %v1824
  %v1826 = vlaneseq
  %v1827 = vshrl.u32 %v1826, 7
  %v1828 = vsub.s32 4, %v1827
  %v1829 = vrot.slane %v1797, %v1828
  %v1830 = vlaneseq
  %v1831 = vshrl.u32 %v1830, 7
  %v1832 = vsub.s32 4, %v1831
  %v1833 = vrot.slane %v1784, %v1832
  %v1834 = vlaneseq
  %v1835 = vshrl.u32 %v1834, 7
  %v1836 = vsub.s32 4, %v1835
  %v1837 = vrot.slane %v1785, %v1836
  %v1838 = vsel %vm1800, %v1825, %v1833
  %v1839 = vsel %vm1800, %v1829, %v1837
  %v1840 = vsel %vm1801, %v1825, %v1833
  %v1841 = vsel %vm1801, %v1829, %v1837
  %v1842 = vsel %vm850, 1, 0
  %v1843 = vsel %vm851, 1, 0
  %vm1844 = vcmp.eq.s32.totalorder %v1842, 1
  %vm1845 = vcmp.eq.s32.totalorder %v1843, 1
  %v1846 = vlaneseq
  %v1847 = vshrl.u32 %v1846, 7
  %v1848 = vsub.s32 5, %v1847
  %v1849 = vrot.slane %v1790, %v1848
  %v1850 = vlaneseq
  %v1851 = vshrl.u32 %v1850, 7
  %v1852 = vsub.s32 5, %v1851
  %v1853 = vrot.slane %v1791, %v1852
  %v1854 = vlaneseq
  %v1855 = vshrl.u32 %v1854, 7
  %v1856 = vsub.s32 5, %v1855
  %v1857 = vrot.slane %v1766, %v1856
  %v1858 = vlaneseq
  %v1859 = vshrl.u32 %v1858, 7
  %v1860 = vsub.s32 5, %v1859
  %v1861 = vrot.slane %v1767, %v1860
  %v1862 = vsel %vm1844, %v1849, %v1857
  %v1863 = vsel %vm1844, %v1853, %v1861
  %v1864 = vsel %vm1845, %v1849, %v1857
  %v1865 = vsel %vm1845, %v1853, %v1861
  %v1866 = vlaneseq
  %v1867 = vshrl.u32 %v1866, 7
  %v1868 = vsub.s32 5, %v1867
  %v1869 = vrot.slane %v1796, %v1868
  %v1870 = vlaneseq
  %v1871 = vshrl.u32 %v1870, 7
  %v1872 = vsub.s32 5, %v1871
  %v1873 = vrot.slane %v1797, %v1872
  %v1874 = vlaneseq
  %v1875 = vshrl.u32 %v1874, 7
  %v1876 = vsub.s32 5, %v1875
  %v1877 = vrot.slane %v1784, %v1876
  %v1878 = vlaneseq
  %v1879 = vshrl.u32 %v1878, 7
  %v1880 = vsub.s32 5, %v1879
  %v1881 = vrot.slane %v1785, %v1880
  %v1882 = vsel %vm1844, %v1869, %v1877
  %v1883 = vsel %vm1844, %v1873, %v1881
  %v1884 = vsel %vm1845, %v1869, %v1877
  %v1885 = vsel %vm1845, %v1873, %v1881
  %v1886 = vmul.f32 %v1818, %v1862
  %v1887 = vmul.f32 %v1819, %v1863
  %v1888 = vmul.f32 %v1820, %v1864
  %v1889 = vmul.f32 %v1821, %v1865
  %v1890 = vmul.f32 %v1838, %v1882
  %v1891 = vmul.f32 %v1839, %v1883
  %v1892 = vmul.f32 %v1840, %v1884
  %v1893 = vmul.f32 %v1841, %v1885
  %v1894 = vsub.f32 %v1886, %v1890
  %v1895 = vsub.f32 %v1887, %v1891
  %v1896 = vsub.f32 %v1888, %v1892
  %v1897 = vsub.f32 %v1889, %v1893
  %v1898 = vmul.f32 %v1818, %v1882
  %v1899 = vmul.f32 %v1819, %v1883
  %v1900 = vmul.f32 %v1820, %v1884
  %v1901 = vmul.f32 %v1821, %v1885
  %v1902 = vmul.f32 %v1838, %v1862
  %v1903 = vmul.f32 %v1839, %v1863
  %v1904 = vmul.f32 %v1840, %v1864
  %v1905 = vmul.f32 %v1841, %v1865
  %v1906 = vadd.f32 %v1898, %v1902
  %v1907 = vadd.f32 %v1899, %v1903
  %v1908 = vadd.f32 %v1900, %v1904
  %v1909 = vadd.f32 %v1901, %v1905
  %v1910 = vsel %vm856, 1, 0
  %v1911 = vsel %vm857, 1, 0
  %vm1912 = vcmp.eq.s32.totalorder %v1910, 1
  %vm1913 = vcmp.eq.s32.totalorder %v1911, 1
  %v1914 = vlaneseq
  %v1915 = vshrl.u32 %v1914, 7
  %v1916 = vsub.s32 6, %v1915
  %v1917 = vrot.slane %v1790, %v1916
  %v1918 = vlaneseq
  %v1919 = vshrl.u32 %v1918, 7
  %v1920 = vsub.s32 6, %v1919
  %v1921 = vrot.slane %v1791, %v1920
  %v1922 = vlaneseq
  %v1923 = vshrl.u32 %v1922, 7
  %v1924 = vsub.s32 6, %v1923
  %v1925 = vrot.slane %v1766, %v1924
  %v1926 = vlaneseq
  %v1927 = vshrl.u32 %v1926, 7
  %v1928 = vsub.s32 6, %v1927
  %v1929 = vrot.slane %v1767, %v1928
  %v1930 = vsel %vm1912, %v1917, %v1925
  %v1931 = vsel %vm1912, %v1921, %v1929
  %v1932 = vsel %vm1913, %v1917, %v1925
  %v1933 = vsel %vm1913, %v1921, %v1929
  %v1934 = vlaneseq
  %v1935 = vshrl.u32 %v1934, 7
  %v1936 = vsub.s32 6, %v1935
  %v1937 = vrot.slane %v1796, %v1936
  %v1938 = vlaneseq
  %v1939 = vshrl.u32 %v1938, 7
  %v1940 = vsub.s32 6, %v1939
  %v1941 = vrot.slane %v1797, %v1940
  %v1942 = vlaneseq
  %v1943 = vshrl.u32 %v1942, 7
  %v1944 = vsub.s32 6, %v1943
  %v1945 = vrot.slane %v1784, %v1944
  %v1946 = vlaneseq
  %v1947 = vshrl.u32 %v1946, 7
  %v1948 = vsub.s32 6, %v1947
  %v1949 = vrot.slane %v1785, %v1948
  %v1950 = vsel %vm1912, %v1937, %v1945
  %v1951 = vsel %vm1912, %v1941, %v1949
  %v1952 = vsel %vm1913, %v1937, %v1945
  %v1953 = vsel %vm1913, %v1941, %v1949
  %v1954 = vmul.f32 %v1894, %v1930
  %v1955 = vmul.f32 %v1895, %v1931
  %v1956 = vmul.f32 %v1896, %v1932
  %v1957 = vmul.f32 %v1897, %v1933
  %v1958 = vmul.f32 %v1906, %v1950
  %v1959 = vmul.f32 %v1907, %v1951
  %v1960 = vmul.f32 %v1908, %v1952
  %v1961 = vmul.f32 %v1909, %v1953
  %v1962 = vsub.f32 %v1954, %v1958
  %v1963 = vsub.f32 %v1955, %v1959
  %v1964 = vsub.f32 %v1956, %v1960
  %v1965 = vsub.f32 %v1957, %v1961
  %v1966 = vmul.f32 %v1894, %v1950
  %v1967 = vmul.f32 %v1895, %v1951
  %v1968 = vmul.f32 %v1896, %v1952
  %v1969 = vmul.f32 %v1897, %v1953
  %v1970 = vmul.f32 %v1906, %v1930
  %v1971 = vmul.f32 %v1907, %v1931
  %v1972 = vmul.f32 %v1908, %v1932
  %v1973 = vmul.f32 %v1909, %v1933
  %v1974 = vadd.f32 %v1966, %v1970
  %v1975 = vadd.f32 %v1967, %v1971
  %v1976 = vadd.f32 %v1968, %v1972
  %v1977 = vadd.f32 %v1969, %v1973
  %v1978 = vsel %vm860, 1, 0
  %v1979 = vsel %vm861, 1, 0
  %vm1980 = vcmp.eq.s32.totalorder %v1978, 1
  %vm1981 = vcmp.eq.s32.totalorder %v1979, 1
  %v1982 = vlaneseq
  %v1983 = vshrl.u32 %v1982, 7
  %v1984 = vsub.s32 7, %v1983
  %v1985 = vrot.slane %v1790, %v1984
  %v1986 = vlaneseq
  %v1987 = vshrl.u32 %v1986, 7
  %v1988 = vsub.s32 7, %v1987
  %v1989 = vrot.slane %v1791, %v1988
  %v1990 = vlaneseq
  %v1991 = vshrl.u32 %v1990, 7
  %v1992 = vsub.s32 7, %v1991
  %v1993 = vrot.slane %v1766, %v1992
  %v1994 = vlaneseq
  %v1995 = vshrl.u32 %v1994, 7
  %v1996 = vsub.s32 7, %v1995
  %v1997 = vrot.slane %v1767, %v1996
  %v1998 = vsel %vm1980, %v1985, %v1993
  %v1999 = vsel %vm1980, %v1989, %v1997
  %v2000 = vsel %vm1981, %v1985, %v1993
  %v2001 = vsel %vm1981, %v1989, %v1997
  %v2002 = vlaneseq
  %v2003 = vshrl.u32 %v2002, 7
  %v2004 = vsub.s32 7, %v2003
  %v2005 = vrot.slane %v1796, %v2004
  %v2006 = vlaneseq
  %v2007 = vshrl.u32 %v2006, 7
  %v2008 = vsub.s32 7, %v2007
  %v2009 = vrot.slane %v1797, %v2008
  %v2010 = vlaneseq
  %v2011 = vshrl.u32 %v2010, 7
  %v2012 = vsub.s32 7, %v2011
  %v2013 = vrot.slane %v1784, %v2012
  %v2014 = vlaneseq
  %v2015 = vshrl.u32 %v2014, 7
  %v2016 = vsub.s32 7, %v2015
  %v2017 = vrot.slane %v1785, %v2016
  %v2018 = vsel %vm1980, %v2005, %v2013
  %v2019 = vsel %vm1980, %v2009, %v2017
  %v2020 = vsel %vm1981, %v2005, %v2013
  %v2021 = vsel %vm1981, %v2009, %v2017
  %v2022 = vmul.f32 %v1962, %v1998
  %v2023 = vmul.f32 %v1963, %v1999
  %v2024 = vmul.f32 %v1964, %v2000
  %v2025 = vmul.f32 %v1965, %v2001
  %v2026 = vmul.f32 %v1974, %v2018
  %v2027 = vmul.f32 %v1975, %v2019
  %v2028 = vmul.f32 %v1976, %v2020
  %v2029 = vmul.f32 %v1977, %v2021
  %v2030 = vsub.f32 %v2022, %v2026
  %v2031 = vsub.f32 %v2023, %v2027
  %v2032 = vsub.f32 %v2024, %v2028
  %v2033 = vsub.f32 %v2025, %v2029
  %v2034 = vmul.f32 %v1962, %v2018
  %v2035 = vmul.f32 %v1963, %v2019
  %v2036 = vmul.f32 %v1964, %v2020
  %v2037 = vmul.f32 %v1965, %v2021
  %v2038 = vmul.f32 %v1974, %v1998
  %v2039 = vmul.f32 %v1975, %v1999
  %v2040 = vmul.f32 %v1976, %v2000
  %v2041 = vmul.f32 %v1977, %v2001
  %v2042 = vadd.f32 %v2034, %v2038
  %v2043 = vadd.f32 %v2035, %v2039
  %v2044 = vadd.f32 %v2036, %v2040
  %v2045 = vadd.f32 %v2037, %v2041
  %vm2046 = vcmask 261120
  %v2048 = vsel %vm2046, %v862, 0
  %v2051 = vsel %vm2046, %v863, 0
  %v2054 = vsel %vm2046, %v864, 0
  %v2057 = vsel %vm2046, %v865, 0
  %2059 = vmatprep.subr.mxu0 0.0
  %2060 = vmatpush1.msra.mxu0 0.0
  %2061 = vmatprep.subr.mxu0 0.0
  %2062 = vmatpush1.msra.mxu0 0.0
  %2063 = vmatprep.subr.mxu0 0.0
  %2064 = vmatpush1.msra.mxu0 0.0
  %2065 = vmatprep.subr.mxu0 0.0
  %2066 = vmatpush1.msra.mxu0 0.0
  %2067 = vmatprep.subr.mxu0 0.0
  %2068 = vmatpush1.msra.mxu0 0.0
  %2069 = vmatprep.subr.mxu0 0.0
  %2070 = vmatpush1.msra.mxu0 0.0
  %2071 = vmatprep.subr.mxu0 0.0
  %2072 = vmatpush1.msra.mxu0 0.0
  %2073 = vmatprep.subr.mxu0 0.0
  %2074 = vmatpush1.msra.mxu0 0.0
  %2075 = vmatprep.subr.mxu0 0.0
  %2076 = vmatpush1.msra.mxu0 0.0
  %2077 = vmatprep.subr.mxu0 0.0
  %2078 = vmatpush1.msra.mxu0 0.0
  %2079 = vmatprep.subr.mxu0 0.0
  %2080 = vmatpush1.msra.mxu0 0.0
  %2081 = vmatprep.subr.mxu0 0.0
  %2082 = vmatpush1.msra.mxu0 0.0
  %2083 = vmatprep.subr.mxu0 %v2045
  %2084 = vmatpush1.msra.mxu0 %v2044
  %2085 = vmatprep.subr.mxu0 %v2043
  %2086 = vmatpush1.msra.mxu0 %v2042
  %2087 = vmatprep.subr.mxu0 %v2033
  %2088 = vmatpush1.msra.mxu0 %v2032
  %2089 = vmatprep.subr.mxu0 %v2031
  %2090 = vmatpush1.msra.mxu0 %v2030
  %2091 = vmatprep.subr.mxu0 0.0
  %2092 = vmatpush2.msra.mxu0 0.0
  %2093 = vmatprep.subr.mxu0 0.0
  %2094 = vmatpush2.msra.mxu0 0.0
  %2095 = vmatprep.subr.mxu0 0.0
  %2096 = vmatpush2.msra.mxu0 0.0
  %2097 = vmatprep.subr.mxu0 0.0
  %2098 = vmatpush2.msra.mxu0 0.0
  %2099 = vmatprep.subr.mxu0 0.0
  %2100 = vmatpush2.msra.mxu0 0.0
  %2101 = vmatprep.subr.mxu0 0.0
  %2102 = vmatpush2.msra.mxu0 0.0
  %2103 = vmatprep.subr.mxu0 0.0
  %2104 = vmatpush2.msra.mxu0 0.0
  %2105 = vmatprep.subr.mxu0 0.0
  %2106 = vmatpush2.msra.mxu0 0.0
  %2107 = vmatprep.subr.mxu0 0.0
  %2108 = vmatpush2.msra.mxu0 0.0
  %2109 = vmatprep.subr.mxu0 0.0
  %2110 = vmatpush2.msra.mxu0 0.0
  %2111 = vmatprep.subr.mxu0 0.0
  %2112 = vmatpush2.msra.mxu0 0.0
  %2113 = vmatprep.subr.mxu0 0.0
  %2114 = vmatpush2.msra.mxu0 0.0
  %2115 = vmatprep.subr.mxu0 0.0
  %2116 = vmatpush2.msra.mxu0 0.0
  %2117 = vmatprep.subr.mxu0 0.0
  %2118 = vmatpush2.msra.mxu0 0.0
  %2119 = vmatprep.subr.mxu0 0.0
  %2120 = vmatpush2.msra.mxu0 0.0
  %2121 = vmatprep.subr.mxu0 0.0
  %2122 = vmatpush2.msra.mxu0 0.0
  %2123 = vmatprep.mubr.f32.mxu0 0.0
  %2124 = vmatmul.mubr.f32.gmra.mxu0 %v2048
  %v2125 = vpop.f32.mrf.mxu0
  %v2126 = vadd.f32 0.0, %v2125
  %v2127 = vpop.f32.mrf.mxu0
  %v2128 = vadd.f32 0.0, %v2127
  %2129 = vmatprep.mubr.f32.mxu0 0.0
  %2130 = vmatmul.mubr.f32.gmra.mxu0 %v2051
  %v2131 = vpop.f32.mrf.mxu0
  %v2132 = vadd.f32 0.0, %v2131
  %v2133 = vpop.f32.mrf.mxu0
  %v2134 = vadd.f32 0.0, %v2133
  %2135 = vmatprep.mubr.f32.mxu0 0.0
  %2136 = vmatmul.mubr.f32.gmra.mxu0 %v2054
  %v2137 = vpop.f32.mrf.mxu0
  %v2138 = vadd.f32 0.0, %v2137
  %v2139 = vpop.f32.mrf.mxu0
  %v2140 = vadd.f32 0.0, %v2139
  %2141 = vmatprep.mubr.f32.mxu0 0.0
  %2142 = vmatmul.mubr.f32.gmra.mxu0 %v2057
  %v2143 = vpop.f32.mrf.mxu0
  %v2144 = vadd.f32 0.0, %v2143
  %v2145 = vpop.f32.mrf.mxu0
  %v2146 = vadd.f32 0.0, %v2145
  %2147 = vdwg.mxu0
  %v2148 = vmul.f32 %v2126, %v2126
  %v2149 = vmul.f32 %v2128, %v2128
  %v2150 = vmul.f32 %v2132, %v2132
  %v2151 = vmul.f32 %v2134, %v2134
  %v2152 = vmul.f32 %v2138, %v2138
  %v2153 = vmul.f32 %v2140, %v2140
  %v2154 = vmul.f32 %v2144, %v2144
  %v2155 = vmul.f32 %v2146, %v2146
  %v2157 = vsel %vm2046, %v866, 0
  %v2160 = vsel %vm2046, %v867, 0
  %2162 = vmatprep.subr.mxu0 0.0
  %2163 = vmatpush1.msra.mxu0 0.0
  %2164 = vmatprep.subr.mxu0 0.0
  %2165 = vmatpush1.msra.mxu0 0.0
  %2166 = vmatprep.subr.mxu0 0.0
  %2167 = vmatpush1.msra.mxu0 0.0
  %2168 = vmatprep.subr.mxu0 0.0
  %2169 = vmatpush1.msra.mxu0 0.0
  %2170 = vmatprep.subr.mxu0 0.0
  %2171 = vmatpush1.msra.mxu0 0.0
  %2172 = vmatprep.subr.mxu0 0.0
  %2173 = vmatpush1.msra.mxu0 0.0
  %2174 = vmatprep.subr.mxu0 0.0
  %2175 = vmatpush1.msra.mxu0 0.0
  %2176 = vmatprep.subr.mxu0 0.0
  %2177 = vmatpush1.msra.mxu0 0.0
  %2178 = vmatprep.subr.mxu0 0.0
  %2179 = vmatpush1.msra.mxu0 0.0
  %2180 = vmatprep.subr.mxu0 0.0
  %2181 = vmatpush1.msra.mxu0 0.0
  %2182 = vmatprep.subr.mxu0 0.0
  %2183 = vmatpush1.msra.mxu0 0.0
  %2184 = vmatprep.subr.mxu0 0.0
  %2185 = vmatpush1.msra.mxu0 0.0
  %2186 = vmatprep.subr.mxu0 %v2155
  %2187 = vmatpush1.msra.mxu0 %v2154
  %2188 = vmatprep.subr.mxu0 %v2153
  %2189 = vmatpush1.msra.mxu0 %v2152
  %2190 = vmatprep.subr.mxu0 %v2151
  %2191 = vmatpush1.msra.mxu0 %v2150
  %2192 = vmatprep.subr.mxu0 %v2149
  %2193 = vmatpush1.msra.mxu0 %v2148
  %2194 = vmatprep.subr.mxu0 0.0
  %2195 = vmatpush2.msra.mxu0 0.0
  %2196 = vmatprep.subr.mxu0 0.0
  %2197 = vmatpush2.msra.mxu0 0.0
  %2198 = vmatprep.subr.mxu0 0.0
  %2199 = vmatpush2.msra.mxu0 0.0
  %2200 = vmatprep.subr.mxu0 0.0
  %2201 = vmatpush2.msra.mxu0 0.0
  %2202 = vmatprep.subr.mxu0 0.0
  %2203 = vmatpush2.msra.mxu0 0.0
  %2204 = vmatprep.subr.mxu0 0.0
  %2205 = vmatpush2.msra.mxu0 0.0
  %2206 = vmatprep.subr.mxu0 0.0
  %2207 = vmatpush2.msra.mxu0 0.0
  %2208 = vmatprep.subr.mxu0 0.0
  %2209 = vmatpush2.msra.mxu0 0.0
  %2210 = vmatprep.subr.mxu0 0.0
  %2211 = vmatpush2.msra.mxu0 0.0
  %2212 = vmatprep.subr.mxu0 0.0
  %2213 = vmatpush2.msra.mxu0 0.0
  %2214 = vmatprep.subr.mxu0 0.0
  %2215 = vmatpush2.msra.mxu0 0.0
  %2216 = vmatprep.subr.mxu0 0.0
  %2217 = vmatpush2.msra.mxu0 0.0
  %2218 = vmatprep.subr.mxu0 0.0
  %2219 = vmatpush2.msra.mxu0 0.0
  %2220 = vmatprep.subr.mxu0 0.0
  %2221 = vmatpush2.msra.mxu0 0.0
  %2222 = vmatprep.subr.mxu0 0.0
  %2223 = vmatpush2.msra.mxu0 0.0
  %2224 = vmatprep.subr.mxu0 0.0
  %2225 = vmatpush2.msra.mxu0 0.0
  %2226 = vmatprep.mubr.f32.mxu0 0.0
  %2227 = vmatmul.mubr.f32.gmra.mxu0 %v2157
  %v2228 = vpop.f32.mrf.mxu0
  %v2229 = vadd.f32 %v833, %v2228
  %v2230 = vpop.f32.mrf.mxu0
  %v2231 = vadd.f32 %v834, %v2230
  %2232 = vmatprep.mubr.f32.mxu0 0.0
  %2233 = vmatmul.mubr.f32.gmra.mxu0 %v2160
  %v2234 = vpop.f32.mrf.mxu0
  %v2235 = vadd.f32 %v835, %v2234
  %v2236 = vpop.f32.mrf.mxu0
  %v2237 = vadd.f32 %v836, %v2236
  %2238 = vdwg.mxu0
  %v2239 = vmul.f32 %v2229, 0.5
  %v2240 = vmul.f32 %v2231, 0.5
  %v2241 = vmul.f32 %v2235, 0.5
  %v2242 = vmul.f32 %v2237, 0.5
  %v2243 = vand.u32 2147483647, %v2239
  %vm2244 = vcmp.le.f32.partialorder %v2243, 0.7853982
  %vm2245 = vcmp.lt.s32.totalorder %v2239, 0
  %v2246 = vand.u32 %v2239, 2139095040
  %v2247 = vshrl.u32 %v2246, 23
  %v2248 = vsub.s32 %v2247, 127
  %v2249 = vand.u32 2147483647, %v2239
  %v2250 = vand.u32 %v2249, 8388607
  %v2251 = vor.u32 %v2250, 8388608
  %v2252 = vsub.s32 0, %v2251
  %v2253 = vadd.s32 %v2248, 1
  %vm2254 = vcmp.gt.s32.totalorder %v2253, 0
  %v2255 = vsel %vm2254, %v2253, 0
  %v2256 = vshrl.u32 %v2255, 5
  %v2257 = vand.u32 %v2255, 31
  %v2258 = vsub.s32 32, %v2257
  %v2259 = vshrl.u32 683565275, %v2258
  %v2260 = vshll.u32 683565275, %v2257
  %v2261 = vshrl.u32 2475754826, %v2258
  %v2262 = vor.u32 %v2260, %v2261
  %v2263 = vshll.u32 2475754826, %v2257
  %v2264 = vshrl.u32 2131351028, %v2258
  %v2265 = vor.u32 %v2263, %v2264
  %v2266 = vshll.u32 2131351028, %v2257
  %v2267 = vshrl.u32 2102212464, %v2258
  %v2268 = vor.u32 %v2266, %v2267
  %v2269 = vshll.u32 2102212464, %v2257
  %v2270 = vshrl.u32 920167782, %v2258
  %v2271 = vor.u32 %v2269, %v2270
  %v2272 = vshll.u32 920167782, %v2257
  %v2273 = vshrl.u32 1326507024, %v2258
  %v2274 = vor.u32 %v2272, %v2273
  %vm2275 = vcmp.lt.s32.totalorder %v2256, 1
  %vm2276 = vcmp.lt.s32.totalorder %v2256, 2
  %vm2277 = vcmp.lt.s32.totalorder %v2256, 3
  %vm2278 = vcmp.lt.s32.totalorder %v2256, 4
  %v2279 = vsel %vm2275, %v2259, %v2262
  %v2280 = vsel %vm2278, %v2268, 2102212464
  %v2281 = vsel %vm2277, %v2265, %v2280
  %v2282 = vsel %vm2276, %v2279, %v2281
  %v2283 = vsel %vm2275, %v2262, %v2265
  %v2284 = vsel %vm2278, %v2271, 920167782
  %v2285 = vsel %vm2277, %v2268, %v2284
  %v2286 = vsel %vm2276, %v2283, %v2285
  %v2287 = vsel %vm2275, %v2265, %v2268
  %v2288 = vsel %vm2278, %v2274, 1326507024
  %v2289 = vsel %vm2277, %v2271, %v2288
  %v2290 = vsel %vm2276, %v2287, %v2289
  %v2291 = vshll.u32 %v2251, 8
  %v2292 = vmul.u32.u64.compose %v2291, %v2290
  %v2293 = vextract.low.u32 %v2292
  %v2294 = vextract.high.u32 %v2292
  %v2295 = vmul.u32.u64.compose %v2291, %v2286
  %v2296 = vextract.low.u32 %v2295
  %v2297 = vextract.high.u32 %v2295
  %v2298 = vmul.u32 %v2291, %v2282
  %v2299 = vadd.s32 %v2294, %v2296
  %vm2300 = vc.u32 %v2294, %v2296
  %v2301 = vadd.s32 %v2297, 1
  %v2302 = vsel %vm2300, %v2301, %v2297
  %v2303 = vadd.s32 %v2298, %v2302
  %v2304 = vadd.s32 %v2303, 536870912
  %v2305 = vshrl.u32 %v2304, 30
  %v2306 = vshll.u32 %v2305, 30
  %v2307 = vsub.s32 %v2303, %v2306
  %vm2308 = vcmp.lt.s32.totalorder %v2307, 0
  %v2309 = vsub.s32 0, %v2307
  %v2310 = vsel %vm2308, %v2309, %v2307
  %v2311 = vclz %v2310
  %v2312 = vsub.s32 %v2311, 2
  %vm2313 = vcmp.gt.s32.totalorder 0, %v2312
  %v2314 = vsel %vm2313, 0, %v2312
  %v2315 = vsub.s32 32, %v2314
  %v2316 = vshll.u32 %v2307, %v2314
  %v2317 = vshrl.u32 %v2299, %v2315
  %v2318 = vor.u32 %v2316, %v2317
  %v2319 = vsub.s32 4294967266, %v2314
  %v2320 = vadd.s32 %v2319, 127
  %v2321 = vshll.u32 %v2320, 23
  %v2322 = vor.u32 4788187, %v2321
  %v2323 = vand.u32 2147483647, %v2322
  %v2325 = vcvt.s32.f32 %v2318
  %v2326 = vmul.f32 %v2325, %v2323
  %v2327 = vxor.u32 %v2326, 2147483648
  %v2328 = vsel %vm2245, %v2327, %v2326
  %v2329 = vsub.s32 4, %v2305
  %v2330 = vsel %vm2245, %v2329, %v2305
  %v2331 = vsel %vm2244, %v2239, %v2328
  %v2332 = vsel %vm2244, 0, %v2330
  %v2333 = vcosq.f32.pop %v2331
  %v2334 = vsinq.f32.pop %v2331
  %vm2335 = vweird.f32 %v2239
  %v2336 = vand.u32 %v2332, 3
  %vm2337 = vcmp.lt.s32.totalorder %v2336, 2
  %vm2338 = vcmp.eq.s32.totalorder %v2336, 0
  %v2339 = vxor.u32 %v2334, 2147483648
  %v2340 = vsel %vm2338, %v2333, %v2339
  %vm2341 = vcmp.eq.s32.totalorder %v2336, 2
  %v2342 = vxor.u32 %v2333, 2147483648
  %v2343 = vsel %vm2341, %v2342, %v2334
  %v2344 = vsel %vm2337, %v2340, %v2343
  %v2345 = vsel %vm2335, nan, %v2344
  %v2346 = vand.u32 2147483647, %v2240
  %vm2347 = vcmp.le.f32.partialorder %v2346, 0.7853982
  %vm2348 = vcmp.lt.s32.totalorder %v2240, 0
  %v2349 = vand.u32 %v2240, 2139095040
  %v2350 = vshrl.u32 %v2349, 23
  %v2351 = vsub.s32 %v2350, 127
  %v2352 = vand.u32 2147483647, %v2240
  %v2353 = vand.u32 %v2352, 8388607
  %v2354 = vor.u32 %v2353, 8388608
  %v2355 = vsub.s32 0, %v2354
  %v2356 = vadd.s32 %v2351, 1
  %vm2357 = vcmp.gt.s32.totalorder %v2356, 0
  %v2358 = vsel %vm2357, %v2356, 0
  %v2359 = vshrl.u32 %v2358, 5
  %v2360 = vand.u32 %v2358, 31
  %v2361 = vsub.s32 32, %v2360
  %v2362 = vshrl.u32 683565275, %v2361
  %v2363 = vshll.u32 683565275, %v2360
  %v2364 = vshrl.u32 2475754826, %v2361
  %v2365 = vor.u32 %v2363, %v2364
  %v2366 = vshll.u32 2475754826, %v2360
  %v2367 = vshrl.u32 2131351028, %v2361
  %v2368 = vor.u32 %v2366, %v2367
  %v2369 = vshll.u32 2131351028, %v2360
  %v2370 = vshrl.u32 2102212464, %v2361
  %v2371 = vor.u32 %v2369, %v2370
  %v2372 = vshll.u32 2102212464, %v2360
  %v2373 = vshrl.u32 920167782, %v2361
  %v2374 = vor.u32 %v2372, %v2373
  %v2375 = vshll.u32 920167782, %v2360
  %v2376 = vshrl.u32 1326507024, %v2361
  %v2377 = vor.u32 %v2375, %v2376
  %vm2378 = vcmp.lt.s32.totalorder %v2359, 1
  %vm2379 = vcmp.lt.s32.totalorder %v2359, 2
  %vm2380 = vcmp.lt.s32.totalorder %v2359, 3
  %vm2381 = vcmp.lt.s32.totalorder %v2359, 4
  %v2382 = vsel %vm2378, %v2362, %v2365
  %v2383 = vsel %vm2381, %v2371, 2102212464
  %v2384 = vsel %vm2380, %v2368, %v2383
  %v2385 = vsel %vm2379, %v2382, %v2384
  %v2386 = vsel %vm2378, %v2365, %v2368
  %v2387 = vsel %vm2381, %v2374, 920167782
  %v2388 = vsel %vm2380, %v2371, %v2387
  %v2389 = vsel %vm2379, %v2386, %v2388
  %v2390 = vsel %vm2378, %v2368, %v2371
  %v2391 = vsel %vm2381, %v2377, 1326507024
  %v2392 = vsel %vm2380, %v2374, %v2391
  %v2393 = vsel %vm2379, %v2390, %v2392
  %v2394 = vshll.u32 %v2354, 8
  %v2395 = vmul.u32.u64.compose %v2394, %v2393
  %v2396 = vextract.low.u32 %v2395
  %v2397 = vextract.high.u32 %v2395
  %v2398 = vmul.u32.u64.compose %v2394, %v2389
  %v2399 = vextract.low.u32 %v2398
  %v2400 = vextract.high.u32 %v2398
  %v2401 = vmul.u32 %v2394, %v2385
  %v2402 = vadd.s32 %v2397, %v2399
  %vm2403 = vc.u32 %v2397, %v2399
  %v2404 = vadd.s32 %v2400, 1
  %v2405 = vsel %vm2403, %v2404, %v2400
  %v2406 = vadd.s32 %v2401, %v2405
  %v2407 = vadd.s32 %v2406, 536870912
  %v2408 = vshrl.u32 %v2407, 30
  %v2409 = vshll.u32 %v2408, 30
  %v2410 = vsub.s32 %v2406, %v2409
  %vm2411 = vcmp.lt.s32.totalorder %v2410, 0
  %v2412 = vsub.s32 0, %v2410
  %v2413 = vsel %vm2411, %v2412, %v2410
  %v2414 = vclz %v2413
  %v2415 = vsub.s32 %v2414, 2
  %vm2416 = vcmp.gt.s32.totalorder 0, %v2415
  %v2417 = vsel %vm2416, 0, %v2415
  %v2418 = vsub.s32 32, %v2417
  %v2419 = vshll.u32 %v2410, %v2417
  %v2420 = vshrl.u32 %v2402, %v2418
  %v2421 = vor.u32 %v2419, %v2420
  %v2422 = vsub.s32 4294967266, %v2417
  %v2423 = vadd.s32 %v2422, 127
  %v2424 = vshll.u32 %v2423, 23
  %v2425 = vor.u32 4788187, %v2424
  %v2426 = vand.u32 2147483647, %v2425
  %v2428 = vcvt.s32.f32 %v2421
  %v2429 = vmul.f32 %v2428, %v2426
  %v2430 = vxor.u32 %v2429, 2147483648
  %v2431 = vsel %vm2348, %v2430, %v2429
  %v2432 = vsub.s32 4, %v2408
  %v2433 = vsel %vm2348, %v2432, %v2408
  %v2434 = vsel %vm2347, %v2240, %v2431
  %v2435 = vsel %vm2347, 0, %v2433
  %v2436 = vcosq.f32.pop %v2434
  %v2437 = vsinq.f32.pop %v2434
  %vm2438 = vweird.f32 %v2240
  %v2439 = vand.u32 %v2435, 3
  %vm2440 = vcmp.lt.s32.totalorder %v2439, 2
  %vm2441 = vcmp.eq.s32.totalorder %v2439, 0
  %v2442 = vxor.u32 %v2437, 2147483648
  %v2443 = vsel %vm2441, %v2436, %v2442
  %vm2444 = vcmp.eq.s32.totalorder %v2439, 2
  %v2445 = vxor.u32 %v2436, 2147483648
  %v2446 = vsel %vm2444, %v2445, %v2437
  %v2447 = vsel %vm2440, %v2443, %v2446
  %v2448 = vsel %vm2438, nan, %v2447
  %v2449 = vand.u32 2147483647, %v2241
  %vm2450 = vcmp.le.f32.partialorder %v2449, 0.7853982
  %vm2451 = vcmp.lt.s32.totalorder %v2241, 0
  %v2452 = vand.u32 %v2241, 2139095040
  %v2453 = vshrl.u32 %v2452, 23
  %v2454 = vsub.s32 %v2453, 127
  %v2455 = vand.u32 2147483647, %v2241
  %v2456 = vand.u32 %v2455, 8388607
  %v2457 = vor.u32 %v2456, 8388608
  %v2458 = vsub.s32 0, %v2457
  %v2459 = vadd.s32 %v2454, 1
  %vm2460 = vcmp.gt.s32.totalorder %v2459, 0
  %v2461 = vsel %vm2460, %v2459, 0
  %v2462 = vshrl.u32 %v2461, 5
  %v2463 = vand.u32 %v2461, 31
  %v2464 = vsub.s32 32, %v2463
  %v2465 = vshrl.u32 683565275, %v2464
  %v2466 = vshll.u32 683565275, %v2463
  %v2467 = vshrl.u32 2475754826, %v2464
  %v2468 = vor.u32 %v2466, %v2467
  %v2469 = vshll.u32 2475754826, %v2463
  %v2470 = vshrl.u32 2131351028, %v2464
  %v2471 = vor.u32 %v2469, %v2470
  %v2472 = vshll.u32 2131351028, %v2463
  %v2473 = vshrl.u32 2102212464, %v2464
  %v2474 = vor.u32 %v2472, %v2473
  %v2475 = vshll.u32 2102212464, %v2463
  %v2476 = vshrl.u32 920167782, %v2464
  %v2477 = vor.u32 %v2475, %v2476
  %v2478 = vshll.u32 920167782, %v2463
  %v2479 = vshrl.u32 1326507024, %v2464
  %v2480 = vor.u32 %v2478, %v2479
  %vm2481 = vcmp.lt.s32.totalorder %v2462, 1
  %vm2482 = vcmp.lt.s32.totalorder %v2462, 2
  %vm2483 = vcmp.lt.s32.totalorder %v2462, 3
  %vm2484 = vcmp.lt.s32.totalorder %v2462, 4
  %v2485 = vsel %vm2481, %v2465, %v2468
  %v2486 = vsel %vm2484, %v2474, 2102212464
  %v2487 = vsel %vm2483, %v2471, %v2486
  %v2488 = vsel %vm2482, %v2485, %v2487
  %v2489 = vsel %vm2481, %v2468, %v2471
  %v2490 = vsel %vm2484, %v2477, 920167782
  %v2491 = vsel %vm2483, %v2474, %v2490
  %v2492 = vsel %vm2482, %v2489, %v2491
  %v2493 = vsel %vm2481, %v2471, %v2474
  %v2494 = vsel %vm2484, %v2480, 1326507024
  %v2495 = vsel %vm2483, %v2477, %v2494
  %v2496 = vsel %vm2482, %v2493, %v2495
  %v2497 = vshll.u32 %v2457, 8
  %v2498 = vmul.u32.u64.compose %v2497, %v2496
  %v2499 = vextract.low.u32 %v2498
  %v2500 = vextract.high.u32 %v2498
  %v2501 = vmul.u32.u64.compose %v2497, %v2492
  %v2502 = vextract.low.u32 %v2501
  %v2503 = vextract.high.u32 %v2501
  %v2504 = vmul.u32 %v2497, %v2488
  %v2505 = vadd.s32 %v2500, %v2502
  %vm2506 = vc.u32 %v2500, %v2502
  %v2507 = vadd.s32 %v2503, 1
  %v2508 = vsel %vm2506, %v2507, %v2503
  %v2509 = vadd.s32 %v2504, %v2508
  %v2510 = vadd.s32 %v2509, 536870912
  %v2511 = vshrl.u32 %v2510, 30
  %v2512 = vshll.u32 %v2511, 30
  %v2513 = vsub.s32 %v2509, %v2512
  %vm2514 = vcmp.lt.s32.totalorder %v2513, 0
  %v2515 = vsub.s32 0, %v2513
  %v2516 = vsel %vm2514, %v2515, %v2513
  %v2517 = vclz %v2516
  %v2518 = vsub.s32 %v2517, 2
  %vm2519 = vcmp.gt.s32.totalorder 0, %v2518
  %v2520 = vsel %vm2519, 0, %v2518
  %v2521 = vsub.s32 32, %v2520
  %v2522 = vshll.u32 %v2513, %v2520
  %v2523 = vshrl.u32 %v2505, %v2521
  %v2524 = vor.u32 %v2522, %v2523
  %v2525 = vsub.s32 4294967266, %v2520
  %v2526 = vadd.s32 %v2525, 127
  %v2527 = vshll.u32 %v2526, 23
  %v2528 = vor.u32 4788187, %v2527
  %v2529 = vand.u32 2147483647, %v2528
  %v2531 = vcvt.s32.f32 %v2524
  %v2532 = vmul.f32 %v2531, %v2529
  %v2533 = vxor.u32 %v2532, 2147483648
  %v2534 = vsel %vm2451, %v2533, %v2532
  %v2535 = vsub.s32 4, %v2511
  %v2536 = vsel %vm2451, %v2535, %v2511
  %v2537 = vsel %vm2450, %v2241, %v2534
  %v2538 = vsel %vm2450, 0, %v2536
  %v2539 = vcosq.f32.pop %v2537
  %v2540 = vsinq.f32.pop %v2537
  %vm2541 = vweird.f32 %v2241
  %v2542 = vand.u32 %v2538, 3
  %vm2543 = vcmp.lt.s32.totalorder %v2542, 2
  %vm2544 = vcmp.eq.s32.totalorder %v2542, 0
  %v2545 = vxor.u32 %v2540, 2147483648
  %v2546 = vsel %vm2544, %v2539, %v2545
  %vm2547 = vcmp.eq.s32.totalorder %v2542, 2
  %v2548 = vxor.u32 %v2539, 2147483648
  %v2549 = vsel %vm2547, %v2548, %v2540
  %v2550 = vsel %vm2543, %v2546, %v2549
  %v2551 = vsel %vm2541, nan, %v2550
  %v2552 = vand.u32 2147483647, %v2242
  %vm2553 = vcmp.le.f32.partialorder %v2552, 0.7853982
  %vm2554 = vcmp.lt.s32.totalorder %v2242, 0
  %v2555 = vand.u32 %v2242, 2139095040
  %v2556 = vshrl.u32 %v2555, 23
  %v2557 = vsub.s32 %v2556, 127
  %v2558 = vand.u32 2147483647, %v2242
  %v2559 = vand.u32 %v2558, 8388607
  %v2560 = vor.u32 %v2559, 8388608
  %v2561 = vsub.s32 0, %v2560
  %v2562 = vadd.s32 %v2557, 1
  %vm2563 = vcmp.gt.s32.totalorder %v2562, 0
  %v2564 = vsel %vm2563, %v2562, 0
  %v2565 = vshrl.u32 %v2564, 5
  %v2566 = vand.u32 %v2564, 31
  %v2567 = vsub.s32 32, %v2566
  %v2568 = vshrl.u32 683565275, %v2567
  %v2569 = vshll.u32 683565275, %v2566
  %v2570 = vshrl.u32 2475754826, %v2567
  %v2571 = vor.u32 %v2569, %v2570
  %v2572 = vshll.u32 2475754826, %v2566
  %v2573 = vshrl.u32 2131351028, %v2567
  %v2574 = vor.u32 %v2572, %v2573
  %v2575 = vshll.u32 2131351028, %v2566
  %v2576 = vshrl.u32 2102212464, %v2567
  %v2577 = vor.u32 %v2575, %v2576
  %v2578 = vshll.u32 2102212464, %v2566
  %v2579 = vshrl.u32 920167782, %v2567
  %v2580 = vor.u32 %v2578, %v2579
  %v2581 = vshll.u32 920167782, %v2566
  %v2582 = vshrl.u32 1326507024, %v2567
  %v2583 = vor.u32 %v2581, %v2582
  %vm2584 = vcmp.lt.s32.totalorder %v2565, 1
  %vm2585 = vcmp.lt.s32.totalorder %v2565, 2
  %vm2586 = vcmp.lt.s32.totalorder %v2565, 3
  %vm2587 = vcmp.lt.s32.totalorder %v2565, 4
  %v2588 = vsel %vm2584, %v2568, %v2571
  %v2589 = vsel %vm2587, %v2577, 2102212464
  %v2590 = vsel %vm2586, %v2574, %v2589
  %v2591 = vsel %vm2585, %v2588, %v2590
  %v2592 = vsel %vm2584, %v2571, %v2574
  %v2593 = vsel %vm2587, %v2580, 920167782
  %v2594 = vsel %vm2586, %v2577, %v2593
  %v2595 = vsel %vm2585, %v2592, %v2594
  %v2596 = vsel %vm2584, %v2574, %v2577
  %v2597 = vsel %vm2587, %v2583, 1326507024
  %v2598 = vsel %vm2586, %v2580, %v2597
  %v2599 = vsel %vm2585, %v2596, %v2598
  %v2600 = vshll.u32 %v2560, 8
  %v2601 = vmul.u32.u64.compose %v2600, %v2599
  %v2602 = vextract.low.u32 %v2601
  %v2603 = vextract.high.u32 %v2601
  %v2604 = vmul.u32.u64.compose %v2600, %v2595
  %v2605 = vextract.low.u32 %v2604
  %v2606 = vextract.high.u32 %v2604
  %v2607 = vmul.u32 %v2600, %v2591
  %v2608 = vadd.s32 %v2603, %v2605
  %vm2609 = vc.u32 %v2603, %v2605
  %v2610 = vadd.s32 %v2606, 1
  %v2611 = vsel %vm2609, %v2610, %v2606
  %v2612 = vadd.s32 %v2607, %v2611
  %v2613 = vadd.s32 %v2612, 536870912
  %v2614 = vshrl.u32 %v2613, 30
  %v2615 = vshll.u32 %v2614, 30
  %v2616 = vsub.s32 %v2612, %v2615
  %vm2617 = vcmp.lt.s32.totalorder %v2616, 0
  %v2618 = vsub.s32 0, %v2616
  %v2619 = vsel %vm2617, %v2618, %v2616
  %v2620 = vclz %v2619
  %v2621 = vsub.s32 %v2620, 2
  %vm2622 = vcmp.gt.s32.totalorder 0, %v2621
  %v2623 = vsel %vm2622, 0, %v2621
  %v2624 = vsub.s32 32, %v2623
  %v2625 = vshll.u32 %v2616, %v2623
  %v2626 = vshrl.u32 %v2608, %v2624
  %v2627 = vor.u32 %v2625, %v2626
  %v2628 = vsub.s32 4294967266, %v2623
  %v2629 = vadd.s32 %v2628, 127
  %v2630 = vshll.u32 %v2629, 23
  %v2631 = vor.u32 4788187, %v2630
  %v2632 = vand.u32 2147483647, %v2631
  %v2634 = vcvt.s32.f32 %v2627
  %v2635 = vmul.f32 %v2634, %v2632
  %v2636 = vxor.u32 %v2635, 2147483648
  %v2637 = vsel %vm2554, %v2636, %v2635
  %v2638 = vsub.s32 4, %v2614
  %v2639 = vsel %vm2554, %v2638, %v2614
  %v2640 = vsel %vm2553, %v2242, %v2637
  %v2641 = vsel %vm2553, 0, %v2639
  %v2642 = vcosq.f32.pop %v2640
  %v2643 = vsinq.f32.pop %v2640
  %vm2644 = vweird.f32 %v2242
  %v2645 = vand.u32 %v2641, 3
  %vm2646 = vcmp.lt.s32.totalorder %v2645, 2
  %vm2647 = vcmp.eq.s32.totalorder %v2645, 0
  %v2648 = vxor.u32 %v2643, 2147483648
  %v2649 = vsel %vm2647, %v2642, %v2648
  %vm2650 = vcmp.eq.s32.totalorder %v2645, 2
  %v2651 = vxor.u32 %v2642, 2147483648
  %v2652 = vsel %vm2650, %v2651, %v2643
  %v2653 = vsel %vm2646, %v2649, %v2652
  %v2654 = vsel %vm2644, nan, %v2653
  %v2655 = vand.u32 2147483647, %v2239
  %vm2656 = vcmp.le.f32.partialorder %v2655, 0.7853982
  %vm2657 = vcmp.lt.s32.totalorder %v2239, 0
  %v2658 = vand.u32 %v2239, 2139095040
  %v2659 = vshrl.u32 %v2658, 23
  %v2660 = vsub.s32 %v2659, 127
  %v2661 = vand.u32 2147483647, %v2239
  %v2662 = vand.u32 %v2661, 8388607
  %v2663 = vor.u32 %v2662, 8388608
  %v2664 = vsub.s32 0, %v2663
  %v2665 = vadd.s32 %v2660, 1
  %vm2666 = vcmp.gt.s32.totalorder %v2665, 0
  %v2667 = vsel %vm2666, %v2665, 0
  %v2668 = vshrl.u32 %v2667, 5
  %v2669 = vand.u32 %v2667, 31
  %v2670 = vsub.s32 32, %v2669
  %v2671 = vshrl.u32 683565275, %v2670
  %v2672 = vshll.u32 683565275, %v2669
  %v2673 = vshrl.u32 2475754826, %v2670
  %v2674 = vor.u32 %v2672, %v2673
  %v2675 = vshll.u32 2475754826, %v2669
  %v2676 = vshrl.u32 2131351028, %v2670
  %v2677 = vor.u32 %v2675, %v2676
  %v2678 = vshll.u32 2131351028, %v2669
  %v2679 = vshrl.u32 2102212464, %v2670
  %v2680 = vor.u32 %v2678, %v2679
  %v2681 = vshll.u32 2102212464, %v2669
  %v2682 = vshrl.u32 920167782, %v2670
  %v2683 = vor.u32 %v2681, %v2682
  %v2684 = vshll.u32 920167782, %v2669
  %v2685 = vshrl.u32 1326507024, %v2670
  %v2686 = vor.u32 %v2684, %v2685
  %vm2687 = vcmp.lt.s32.totalorder %v2668, 1
  %vm2688 = vcmp.lt.s32.totalorder %v2668, 2
  %vm2689 = vcmp.lt.s32.totalorder %v2668, 3
  %vm2690 = vcmp.lt.s32.totalorder %v2668, 4
  %v2691 = vsel %vm2687, %v2671, %v2674
  %v2692 = vsel %vm2690, %v2680, 2102212464
  %v2693 = vsel %vm2689, %v2677, %v2692
  %v2694 = vsel %vm2688, %v2691, %v2693
  %v2695 = vsel %vm2687, %v2674, %v2677
  %v2696 = vsel %vm2690, %v2683, 920167782
  %v2697 = vsel %vm2689, %v2680, %v2696
  %v2698 = vsel %vm2688, %v2695, %v2697
  %v2699 = vsel %vm2687, %v2677, %v2680
  %v2700 = vsel %vm2690, %v2686, 1326507024
  %v2701 = vsel %vm2689, %v2683, %v2700
  %v2702 = vsel %vm2688, %v2699, %v2701
  %v2703 = vshll.u32 %v2663, 8
  %v2704 = vmul.u32.u64.compose %v2703, %v2702
  %v2705 = vextract.low.u32 %v2704
  %v2706 = vextract.high.u32 %v2704
  %v2707 = vmul.u32.u64.compose %v2703, %v2698
  %v2708 = vextract.low.u32 %v2707
  %v2709 = vextract.high.u32 %v2707
  %v2710 = vmul.u32 %v2703, %v2694
  %v2711 = vadd.s32 %v2706, %v2708
  %vm2712 = vc.u32 %v2706, %v2708
  %v2713 = vadd.s32 %v2709, 1
  %v2714 = vsel %vm2712, %v2713, %v2709
  %v2715 = vadd.s32 %v2710, %v2714
  %v2716 = vadd.s32 %v2715, 536870912
  %v2717 = vshrl.u32 %v2716, 30
  %v2718 = vshll.u32 %v2717, 30
  %v2719 = vsub.s32 %v2715, %v2718
  %vm2720 = vcmp.lt.s32.totalorder %v2719, 0
  %v2721 = vsub.s32 0, %v2719
  %v2722 = vsel %vm2720, %v2721, %v2719
  %v2723 = vclz %v2722
  %v2724 = vsub.s32 %v2723, 2
  %vm2725 = vcmp.gt.s32.totalorder 0, %v2724
  %v2726 = vsel %vm2725, 0, %v2724
  %v2727 = vsub.s32 32, %v2726
  %v2728 = vshll.u32 %v2719, %v2726
  %v2729 = vshrl.u32 %v2711, %v2727
  %v2730 = vor.u32 %v2728, %v2729
  %v2731 = vsub.s32 4294967266, %v2726
  %v2732 = vadd.s32 %v2731, 127
  %v2733 = vshll.u32 %v2732, 23
  %v2734 = vor.u32 4788187, %v2733
  %v2735 = vand.u32 2147483647, %v2734
  %v2737 = vcvt.s32.f32 %v2730
  %v2738 = vmul.f32 %v2737, %v2735
  %v2739 = vxor.u32 %v2738, 2147483648
  %v2740 = vsel %vm2657, %v2739, %v2738
  %v2741 = vsub.s32 4, %v2717
  %v2742 = vsel %vm2657, %v2741, %v2717
  %v2743 = vsel %vm2656, %v2239, %v2740
  %v2744 = vsel %vm2656, 0, %v2742
  %v2745 = vcosq.f32.pop %v2743
  %v2746 = vsinq.f32.pop %v2743
  %vm2747 = vweird.f32 %v2239
  %v2748 = vadd.s32 %v2744, 3
  %v2749 = vand.u32 %v2748, 3
  %vm2750 = vcmp.lt.s32.totalorder %v2749, 2
  %vm2751 = vcmp.eq.s32.totalorder %v2749, 0
  %v2752 = vxor.u32 %v2746, 2147483648
  %v2753 = vsel %vm2751, %v2745, %v2752
  %vm2754 = vcmp.eq.s32.totalorder %v2749, 2
  %v2755 = vxor.u32 %v2745, 2147483648
  %v2756 = vsel %vm2754, %v2755, %v2746
  %v2757 = vsel %vm2750, %v2753, %v2756
  %v2758 = vsel %vm2747, nan, %v2757
  %v2759 = vand.u32 2147483647, %v2240
  %vm2760 = vcmp.le.f32.partialorder %v2759, 0.7853982
  %vm2761 = vcmp.lt.s32.totalorder %v2240, 0
  %v2762 = vand.u32 %v2240, 2139095040
  %v2763 = vshrl.u32 %v2762, 23
  %v2764 = vsub.s32 %v2763, 127
  %v2765 = vand.u32 2147483647, %v2240
  %v2766 = vand.u32 %v2765, 8388607
  %v2767 = vor.u32 %v2766, 8388608
  %v2768 = vsub.s32 0, %v2767
  %v2769 = vadd.s32 %v2764, 1
  %vm2770 = vcmp.gt.s32.totalorder %v2769, 0
  %v2771 = vsel %vm2770, %v2769, 0
  %v2772 = vshrl.u32 %v2771, 5
  %v2773 = vand.u32 %v2771, 31
  %v2774 = vsub.s32 32, %v2773
  %v2775 = vshrl.u32 683565275, %v2774
  %v2776 = vshll.u32 683565275, %v2773
  %v2777 = vshrl.u32 2475754826, %v2774
  %v2778 = vor.u32 %v2776, %v2777
  %v2779 = vshll.u32 2475754826, %v2773
  %v2780 = vshrl.u32 2131351028, %v2774
  %v2781 = vor.u32 %v2779, %v2780
  %v2782 = vshll.u32 2131351028, %v2773
  %v2783 = vshrl.u32 2102212464, %v2774
  %v2784 = vor.u32 %v2782, %v2783
  %v2785 = vshll.u32 2102212464, %v2773
  %v2786 = vshrl.u32 920167782, %v2774
  %v2787 = vor.u32 %v2785, %v2786
  %v2788 = vshll.u32 920167782, %v2773
  %v2789 = vshrl.u32 1326507024, %v2774
  %v2790 = vor.u32 %v2788, %v2789
  %vm2791 = vcmp.lt.s32.totalorder %v2772, 1
  %vm2792 = vcmp.lt.s32.totalorder %v2772, 2
  %vm2793 = vcmp.lt.s32.totalorder %v2772, 3
  %vm2794 = vcmp.lt.s32.totalorder %v2772, 4
  %v2795 = vsel %vm2791, %v2775, %v2778
  %v2796 = vsel %vm2794, %v2784, 2102212464
  %v2797 = vsel %vm2793, %v2781, %v2796
  %v2798 = vsel %vm2792, %v2795, %v2797
  %v2799 = vsel %vm2791, %v2778, %v2781
  %v2800 = vsel %vm2794, %v2787, 920167782
  %v2801 = vsel %vm2793, %v2784, %v2800
  %v2802 = vsel %vm2792, %v2799, %v2801
  %v2803 = vsel %vm2791, %v2781, %v2784
  %v2804 = vsel %vm2794, %v2790, 1326507024
  %v2805 = vsel %vm2793, %v2787, %v2804
  %v2806 = vsel %vm2792, %v2803, %v2805
  %v2807 = vshll.u32 %v2767, 8
  %v2808 = vmul.u32.u64.compose %v2807, %v2806
  %v2809 = vextract.low.u32 %v2808
  %v2810 = vextract.high.u32 %v2808
  %v2811 = vmul.u32.u64.compose %v2807, %v2802
  %v2812 = vextract.low.u32 %v2811
  %v2813 = vextract.high.u32 %v2811
  %v2814 = vmul.u32 %v2807, %v2798
  %v2815 = vadd.s32 %v2810, %v2812
  %vm2816 = vc.u32 %v2810, %v2812
  %v2817 = vadd.s32 %v2813, 1
  %v2818 = vsel %vm2816, %v2817, %v2813
  %v2819 = vadd.s32 %v2814, %v2818
  %v2820 = vadd.s32 %v2819, 536870912
  %v2821 = vshrl.u32 %v2820, 30
  %v2822 = vshll.u32 %v2821, 30
  %v2823 = vsub.s32 %v2819, %v2822
  %vm2824 = vcmp.lt.s32.totalorder %v2823, 0
  %v2825 = vsub.s32 0, %v2823
  %v2826 = vsel %vm2824, %v2825, %v2823
  %v2827 = vclz %v2826
  %v2828 = vsub.s32 %v2827, 2
  %vm2829 = vcmp.gt.s32.totalorder 0, %v2828
  %v2830 = vsel %vm2829, 0, %v2828
  %v2831 = vsub.s32 32, %v2830
  %v2832 = vshll.u32 %v2823, %v2830
  %v2833 = vshrl.u32 %v2815, %v2831
  %v2834 = vor.u32 %v2832, %v2833
  %v2835 = vsub.s32 4294967266, %v2830
  %v2836 = vadd.s32 %v2835, 127
  %v2837 = vshll.u32 %v2836, 23
  %v2838 = vor.u32 4788187, %v2837
  %v2839 = vand.u32 2147483647, %v2838
  %v2841 = vcvt.s32.f32 %v2834
  %v2842 = vmul.f32 %v2841, %v2839
  %v2843 = vxor.u32 %v2842, 2147483648
  %v2844 = vsel %vm2761, %v2843, %v2842
  %v2845 = vsub.s32 4, %v2821
  %v2846 = vsel %vm2761, %v2845, %v2821
  %v2847 = vsel %vm2760, %v2240, %v2844
  %v2848 = vsel %vm2760, 0, %v2846
  %v2849 = vcosq.f32.pop %v2847
  %v2850 = vsinq.f32.pop %v2847
  %vm2851 = vweird.f32 %v2240
  %v2852 = vadd.s32 %v2848, 3
  %v2853 = vand.u32 %v2852, 3
  %vm2854 = vcmp.lt.s32.totalorder %v2853, 2
  %vm2855 = vcmp.eq.s32.totalorder %v2853, 0
  %v2856 = vxor.u32 %v2850, 2147483648
  %v2857 = vsel %vm2855, %v2849, %v2856
  %vm2858 = vcmp.eq.s32.totalorder %v2853, 2
  %v2859 = vxor.u32 %v2849, 2147483648
  %v2860 = vsel %vm2858, %v2859, %v2850
  %v2861 = vsel %vm2854, %v2857, %v2860
  %v2862 = vsel %vm2851, nan, %v2861
  %v2863 = vand.u32 2147483647, %v2241
  %vm2864 = vcmp.le.f32.partialorder %v2863, 0.7853982
  %vm2865 = vcmp.lt.s32.totalorder %v2241, 0
  %v2866 = vand.u32 %v2241, 2139095040
  %v2867 = vshrl.u32 %v2866, 23
  %v2868 = vsub.s32 %v2867, 127
  %v2869 = vand.u32 2147483647, %v2241
  %v2870 = vand.u32 %v2869, 8388607
  %v2871 = vor.u32 %v2870, 8388608
  %v2872 = vsub.s32 0, %v2871
  %v2873 = vadd.s32 %v2868, 1
  %vm2874 = vcmp.gt.s32.totalorder %v2873, 0
  %v2875 = vsel %vm2874, %v2873, 0
  %v2876 = vshrl.u32 %v2875, 5
  %v2877 = vand.u32 %v2875, 31
  %v2878 = vsub.s32 32, %v2877
  %v2879 = vshrl.u32 683565275, %v2878
  %v2880 = vshll.u32 683565275, %v2877
  %v2881 = vshrl.u32 2475754826, %v2878
  %v2882 = vor.u32 %v2880, %v2881
  %v2883 = vshll.u32 2475754826, %v2877
  %v2884 = vshrl.u32 2131351028, %v2878
  %v2885 = vor.u32 %v2883, %v2884
  %v2886 = vshll.u32 2131351028, %v2877
  %v2887 = vshrl.u32 2102212464, %v2878
  %v2888 = vor.u32 %v2886, %v2887
  %v2889 = vshll.u32 2102212464, %v2877
  %v2890 = vshrl.u32 920167782, %v2878
  %v2891 = vor.u32 %v2889, %v2890
  %v2892 = vshll.u32 920167782, %v2877
  %v2893 = vshrl.u32 1326507024, %v2878
  %v2894 = vor.u32 %v2892, %v2893
  %vm2895 = vcmp.lt.s32.totalorder %v2876, 1
  %vm2896 = vcmp.lt.s32.totalorder %v2876, 2
  %vm2897 = vcmp.lt.s32.totalorder %v2876, 3
  %vm2898 = vcmp.lt.s32.totalorder %v2876, 4
  %v2899 = vsel %vm2895, %v2879, %v2882
  %v2900 = vsel %vm2898, %v2888, 2102212464
  %v2901 = vsel %vm2897, %v2885, %v2900
  %v2902 = vsel %vm2896, %v2899, %v2901
  %v2903 = vsel %vm2895, %v2882, %v2885
  %v2904 = vsel %vm2898, %v2891, 920167782
  %v2905 = vsel %vm2897, %v2888, %v2904
  %v2906 = vsel %vm2896, %v2903, %v2905
  %v2907 = vsel %vm2895, %v2885, %v2888
  %v2908 = vsel %vm2898, %v2894, 1326507024
  %v2909 = vsel %vm2897, %v2891, %v2908
  %v2910 = vsel %vm2896, %v2907, %v2909
  %v2911 = vshll.u32 %v2871, 8
  %v2912 = vmul.u32.u64.compose %v2911, %v2910
  %v2913 = vextract.low.u32 %v2912
  %v2914 = vextract.high.u32 %v2912
  %v2915 = vmul.u32.u64.compose %v2911, %v2906
  %v2916 = vextract.low.u32 %v2915
  %v2917 = vextract.high.u32 %v2915
  %v2918 = vmul.u32 %v2911, %v2902
  %v2919 = vadd.s32 %v2914, %v2916
  %vm2920 = vc.u32 %v2914, %v2916
  %v2921 = vadd.s32 %v2917, 1
  %v2922 = vsel %vm2920, %v2921, %v2917
  %v2923 = vadd.s32 %v2918, %v2922
  %v2924 = vadd.s32 %v2923, 536870912
  %v2925 = vshrl.u32 %v2924, 30
  %v2926 = vshll.u32 %v2925, 30
  %v2927 = vsub.s32 %v2923, %v2926
  %vm2928 = vcmp.lt.s32.totalorder %v2927, 0
  %v2929 = vsub.s32 0, %v2927
  %v2930 = vsel %vm2928, %v2929, %v2927
  %v2931 = vclz %v2930
  %v2932 = vsub.s32 %v2931, 2
  %vm2933 = vcmp.gt.s32.totalorder 0, %v2932
  %v2934 = vsel %vm2933, 0, %v2932
  %v2935 = vsub.s32 32, %v2934
  %v2936 = vshll.u32 %v2927, %v2934
  %v2937 = vshrl.u32 %v2919, %v2935
  %v2938 = vor.u32 %v2936, %v2937
  %v2939 = vsub.s32 4294967266, %v2934
  %v2940 = vadd.s32 %v2939, 127
  %v2941 = vshll.u32 %v2940, 23
  %v2942 = vor.u32 4788187, %v2941
  %v2943 = vand.u32 2147483647, %v2942
  %v2945 = vcvt.s32.f32 %v2938
  %v2946 = vmul.f32 %v2945, %v2943
  %v2947 = vxor.u32 %v2946, 2147483648
  %v2948 = vsel %vm2865, %v2947, %v2946
  %v2949 = vsub.s32 4, %v2925
  %v2950 = vsel %vm2865, %v2949, %v2925
  %v2951 = vsel %vm2864, %v2241, %v2948
  %v2952 = vsel %vm2864, 0, %v2950
  %v2953 = vcosq.f32.pop %v2951
  %v2954 = vsinq.f32.pop %v2951
  %vm2955 = vweird.f32 %v2241
  %v2956 = vadd.s32 %v2952, 3
  %v2957 = vand.u32 %v2956, 3
  %vm2958 = vcmp.lt.s32.totalorder %v2957, 2
  %vm2959 = vcmp.eq.s32.totalorder %v2957, 0
  %v2960 = vxor.u32 %v2954, 2147483648
  %v2961 = vsel %vm2959, %v2953, %v2960
  %vm2962 = vcmp.eq.s32.totalorder %v2957, 2
  %v2963 = vxor.u32 %v2953, 2147483648
  %v2964 = vsel %vm2962, %v2963, %v2954
  %v2965 = vsel %vm2958, %v2961, %v2964
  %v2966 = vsel %vm2955, nan, %v2965
  %v2967 = vand.u32 2147483647, %v2242
  %vm2968 = vcmp.le.f32.partialorder %v2967, 0.7853982
  %vm2969 = vcmp.lt.s32.totalorder %v2242, 0
  %v2970 = vand.u32 %v2242, 2139095040
  %v2971 = vshrl.u32 %v2970, 23
  %v2972 = vsub.s32 %v2971, 127
  %v2973 = vand.u32 2147483647, %v2242
  %v2974 = vand.u32 %v2973, 8388607
  %v2975 = vor.u32 %v2974, 8388608
  %v2976 = vsub.s32 0, %v2975
  %v2977 = vadd.s32 %v2972, 1
  %vm2978 = vcmp.gt.s32.totalorder %v2977, 0
  %v2979 = vsel %vm2978, %v2977, 0
  %v2980 = vshrl.u32 %v2979, 5
  %v2981 = vand.u32 %v2979, 31
  %v2982 = vsub.s32 32, %v2981
  %v2983 = vshrl.u32 683565275, %v2982
  %v2984 = vshll.u32 683565275, %v2981
  %v2985 = vshrl.u32 2475754826, %v2982
  %v2986 = vor.u32 %v2984, %v2985
  %v2987 = vshll.u32 2475754826, %v2981
  %v2988 = vshrl.u32 2131351028, %v2982
  %v2989 = vor.u32 %v2987, %v2988
  %v2990 = vshll.u32 2131351028, %v2981
  %v2991 = vshrl.u32 2102212464, %v2982
  %v2992 = vor.u32 %v2990, %v2991
  %v2993 = vshll.u32 2102212464, %v2981
  %v2994 = vshrl.u32 920167782, %v2982
  %v2995 = vor.u32 %v2993, %v2994
  %v2996 = vshll.u32 920167782, %v2981
  %v2997 = vshrl.u32 1326507024, %v2982
  %v2998 = vor.u32 %v2996, %v2997
  %vm2999 = vcmp.lt.s32.totalorder %v2980, 1
  %vm3000 = vcmp.lt.s32.totalorder %v2980, 2
  %vm3001 = vcmp.lt.s32.totalorder %v2980, 3
  %vm3002 = vcmp.lt.s32.totalorder %v2980, 4
  %v3003 = vsel %vm2999, %v2983, %v2986
  %v3004 = vsel %vm3002, %v2992, 2102212464
  %v3005 = vsel %vm3001, %v2989, %v3004
  %v3006 = vsel %vm3000, %v3003, %v3005
  %v3007 = vsel %vm2999, %v2986, %v2989
  %v3008 = vsel %vm3002, %v2995, 920167782
  %v3009 = vsel %vm3001, %v2992, %v3008
  %v3010 = vsel %vm3000, %v3007, %v3009
  %v3011 = vsel %vm2999, %v2989, %v2992
  %v3012 = vsel %vm3002, %v2998, 1326507024
  %v3013 = vsel %vm3001, %v2995, %v3012
  %v3014 = vsel %vm3000, %v3011, %v3013
  %v3015 = vshll.u32 %v2975, 8
  %v3016 = vmul.u32.u64.compose %v3015, %v3014
  %v3017 = vextract.low.u32 %v3016
  %v3018 = vextract.high.u32 %v3016
  %v3019 = vmul.u32.u64.compose %v3015, %v3010
  %v3020 = vextract.low.u32 %v3019
  %v3021 = vextract.high.u32 %v3019
  %v3022 = vmul.u32 %v3015, %v3006
  %v3023 = vadd.s32 %v3018, %v3020
  %vm3024 = vc.u32 %v3018, %v3020
  %v3025 = vadd.s32 %v3021, 1
  %v3026 = vsel %vm3024, %v3025, %v3021
  %v3027 = vadd.s32 %v3022, %v3026
  %v3028 = vadd.s32 %v3027, 536870912
  %v3029 = vshrl.u32 %v3028, 30
  %v3030 = vshll.u32 %v3029, 30
  %v3031 = vsub.s32 %v3027, %v3030
  %vm3032 = vcmp.lt.s32.totalorder %v3031, 0
  %v3033 = vsub.s32 0, %v3031
  %v3034 = vsel %vm3032, %v3033, %v3031
  %v3035 = vclz %v3034
  %v3036 = vsub.s32 %v3035, 2
  %vm3037 = vcmp.gt.s32.totalorder 0, %v3036
  %v3038 = vsel %vm3037, 0, %v3036
  %v3039 = vsub.s32 32, %v3038
  %v3040 = vshll.u32 %v3031, %v3038
  %v3041 = vshrl.u32 %v3023, %v3039
  %v3042 = vor.u32 %v3040, %v3041
  %v3043 = vsub.s32 4294967266, %v3038
  %v3044 = vadd.s32 %v3043, 127
  %v3045 = vshll.u32 %v3044, 23
  %v3046 = vor.u32 4788187, %v3045
  %v3047 = vand.u32 2147483647, %v3046
  %v3049 = vcvt.s32.f32 %v3042
  %v3050 = vmul.f32 %v3049, %v3047
  %v3051 = vxor.u32 %v3050, 2147483648
  %v3052 = vsel %vm2969, %v3051, %v3050
  %v3053 = vsub.s32 4, %v3029
  %v3054 = vsel %vm2969, %v3053, %v3029
  %v3055 = vsel %vm2968, %v2242, %v3052
  %v3056 = vsel %vm2968, 0, %v3054
  %v3057 = vcosq.f32.pop %v3055
  %v3058 = vsinq.f32.pop %v3055
  %vm3059 = vweird.f32 %v2242
  %v3060 = vadd.s32 %v3056, 3
  %v3061 = vand.u32 %v3060, 3
  %vm3062 = vcmp.lt.s32.totalorder %v3061, 2
  %vm3063 = vcmp.eq.s32.totalorder %v3061, 0
  %v3064 = vxor.u32 %v3058, 2147483648
  %v3065 = vsel %vm3063, %v3057, %v3064
  %vm3066 = vcmp.eq.s32.totalorder %v3061, 2
  %v3067 = vxor.u32 %v3057, 2147483648
  %v3068 = vsel %vm3066, %v3067, %v3058
  %v3069 = vsel %vm3062, %v3065, %v3068
  %v3070 = vsel %vm3059, nan, %v3069
  %v3073 = vrot.slane %v2345, 4
  %v3074 = vrot.slane %v2448, 4
  %v3077 = vmul.f32 %v2345, %v3073
  %v3078 = vmul.f32 %v2448, %v3074
  %v3081 = vrot.slane %v2758, 4
  %v3082 = vrot.slane %v2862, 4
  %v3085 = vmul.f32 %v2345, %v3081
  %v3086 = vmul.f32 %v2448, %v3082
  %v3087 = vsub.f32 0.0, %v3085
  %v3088 = vsub.f32 0.0, %v3086
  %v3089 = vmul.f32 %v2758, %v3073
  %v3090 = vmul.f32 %v2862, %v3074
  %v3091 = vmul.f32 %v2758, %v3081
  %v3092 = vmul.f32 %v2862, %v3082
  %v3093 = vmul.f32 %v2551, %v3077
  %v3094 = vmul.f32 %v2654, %v3078
  %v3095 = vmul.f32 %v2966, %v3091
  %v3096 = vmul.f32 %v3070, %v3092
  %v3097 = vadd.f32 %v3093, %v3095
  %v3098 = vadd.f32 %v3094, %v3096
  %v3099 = vmul.f32 %v2551, %v3087
  %v3100 = vmul.f32 %v2654, %v3088
  %v3101 = vmul.f32 %v2966, %v3089
  %v3102 = vmul.f32 %v3070, %v3090
  %v3103 = vsub.f32 %v3099, %v3101
  %v3104 = vsub.f32 %v3100, %v3102
  %v3105 = vmul.f32 %v2966, %v3087
  %v3106 = vmul.f32 %v3070, %v3088
  %v3107 = vmul.f32 %v2551, %v3089
  %v3108 = vmul.f32 %v2654, %v3090
  %v3109 = vadd.f32 %v3105, %v3107
  %v3110 = vadd.f32 %v3106, %v3108
  %v3111 = vmul.f32 %v2551, %v3091
  %v3112 = vmul.f32 %v2654, %v3092
  %v3113 = vmul.f32 %v2966, %v3077
  %v3114 = vmul.f32 %v3070, %v3078
  %v3115 = vsub.f32 %v3111, %v3113
  %v3116 = vsub.f32 %v3112, %v3114
  %v3119 = vrot.slane %v3097, 4
  %v3120 = vrot.slane %v3098, 4
  %v3123 = vmul.f32 %v2551, %v3119
  %v3124 = vmul.f32 %v2654, %v3120
  %v3127 = vrot.slane %v3109, 4
  %v3128 = vrot.slane %v3110, 4
  %v3131 = vmul.f32 %v2966, %v3127
  %v3132 = vmul.f32 %v3070, %v3128
  %v3133 = vsub.f32 %v3123, %v3131
  %v3134 = vsub.f32 %v3124, %v3132
  %v3137 = vrot.slane %v3103, 4
  %v3138 = vrot.slane %v3104, 4
  %v3141 = vmul.f32 %v2551, %v3137
  %v3142 = vmul.f32 %v2654, %v3138
  %v3145 = vrot.slane %v3115, 4
  %v3146 = vrot.slane %v3116, 4
  %v3149 = vmul.f32 %v2966, %v3145
  %v3150 = vmul.f32 %v3070, %v3146
  %v3151 = vsub.f32 %v3141, %v3149
  %v3152 = vsub.f32 %v3142, %v3150
  %v3153 = vmul.f32 %v2966, %v3119
  %v3154 = vmul.f32 %v3070, %v3120
  %v3155 = vmul.f32 %v2551, %v3127
  %v3156 = vmul.f32 %v2654, %v3128
  %v3157 = vadd.f32 %v3153, %v3155
  %v3158 = vadd.f32 %v3154, %v3156
  %v3159 = vmul.f32 %v2966, %v3137
  %v3160 = vmul.f32 %v3070, %v3138
  %v3161 = vmul.f32 %v2551, %v3145
  %v3162 = vmul.f32 %v2654, %v3146
  %v3163 = vadd.f32 %v3159, %v3161
  %v3164 = vadd.f32 %v3160, %v3162
  %v3165 = vlaneseq
  %v3166 = vshrl.u32 %v3165, 7
  %v3167 = vsub.s32 4, %v3166
  %v3168 = vrot.slane %v3157, %v3167
  %v3169 = vlaneseq
  %v3170 = vshrl.u32 %v3169, 7
  %v3171 = vsub.s32 4, %v3170
  %v3172 = vrot.slane %v3158, %v3171
  %v3173 = vlaneseq
  %v3174 = vshrl.u32 %v3173, 7
  %v3175 = vsub.s32 4, %v3174
  %v3176 = vrot.slane %v3133, %v3175
  %v3177 = vlaneseq
  %v3178 = vshrl.u32 %v3177, 7
  %v3179 = vsub.s32 4, %v3178
  %v3180 = vrot.slane %v3134, %v3179
  %v3181 = vsel %vm1800, %v3168, %v3176
  %v3182 = vsel %vm1800, %v3172, %v3180
  %v3183 = vsel %vm1801, %v3168, %v3176
  %v3184 = vsel %vm1801, %v3172, %v3180
  %v3185 = vlaneseq
  %v3186 = vshrl.u32 %v3185, 7
  %v3187 = vsub.s32 4, %v3186
  %v3188 = vrot.slane %v3163, %v3187
  %v3189 = vlaneseq
  %v3190 = vshrl.u32 %v3189, 7
  %v3191 = vsub.s32 4, %v3190
  %v3192 = vrot.slane %v3164, %v3191
  %v3193 = vlaneseq
  %v3194 = vshrl.u32 %v3193, 7
  %v3195 = vsub.s32 4, %v3194
  %v3196 = vrot.slane %v3151, %v3195
  %v3197 = vlaneseq
  %v3198 = vshrl.u32 %v3197, 7
  %v3199 = vsub.s32 4, %v3198
  %v3200 = vrot.slane %v3152, %v3199
  %v3201 = vsel %vm1800, %v3188, %v3196
  %v3202 = vsel %vm1800, %v3192, %v3200
  %v3203 = vsel %vm1801, %v3188, %v3196
  %v3204 = vsel %vm1801, %v3192, %v3200
  %v3205 = vlaneseq
  %v3206 = vshrl.u32 %v3205, 7
  %v3207 = vsub.s32 5, %v3206
  %v3208 = vrot.slane %v3157, %v3207
  %v3209 = vlaneseq
  %v3210 = vshrl.u32 %v3209, 7
  %v3211 = vsub.s32 5, %v3210
  %v3212 = vrot.slane %v3158, %v3211
  %v3213 = vlaneseq
  %v3214 = vshrl.u32 %v3213, 7
  %v3215 = vsub.s32 5, %v3214
  %v3216 = vrot.slane %v3133, %v3215
  %v3217 = vlaneseq
  %v3218 = vshrl.u32 %v3217, 7
  %v3219 = vsub.s32 5, %v3218
  %v3220 = vrot.slane %v3134, %v3219
  %v3221 = vsel %vm1844, %v3208, %v3216
  %v3222 = vsel %vm1844, %v3212, %v3220
  %v3223 = vsel %vm1845, %v3208, %v3216
  %v3224 = vsel %vm1845, %v3212, %v3220
  %v3225 = vlaneseq
  %v3226 = vshrl.u32 %v3225, 7
  %v3227 = vsub.s32 5, %v3226
  %v3228 = vrot.slane %v3163, %v3227
  %v3229 = vlaneseq
  %v3230 = vshrl.u32 %v3229, 7
  %v3231 = vsub.s32 5, %v3230
  %v3232 = vrot.slane %v3164, %v3231
  %v3233 = vlaneseq
  %v3234 = vshrl.u32 %v3233, 7
  %v3235 = vsub.s32 5, %v3234
  %v3236 = vrot.slane %v3151, %v3235
  %v3237 = vlaneseq
  %v3238 = vshrl.u32 %v3237, 7
  %v3239 = vsub.s32 5, %v3238
  %v3240 = vrot.slane %v3152, %v3239
  %v3241 = vsel %vm1844, %v3228, %v3236
  %v3242 = vsel %vm1844, %v3232, %v3240
  %v3243 = vsel %vm1845, %v3228, %v3236
  %v3244 = vsel %vm1845, %v3232, %v3240
  %v3245 = vmul.f32 %v3181, %v3221
  %v3246 = vmul.f32 %v3182, %v3222
  %v3247 = vmul.f32 %v3183, %v3223
  %v3248 = vmul.f32 %v3184, %v3224
  %v3249 = vmul.f32 %v3201, %v3241
  %v3250 = vmul.f32 %v3202, %v3242
  %v3251 = vmul.f32 %v3203, %v3243
  %v3252 = vmul.f32 %v3204, %v3244
  %v3253 = vsub.f32 %v3245, %v3249
  %v3254 = vsub.f32 %v3246, %v3250
  %v3255 = vsub.f32 %v3247, %v3251
  %v3256 = vsub.f32 %v3248, %v3252
  %v3257 = vmul.f32 %v3181, %v3241
  %v3258 = vmul.f32 %v3182, %v3242
  %v3259 = vmul.f32 %v3183, %v3243
  %v3260 = vmul.f32 %v3184, %v3244
  %v3261 = vmul.f32 %v3201, %v3221
  %v3262 = vmul.f32 %v3202, %v3222
  %v3263 = vmul.f32 %v3203, %v3223
  %v3264 = vmul.f32 %v3204, %v3224
  %v3265 = vadd.f32 %v3257, %v3261
  %v3266 = vadd.f32 %v3258, %v3262
  %v3267 = vadd.f32 %v3259, %v3263
  %v3268 = vadd.f32 %v3260, %v3264
  %v3269 = vlaneseq
  %v3270 = vshrl.u32 %v3269, 7
  %v3271 = vsub.s32 6, %v3270
  %v3272 = vrot.slane %v3157, %v3271
  %v3273 = vlaneseq
  %v3274 = vshrl.u32 %v3273, 7
  %v3275 = vsub.s32 6, %v3274
  %v3276 = vrot.slane %v3158, %v3275
  %v3277 = vlaneseq
  %v3278 = vshrl.u32 %v3277, 7
  %v3279 = vsub.s32 6, %v3278
  %v3280 = vrot.slane %v3133, %v3279
  %v3281 = vlaneseq
  %v3282 = vshrl.u32 %v3281, 7
  %v3283 = vsub.s32 6, %v3282
  %v3284 = vrot.slane %v3134, %v3283
  %v3285 = vsel %vm1912, %v3272, %v3280
  %v3286 = vsel %vm1912, %v3276, %v3284
  %v3287 = vsel %vm1913, %v3272, %v3280
  %v3288 = vsel %vm1913, %v3276, %v3284
  %v3289 = vlaneseq
  %v3290 = vshrl.u32 %v3289, 7
  %v3291 = vsub.s32 6, %v3290
  %v3292 = vrot.slane %v3163, %v3291
  %v3293 = vlaneseq
  %v3294 = vshrl.u32 %v3293, 7
  %v3295 = vsub.s32 6, %v3294
  %v3296 = vrot.slane %v3164, %v3295
  %v3297 = vlaneseq
  %v3298 = vshrl.u32 %v3297, 7
  %v3299 = vsub.s32 6, %v3298
  %v3300 = vrot.slane %v3151, %v3299
  %v3301 = vlaneseq
  %v3302 = vshrl.u32 %v3301, 7
  %v3303 = vsub.s32 6, %v3302
  %v3304 = vrot.slane %v3152, %v3303
  %v3305 = vsel %vm1912, %v3292, %v3300
  %v3306 = vsel %vm1912, %v3296, %v3304
  %v3307 = vsel %vm1913, %v3292, %v3300
  %v3308 = vsel %vm1913, %v3296, %v3304
  %v3309 = vmul.f32 %v3253, %v3285
  %v3310 = vmul.f32 %v3254, %v3286
  %v3311 = vmul.f32 %v3255, %v3287
  %v3312 = vmul.f32 %v3256, %v3288
  %v3313 = vmul.f32 %v3265, %v3305
  %v3314 = vmul.f32 %v3266, %v3306
  %v3315 = vmul.f32 %v3267, %v3307
  %v3316 = vmul.f32 %v3268, %v3308
  %v3317 = vsub.f32 %v3309, %v3313
  %v3318 = vsub.f32 %v3310, %v3314
  %v3319 = vsub.f32 %v3311, %v3315
  %v3320 = vsub.f32 %v3312, %v3316
  %v3321 = vmul.f32 %v3253, %v3305
  %v3322 = vmul.f32 %v3254, %v3306
  %v3323 = vmul.f32 %v3255, %v3307
  %v3324 = vmul.f32 %v3256, %v3308
  %v3325 = vmul.f32 %v3265, %v3285
  %v3326 = vmul.f32 %v3266, %v3286
  %v3327 = vmul.f32 %v3267, %v3287
  %v3328 = vmul.f32 %v3268, %v3288
  %v3329 = vadd.f32 %v3321, %v3325
  %v3330 = vadd.f32 %v3322, %v3326
  %v3331 = vadd.f32 %v3323, %v3327
  %v3332 = vadd.f32 %v3324, %v3328
  %v3333 = vlaneseq
  %v3334 = vshrl.u32 %v3333, 7
  %v3335 = vsub.s32 7, %v3334
  %v3336 = vrot.slane %v3157, %v3335
  %v3337 = vlaneseq
  %v3338 = vshrl.u32 %v3337, 7
  %v3339 = vsub.s32 7, %v3338
  %v3340 = vrot.slane %v3158, %v3339
  %v3341 = vlaneseq
  %v3342 = vshrl.u32 %v3341, 7
  %v3343 = vsub.s32 7, %v3342
  %v3344 = vrot.slane %v3133, %v3343
  %v3345 = vlaneseq
  %v3346 = vshrl.u32 %v3345, 7
  %v3347 = vsub.s32 7, %v3346
  %v3348 = vrot.slane %v3134, %v3347
  %v3349 = vsel %vm1980, %v3336, %v3344
  %v3350 = vsel %vm1980, %v3340, %v3348
  %v3351 = vsel %vm1981, %v3336, %v3344
  %v3352 = vsel %vm1981, %v3340, %v3348
  %v3353 = vlaneseq
  %v3354 = vshrl.u32 %v3353, 7
  %v3355 = vsub.s32 7, %v3354
  %v3356 = vrot.slane %v3163, %v3355
  %v3357 = vlaneseq
  %v3358 = vshrl.u32 %v3357, 7
  %v3359 = vsub.s32 7, %v3358
  %v3360 = vrot.slane %v3164, %v3359
  %v3361 = vlaneseq
  %v3362 = vshrl.u32 %v3361, 7
  %v3363 = vsub.s32 7, %v3362
  %v3364 = vrot.slane %v3151, %v3363
  %v3365 = vlaneseq
  %v3366 = vshrl.u32 %v3365, 7
  %v3367 = vsub.s32 7, %v3366
  %v3368 = vrot.slane %v3152, %v3367
  %v3369 = vsel %vm1980, %v3356, %v3364
  %v3370 = vsel %vm1980, %v3360, %v3368
  %v3371 = vsel %vm1981, %v3356, %v3364
  %v3372 = vsel %vm1981, %v3360, %v3368
  %v3373 = vmul.f32 %v3317, %v3349
  %v3374 = vmul.f32 %v3318, %v3350
  %v3375 = vmul.f32 %v3319, %v3351
  %v3376 = vmul.f32 %v3320, %v3352
  %v3377 = vmul.f32 %v3329, %v3369
  %v3378 = vmul.f32 %v3330, %v3370
  %v3379 = vmul.f32 %v3331, %v3371
  %v3380 = vmul.f32 %v3332, %v3372
  %v3381 = vsub.f32 %v3373, %v3377
  %v3382 = vsub.f32 %v3374, %v3378
  %v3383 = vsub.f32 %v3375, %v3379
  %v3384 = vsub.f32 %v3376, %v3380
  %v3385 = vmul.f32 %v3317, %v3369
  %v3386 = vmul.f32 %v3318, %v3370
  %v3387 = vmul.f32 %v3319, %v3371
  %v3388 = vmul.f32 %v3320, %v3372
  %v3389 = vmul.f32 %v3329, %v3349
  %v3390 = vmul.f32 %v3330, %v3350
  %v3391 = vmul.f32 %v3331, %v3351
  %v3392 = vmul.f32 %v3332, %v3352
  %v3393 = vadd.f32 %v3385, %v3389
  %v3394 = vadd.f32 %v3386, %v3390
  %v3395 = vadd.f32 %v3387, %v3391
  %v3396 = vadd.f32 %v3388, %v3392
  %3397 = vmatprep.subr.mxu0 0.0
  %3398 = vmatpush1.msra.mxu0 0.0
  %3399 = vmatprep.subr.mxu0 0.0
  %3400 = vmatpush1.msra.mxu0 0.0
  %3401 = vmatprep.subr.mxu0 0.0
  %3402 = vmatpush1.msra.mxu0 0.0
  %3403 = vmatprep.subr.mxu0 0.0
  %3404 = vmatpush1.msra.mxu0 0.0
  %3405 = vmatprep.subr.mxu0 0.0
  %3406 = vmatpush1.msra.mxu0 0.0
  %3407 = vmatprep.subr.mxu0 0.0
  %3408 = vmatpush1.msra.mxu0 0.0
  %3409 = vmatprep.subr.mxu0 0.0
  %3410 = vmatpush1.msra.mxu0 0.0
  %3411 = vmatprep.subr.mxu0 0.0
  %3412 = vmatpush1.msra.mxu0 0.0
  %3413 = vmatprep.subr.mxu0 0.0
  %3414 = vmatpush1.msra.mxu0 0.0
  %3415 = vmatprep.subr.mxu0 0.0
  %3416 = vmatpush1.msra.mxu0 0.0
  %3417 = vmatprep.subr.mxu0 0.0
  %3418 = vmatpush1.msra.mxu0 0.0
  %3419 = vmatprep.subr.mxu0 0.0
  %3420 = vmatpush1.msra.mxu0 0.0
  %3421 = vmatprep.subr.mxu0 %v3396
  %3422 = vmatpush1.msra.mxu0 %v3395
  %3423 = vmatprep.subr.mxu0 %v3394
  %3424 = vmatpush1.msra.mxu0 %v3393
  %3425 = vmatprep.subr.mxu0 %v3384
  %3426 = vmatpush1.msra.mxu0 %v3383
  %3427 = vmatprep.subr.mxu0 %v3382
  %3428 = vmatpush1.msra.mxu0 %v3381
  %3429 = vmatprep.subr.mxu0 0.0
  %3430 = vmatpush2.msra.mxu0 0.0
  %3431 = vmatprep.subr.mxu0 0.0
  %3432 = vmatpush2.msra.mxu0 0.0
  %3433 = vmatprep.subr.mxu0 0.0
  %3434 = vmatpush2.msra.mxu0 0.0
  %3435 = vmatprep.subr.mxu0 0.0
  %3436 = vmatpush2.msra.mxu0 0.0
  %3437 = vmatprep.subr.mxu0 0.0
  %3438 = vmatpush2.msra.mxu0 0.0
  %3439 = vmatprep.subr.mxu0 0.0
  %3440 = vmatpush2.msra.mxu0 0.0
  %3441 = vmatprep.subr.mxu0 0.0
  %3442 = vmatpush2.msra.mxu0 0.0
  %3443 = vmatprep.subr.mxu0 0.0
  %3444 = vmatpush2.msra.mxu0 0.0
  %3445 = vmatprep.subr.mxu0 0.0
  %3446 = vmatpush2.msra.mxu0 0.0
  %3447 = vmatprep.subr.mxu0 0.0
  %3448 = vmatpush2.msra.mxu0 0.0
  %3449 = vmatprep.subr.mxu0 0.0
  %3450 = vmatpush2.msra.mxu0 0.0
  %3451 = vmatprep.subr.mxu0 0.0
  %3452 = vmatpush2.msra.mxu0 0.0
  %3453 = vmatprep.subr.mxu0 0.0
  %3454 = vmatpush2.msra.mxu0 0.0
  %3455 = vmatprep.subr.mxu0 0.0
  %3456 = vmatpush2.msra.mxu0 0.0
  %3457 = vmatprep.subr.mxu0 0.0
  %3458 = vmatpush2.msra.mxu0 0.0
  %3459 = vmatprep.subr.mxu0 0.0
  %3460 = vmatpush2.msra.mxu0 0.0
  %3461 = vmatprep.mubr.f32.mxu0 0.0
  %3462 = vmatmul.mubr.f32.gmra.mxu0 %v2048
  %v3463 = vpop.f32.mrf.mxu0
  %v3464 = vadd.f32 0.0, %v3463
  %v3465 = vpop.f32.mrf.mxu0
  %v3466 = vadd.f32 0.0, %v3465
  %3467 = vmatprep.mubr.f32.mxu0 0.0
  %3468 = vmatmul.mubr.f32.gmra.mxu0 %v2051
  %v3469 = vpop.f32.mrf.mxu0
  %v3470 = vadd.f32 0.0, %v3469
  %v3471 = vpop.f32.mrf.mxu0
  %v3472 = vadd.f32 0.0, %v3471
  %3473 = vmatprep.mubr.f32.mxu0 0.0
  %3474 = vmatmul.mubr.f32.gmra.mxu0 %v2054
  %v3475 = vpop.f32.mrf.mxu0
  %v3476 = vadd.f32 0.0, %v3475
  %v3477 = vpop.f32.mrf.mxu0
  %v3478 = vadd.f32 0.0, %v3477
  %3479 = vmatprep.mubr.f32.mxu0 0.0
  %3480 = vmatmul.mubr.f32.gmra.mxu0 %v2057
  %v3481 = vpop.f32.mrf.mxu0
  %v3482 = vadd.f32 0.0, %v3481
  %v3483 = vpop.f32.mrf.mxu0
  %v3484 = vadd.f32 0.0, %v3483
  %3485 = vdwg.mxu0
  %v3486 = vmul.f32 %v3464, %v3464
  %v3487 = vmul.f32 %v3466, %v3466
  %v3488 = vmul.f32 %v3470, %v3470
  %v3489 = vmul.f32 %v3472, %v3472
  %v3490 = vmul.f32 %v3476, %v3476
  %v3491 = vmul.f32 %v3478, %v3478
  %v3492 = vmul.f32 %v3482, %v3482
  %v3493 = vmul.f32 %v3484, %v3484
  %3494 = vmatprep.subr.mxu0 0.0
  %3495 = vmatpush1.msra.mxu0 0.0
  %3496 = vmatprep.subr.mxu0 0.0
  %3497 = vmatpush1.msra.mxu0 0.0
  %3498 = vmatprep.subr.mxu0 0.0
  %3499 = vmatpush1.msra.mxu0 0.0
  %3500 = vmatprep.subr.mxu0 0.0
  %3501 = vmatpush1.msra.mxu0 0.0
  %3502 = vmatprep.subr.mxu0 0.0
  %3503 = vmatpush1.msra.mxu0 0.0
  %3504 = vmatprep.subr.mxu0 0.0
  %3505 = vmatpush1.msra.mxu0 0.0
  %3506 = vmatprep.subr.mxu0 0.0
  %3507 = vmatpush1.msra.mxu0 0.0
  %3508 = vmatprep.subr.mxu0 0.0
  %3509 = vmatpush1.msra.mxu0 0.0
  %3510 = vmatprep.subr.mxu0 0.0
  %3511 = vmatpush1.msra.mxu0 0.0
  %3512 = vmatprep.subr.mxu0 0.0
  %3513 = vmatpush1.msra.mxu0 0.0
  %3514 = vmatprep.subr.mxu0 0.0
  %3515 = vmatpush1.msra.mxu0 0.0
  %3516 = vmatprep.subr.mxu0 0.0
  %3517 = vmatpush1.msra.mxu0 0.0
  %3518 = vmatprep.subr.mxu0 %v3493
  %3519 = vmatpush1.msra.mxu0 %v3492
  %3520 = vmatprep.subr.mxu0 %v3491
  %3521 = vmatpush1.msra.mxu0 %v3490
  %3522 = vmatprep.subr.mxu0 %v3489
  %3523 = vmatpush1.msra.mxu0 %v3488
  %3524 = vmatprep.subr.mxu0 %v3487
  %3525 = vmatpush1.msra.mxu0 %v3486
  %3526 = vmatprep.subr.mxu0 0.0
  %3527 = vmatpush2.msra.mxu0 0.0
  %3528 = vmatprep.subr.mxu0 0.0
  %3529 = vmatpush2.msra.mxu0 0.0
  %3530 = vmatprep.subr.mxu0 0.0
  %3531 = vmatpush2.msra.mxu0 0.0
  %3532 = vmatprep.subr.mxu0 0.0
  %3533 = vmatpush2.msra.mxu0 0.0
  %3534 = vmatprep.subr.mxu0 0.0
  %3535 = vmatpush2.msra.mxu0 0.0
  %3536 = vmatprep.subr.mxu0 0.0
  %3537 = vmatpush2.msra.mxu0 0.0
  %3538 = vmatprep.subr.mxu0 0.0
  %3539 = vmatpush2.msra.mxu0 0.0
  %3540 = vmatprep.subr.mxu0 0.0
  %3541 = vmatpush2.msra.mxu0 0.0
  %3542 = vmatprep.subr.mxu0 0.0
  %3543 = vmatpush2.msra.mxu0 0.0
  %3544 = vmatprep.subr.mxu0 0.0
  %3545 = vmatpush2.msra.mxu0 0.0
  %3546 = vmatprep.subr.mxu0 0.0
  %3547 = vmatpush2.msra.mxu0 0.0
  %3548 = vmatprep.subr.mxu0 0.0
  %3549 = vmatpush2.msra.mxu0 0.0
  %3550 = vmatprep.subr.mxu0 0.0
  %3551 = vmatpush2.msra.mxu0 0.0
  %3552 = vmatprep.subr.mxu0 0.0
  %3553 = vmatpush2.msra.mxu0 0.0
  %3554 = vmatprep.subr.mxu0 0.0
  %3555 = vmatpush2.msra.mxu0 0.0
  %3556 = vmatprep.subr.mxu0 0.0
  %3557 = vmatpush2.msra.mxu0 0.0
  %3558 = vmatprep.mubr.f32.mxu0 0.0
  %3559 = vmatmul.mubr.f32.gmra.mxu0 %v2157
  %v3560 = vpop.f32.mrf.mxu0
  %v3561 = vadd.f32 %v833, %v3560
  %v3562 = vpop.f32.mrf.mxu0
  %v3563 = vadd.f32 %v834, %v3562
  %3564 = vmatprep.mubr.f32.mxu0 0.0
  %3565 = vmatmul.mubr.f32.gmra.mxu0 %v2160
  %v3566 = vpop.f32.mrf.mxu0
  %v3567 = vadd.f32 %v835, %v3566
  %v3568 = vpop.f32.mrf.mxu0
  %v3569 = vadd.f32 %v836, %v3568
  %3570 = vdwg.mxu0
  %v3571 = vmul.f32 %v3561, 0.5
  %v3572 = vmul.f32 %v3563, 0.5
  %v3573 = vmul.f32 %v3567, 0.5
  %v3574 = vmul.f32 %v3569, 0.5
  %v3575 = vand.u32 2147483647, %v3571
  %vm3576 = vcmp.le.f32.partialorder %v3575, 0.7853982
  %vm3577 = vcmp.lt.s32.totalorder %v3571, 0
  %v3578 = vand.u32 %v3571, 2139095040
  %v3579 = vshrl.u32 %v3578, 23
  %v3580 = vsub.s32 %v3579, 127
  %v3581 = vand.u32 2147483647, %v3571
  %v3582 = vand.u32 %v3581, 8388607
  %v3583 = vor.u32 %v3582, 8388608
  %v3584 = vsub.s32 0, %v3583
  %v3585 = vadd.s32 %v3580, 1
  %vm3586 = vcmp.gt.s32.totalorder %v3585, 0
  %v3587 = vsel %vm3586, %v3585, 0
  %v3588 = vshrl.u32 %v3587, 5
  %v3589 = vand.u32 %v3587, 31
  %v3590 = vsub.s32 32, %v3589
  %v3591 = vshrl.u32 683565275, %v3590
  %v3592 = vshll.u32 683565275, %v3589
  %v3593 = vshrl.u32 2475754826, %v3590
  %v3594 = vor.u32 %v3592, %v3593
  %v3595 = vshll.u32 2475754826, %v3589
  %v3596 = vshrl.u32 2131351028, %v3590
  %v3597 = vor.u32 %v3595, %v3596
  %v3598 = vshll.u32 2131351028, %v3589
  %v3599 = vshrl.u32 2102212464, %v3590
  %v3600 = vor.u32 %v3598, %v3599
  %v3601 = vshll.u32 2102212464, %v3589
  %v3602 = vshrl.u32 920167782, %v3590
  %v3603 = vor.u32 %v3601, %v3602
  %v3604 = vshll.u32 920167782, %v3589
  %v3605 = vshrl.u32 1326507024, %v3590
  %v3606 = vor.u32 %v3604, %v3605
  %vm3607 = vcmp.lt.s32.totalorder %v3588, 1
  %vm3608 = vcmp.lt.s32.totalorder %v3588, 2
  %vm3609 = vcmp.lt.s32.totalorder %v3588, 3
  %vm3610 = vcmp.lt.s32.totalorder %v3588, 4
  %v3611 = vsel %vm3607, %v3591, %v3594
  %v3612 = vsel %vm3610, %v3600, 2102212464
  %v3613 = vsel %vm3609, %v3597, %v3612
  %v3614 = vsel %vm3608, %v3611, %v3613
  %v3615 = vsel %vm3607, %v3594, %v3597
  %v3616 = vsel %vm3610, %v3603, 920167782
  %v3617 = vsel %vm3609, %v3600, %v3616
  %v3618 = vsel %vm3608, %v3615, %v3617
  %v3619 = vsel %vm3607, %v3597, %v3600
  %v3620 = vsel %vm3610, %v3606, 1326507024
  %v3621 = vsel %vm3609, %v3603, %v3620
  %v3622 = vsel %vm3608, %v3619, %v3621
  %v3623 = vshll.u32 %v3583, 8
  %v3624 = vmul.u32.u64.compose %v3623, %v3622
  %v3625 = vextract.low.u32 %v3624
  %v3626 = vextract.high.u32 %v3624
  %v3627 = vmul.u32.u64.compose %v3623, %v3618
  %v3628 = vextract.low.u32 %v3627
  %v3629 = vextract.high.u32 %v3627
  %v3630 = vmul.u32 %v3623, %v3614
  %v3631 = vadd.s32 %v3626, %v3628
  %vm3632 = vc.u32 %v3626, %v3628
  %v3633 = vadd.s32 %v3629, 1
  %v3634 = vsel %vm3632, %v3633, %v3629
  %v3635 = vadd.s32 %v3630, %v3634
  %v3636 = vadd.s32 %v3635, 536870912
  %v3637 = vshrl.u32 %v3636, 30
  %v3638 = vshll.u32 %v3637, 30
  %v3639 = vsub.s32 %v3635, %v3638
  %vm3640 = vcmp.lt.s32.totalorder %v3639, 0
  %v3641 = vsub.s32 0, %v3639
  %v3642 = vsel %vm3640, %v3641, %v3639
  %v3643 = vclz %v3642
  %v3644 = vsub.s32 %v3643, 2
  %vm3645 = vcmp.gt.s32.totalorder 0, %v3644
  %v3646 = vsel %vm3645, 0, %v3644
  %v3647 = vsub.s32 32, %v3646
  %v3648 = vshll.u32 %v3639, %v3646
  %v3649 = vshrl.u32 %v3631, %v3647
  %v3650 = vor.u32 %v3648, %v3649
  %v3651 = vsub.s32 4294967266, %v3646
  %v3652 = vadd.s32 %v3651, 127
  %v3653 = vshll.u32 %v3652, 23
  %v3654 = vor.u32 4788187, %v3653
  %v3655 = vand.u32 2147483647, %v3654
  %v3657 = vcvt.s32.f32 %v3650
  %v3658 = vmul.f32 %v3657, %v3655
  %v3659 = vxor.u32 %v3658, 2147483648
  %v3660 = vsel %vm3577, %v3659, %v3658
  %v3661 = vsub.s32 4, %v3637
  %v3662 = vsel %vm3577, %v3661, %v3637
  %v3663 = vsel %vm3576, %v3571, %v3660
  %v3664 = vsel %vm3576, 0, %v3662
  %v3665 = vcosq.f32.pop %v3663
  %v3666 = vsinq.f32.pop %v3663
  %vm3667 = vweird.f32 %v3571
  %v3668 = vand.u32 %v3664, 3
  %vm3669 = vcmp.lt.s32.totalorder %v3668, 2
  %vm3670 = vcmp.eq.s32.totalorder %v3668, 0
  %v3671 = vxor.u32 %v3666, 2147483648
  %v3672 = vsel %vm3670, %v3665, %v3671
  %vm3673 = vcmp.eq.s32.totalorder %v3668, 2
  %v3674 = vxor.u32 %v3665, 2147483648
  %v3675 = vsel %vm3673, %v3674, %v3666
  %v3676 = vsel %vm3669, %v3672, %v3675
  %v3677 = vsel %vm3667, nan, %v3676
  %v3678 = vand.u32 2147483647, %v3572
  %vm3679 = vcmp.le.f32.partialorder %v3678, 0.7853982
  %vm3680 = vcmp.lt.s32.totalorder %v3572, 0
  %v3681 = vand.u32 %v3572, 2139095040
  %v3682 = vshrl.u32 %v3681, 23
  %v3683 = vsub.s32 %v3682, 127
  %v3684 = vand.u32 2147483647, %v3572
  %v3685 = vand.u32 %v3684, 8388607
  %v3686 = vor.u32 %v3685, 8388608
  %v3687 = vsub.s32 0, %v3686
  %v3688 = vadd.s32 %v3683, 1
  %vm3689 = vcmp.gt.s32.totalorder %v3688, 0
  %v3690 = vsel %vm3689, %v3688, 0
  %v3691 = vshrl.u32 %v3690, 5
  %v3692 = vand.u32 %v3690, 31
  %v3693 = vsub.s32 32, %v3692
  %v3694 = vshrl.u32 683565275, %v3693
  %v3695 = vshll.u32 683565275, %v3692
  %v3696 = vshrl.u32 2475754826, %v3693
  %v3697 = vor.u32 %v3695, %v3696
  %v3698 = vshll.u32 2475754826, %v3692
  %v3699 = vshrl.u32 2131351028, %v3693
  %v3700 = vor.u32 %v3698, %v3699
  %v3701 = vshll.u32 2131351028, %v3692
  %v3702 = vshrl.u32 2102212464, %v3693
  %v3703 = vor.u32 %v3701, %v3702
  %v3704 = vshll.u32 2102212464, %v3692
  %v3705 = vshrl.u32 920167782, %v3693
  %v3706 = vor.u32 %v3704, %v3705
  %v3707 = vshll.u32 920167782, %v3692
  %v3708 = vshrl.u32 1326507024, %v3693
  %v3709 = vor.u32 %v3707, %v3708
  %vm3710 = vcmp.lt.s32.totalorder %v3691, 1
  %vm3711 = vcmp.lt.s32.totalorder %v3691, 2
  %vm3712 = vcmp.lt.s32.totalorder %v3691, 3
  %vm3713 = vcmp.lt.s32.totalorder %v3691, 4
  %v3714 = vsel %vm3710, %v3694, %v3697
  %v3715 = vsel %vm3713, %v3703, 2102212464
  %v3716 = vsel %vm3712, %v3700, %v3715
  %v3717 = vsel %vm3711, %v3714, %v3716
  %v3718 = vsel %vm3710, %v3697, %v3700
  %v3719 = vsel %vm3713, %v3706, 920167782
  %v3720 = vsel %vm3712, %v3703, %v3719
  %v3721 = vsel %vm3711, %v3718, %v3720
  %v3722 = vsel %vm3710, %v3700, %v3703
  %v3723 = vsel %vm3713, %v3709, 1326507024
  %v3724 = vsel %vm3712, %v3706, %v3723
  %v3725 = vsel %vm3711, %v3722, %v3724
  %v3726 = vshll.u32 %v3686, 8
  %v3727 = vmul.u32.u64.compose %v3726, %v3725
  %v3728 = vextract.low.u32 %v3727
  %v3729 = vextract.high.u32 %v3727
  %v3730 = vmul.u32.u64.compose %v3726, %v3721
  %v3731 = vextract.low.u32 %v3730
  %v3732 = vextract.high.u32 %v3730
  %v3733 = vmul.u32 %v3726, %v3717
  %v3734 = vadd.s32 %v3729, %v3731
  %vm3735 = vc.u32 %v3729, %v3731
  %v3736 = vadd.s32 %v3732, 1
  %v3737 = vsel %vm3735, %v3736, %v3732
  %v3738 = vadd.s32 %v3733, %v3737
  %v3739 = vadd.s32 %v3738, 536870912
  %v3740 = vshrl.u32 %v3739, 30
  %v3741 = vshll.u32 %v3740, 30
  %v3742 = vsub.s32 %v3738, %v3741
  %vm3743 = vcmp.lt.s32.totalorder %v3742, 0
  %v3744 = vsub.s32 0, %v3742
  %v3745 = vsel %vm3743, %v3744, %v3742
  %v3746 = vclz %v3745
  %v3747 = vsub.s32 %v3746, 2
  %vm3748 = vcmp.gt.s32.totalorder 0, %v3747
  %v3749 = vsel %vm3748, 0, %v3747
  %v3750 = vsub.s32 32, %v3749
  %v3751 = vshll.u32 %v3742, %v3749
  %v3752 = vshrl.u32 %v3734, %v3750
  %v3753 = vor.u32 %v3751, %v3752
  %v3754 = vsub.s32 4294967266, %v3749
  %v3755 = vadd.s32 %v3754, 127
  %v3756 = vshll.u32 %v3755, 23
  %v3757 = vor.u32 4788187, %v3756
  %v3758 = vand.u32 2147483647, %v3757
  %v3760 = vcvt.s32.f32 %v3753
  %v3761 = vmul.f32 %v3760, %v3758
  %v3762 = vxor.u32 %v3761, 2147483648
  %v3763 = vsel %vm3680, %v3762, %v3761
  %v3764 = vsub.s32 4, %v3740
  %v3765 = vsel %vm3680, %v3764, %v3740
  %v3766 = vsel %vm3679, %v3572, %v3763
  %v3767 = vsel %vm3679, 0, %v3765
  %v3768 = vcosq.f32.pop %v3766
  %v3769 = vsinq.f32.pop %v3766
  %vm3770 = vweird.f32 %v3572
  %v3771 = vand.u32 %v3767, 3
  %vm3772 = vcmp.lt.s32.totalorder %v3771, 2
  %vm3773 = vcmp.eq.s32.totalorder %v3771, 0
  %v3774 = vxor.u32 %v3769, 2147483648
  %v3775 = vsel %vm3773, %v3768, %v3774
  %vm3776 = vcmp.eq.s32.totalorder %v3771, 2
  %v3777 = vxor.u32 %v3768, 2147483648
  %v3778 = vsel %vm3776, %v3777, %v3769
  %v3779 = vsel %vm3772, %v3775, %v3778
  %v3780 = vsel %vm3770, nan, %v3779
  %v3781 = vand.u32 2147483647, %v3573
  %vm3782 = vcmp.le.f32.partialorder %v3781, 0.7853982
  %vm3783 = vcmp.lt.s32.totalorder %v3573, 0
  %v3784 = vand.u32 %v3573, 2139095040
  %v3785 = vshrl.u32 %v3784, 23
  %v3786 = vsub.s32 %v3785, 127
  %v3787 = vand.u32 2147483647, %v3573
  %v3788 = vand.u32 %v3787, 8388607
  %v3789 = vor.u32 %v3788, 8388608
  %v3790 = vsub.s32 0, %v3789
  %v3791 = vadd.s32 %v3786, 1
  %vm3792 = vcmp.gt.s32.totalorder %v3791, 0
  %v3793 = vsel %vm3792, %v3791, 0
  %v3794 = vshrl.u32 %v3793, 5
  %v3795 = vand.u32 %v3793, 31
  %v3796 = vsub.s32 32, %v3795
  %v3797 = vshrl.u32 683565275, %v3796
  %v3798 = vshll.u32 683565275, %v3795
  %v3799 = vshrl.u32 2475754826, %v3796
  %v3800 = vor.u32 %v3798, %v3799
  %v3801 = vshll.u32 2475754826, %v3795
  %v3802 = vshrl.u32 2131351028, %v3796
  %v3803 = vor.u32 %v3801, %v3802
  %v3804 = vshll.u32 2131351028, %v3795
  %v3805 = vshrl.u32 2102212464, %v3796
  %v3806 = vor.u32 %v3804, %v3805
  %v3807 = vshll.u32 2102212464, %v3795
  %v3808 = vshrl.u32 920167782, %v3796
  %v3809 = vor.u32 %v3807, %v3808
  %v3810 = vshll.u32 920167782, %v3795
  %v3811 = vshrl.u32 1326507024, %v3796
  %v3812 = vor.u32 %v3810, %v3811
  %vm3813 = vcmp.lt.s32.totalorder %v3794, 1
  %vm3814 = vcmp.lt.s32.totalorder %v3794, 2
  %vm3815 = vcmp.lt.s32.totalorder %v3794, 3
  %vm3816 = vcmp.lt.s32.totalorder %v3794, 4
  %v3817 = vsel %vm3813, %v3797, %v3800
  %v3818 = vsel %vm3816, %v3806, 2102212464
  %v3819 = vsel %vm3815, %v3803, %v3818
  %v3820 = vsel %vm3814, %v3817, %v3819
  %v3821 = vsel %vm3813, %v3800, %v3803
  %v3822 = vsel %vm3816, %v3809, 920167782
  %v3823 = vsel %vm3815, %v3806, %v3822
  %v3824 = vsel %vm3814, %v3821, %v3823
  %v3825 = vsel %vm3813, %v3803, %v3806
  %v3826 = vsel %vm3816, %v3812, 1326507024
  %v3827 = vsel %vm3815, %v3809, %v3826
  %v3828 = vsel %vm3814, %v3825, %v3827
  %v3829 = vshll.u32 %v3789, 8
  %v3830 = vmul.u32.u64.compose %v3829, %v3828
  %v3831 = vextract.low.u32 %v3830
  %v3832 = vextract.high.u32 %v3830
  %v3833 = vmul.u32.u64.compose %v3829, %v3824
  %v3834 = vextract.low.u32 %v3833
  %v3835 = vextract.high.u32 %v3833
  %v3836 = vmul.u32 %v3829, %v3820
  %v3837 = vadd.s32 %v3832, %v3834
  %vm3838 = vc.u32 %v3832, %v3834
  %v3839 = vadd.s32 %v3835, 1
  %v3840 = vsel %vm3838, %v3839, %v3835
  %v3841 = vadd.s32 %v3836, %v3840
  %v3842 = vadd.s32 %v3841, 536870912
  %v3843 = vshrl.u32 %v3842, 30
  %v3844 = vshll.u32 %v3843, 30
  %v3845 = vsub.s32 %v3841, %v3844
  %vm3846 = vcmp.lt.s32.totalorder %v3845, 0
  %v3847 = vsub.s32 0, %v3845
  %v3848 = vsel %vm3846, %v3847, %v3845
  %v3849 = vclz %v3848
  %v3850 = vsub.s32 %v3849, 2
  %vm3851 = vcmp.gt.s32.totalorder 0, %v3850
  %v3852 = vsel %vm3851, 0, %v3850
  %v3853 = vsub.s32 32, %v3852
  %v3854 = vshll.u32 %v3845, %v3852
  %v3855 = vshrl.u32 %v3837, %v3853
  %v3856 = vor.u32 %v3854, %v3855
  %v3857 = vsub.s32 4294967266, %v3852
  %v3858 = vadd.s32 %v3857, 127
  %v3859 = vshll.u32 %v3858, 23
  %v3860 = vor.u32 4788187, %v3859
  %v3861 = vand.u32 2147483647, %v3860
  %v3863 = vcvt.s32.f32 %v3856
  %v3864 = vmul.f32 %v3863, %v3861
  %v3865 = vxor.u32 %v3864, 2147483648
  %v3866 = vsel %vm3783, %v3865, %v3864
  %v3867 = vsub.s32 4, %v3843
  %v3868 = vsel %vm3783, %v3867, %v3843
  %v3869 = vsel %vm3782, %v3573, %v3866
  %v3870 = vsel %vm3782, 0, %v3868
  %v3871 = vcosq.f32.pop %v3869
  %v3872 = vsinq.f32.pop %v3869
  %vm3873 = vweird.f32 %v3573
  %v3874 = vand.u32 %v3870, 3
  %vm3875 = vcmp.lt.s32.totalorder %v3874, 2
  %vm3876 = vcmp.eq.s32.totalorder %v3874, 0
  %v3877 = vxor.u32 %v3872, 2147483648
  %v3878 = vsel %vm3876, %v3871, %v3877
  %vm3879 = vcmp.eq.s32.totalorder %v3874, 2
  %v3880 = vxor.u32 %v3871, 2147483648
  %v3881 = vsel %vm3879, %v3880, %v3872
  %v3882 = vsel %vm3875, %v3878, %v3881
  %v3883 = vsel %vm3873, nan, %v3882
  %v3884 = vand.u32 2147483647, %v3574
  %vm3885 = vcmp.le.f32.partialorder %v3884, 0.7853982
  %vm3886 = vcmp.lt.s32.totalorder %v3574, 0
  %v3887 = vand.u32 %v3574, 2139095040
  %v3888 = vshrl.u32 %v3887, 23
  %v3889 = vsub.s32 %v3888, 127
  %v3890 = vand.u32 2147483647, %v3574
  %v3891 = vand.u32 %v3890, 8388607
  %v3892 = vor.u32 %v3891, 8388608
  %v3893 = vsub.s32 0, %v3892
  %v3894 = vadd.s32 %v3889, 1
  %vm3895 = vcmp.gt.s32.totalorder %v3894, 0
  %v3896 = vsel %vm3895, %v3894, 0
  %v3897 = vshrl.u32 %v3896, 5
  %v3898 = vand.u32 %v3896, 31
  %v3899 = vsub.s32 32, %v3898
  %v3900 = vshrl.u32 683565275, %v3899
  %v3901 = vshll.u32 683565275, %v3898
  %v3902 = vshrl.u32 2475754826, %v3899
  %v3903 = vor.u32 %v3901, %v3902
  %v3904 = vshll.u32 2475754826, %v3898
  %v3905 = vshrl.u32 2131351028, %v3899
  %v3906 = vor.u32 %v3904, %v3905
  %v3907 = vshll.u32 2131351028, %v3898
  %v3908 = vshrl.u32 2102212464, %v3899
  %v3909 = vor.u32 %v3907, %v3908
  %v3910 = vshll.u32 2102212464, %v3898
  %v3911 = vshrl.u32 920167782, %v3899
  %v3912 = vor.u32 %v3910, %v3911
  %v3913 = vshll.u32 920167782, %v3898
  %v3914 = vshrl.u32 1326507024, %v3899
  %v3915 = vor.u32 %v3913, %v3914
  %vm3916 = vcmp.lt.s32.totalorder %v3897, 1
  %vm3917 = vcmp.lt.s32.totalorder %v3897, 2
  %vm3918 = vcmp.lt.s32.totalorder %v3897, 3
  %vm3919 = vcmp.lt.s32.totalorder %v3897, 4
  %v3920 = vsel %vm3916, %v3900, %v3903
  %v3921 = vsel %vm3919, %v3909, 2102212464
  %v3922 = vsel %vm3918, %v3906, %v3921
  %v3923 = vsel %vm3917, %v3920, %v3922
  %v3924 = vsel %vm3916, %v3903, %v3906
  %v3925 = vsel %vm3919, %v3912, 920167782
  %v3926 = vsel %vm3918, %v3909, %v3925
  %v3927 = vsel %vm3917, %v3924, %v3926
  %v3928 = vsel %vm3916, %v3906, %v3909
  %v3929 = vsel %vm3919, %v3915, 1326507024
  %v3930 = vsel %vm3918, %v3912, %v3929
  %v3931 = vsel %vm3917, %v3928, %v3930
  %v3932 = vshll.u32 %v3892, 8
  %v3933 = vmul.u32.u64.compose %v3932, %v3931
  %v3934 = vextract.low.u32 %v3933
  %v3935 = vextract.high.u32 %v3933
  %v3936 = vmul.u32.u64.compose %v3932, %v3927
  %v3937 = vextract.low.u32 %v3936
  %v3938 = vextract.high.u32 %v3936
  %v3939 = vmul.u32 %v3932, %v3923
  %v3940 = vadd.s32 %v3935, %v3937
  %vm3941 = vc.u32 %v3935, %v3937
  %v3942 = vadd.s32 %v3938, 1
  %v3943 = vsel %vm3941, %v3942, %v3938
  %v3944 = vadd.s32 %v3939, %v3943
  %v3945 = vadd.s32 %v3944, 536870912
  %v3946 = vshrl.u32 %v3945, 30
  %v3947 = vshll.u32 %v3946, 30
  %v3948 = vsub.s32 %v3944, %v3947
  %vm3949 = vcmp.lt.s32.totalorder %v3948, 0
  %v3950 = vsub.s32 0, %v3948
  %v3951 = vsel %vm3949, %v3950, %v3948
  %v3952 = vclz %v3951
  %v3953 = vsub.s32 %v3952, 2
  %vm3954 = vcmp.gt.s32.totalorder 0, %v3953
  %v3955 = vsel %vm3954, 0, %v3953
  %v3956 = vsub.s32 32, %v3955
  %v3957 = vshll.u32 %v3948, %v3955
  %v3958 = vshrl.u32 %v3940, %v3956
  %v3959 = vor.u32 %v3957, %v3958
  %v3960 = vsub.s32 4294967266, %v3955
  %v3961 = vadd.s32 %v3960, 127
  %v3962 = vshll.u32 %v3961, 23
  %v3963 = vor.u32 4788187, %v3962
  %v3964 = vand.u32 2147483647, %v3963
  %v3966 = vcvt.s32.f32 %v3959
  %v3967 = vmul.f32 %v3966, %v3964
  %v3968 = vxor.u32 %v3967, 2147483648
  %v3969 = vsel %vm3886, %v3968, %v3967
  %v3970 = vsub.s32 4, %v3946
  %v3971 = vsel %vm3886, %v3970, %v3946
  %v3972 = vsel %vm3885, %v3574, %v3969
  %v3973 = vsel %vm3885, 0, %v3971
  %v3974 = vcosq.f32.pop %v3972
  %v3975 = vsinq.f32.pop %v3972
  %vm3976 = vweird.f32 %v3574
  %v3977 = vand.u32 %v3973, 3
  %vm3978 = vcmp.lt.s32.totalorder %v3977, 2
  %vm3979 = vcmp.eq.s32.totalorder %v3977, 0
  %v3980 = vxor.u32 %v3975, 2147483648
  %v3981 = vsel %vm3979, %v3974, %v3980
  %vm3982 = vcmp.eq.s32.totalorder %v3977, 2
  %v3983 = vxor.u32 %v3974, 2147483648
  %v3984 = vsel %vm3982, %v3983, %v3975
  %v3985 = vsel %vm3978, %v3981, %v3984
  %v3986 = vsel %vm3976, nan, %v3985
  %v3987 = vand.u32 2147483647, %v3571
  %vm3988 = vcmp.le.f32.partialorder %v3987, 0.7853982
  %vm3989 = vcmp.lt.s32.totalorder %v3571, 0
  %v3990 = vand.u32 %v3571, 2139095040
  %v3991 = vshrl.u32 %v3990, 23
  %v3992 = vsub.s32 %v3991, 127
  %v3993 = vand.u32 2147483647, %v3571
  %v3994 = vand.u32 %v3993, 8388607
  %v3995 = vor.u32 %v3994, 8388608
  %v3996 = vsub.s32 0, %v3995
  %v3997 = vadd.s32 %v3992, 1
  %vm3998 = vcmp.gt.s32.totalorder %v3997, 0
  %v3999 = vsel %vm3998, %v3997, 0
  %v4000 = vshrl.u32 %v3999, 5
  %v4001 = vand.u32 %v3999, 31
  %v4002 = vsub.s32 32, %v4001
  %v4003 = vshrl.u32 683565275, %v4002
  %v4004 = vshll.u32 683565275, %v4001
  %v4005 = vshrl.u32 2475754826, %v4002
  %v4006 = vor.u32 %v4004, %v4005
  %v4007 = vshll.u32 2475754826, %v4001
  %v4008 = vshrl.u32 2131351028, %v4002
  %v4009 = vor.u32 %v4007, %v4008
  %v4010 = vshll.u32 2131351028, %v4001
  %v4011 = vshrl.u32 2102212464, %v4002
  %v4012 = vor.u32 %v4010, %v4011
  %v4013 = vshll.u32 2102212464, %v4001
  %v4014 = vshrl.u32 920167782, %v4002
  %v4015 = vor.u32 %v4013, %v4014
  %v4016 = vshll.u32 920167782, %v4001
  %v4017 = vshrl.u32 1326507024, %v4002
  %v4018 = vor.u32 %v4016, %v4017
  %vm4019 = vcmp.lt.s32.totalorder %v4000, 1
  %vm4020 = vcmp.lt.s32.totalorder %v4000, 2
  %vm4021 = vcmp.lt.s32.totalorder %v4000, 3
  %vm4022 = vcmp.lt.s32.totalorder %v4000, 4
  %v4023 = vsel %vm4019, %v4003, %v4006
  %v4024 = vsel %vm4022, %v4012, 2102212464
  %v4025 = vsel %vm4021, %v4009, %v4024
  %v4026 = vsel %vm4020, %v4023, %v4025
  %v4027 = vsel %vm4019, %v4006, %v4009
  %v4028 = vsel %vm4022, %v4015, 920167782
  %v4029 = vsel %vm4021, %v4012, %v4028
  %v4030 = vsel %vm4020, %v4027, %v4029
  %v4031 = vsel %vm4019, %v4009, %v4012
  %v4032 = vsel %vm4022, %v4018, 1326507024
  %v4033 = vsel %vm4021, %v4015, %v4032
  %v4034 = vsel %vm4020, %v4031, %v4033
  %v4035 = vshll.u32 %v3995, 8
  %v4036 = vmul.u32.u64.compose %v4035, %v4034
  %v4037 = vextract.low.u32 %v4036
  %v4038 = vextract.high.u32 %v4036
  %v4039 = vmul.u32.u64.compose %v4035, %v4030
  %v4040 = vextract.low.u32 %v4039
  %v4041 = vextract.high.u32 %v4039
  %v4042 = vmul.u32 %v4035, %v4026
  %v4043 = vadd.s32 %v4038, %v4040
  %vm4044 = vc.u32 %v4038, %v4040
  %v4045 = vadd.s32 %v4041, 1
  %v4046 = vsel %vm4044, %v4045, %v4041
  %v4047 = vadd.s32 %v4042, %v4046
  %v4048 = vadd.s32 %v4047, 536870912
  %v4049 = vshrl.u32 %v4048, 30
  %v4050 = vshll.u32 %v4049, 30
  %v4051 = vsub.s32 %v4047, %v4050
  %vm4052 = vcmp.lt.s32.totalorder %v4051, 0
  %v4053 = vsub.s32 0, %v4051
  %v4054 = vsel %vm4052, %v4053, %v4051
  %v4055 = vclz %v4054
  %v4056 = vsub.s32 %v4055, 2
  %vm4057 = vcmp.gt.s32.totalorder 0, %v4056
  %v4058 = vsel %vm4057, 0, %v4056
  %v4059 = vsub.s32 32, %v4058
  %v4060 = vshll.u32 %v4051, %v4058
  %v4061 = vshrl.u32 %v4043, %v4059
  %v4062 = vor.u32 %v4060, %v4061
  %v4063 = vsub.s32 4294967266, %v4058
  %v4064 = vadd.s32 %v4063, 127
  %v4065 = vshll.u32 %v4064, 23
  %v4066 = vor.u32 4788187, %v4065
  %v4067 = vand.u32 2147483647, %v4066
  %v4069 = vcvt.s32.f32 %v4062
  %v4070 = vmul.f32 %v4069, %v4067
  %v4071 = vxor.u32 %v4070, 2147483648
  %v4072 = vsel %vm3989, %v4071, %v4070
  %v4073 = vsub.s32 4, %v4049
  %v4074 = vsel %vm3989, %v4073, %v4049
  %v4075 = vsel %vm3988, %v3571, %v4072
  %v4076 = vsel %vm3988, 0, %v4074
  %v4077 = vcosq.f32.pop %v4075
  %v4078 = vsinq.f32.pop %v4075
  %vm4079 = vweird.f32 %v3571
  %v4080 = vadd.s32 %v4076, 3
  %v4081 = vand.u32 %v4080, 3
  %vm4082 = vcmp.lt.s32.totalorder %v4081, 2
  %vm4083 = vcmp.eq.s32.totalorder %v4081, 0
  %v4084 = vxor.u32 %v4078, 2147483648
  %v4085 = vsel %vm4083, %v4077, %v4084
  %vm4086 = vcmp.eq.s32.totalorder %v4081, 2
  %v4087 = vxor.u32 %v4077, 2147483648
  %v4088 = vsel %vm4086, %v4087, %v4078
  %v4089 = vsel %vm4082, %v4085, %v4088
  %v4090 = vsel %vm4079, nan, %v4089
  %v4091 = vand.u32 2147483647, %v3572
  %vm4092 = vcmp.le.f32.partialorder %v4091, 0.7853982
  %vm4093 = vcmp.lt.s32.totalorder %v3572, 0
  %v4094 = vand.u32 %v3572, 2139095040
  %v4095 = vshrl.u32 %v4094, 23
  %v4096 = vsub.s32 %v4095, 127
  %v4097 = vand.u32 2147483647, %v3572
  %v4098 = vand.u32 %v4097, 8388607
  %v4099 = vor.u32 %v4098, 8388608
  %v4100 = vsub.s32 0, %v4099
  %v4101 = vadd.s32 %v4096, 1
  %vm4102 = vcmp.gt.s32.totalorder %v4101, 0
  %v4103 = vsel %vm4102, %v4101, 0
  %v4104 = vshrl.u32 %v4103, 5
  %v4105 = vand.u32 %v4103, 31
  %v4106 = vsub.s32 32, %v4105
  %v4107 = vshrl.u32 683565275, %v4106
  %v4108 = vshll.u32 683565275, %v4105
  %v4109 = vshrl.u32 2475754826, %v4106
  %v4110 = vor.u32 %v4108, %v4109
  %v4111 = vshll.u32 2475754826, %v4105
  %v4112 = vshrl.u32 2131351028, %v4106
  %v4113 = vor.u32 %v4111, %v4112
  %v4114 = vshll.u32 2131351028, %v4105
  %v4115 = vshrl.u32 2102212464, %v4106
  %v4116 = vor.u32 %v4114, %v4115
  %v4117 = vshll.u32 2102212464, %v4105
  %v4118 = vshrl.u32 920167782, %v4106
  %v4119 = vor.u32 %v4117, %v4118
  %v4120 = vshll.u32 920167782, %v4105
  %v4121 = vshrl.u32 1326507024, %v4106
  %v4122 = vor.u32 %v4120, %v4121
  %vm4123 = vcmp.lt.s32.totalorder %v4104, 1
  %vm4124 = vcmp.lt.s32.totalorder %v4104, 2
  %vm4125 = vcmp.lt.s32.totalorder %v4104, 3
  %vm4126 = vcmp.lt.s32.totalorder %v4104, 4
  %v4127 = vsel %vm4123, %v4107, %v4110
  %v4128 = vsel %vm4126, %v4116, 2102212464
  %v4129 = vsel %vm4125, %v4113, %v4128
  %v4130 = vsel %vm4124, %v4127, %v4129
  %v4131 = vsel %vm4123, %v4110, %v4113
  %v4132 = vsel %vm4126, %v4119, 920167782
  %v4133 = vsel %vm4125, %v4116, %v4132
  %v4134 = vsel %vm4124, %v4131, %v4133
  %v4135 = vsel %vm4123, %v4113, %v4116
  %v4136 = vsel %vm4126, %v4122, 1326507024
  %v4137 = vsel %vm4125, %v4119, %v4136
  %v4138 = vsel %vm4124, %v4135, %v4137
  %v4139 = vshll.u32 %v4099, 8
  %v4140 = vmul.u32.u64.compose %v4139, %v4138
  %v4141 = vextract.low.u32 %v4140
  %v4142 = vextract.high.u32 %v4140
  %v4143 = vmul.u32.u64.compose %v4139, %v4134
  %v4144 = vextract.low.u32 %v4143
  %v4145 = vextract.high.u32 %v4143
  %v4146 = vmul.u32 %v4139, %v4130
  %v4147 = vadd.s32 %v4142, %v4144
  %vm4148 = vc.u32 %v4142, %v4144
  %v4149 = vadd.s32 %v4145, 1
  %v4150 = vsel %vm4148, %v4149, %v4145
  %v4151 = vadd.s32 %v4146, %v4150
  %v4152 = vadd.s32 %v4151, 536870912
  %v4153 = vshrl.u32 %v4152, 30
  %v4154 = vshll.u32 %v4153, 30
  %v4155 = vsub.s32 %v4151, %v4154
  %vm4156 = vcmp.lt.s32.totalorder %v4155, 0
  %v4157 = vsub.s32 0, %v4155
  %v4158 = vsel %vm4156, %v4157, %v4155
  %v4159 = vclz %v4158
  %v4160 = vsub.s32 %v4159, 2
  %vm4161 = vcmp.gt.s32.totalorder 0, %v4160
  %v4162 = vsel %vm4161, 0, %v4160
  %v4163 = vsub.s32 32, %v4162
  %v4164 = vshll.u32 %v4155, %v4162
  %v4165 = vshrl.u32 %v4147, %v4163
  %v4166 = vor.u32 %v4164, %v4165
  %v4167 = vsub.s32 4294967266, %v4162
  %v4168 = vadd.s32 %v4167, 127
  %v4169 = vshll.u32 %v4168, 23
  %v4170 = vor.u32 4788187, %v4169
  %v4171 = vand.u32 2147483647, %v4170
  %v4173 = vcvt.s32.f32 %v4166
  %v4174 = vmul.f32 %v4173, %v4171
  %v4175 = vxor.u32 %v4174, 2147483648
  %v4176 = vsel %vm4093, %v4175, %v4174
  %v4177 = vsub.s32 4, %v4153
  %v4178 = vsel %vm4093, %v4177, %v4153
  %v4179 = vsel %vm4092, %v3572, %v4176
  %v4180 = vsel %vm4092, 0, %v4178
  %v4181 = vcosq.f32.pop %v4179
  %v4182 = vsinq.f32.pop %v4179
  %vm4183 = vweird.f32 %v3572
  %v4184 = vadd.s32 %v4180, 3
  %v4185 = vand.u32 %v4184, 3
  %vm4186 = vcmp.lt.s32.totalorder %v4185, 2
  %vm4187 = vcmp.eq.s32.totalorder %v4185, 0
  %v4188 = vxor.u32 %v4182, 2147483648
  %v4189 = vsel %vm4187, %v4181, %v4188
  %vm4190 = vcmp.eq.s32.totalorder %v4185, 2
  %v4191 = vxor.u32 %v4181, 2147483648
  %v4192 = vsel %vm4190, %v4191, %v4182
  %v4193 = vsel %vm4186, %v4189, %v4192
  %v4194 = vsel %vm4183, nan, %v4193
  %v4195 = vand.u32 2147483647, %v3573
  %vm4196 = vcmp.le.f32.partialorder %v4195, 0.7853982
  %vm4197 = vcmp.lt.s32.totalorder %v3573, 0
  %v4198 = vand.u32 %v3573, 2139095040
  %v4199 = vshrl.u32 %v4198, 23
  %v4200 = vsub.s32 %v4199, 127
  %v4201 = vand.u32 2147483647, %v3573
  %v4202 = vand.u32 %v4201, 8388607
  %v4203 = vor.u32 %v4202, 8388608
  %v4204 = vsub.s32 0, %v4203
  %v4205 = vadd.s32 %v4200, 1
  %vm4206 = vcmp.gt.s32.totalorder %v4205, 0
  %v4207 = vsel %vm4206, %v4205, 0
  %v4208 = vshrl.u32 %v4207, 5
  %v4209 = vand.u32 %v4207, 31
  %v4210 = vsub.s32 32, %v4209
  %v4211 = vshrl.u32 683565275, %v4210
  %v4212 = vshll.u32 683565275, %v4209
  %v4213 = vshrl.u32 2475754826, %v4210
  %v4214 = vor.u32 %v4212, %v4213
  %v4215 = vshll.u32 2475754826, %v4209
  %v4216 = vshrl.u32 2131351028, %v4210
  %v4217 = vor.u32 %v4215, %v4216
  %v4218 = vshll.u32 2131351028, %v4209
  %v4219 = vshrl.u32 2102212464, %v4210
  %v4220 = vor.u32 %v4218, %v4219
  %v4221 = vshll.u32 2102212464, %v4209
  %v4222 = vshrl.u32 920167782, %v4210
  %v4223 = vor.u32 %v4221, %v4222
  %v4224 = vshll.u32 920167782, %v4209
  %v4225 = vshrl.u32 1326507024, %v4210
  %v4226 = vor.u32 %v4224, %v4225
  %vm4227 = vcmp.lt.s32.totalorder %v4208, 1
  %vm4228 = vcmp.lt.s32.totalorder %v4208, 2
  %vm4229 = vcmp.lt.s32.totalorder %v4208, 3
  %vm4230 = vcmp.lt.s32.totalorder %v4208, 4
  %v4231 = vsel %vm4227, %v4211, %v4214
  %v4232 = vsel %vm4230, %v4220, 2102212464
  %v4233 = vsel %vm4229, %v4217, %v4232
  %v4234 = vsel %vm4228, %v4231, %v4233
  %v4235 = vsel %vm4227, %v4214, %v4217
  %v4236 = vsel %vm4230, %v4223, 920167782
  %v4237 = vsel %vm4229, %v4220, %v4236
  %v4238 = vsel %vm4228, %v4235, %v4237
  %v4239 = vsel %vm4227, %v4217, %v4220
  %v4240 = vsel %vm4230, %v4226, 1326507024
  %v4241 = vsel %vm4229, %v4223, %v4240
  %v4242 = vsel %vm4228, %v4239, %v4241
  %v4243 = vshll.u32 %v4203, 8
  %v4244 = vmul.u32.u64.compose %v4243, %v4242
  %v4245 = vextract.low.u32 %v4244
  %v4246 = vextract.high.u32 %v4244
  %v4247 = vmul.u32.u64.compose %v4243, %v4238
  %v4248 = vextract.low.u32 %v4247
  %v4249 = vextract.high.u32 %v4247
  %v4250 = vmul.u32 %v4243, %v4234
  %v4251 = vadd.s32 %v4246, %v4248
  %vm4252 = vc.u32 %v4246, %v4248
  %v4253 = vadd.s32 %v4249, 1
  %v4254 = vsel %vm4252, %v4253, %v4249
  %v4255 = vadd.s32 %v4250, %v4254
  %v4256 = vadd.s32 %v4255, 536870912
  %v4257 = vshrl.u32 %v4256, 30
  %v4258 = vshll.u32 %v4257, 30
  %v4259 = vsub.s32 %v4255, %v4258
  %vm4260 = vcmp.lt.s32.totalorder %v4259, 0
  %v4261 = vsub.s32 0, %v4259
  %v4262 = vsel %vm4260, %v4261, %v4259
  %v4263 = vclz %v4262
  %v4264 = vsub.s32 %v4263, 2
  %vm4265 = vcmp.gt.s32.totalorder 0, %v4264
  %v4266 = vsel %vm4265, 0, %v4264
  %v4267 = vsub.s32 32, %v4266
  %v4268 = vshll.u32 %v4259, %v4266
  %v4269 = vshrl.u32 %v4251, %v4267
  %v4270 = vor.u32 %v4268, %v4269
  %v4271 = vsub.s32 4294967266, %v4266
  %v4272 = vadd.s32 %v4271, 127
  %v4273 = vshll.u32 %v4272, 23
  %v4274 = vor.u32 4788187, %v4273
  %v4275 = vand.u32 2147483647, %v4274
  %v4277 = vcvt.s32.f32 %v4270
  %v4278 = vmul.f32 %v4277, %v4275
  %v4279 = vxor.u32 %v4278, 2147483648
  %v4280 = vsel %vm4197, %v4279, %v4278
  %v4281 = vsub.s32 4, %v4257
  %v4282 = vsel %vm4197, %v4281, %v4257
  %v4283 = vsel %vm4196, %v3573, %v4280
  %v4284 = vsel %vm4196, 0, %v4282
  %v4285 = vcosq.f32.pop %v4283
  %v4286 = vsinq.f32.pop %v4283
  %vm4287 = vweird.f32 %v3573
  %v4288 = vadd.s32 %v4284, 3
  %v4289 = vand.u32 %v4288, 3
  %vm4290 = vcmp.lt.s32.totalorder %v4289, 2
  %vm4291 = vcmp.eq.s32.totalorder %v4289, 0
  %v4292 = vxor.u32 %v4286, 2147483648
  %v4293 = vsel %vm4291, %v4285, %v4292
  %vm4294 = vcmp.eq.s32.totalorder %v4289, 2
  %v4295 = vxor.u32 %v4285, 2147483648
  %v4296 = vsel %vm4294, %v4295, %v4286
  %v4297 = vsel %vm4290, %v4293, %v4296
  %v4298 = vsel %vm4287, nan, %v4297
  %v4299 = vand.u32 2147483647, %v3574
  %vm4300 = vcmp.le.f32.partialorder %v4299, 0.7853982
  %vm4301 = vcmp.lt.s32.totalorder %v3574, 0
  %v4302 = vand.u32 %v3574, 2139095040
  %v4303 = vshrl.u32 %v4302, 23
  %v4304 = vsub.s32 %v4303, 127
  %v4305 = vand.u32 2147483647, %v3574
  %v4306 = vand.u32 %v4305, 8388607
  %v4307 = vor.u32 %v4306, 8388608
  %v4308 = vsub.s32 0, %v4307
  %v4309 = vadd.s32 %v4304, 1
  %vm4310 = vcmp.gt.s32.totalorder %v4309, 0
  %v4311 = vsel %vm4310, %v4309, 0
  %v4312 = vshrl.u32 %v4311, 5
  %v4313 = vand.u32 %v4311, 31
  %v4314 = vsub.s32 32, %v4313
  %v4315 = vshrl.u32 683565275, %v4314
  %v4316 = vshll.u32 683565275, %v4313
  %v4317 = vshrl.u32 2475754826, %v4314
  %v4318 = vor.u32 %v4316, %v4317
  %v4319 = vshll.u32 2475754826, %v4313
  %v4320 = vshrl.u32 2131351028, %v4314
  %v4321 = vor.u32 %v4319, %v4320
  %v4322 = vshll.u32 2131351028, %v4313
  %v4323 = vshrl.u32 2102212464, %v4314
  %v4324 = vor.u32 %v4322, %v4323
  %v4325 = vshll.u32 2102212464, %v4313
  %v4326 = vshrl.u32 920167782, %v4314
  %v4327 = vor.u32 %v4325, %v4326
  %v4328 = vshll.u32 920167782, %v4313
  %v4329 = vshrl.u32 1326507024, %v4314
  %v4330 = vor.u32 %v4328, %v4329
  %vm4331 = vcmp.lt.s32.totalorder %v4312, 1
  %vm4332 = vcmp.lt.s32.totalorder %v4312, 2
  %vm4333 = vcmp.lt.s32.totalorder %v4312, 3
  %vm4334 = vcmp.lt.s32.totalorder %v4312, 4
  %v4335 = vsel %vm4331, %v4315, %v4318
  %v4336 = vsel %vm4334, %v4324, 2102212464
  %v4337 = vsel %vm4333, %v4321, %v4336
  %v4338 = vsel %vm4332, %v4335, %v4337
  %v4339 = vsel %vm4331, %v4318, %v4321
  %v4340 = vsel %vm4334, %v4327, 920167782
  %v4341 = vsel %vm4333, %v4324, %v4340
  %v4342 = vsel %vm4332, %v4339, %v4341
  %v4343 = vsel %vm4331, %v4321, %v4324
  %v4344 = vsel %vm4334, %v4330, 1326507024
  %v4345 = vsel %vm4333, %v4327, %v4344
  %v4346 = vsel %vm4332, %v4343, %v4345
  %v4347 = vshll.u32 %v4307, 8
  %v4348 = vmul.u32.u64.compose %v4347, %v4346
  %v4349 = vextract.low.u32 %v4348
  %v4350 = vextract.high.u32 %v4348
  %v4351 = vmul.u32.u64.compose %v4347, %v4342
  %v4352 = vextract.low.u32 %v4351
  %v4353 = vextract.high.u32 %v4351
  %v4354 = vmul.u32 %v4347, %v4338
  %v4355 = vadd.s32 %v4350, %v4352
  %vm4356 = vc.u32 %v4350, %v4352
  %v4357 = vadd.s32 %v4353, 1
  %v4358 = vsel %vm4356, %v4357, %v4353
  %v4359 = vadd.s32 %v4354, %v4358
  %v4360 = vadd.s32 %v4359, 536870912
  %v4361 = vshrl.u32 %v4360, 30
  %v4362 = vshll.u32 %v4361, 30
  %v4363 = vsub.s32 %v4359, %v4362
  %vm4364 = vcmp.lt.s32.totalorder %v4363, 0
  %v4365 = vsub.s32 0, %v4363
  %v4366 = vsel %vm4364, %v4365, %v4363
  %v4367 = vclz %v4366
  %v4368 = vsub.s32 %v4367, 2
  %vm4369 = vcmp.gt.s32.totalorder 0, %v4368
  %v4370 = vsel %vm4369, 0, %v4368
  %v4371 = vsub.s32 32, %v4370
  %v4372 = vshll.u32 %v4363, %v4370
  %v4373 = vshrl.u32 %v4355, %v4371
  %v4374 = vor.u32 %v4372, %v4373
  %v4375 = vsub.s32 4294967266, %v4370
  %v4376 = vadd.s32 %v4375, 127
  %v4377 = vshll.u32 %v4376, 23
  %v4378 = vor.u32 4788187, %v4377
  %v4379 = vand.u32 2147483647, %v4378
  %v4381 = vcvt.s32.f32 %v4374
  %v4382 = vmul.f32 %v4381, %v4379
  %v4383 = vxor.u32 %v4382, 2147483648
  %v4384 = vsel %vm4301, %v4383, %v4382
  %v4385 = vsub.s32 4, %v4361
  %v4386 = vsel %vm4301, %v4385, %v4361
  %v4387 = vsel %vm4300, %v3574, %v4384
  %v4388 = vsel %vm4300, 0, %v4386
  %v4389 = vcosq.f32.pop %v4387
  %v4390 = vsinq.f32.pop %v4387
  %vm4391 = vweird.f32 %v3574
  %v4392 = vadd.s32 %v4388, 3
  %v4393 = vand.u32 %v4392, 3
  %vm4394 = vcmp.lt.s32.totalorder %v4393, 2
  %vm4395 = vcmp.eq.s32.totalorder %v4393, 0
  %v4396 = vxor.u32 %v4390, 2147483648
  %v4397 = vsel %vm4395, %v4389, %v4396
  %vm4398 = vcmp.eq.s32.totalorder %v4393, 2
  %v4399 = vxor.u32 %v4389, 2147483648
  %v4400 = vsel %vm4398, %v4399, %v4390
  %v4401 = vsel %vm4394, %v4397, %v4400
  %v4402 = vsel %vm4391, nan, %v4401
  %v4405 = vrot.slane %v3677, 4
  %v4406 = vrot.slane %v3780, 4
  %v4409 = vmul.f32 %v3677, %v4405
  %v4410 = vmul.f32 %v3780, %v4406
  %v4413 = vrot.slane %v4090, 4
  %v4414 = vrot.slane %v4194, 4
  %v4417 = vmul.f32 %v3677, %v4413
  %v4418 = vmul.f32 %v3780, %v4414
  %v4419 = vsub.f32 0.0, %v4417
  %v4420 = vsub.f32 0.0, %v4418
  %v4421 = vmul.f32 %v4090, %v4405
  %v4422 = vmul.f32 %v4194, %v4406
  %v4423 = vmul.f32 %v4090, %v4413
  %v4424 = vmul.f32 %v4194, %v4414
  %v4425 = vmul.f32 %v3883, %v4409
  %v4426 = vmul.f32 %v3986, %v4410
  %v4427 = vmul.f32 %v4298, %v4423
  %v4428 = vmul.f32 %v4402, %v4424
  %v4429 = vadd.f32 %v4425, %v4427
  %v4430 = vadd.f32 %v4426, %v4428
  %v4431 = vmul.f32 %v3883, %v4419
  %v4432 = vmul.f32 %v3986, %v4420
  %v4433 = vmul.f32 %v4298, %v4421
  %v4434 = vmul.f32 %v4402, %v4422
  %v4435 = vsub.f32 %v4431, %v4433
  %v4436 = vsub.f32 %v4432, %v4434
  %v4437 = vmul.f32 %v4298, %v4419
  %v4438 = vmul.f32 %v4402, %v4420
  %v4439 = vmul.f32 %v3883, %v4421
  %v4440 = vmul.f32 %v3986, %v4422
  %v4441 = vadd.f32 %v4437, %v4439
  %v4442 = vadd.f32 %v4438, %v4440
  %v4443 = vmul.f32 %v3883, %v4423
  %v4444 = vmul.f32 %v3986, %v4424
  %v4445 = vmul.f32 %v4298, %v4409
  %v4446 = vmul.f32 %v4402, %v4410
  %v4447 = vsub.f32 %v4443, %v4445
  %v4448 = vsub.f32 %v4444, %v4446
  %v4451 = vrot.slane %v4429, 4
  %v4452 = vrot.slane %v4430, 4
  %v4455 = vmul.f32 %v3883, %v4451
  %v4456 = vmul.f32 %v3986, %v4452
  %v4459 = vrot.slane %v4441, 4
  %v4460 = vrot.slane %v4442, 4
  %v4463 = vmul.f32 %v4298, %v4459
  %v4464 = vmul.f32 %v4402, %v4460
  %v4465 = vsub.f32 %v4455, %v4463
  %v4466 = vsub.f32 %v4456, %v4464
  %v4469 = vrot.slane %v4435, 4
  %v4470 = vrot.slane %v4436, 4
  %v4473 = vmul.f32 %v3883, %v4469
  %v4474 = vmul.f32 %v3986, %v4470
  %v4477 = vrot.slane %v4447, 4
  %v4478 = vrot.slane %v4448, 4
  %v4481 = vmul.f32 %v4298, %v4477
  %v4482 = vmul.f32 %v4402, %v4478
  %v4483 = vsub.f32 %v4473, %v4481
  %v4484 = vsub.f32 %v4474, %v4482
  %v4485 = vmul.f32 %v4298, %v4451
  %v4486 = vmul.f32 %v4402, %v4452
  %v4487 = vmul.f32 %v3883, %v4459
  %v4488 = vmul.f32 %v3986, %v4460
  %v4489 = vadd.f32 %v4485, %v4487
  %v4490 = vadd.f32 %v4486, %v4488
  %v4491 = vmul.f32 %v4298, %v4469
  %v4492 = vmul.f32 %v4402, %v4470
  %v4493 = vmul.f32 %v3883, %v4477
  %v4494 = vmul.f32 %v3986, %v4478
  %v4495 = vadd.f32 %v4491, %v4493
  %v4496 = vadd.f32 %v4492, %v4494
  %v4497 = vlaneseq
  %v4498 = vshrl.u32 %v4497, 7
  %v4499 = vsub.s32 4, %v4498
  %v4500 = vrot.slane %v4489, %v4499
  %v4501 = vlaneseq
  %v4502 = vshrl.u32 %v4501, 7
  %v4503 = vsub.s32 4, %v4502
  %v4504 = vrot.slane %v4490, %v4503
  %v4505 = vlaneseq
  %v4506 = vshrl.u32 %v4505, 7
  %v4507 = vsub.s32 4, %v4506
  %v4508 = vrot.slane %v4465, %v4507
  %v4509 = vlaneseq
  %v4510 = vshrl.u32 %v4509, 7
  %v4511 = vsub.s32 4, %v4510
  %v4512 = vrot.slane %v4466, %v4511
  %v4513 = vsel %vm1800, %v4500, %v4508
  %v4514 = vsel %vm1800, %v4504, %v4512
  %v4515 = vsel %vm1801, %v4500, %v4508
  %v4516 = vsel %vm1801, %v4504, %v4512
  %v4517 = vlaneseq
  %v4518 = vshrl.u32 %v4517, 7
  %v4519 = vsub.s32 4, %v4518
  %v4520 = vrot.slane %v4495, %v4519
  %v4521 = vlaneseq
  %v4522 = vshrl.u32 %v4521, 7
  %v4523 = vsub.s32 4, %v4522
  %v4524 = vrot.slane %v4496, %v4523
  %v4525 = vlaneseq
  %v4526 = vshrl.u32 %v4525, 7
  %v4527 = vsub.s32 4, %v4526
  %v4528 = vrot.slane %v4483, %v4527
  %v4529 = vlaneseq
  %v4530 = vshrl.u32 %v4529, 7
  %v4531 = vsub.s32 4, %v4530
  %v4532 = vrot.slane %v4484, %v4531
  %v4533 = vsel %vm1800, %v4520, %v4528
  %v4534 = vsel %vm1800, %v4524, %v4532
  %v4535 = vsel %vm1801, %v4520, %v4528
  %v4536 = vsel %vm1801, %v4524, %v4532
  %v4537 = vlaneseq
  %v4538 = vshrl.u32 %v4537, 7
  %v4539 = vsub.s32 5, %v4538
  %v4540 = vrot.slane %v4489, %v4539
  %v4541 = vlaneseq
  %v4542 = vshrl.u32 %v4541, 7
  %v4543 = vsub.s32 5, %v4542
  %v4544 = vrot.slane %v4490, %v4543
  %v4545 = vlaneseq
  %v4546 = vshrl.u32 %v4545, 7
  %v4547 = vsub.s32 5, %v4546
  %v4548 = vrot.slane %v4465, %v4547
  %v4549 = vlaneseq
  %v4550 = vshrl.u32 %v4549, 7
  %v4551 = vsub.s32 5, %v4550
  %v4552 = vrot.slane %v4466, %v4551
  %v4553 = vsel %vm1844, %v4540, %v4548
  %v4554 = vsel %vm1844, %v4544, %v4552
  %v4555 = vsel %vm1845, %v4540, %v4548
  %v4556 = vsel %vm1845, %v4544, %v4552
  %v4557 = vlaneseq
  %v4558 = vshrl.u32 %v4557, 7
  %v4559 = vsub.s32 5, %v4558
  %v4560 = vrot.slane %v4495, %v4559
  %v4561 = vlaneseq
  %v4562 = vshrl.u32 %v4561, 7
  %v4563 = vsub.s32 5, %v4562
  %v4564 = vrot.slane %v4496, %v4563
  %v4565 = vlaneseq
  %v4566 = vshrl.u32 %v4565, 7
  %v4567 = vsub.s32 5, %v4566
  %v4568 = vrot.slane %v4483, %v4567
  %v4569 = vlaneseq
  %v4570 = vshrl.u32 %v4569, 7
  %v4571 = vsub.s32 5, %v4570
  %v4572 = vrot.slane %v4484, %v4571
  %v4573 = vsel %vm1844, %v4560, %v4568
  %v4574 = vsel %vm1844, %v4564, %v4572
  %v4575 = vsel %vm1845, %v4560, %v4568
  %v4576 = vsel %vm1845, %v4564, %v4572
  %v4577 = vmul.f32 %v4513, %v4553
  %v4578 = vmul.f32 %v4514, %v4554
  %v4579 = vmul.f32 %v4515, %v4555
  %v4580 = vmul.f32 %v4516, %v4556
  %v4581 = vmul.f32 %v4533, %v4573
  %v4582 = vmul.f32 %v4534, %v4574
  %v4583 = vmul.f32 %v4535, %v4575
  %v4584 = vmul.f32 %v4536, %v4576
  %v4585 = vsub.f32 %v4577, %v4581
  %v4586 = vsub.f32 %v4578, %v4582
  %v4587 = vsub.f32 %v4579, %v4583
  %v4588 = vsub.f32 %v4580, %v4584
  %v4589 = vmul.f32 %v4513, %v4573
  %v4590 = vmul.f32 %v4514, %v4574
  %v4591 = vmul.f32 %v4515, %v4575
  %v4592 = vmul.f32 %v4516, %v4576
  %v4593 = vmul.f32 %v4533, %v4553
  %v4594 = vmul.f32 %v4534, %v4554
  %v4595 = vmul.f32 %v4535, %v4555
  %v4596 = vmul.f32 %v4536, %v4556
  %v4597 = vadd.f32 %v4589, %v4593
  %v4598 = vadd.f32 %v4590, %v4594
  %v4599 = vadd.f32 %v4591, %v4595
  %v4600 = vadd.f32 %v4592, %v4596
  %v4601 = vlaneseq
  %v4602 = vshrl.u32 %v4601, 7
  %v4603 = vsub.s32 6, %v4602
  %v4604 = vrot.slane %v4489, %v4603
  %v4605 = vlaneseq
  %v4606 = vshrl.u32 %v4605, 7
  %v4607 = vsub.s32 6, %v4606
  %v4608 = vrot.slane %v4490, %v4607
  %v4609 = vlaneseq
  %v4610 = vshrl.u32 %v4609, 7
  %v4611 = vsub.s32 6, %v4610
  %v4612 = vrot.slane %v4465, %v4611
  %v4613 = vlaneseq
  %v4614 = vshrl.u32 %v4613, 7
  %v4615 = vsub.s32 6, %v4614
  %v4616 = vrot.slane %v4466, %v4615
  %v4617 = vsel %vm1912, %v4604, %v4612
  %v4618 = vsel %vm1912, %v4608, %v4616
  %v4619 = vsel %vm1913, %v4604, %v4612
  %v4620 = vsel %vm1913, %v4608, %v4616
  %v4621 = vlaneseq
  %v4622 = vshrl.u32 %v4621, 7
  %v4623 = vsub.s32 6, %v4622
  %v4624 = vrot.slane %v4495, %v4623
  %v4625 = vlaneseq
  %v4626 = vshrl.u32 %v4625, 7
  %v4627 = vsub.s32 6, %v4626
  %v4628 = vrot.slane %v4496, %v4627
  %v4629 = vlaneseq
  %v4630 = vshrl.u32 %v4629, 7
  %v4631 = vsub.s32 6, %v4630
  %v4632 = vrot.slane %v4483, %v4631
  %v4633 = vlaneseq
  %v4634 = vshrl.u32 %v4633, 7
  %v4635 = vsub.s32 6, %v4634
  %v4636 = vrot.slane %v4484, %v4635
  %v4637 = vsel %vm1912, %v4624, %v4632
  %v4638 = vsel %vm1912, %v4628, %v4636
  %v4639 = vsel %vm1913, %v4624, %v4632
  %v4640 = vsel %vm1913, %v4628, %v4636
  %v4641 = vmul.f32 %v4585, %v4617
  %v4642 = vmul.f32 %v4586, %v4618
  %v4643 = vmul.f32 %v4587, %v4619
  %v4644 = vmul.f32 %v4588, %v4620
  %v4645 = vmul.f32 %v4597, %v4637
  %v4646 = vmul.f32 %v4598, %v4638
  %v4647 = vmul.f32 %v4599, %v4639
  %v4648 = vmul.f32 %v4600, %v4640
  %v4649 = vsub.f32 %v4641, %v4645
  %v4650 = vsub.f32 %v4642, %v4646
  %v4651 = vsub.f32 %v4643, %v4647
  %v4652 = vsub.f32 %v4644, %v4648
  %v4653 = vmul.f32 %v4585, %v4637
  %v4654 = vmul.f32 %v4586, %v4638
  %v4655 = vmul.f32 %v4587, %v4639
  %v4656 = vmul.f32 %v4588, %v4640
  %v4657 = vmul.f32 %v4597, %v4617
  %v4658 = vmul.f32 %v4598, %v4618
  %v4659 = vmul.f32 %v4599, %v4619
  %v4660 = vmul.f32 %v4600, %v4620
  %v4661 = vadd.f32 %v4653, %v4657
  %v4662 = vadd.f32 %v4654, %v4658
  %v4663 = vadd.f32 %v4655, %v4659
  %v4664 = vadd.f32 %v4656, %v4660
  %v4665 = vlaneseq
  %v4666 = vshrl.u32 %v4665, 7
  %v4667 = vsub.s32 7, %v4666
  %v4668 = vrot.slane %v4489, %v4667
  %v4669 = vlaneseq
  %v4670 = vshrl.u32 %v4669, 7
  %v4671 = vsub.s32 7, %v4670
  %v4672 = vrot.slane %v4490, %v4671
  %v4673 = vlaneseq
  %v4674 = vshrl.u32 %v4673, 7
  %v4675 = vsub.s32 7, %v4674
  %v4676 = vrot.slane %v4465, %v4675
  %v4677 = vlaneseq
  %v4678 = vshrl.u32 %v4677, 7
  %v4679 = vsub.s32 7, %v4678
  %v4680 = vrot.slane %v4466, %v4679
  %v4681 = vsel %vm1980, %v4668, %v4676
  %v4682 = vsel %vm1980, %v4672, %v4680
  %v4683 = vsel %vm1981, %v4668, %v4676
  %v4684 = vsel %vm1981, %v4672, %v4680
  %v4685 = vlaneseq
  %v4686 = vshrl.u32 %v4685, 7
  %v4687 = vsub.s32 7, %v4686
  %v4688 = vrot.slane %v4495, %v4687
  %v4689 = vlaneseq
  %v4690 = vshrl.u32 %v4689, 7
  %v4691 = vsub.s32 7, %v4690
  %v4692 = vrot.slane %v4496, %v4691
  %v4693 = vlaneseq
  %v4694 = vshrl.u32 %v4693, 7
  %v4695 = vsub.s32 7, %v4694
  %v4696 = vrot.slane %v4483, %v4695
  %v4697 = vlaneseq
  %v4698 = vshrl.u32 %v4697, 7
  %v4699 = vsub.s32 7, %v4698
  %v4700 = vrot.slane %v4484, %v4699
  %v4701 = vsel %vm1980, %v4688, %v4696
  %v4702 = vsel %vm1980, %v4692, %v4700
  %v4703 = vsel %vm1981, %v4688, %v4696
  %v4704 = vsel %vm1981, %v4692, %v4700
  %v4705 = vmul.f32 %v4649, %v4681
  %v4706 = vmul.f32 %v4650, %v4682
  %v4707 = vmul.f32 %v4651, %v4683
  %v4708 = vmul.f32 %v4652, %v4684
  %v4709 = vmul.f32 %v4661, %v4701
  %v4710 = vmul.f32 %v4662, %v4702
  %v4711 = vmul.f32 %v4663, %v4703
  %v4712 = vmul.f32 %v4664, %v4704
  %v4713 = vsub.f32 %v4705, %v4709
  %v4714 = vsub.f32 %v4706, %v4710
  %v4715 = vsub.f32 %v4707, %v4711
  %v4716 = vsub.f32 %v4708, %v4712
  %v4717 = vmul.f32 %v4649, %v4701
  %v4718 = vmul.f32 %v4650, %v4702
  %v4719 = vmul.f32 %v4651, %v4703
  %v4720 = vmul.f32 %v4652, %v4704
  %v4721 = vmul.f32 %v4661, %v4681
  %v4722 = vmul.f32 %v4662, %v4682
  %v4723 = vmul.f32 %v4663, %v4683
  %v4724 = vmul.f32 %v4664, %v4684
  %v4725 = vadd.f32 %v4717, %v4721
  %v4726 = vadd.f32 %v4718, %v4722
  %v4727 = vadd.f32 %v4719, %v4723
  %v4728 = vadd.f32 %v4720, %v4724
  %4729 = vmatprep.subr.mxu0 0.0
  %4730 = vmatpush1.msra.mxu0 0.0
  %4731 = vmatprep.subr.mxu0 0.0
  %4732 = vmatpush1.msra.mxu0 0.0
  %4733 = vmatprep.subr.mxu0 0.0
  %4734 = vmatpush1.msra.mxu0 0.0
  %4735 = vmatprep.subr.mxu0 0.0
  %4736 = vmatpush1.msra.mxu0 0.0
  %4737 = vmatprep.subr.mxu0 0.0
  %4738 = vmatpush1.msra.mxu0 0.0
  %4739 = vmatprep.subr.mxu0 0.0
  %4740 = vmatpush1.msra.mxu0 0.0
  %4741 = vmatprep.subr.mxu0 0.0
  %4742 = vmatpush1.msra.mxu0 0.0
  %4743 = vmatprep.subr.mxu0 0.0
  %4744 = vmatpush1.msra.mxu0 0.0
  %4745 = vmatprep.subr.mxu0 0.0
  %4746 = vmatpush1.msra.mxu0 0.0
  %4747 = vmatprep.subr.mxu0 0.0
  %4748 = vmatpush1.msra.mxu0 0.0
  %4749 = vmatprep.subr.mxu0 0.0
  %4750 = vmatpush1.msra.mxu0 0.0
  %4751 = vmatprep.subr.mxu0 0.0
  %4752 = vmatpush1.msra.mxu0 0.0
  %4753 = vmatprep.subr.mxu0 %v4728
  %4754 = vmatpush1.msra.mxu0 %v4727
  %4755 = vmatprep.subr.mxu0 %v4726
  %4756 = vmatpush1.msra.mxu0 %v4725
  %4757 = vmatprep.subr.mxu0 %v4716
  %4758 = vmatpush1.msra.mxu0 %v4715
  %4759 = vmatprep.subr.mxu0 %v4714
  %4760 = vmatpush1.msra.mxu0 %v4713
  %4761 = vmatprep.subr.mxu0 0.0
  %4762 = vmatpush2.msra.mxu0 0.0
  %4763 = vmatprep.subr.mxu0 0.0
  %4764 = vmatpush2.msra.mxu0 0.0
  %4765 = vmatprep.subr.mxu0 0.0
  %4766 = vmatpush2.msra.mxu0 0.0
  %4767 = vmatprep.subr.mxu0 0.0
  %4768 = vmatpush2.msra.mxu0 0.0
  %4769 = vmatprep.subr.mxu0 0.0
  %4770 = vmatpush2.msra.mxu0 0.0
  %4771 = vmatprep.subr.mxu0 0.0
  %4772 = vmatpush2.msra.mxu0 0.0
  %4773 = vmatprep.subr.mxu0 0.0
  %4774 = vmatpush2.msra.mxu0 0.0
  %4775 = vmatprep.subr.mxu0 0.0
  %4776 = vmatpush2.msra.mxu0 0.0
  %4777 = vmatprep.subr.mxu0 0.0
  %4778 = vmatpush2.msra.mxu0 0.0
  %4779 = vmatprep.subr.mxu0 0.0
  %4780 = vmatpush2.msra.mxu0 0.0
  %4781 = vmatprep.subr.mxu0 0.0
  %4782 = vmatpush2.msra.mxu0 0.0
  %4783 = vmatprep.subr.mxu0 0.0
  %4784 = vmatpush2.msra.mxu0 0.0
  %4785 = vmatprep.subr.mxu0 0.0
  %4786 = vmatpush2.msra.mxu0 0.0
  %4787 = vmatprep.subr.mxu0 0.0
  %4788 = vmatpush2.msra.mxu0 0.0
  %4789 = vmatprep.subr.mxu0 0.0
  %4790 = vmatpush2.msra.mxu0 0.0
  %4791 = vmatprep.subr.mxu0 0.0
  %4792 = vmatpush2.msra.mxu0 0.0
  %4793 = vmatprep.mubr.f32.mxu0 0.0
  %4794 = vmatmul.mubr.f32.gmra.mxu0 %v2048
  %v4795 = vpop.f32.mrf.mxu0
  %v4796 = vadd.f32 0.0, %v4795
  %v4797 = vpop.f32.mrf.mxu0
  %v4798 = vadd.f32 0.0, %v4797
  %4799 = vmatprep.mubr.f32.mxu0 0.0
  %4800 = vmatmul.mubr.f32.gmra.mxu0 %v2051
  %v4801 = vpop.f32.mrf.mxu0
  %v4802 = vadd.f32 0.0, %v4801
  %v4803 = vpop.f32.mrf.mxu0
  %v4804 = vadd.f32 0.0, %v4803
  %4805 = vmatprep.mubr.f32.mxu0 0.0
  %4806 = vmatmul.mubr.f32.gmra.mxu0 %v2054
  %v4807 = vpop.f32.mrf.mxu0
  %v4808 = vadd.f32 0.0, %v4807
  %v4809 = vpop.f32.mrf.mxu0
  %v4810 = vadd.f32 0.0, %v4809
  %4811 = vmatprep.mubr.f32.mxu0 0.0
  %4812 = vmatmul.mubr.f32.gmra.mxu0 %v2057
  %v4813 = vpop.f32.mrf.mxu0
  %v4814 = vadd.f32 0.0, %v4813
  %v4815 = vpop.f32.mrf.mxu0
  %v4816 = vadd.f32 0.0, %v4815
  %4817 = vdwg.mxu0
  %v4818 = vmul.f32 %v4796, %v4796
  %v4819 = vmul.f32 %v4798, %v4798
  %v4820 = vmul.f32 %v4802, %v4802
  %v4821 = vmul.f32 %v4804, %v4804
  %v4822 = vmul.f32 %v4808, %v4808
  %v4823 = vmul.f32 %v4810, %v4810
  %v4824 = vmul.f32 %v4814, %v4814
  %v4825 = vmul.f32 %v4816, %v4816
  %4826 = vmatprep.subr.mxu0 0.0
  %4827 = vmatpush1.msra.mxu0 0.0
  %4828 = vmatprep.subr.mxu0 0.0
  %4829 = vmatpush1.msra.mxu0 0.0
  %4830 = vmatprep.subr.mxu0 0.0
  %4831 = vmatpush1.msra.mxu0 0.0
  %4832 = vmatprep.subr.mxu0 0.0
  %4833 = vmatpush1.msra.mxu0 0.0
  %4834 = vmatprep.subr.mxu0 0.0
  %4835 = vmatpush1.msra.mxu0 0.0
  %4836 = vmatprep.subr.mxu0 0.0
  %4837 = vmatpush1.msra.mxu0 0.0
  %4838 = vmatprep.subr.mxu0 0.0
  %4839 = vmatpush1.msra.mxu0 0.0
  %4840 = vmatprep.subr.mxu0 0.0
  %4841 = vmatpush1.msra.mxu0 0.0
  %4842 = vmatprep.subr.mxu0 0.0
  %4843 = vmatpush1.msra.mxu0 0.0
  %4844 = vmatprep.subr.mxu0 0.0
  %4845 = vmatpush1.msra.mxu0 0.0
  %4846 = vmatprep.subr.mxu0 0.0
  %4847 = vmatpush1.msra.mxu0 0.0
  %4848 = vmatprep.subr.mxu0 0.0
  %4849 = vmatpush1.msra.mxu0 0.0
  %4850 = vmatprep.subr.mxu0 %v4825
  %4851 = vmatpush1.msra.mxu0 %v4824
  %4852 = vmatprep.subr.mxu0 %v4823
  %4853 = vmatpush1.msra.mxu0 %v4822
  %4854 = vmatprep.subr.mxu0 %v4821
  %4855 = vmatpush1.msra.mxu0 %v4820
  %4856 = vmatprep.subr.mxu0 %v4819
  %4857 = vmatpush1.msra.mxu0 %v4818
  %4858 = vmatprep.subr.mxu0 0.0
  %4859 = vmatpush2.msra.mxu0 0.0
  %4860 = vmatprep.subr.mxu0 0.0
  %4861 = vmatpush2.msra.mxu0 0.0
  %4862 = vmatprep.subr.mxu0 0.0
  %4863 = vmatpush2.msra.mxu0 0.0
  %4864 = vmatprep.subr.mxu0 0.0
  %4865 = vmatpush2.msra.mxu0 0.0
  %4866 = vmatprep.subr.mxu0 0.0
  %4867 = vmatpush2.msra.mxu0 0.0
  %4868 = vmatprep.subr.mxu0 0.0
  %4869 = vmatpush2.msra.mxu0 0.0
  %4870 = vmatprep.subr.mxu0 0.0
  %4871 = vmatpush2.msra.mxu0 0.0
  %4872 = vmatprep.subr.mxu0 0.0
  %4873 = vmatpush2.msra.mxu0 0.0
  %4874 = vmatprep.subr.mxu0 0.0
  %4875 = vmatpush2.msra.mxu0 0.0
  %4876 = vmatprep.subr.mxu0 0.0
  %4877 = vmatpush2.msra.mxu0 0.0
  %4878 = vmatprep.subr.mxu0 0.0
  %4879 = vmatpush2.msra.mxu0 0.0
  %4880 = vmatprep.subr.mxu0 0.0
  %4881 = vmatpush2.msra.mxu0 0.0
  %4882 = vmatprep.subr.mxu0 0.0
  %4883 = vmatpush2.msra.mxu0 0.0
  %4884 = vmatprep.subr.mxu0 0.0
  %4885 = vmatpush2.msra.mxu0 0.0
  %4886 = vmatprep.subr.mxu0 0.0
  %4887 = vmatpush2.msra.mxu0 0.0
  %4888 = vmatprep.subr.mxu0 0.0
  %4889 = vmatpush2.msra.mxu0 0.0
  %4890 = vmatprep.mubr.f32.mxu0 0.0
  %4891 = vmatmul.mubr.f32.gmra.mxu0 %v2157
  %v4892 = vpop.f32.mrf.mxu0
  %v4893 = vadd.f32 %v833, %v4892
  %v4894 = vpop.f32.mrf.mxu0
  %v4895 = vadd.f32 %v834, %v4894
  %4896 = vmatprep.mubr.f32.mxu0 0.0
  %4897 = vmatmul.mubr.f32.gmra.mxu0 %v2160
  %v4898 = vpop.f32.mrf.mxu0
  %v4899 = vadd.f32 %v835, %v4898
  %v4900 = vpop.f32.mrf.mxu0
  %v4901 = vadd.f32 %v836, %v4900
  %4902 = vdwg.mxu0
  %v4903 = vmul.f32 %v4893, 0.5
  %v4904 = vmul.f32 %v4895, 0.5
  %v4905 = vmul.f32 %v4899, 0.5
  %v4906 = vmul.f32 %v4901, 0.5
  %v4907 = vand.u32 2147483647, %v4903
  %vm4908 = vcmp.le.f32.partialorder %v4907, 0.7853982
  %vm4909 = vcmp.lt.s32.totalorder %v4903, 0
  %v4910 = vand.u32 %v4903, 2139095040
  %v4911 = vshrl.u32 %v4910, 23
  %v4912 = vsub.s32 %v4911, 127
  %v4913 = vand.u32 2147483647, %v4903
  %v4914 = vand.u32 %v4913, 8388607
  %v4915 = vor.u32 %v4914, 8388608
  %v4916 = vsub.s32 0, %v4915
  %v4917 = vadd.s32 %v4912, 1
  %vm4918 = vcmp.gt.s32.totalorder %v4917, 0
  %v4919 = vsel %vm4918, %v4917, 0
  %v4920 = vshrl.u32 %v4919, 5
  %v4921 = vand.u32 %v4919, 31
  %v4922 = vsub.s32 32, %v4921
  %v4923 = vshrl.u32 683565275, %v4922
  %v4924 = vshll.u32 683565275, %v4921
  %v4925 = vshrl.u32 2475754826, %v4922
  %v4926 = vor.u32 %v4924, %v4925
  %v4927 = vshll.u32 2475754826, %v4921
  %v4928 = vshrl.u32 2131351028, %v4922
  %v4929 = vor.u32 %v4927, %v4928
  %v4930 = vshll.u32 2131351028, %v4921
  %v4931 = vshrl.u32 2102212464, %v4922
  %v4932 = vor.u32 %v4930, %v4931
  %v4933 = vshll.u32 2102212464, %v4921
  %v4934 = vshrl.u32 920167782, %v4922
  %v4935 = vor.u32 %v4933, %v4934
  %v4936 = vshll.u32 920167782, %v4921
  %v4937 = vshrl.u32 1326507024, %v4922
  %v4938 = vor.u32 %v4936, %v4937
  %vm4939 = vcmp.lt.s32.totalorder %v4920, 1
  %vm4940 = vcmp.lt.s32.totalorder %v4920, 2
  %vm4941 = vcmp.lt.s32.totalorder %v4920, 3
  %vm4942 = vcmp.lt.s32.totalorder %v4920, 4
  %v4943 = vsel %vm4939, %v4923, %v4926
  %v4944 = vsel %vm4942, %v4932, 2102212464
  %v4945 = vsel %vm4941, %v4929, %v4944
  %v4946 = vsel %vm4940, %v4943, %v4945
  %v4947 = vsel %vm4939, %v4926, %v4929
  %v4948 = vsel %vm4942, %v4935, 920167782
  %v4949 = vsel %vm4941, %v4932, %v4948
  %v4950 = vsel %vm4940, %v4947, %v4949
  %v4951 = vsel %vm4939, %v4929, %v4932
  %v4952 = vsel %vm4942, %v4938, 1326507024
  %v4953 = vsel %vm4941, %v4935, %v4952
  %v4954 = vsel %vm4940, %v4951, %v4953
  %v4955 = vshll.u32 %v4915, 8
  %v4956 = vmul.u32.u64.compose %v4955, %v4954
  %v4957 = vextract.low.u32 %v4956
  %v4958 = vextract.high.u32 %v4956
  %v4959 = vmul.u32.u64.compose %v4955, %v4950
  %v4960 = vextract.low.u32 %v4959
  %v4961 = vextract.high.u32 %v4959
  %v4962 = vmul.u32 %v4955, %v4946
  %v4963 = vadd.s32 %v4958, %v4960
  %vm4964 = vc.u32 %v4958, %v4960
  %v4965 = vadd.s32 %v4961, 1
  %v4966 = vsel %vm4964, %v4965, %v4961
  %v4967 = vadd.s32 %v4962, %v4966
  %v4968 = vadd.s32 %v4967, 536870912
  %v4969 = vshrl.u32 %v4968, 30
  %v4970 = vshll.u32 %v4969, 30
  %v4971 = vsub.s32 %v4967, %v4970
  %vm4972 = vcmp.lt.s32.totalorder %v4971, 0
  %v4973 = vsub.s32 0, %v4971
  %v4974 = vsel %vm4972, %v4973, %v4971
  %v4975 = vclz %v4974
  %v4976 = vsub.s32 %v4975, 2
  %vm4977 = vcmp.gt.s32.totalorder 0, %v4976
  %v4978 = vsel %vm4977, 0, %v4976
  %v4979 = vsub.s32 32, %v4978
  %v4980 = vshll.u32 %v4971, %v4978
  %v4981 = vshrl.u32 %v4963, %v4979
  %v4982 = vor.u32 %v4980, %v4981
  %v4983 = vsub.s32 4294967266, %v4978
  %v4984 = vadd.s32 %v4983, 127
  %v4985 = vshll.u32 %v4984, 23
  %v4986 = vor.u32 4788187, %v4985
  %v4987 = vand.u32 2147483647, %v4986
  %v4989 = vcvt.s32.f32 %v4982
  %v4990 = vmul.f32 %v4989, %v4987
  %v4991 = vxor.u32 %v4990, 2147483648
  %v4992 = vsel %vm4909, %v4991, %v4990
  %v4993 = vsub.s32 4, %v4969
  %v4994 = vsel %vm4909, %v4993, %v4969
  %v4995 = vsel %vm4908, %v4903, %v4992
  %v4996 = vsel %vm4908, 0, %v4994
  %v4997 = vcosq.f32.pop %v4995
  %v4998 = vsinq.f32.pop %v4995
  %vm4999 = vweird.f32 %v4903
  %v5000 = vand.u32 %v4996, 3
  %vm5001 = vcmp.lt.s32.totalorder %v5000, 2
  %vm5002 = vcmp.eq.s32.totalorder %v5000, 0
  %v5003 = vxor.u32 %v4998, 2147483648
  %v5004 = vsel %vm5002, %v4997, %v5003
  %vm5005 = vcmp.eq.s32.totalorder %v5000, 2
  %v5006 = vxor.u32 %v4997, 2147483648
  %v5007 = vsel %vm5005, %v5006, %v4998
  %v5008 = vsel %vm5001, %v5004, %v5007
  %v5009 = vsel %vm4999, nan, %v5008
  %v5010 = vand.u32 2147483647, %v4904
  %vm5011 = vcmp.le.f32.partialorder %v5010, 0.7853982
  %vm5012 = vcmp.lt.s32.totalorder %v4904, 0
  %v5013 = vand.u32 %v4904, 2139095040
  %v5014 = vshrl.u32 %v5013, 23
  %v5015 = vsub.s32 %v5014, 127
  %v5016 = vand.u32 2147483647, %v4904
  %v5017 = vand.u32 %v5016, 8388607
  %v5018 = vor.u32 %v5017, 8388608
  %v5019 = vsub.s32 0, %v5018
  %v5020 = vadd.s32 %v5015, 1
  %vm5021 = vcmp.gt.s32.totalorder %v5020, 0
  %v5022 = vsel %vm5021, %v5020, 0
  %v5023 = vshrl.u32 %v5022, 5
  %v5024 = vand.u32 %v5022, 31
  %v5025 = vsub.s32 32, %v5024
  %v5026 = vshrl.u32 683565275, %v5025
  %v5027 = vshll.u32 683565275, %v5024
  %v5028 = vshrl.u32 2475754826, %v5025
  %v5029 = vor.u32 %v5027, %v5028
  %v5030 = vshll.u32 2475754826, %v5024
  %v5031 = vshrl.u32 2131351028, %v5025
  %v5032 = vor.u32 %v5030, %v5031
  %v5033 = vshll.u32 2131351028, %v5024
  %v5034 = vshrl.u32 2102212464, %v5025
  %v5035 = vor.u32 %v5033, %v5034
  %v5036 = vshll.u32 2102212464, %v5024
  %v5037 = vshrl.u32 920167782, %v5025
  %v5038 = vor.u32 %v5036, %v5037
  %v5039 = vshll.u32 920167782, %v5024
  %v5040 = vshrl.u32 1326507024, %v5025
  %v5041 = vor.u32 %v5039, %v5040
  %vm5042 = vcmp.lt.s32.totalorder %v5023, 1
  %vm5043 = vcmp.lt.s32.totalorder %v5023, 2
  %vm5044 = vcmp.lt.s32.totalorder %v5023, 3
  %vm5045 = vcmp.lt.s32.totalorder %v5023, 4
  %v5046 = vsel %vm5042, %v5026, %v5029
  %v5047 = vsel %vm5045, %v5035, 2102212464
  %v5048 = vsel %vm5044, %v5032, %v5047
  %v5049 = vsel %vm5043, %v5046, %v5048
  %v5050 = vsel %vm5042, %v5029, %v5032
  %v5051 = vsel %vm5045, %v5038, 920167782
  %v5052 = vsel %vm5044, %v5035, %v5051
  %v5053 = vsel %vm5043, %v5050, %v5052
  %v5054 = vsel %vm5042, %v5032, %v5035
  %v5055 = vsel %vm5045, %v5041, 1326507024
  %v5056 = vsel %vm5044, %v5038, %v5055
  %v5057 = vsel %vm5043, %v5054, %v5056
  %v5058 = vshll.u32 %v5018, 8
  %v5059 = vmul.u32.u64.compose %v5058, %v5057
  %v5060 = vextract.low.u32 %v5059
  %v5061 = vextract.high.u32 %v5059
  %v5062 = vmul.u32.u64.compose %v5058, %v5053
  %v5063 = vextract.low.u32 %v5062
  %v5064 = vextract.high.u32 %v5062
  %v5065 = vmul.u32 %v5058, %v5049
  %v5066 = vadd.s32 %v5061, %v5063
  %vm5067 = vc.u32 %v5061, %v5063
  %v5068 = vadd.s32 %v5064, 1
  %v5069 = vsel %vm5067, %v5068, %v5064
  %v5070 = vadd.s32 %v5065, %v5069
  %v5071 = vadd.s32 %v5070, 536870912
  %v5072 = vshrl.u32 %v5071, 30
  %v5073 = vshll.u32 %v5072, 30
  %v5074 = vsub.s32 %v5070, %v5073
  %vm5075 = vcmp.lt.s32.totalorder %v5074, 0
  %v5076 = vsub.s32 0, %v5074
  %v5077 = vsel %vm5075, %v5076, %v5074
  %v5078 = vclz %v5077
  %v5079 = vsub.s32 %v5078, 2
  %vm5080 = vcmp.gt.s32.totalorder 0, %v5079
  %v5081 = vsel %vm5080, 0, %v5079
  %v5082 = vsub.s32 32, %v5081
  %v5083 = vshll.u32 %v5074, %v5081
  %v5084 = vshrl.u32 %v5066, %v5082
  %v5085 = vor.u32 %v5083, %v5084
  %v5086 = vsub.s32 4294967266, %v5081
  %v5087 = vadd.s32 %v5086, 127
  %v5088 = vshll.u32 %v5087, 23
  %v5089 = vor.u32 4788187, %v5088
  %v5090 = vand.u32 2147483647, %v5089
  %v5092 = vcvt.s32.f32 %v5085
  %v5093 = vmul.f32 %v5092, %v5090
  %v5094 = vxor.u32 %v5093, 2147483648
  %v5095 = vsel %vm5012, %v5094, %v5093
  %v5096 = vsub.s32 4, %v5072
  %v5097 = vsel %vm5012, %v5096, %v5072
  %v5098 = vsel %vm5011, %v4904, %v5095
  %v5099 = vsel %vm5011, 0, %v5097
  %v5100 = vcosq.f32.pop %v5098
  %v5101 = vsinq.f32.pop %v5098
  %vm5102 = vweird.f32 %v4904
  %v5103 = vand.u32 %v5099, 3
  %vm5104 = vcmp.lt.s32.totalorder %v5103, 2
  %vm5105 = vcmp.eq.s32.totalorder %v5103, 0
  %v5106 = vxor.u32 %v5101, 2147483648
  %v5107 = vsel %vm5105, %v5100, %v5106
  %vm5108 = vcmp.eq.s32.totalorder %v5103, 2
  %v5109 = vxor.u32 %v5100, 2147483648
  %v5110 = vsel %vm5108, %v5109, %v5101
  %v5111 = vsel %vm5104, %v5107, %v5110
  %v5112 = vsel %vm5102, nan, %v5111
  %v5113 = vand.u32 2147483647, %v4905
  %vm5114 = vcmp.le.f32.partialorder %v5113, 0.7853982
  %vm5115 = vcmp.lt.s32.totalorder %v4905, 0
  %v5116 = vand.u32 %v4905, 2139095040
  %v5117 = vshrl.u32 %v5116, 23
  %v5118 = vsub.s32 %v5117, 127
  %v5119 = vand.u32 2147483647, %v4905
  %v5120 = vand.u32 %v5119, 8388607
  %v5121 = vor.u32 %v5120, 8388608
  %v5122 = vsub.s32 0, %v5121
  %v5123 = vadd.s32 %v5118, 1
  %vm5124 = vcmp.gt.s32.totalorder %v5123, 0
  %v5125 = vsel %vm5124, %v5123, 0
  %v5126 = vshrl.u32 %v5125, 5
  %v5127 = vand.u32 %v5125, 31
  %v5128 = vsub.s32 32, %v5127
  %v5129 = vshrl.u32 683565275, %v5128
  %v5130 = vshll.u32 683565275, %v5127
  %v5131 = vshrl.u32 2475754826, %v5128
  %v5132 = vor.u32 %v5130, %v5131
  %v5133 = vshll.u32 2475754826, %v5127
  %v5134 = vshrl.u32 2131351028, %v5128
  %v5135 = vor.u32 %v5133, %v5134
  %v5136 = vshll.u32 2131351028, %v5127
  %v5137 = vshrl.u32 2102212464, %v5128
  %v5138 = vor.u32 %v5136, %v5137
  %v5139 = vshll.u32 2102212464, %v5127
  %v5140 = vshrl.u32 920167782, %v5128
  %v5141 = vor.u32 %v5139, %v5140
  %v5142 = vshll.u32 920167782, %v5127
  %v5143 = vshrl.u32 1326507024, %v5128
  %v5144 = vor.u32 %v5142, %v5143
  %vm5145 = vcmp.lt.s32.totalorder %v5126, 1
  %vm5146 = vcmp.lt.s32.totalorder %v5126, 2
  %vm5147 = vcmp.lt.s32.totalorder %v5126, 3
  %vm5148 = vcmp.lt.s32.totalorder %v5126, 4
  %v5149 = vsel %vm5145, %v5129, %v5132
  %v5150 = vsel %vm5148, %v5138, 2102212464
  %v5151 = vsel %vm5147, %v5135, %v5150
  %v5152 = vsel %vm5146, %v5149, %v5151
  %v5153 = vsel %vm5145, %v5132, %v5135
  %v5154 = vsel %vm5148, %v5141, 920167782
  %v5155 = vsel %vm5147, %v5138, %v5154
  %v5156 = vsel %vm5146, %v5153, %v5155
  %v5157 = vsel %vm5145, %v5135, %v5138
  %v5158 = vsel %vm5148, %v5144, 1326507024
  %v5159 = vsel %vm5147, %v5141, %v5158
  %v5160 = vsel %vm5146, %v5157, %v5159
  %v5161 = vshll.u32 %v5121, 8
  %v5162 = vmul.u32.u64.compose %v5161, %v5160
  %v5163 = vextract.low.u32 %v5162
  %v5164 = vextract.high.u32 %v5162
  %v5165 = vmul.u32.u64.compose %v5161, %v5156
  %v5166 = vextract.low.u32 %v5165
  %v5167 = vextract.high.u32 %v5165
  %v5168 = vmul.u32 %v5161, %v5152
  %v5169 = vadd.s32 %v5164, %v5166
  %vm5170 = vc.u32 %v5164, %v5166
  %v5171 = vadd.s32 %v5167, 1
  %v5172 = vsel %vm5170, %v5171, %v5167
  %v5173 = vadd.s32 %v5168, %v5172
  %v5174 = vadd.s32 %v5173, 536870912
  %v5175 = vshrl.u32 %v5174, 30
  %v5176 = vshll.u32 %v5175, 30
  %v5177 = vsub.s32 %v5173, %v5176
  %vm5178 = vcmp.lt.s32.totalorder %v5177, 0
  %v5179 = vsub.s32 0, %v5177
  %v5180 = vsel %vm5178, %v5179, %v5177
  %v5181 = vclz %v5180
  %v5182 = vsub.s32 %v5181, 2
  %vm5183 = vcmp.gt.s32.totalorder 0, %v5182
  %v5184 = vsel %vm5183, 0, %v5182
  %v5185 = vsub.s32 32, %v5184
  %v5186 = vshll.u32 %v5177, %v5184
  %v5187 = vshrl.u32 %v5169, %v5185
  %v5188 = vor.u32 %v5186, %v5187
  %v5189 = vsub.s32 4294967266, %v5184
  %v5190 = vadd.s32 %v5189, 127
  %v5191 = vshll.u32 %v5190, 23
  %v5192 = vor.u32 4788187, %v5191
  %v5193 = vand.u32 2147483647, %v5192
  %v5195 = vcvt.s32.f32 %v5188
  %v5196 = vmul.f32 %v5195, %v5193
  %v5197 = vxor.u32 %v5196, 2147483648
  %v5198 = vsel %vm5115, %v5197, %v5196
  %v5199 = vsub.s32 4, %v5175
  %v5200 = vsel %vm5115, %v5199, %v5175
  %v5201 = vsel %vm5114, %v4905, %v5198
  %v5202 = vsel %vm5114, 0, %v5200
  %v5203 = vcosq.f32.pop %v5201
  %v5204 = vsinq.f32.pop %v5201
  %vm5205 = vweird.f32 %v4905
  %v5206 = vand.u32 %v5202, 3
  %vm5207 = vcmp.lt.s32.totalorder %v5206, 2
  %vm5208 = vcmp.eq.s32.totalorder %v5206, 0
  %v5209 = vxor.u32 %v5204, 2147483648
  %v5210 = vsel %vm5208, %v5203, %v5209
  %vm5211 = vcmp.eq.s32.totalorder %v5206, 2
  %v5212 = vxor.u32 %v5203, 2147483648
  %v5213 = vsel %vm5211, %v5212, %v5204
  %v5214 = vsel %vm5207, %v5210, %v5213
  %v5215 = vsel %vm5205, nan, %v5214
  %v5216 = vand.u32 2147483647, %v4906
  %vm5217 = vcmp.le.f32.partialorder %v5216, 0.7853982
  %vm5218 = vcmp.lt.s32.totalorder %v4906, 0
  %v5219 = vand.u32 %v4906, 2139095040
  %v5220 = vshrl.u32 %v5219, 23
  %v5221 = vsub.s32 %v5220, 127
  %v5222 = vand.u32 2147483647, %v4906
  %v5223 = vand.u32 %v5222, 8388607
  %v5224 = vor.u32 %v5223, 8388608
  %v5225 = vsub.s32 0, %v5224
  %v5226 = vadd.s32 %v5221, 1
  %vm5227 = vcmp.gt.s32.totalorder %v5226, 0
  %v5228 = vsel %vm5227, %v5226, 0
  %v5229 = vshrl.u32 %v5228, 5
  %v5230 = vand.u32 %v5228, 31
  %v5231 = vsub.s32 32, %v5230
  %v5232 = vshrl.u32 683565275, %v5231
  %v5233 = vshll.u32 683565275, %v5230
  %v5234 = vshrl.u32 2475754826, %v5231
  %v5235 = vor.u32 %v5233, %v5234
  %v5236 = vshll.u32 2475754826, %v5230
  %v5237 = vshrl.u32 2131351028, %v5231
  %v5238 = vor.u32 %v5236, %v5237
  %v5239 = vshll.u32 2131351028, %v5230
  %v5240 = vshrl.u32 2102212464, %v5231
  %v5241 = vor.u32 %v5239, %v5240
  %v5242 = vshll.u32 2102212464, %v5230
  %v5243 = vshrl.u32 920167782, %v5231
  %v5244 = vor.u32 %v5242, %v5243
  %v5245 = vshll.u32 920167782, %v5230
  %v5246 = vshrl.u32 1326507024, %v5231
  %v5247 = vor.u32 %v5245, %v5246
  %vm5248 = vcmp.lt.s32.totalorder %v5229, 1
  %vm5249 = vcmp.lt.s32.totalorder %v5229, 2
  %vm5250 = vcmp.lt.s32.totalorder %v5229, 3
  %vm5251 = vcmp.lt.s32.totalorder %v5229, 4
  %v5252 = vsel %vm5248, %v5232, %v5235
  %v5253 = vsel %vm5251, %v5241, 2102212464
  %v5254 = vsel %vm5250, %v5238, %v5253
  %v5255 = vsel %vm5249, %v5252, %v5254
  %v5256 = vsel %vm5248, %v5235, %v5238
  %v5257 = vsel %vm5251, %v5244, 920167782
  %v5258 = vsel %vm5250, %v5241, %v5257
  %v5259 = vsel %vm5249, %v5256, %v5258
  %v5260 = vsel %vm5248, %v5238, %v5241
  %v5261 = vsel %vm5251, %v5247, 1326507024
  %v5262 = vsel %vm5250, %v5244, %v5261
  %v5263 = vsel %vm5249, %v5260, %v5262
  %v5264 = vshll.u32 %v5224, 8
  %v5265 = vmul.u32.u64.compose %v5264, %v5263
  %v5266 = vextract.low.u32 %v5265
  %v5267 = vextract.high.u32 %v5265
  %v5268 = vmul.u32.u64.compose %v5264, %v5259
  %v5269 = vextract.low.u32 %v5268
  %v5270 = vextract.high.u32 %v5268
  %v5271 = vmul.u32 %v5264, %v5255
  %v5272 = vadd.s32 %v5267, %v5269
  %vm5273 = vc.u32 %v5267, %v5269
  %v5274 = vadd.s32 %v5270, 1
  %v5275 = vsel %vm5273, %v5274, %v5270
  %v5276 = vadd.s32 %v5271, %v5275
  %v5277 = vadd.s32 %v5276, 536870912
  %v5278 = vshrl.u32 %v5277, 30
  %v5279 = vshll.u32 %v5278, 30
  %v5280 = vsub.s32 %v5276, %v5279
  %vm5281 = vcmp.lt.s32.totalorder %v5280, 0
  %v5282 = vsub.s32 0, %v5280
  %v5283 = vsel %vm5281, %v5282, %v5280
  %v5284 = vclz %v5283
  %v5285 = vsub.s32 %v5284, 2
  %vm5286 = vcmp.gt.s32.totalorder 0, %v5285
  %v5287 = vsel %vm5286, 0, %v5285
  %v5288 = vsub.s32 32, %v5287
  %v5289 = vshll.u32 %v5280, %v5287
  %v5290 = vshrl.u32 %v5272, %v5288
  %v5291 = vor.u32 %v5289, %v5290
  %v5292 = vsub.s32 4294967266, %v5287
  %v5293 = vadd.s32 %v5292, 127
  %v5294 = vshll.u32 %v5293, 23
  %v5295 = vor.u32 4788187, %v5294
  %v5296 = vand.u32 2147483647, %v5295
  %v5298 = vcvt.s32.f32 %v5291
  %v5299 = vmul.f32 %v5298, %v5296
  %v5300 = vxor.u32 %v5299, 2147483648
  %v5301 = vsel %vm5218, %v5300, %v5299
  %v5302 = vsub.s32 4, %v5278
  %v5303 = vsel %vm5218, %v5302, %v5278
  %v5304 = vsel %vm5217, %v4906, %v5301
  %v5305 = vsel %vm5217, 0, %v5303
  %v5306 = vcosq.f32.pop %v5304
  %v5307 = vsinq.f32.pop %v5304
  %vm5308 = vweird.f32 %v4906
  %v5309 = vand.u32 %v5305, 3
  %vm5310 = vcmp.lt.s32.totalorder %v5309, 2
  %vm5311 = vcmp.eq.s32.totalorder %v5309, 0
  %v5312 = vxor.u32 %v5307, 2147483648
  %v5313 = vsel %vm5311, %v5306, %v5312
  %vm5314 = vcmp.eq.s32.totalorder %v5309, 2
  %v5315 = vxor.u32 %v5306, 2147483648
  %v5316 = vsel %vm5314, %v5315, %v5307
  %v5317 = vsel %vm5310, %v5313, %v5316
  %v5318 = vsel %vm5308, nan, %v5317
  %v5319 = vand.u32 2147483647, %v4903
  %vm5320 = vcmp.le.f32.partialorder %v5319, 0.7853982
  %vm5321 = vcmp.lt.s32.totalorder %v4903, 0
  %v5322 = vand.u32 %v4903, 2139095040
  %v5323 = vshrl.u32 %v5322, 23
  %v5324 = vsub.s32 %v5323, 127
  %v5325 = vand.u32 2147483647, %v4903
  %v5326 = vand.u32 %v5325, 8388607
  %v5327 = vor.u32 %v5326, 8388608
  %v5328 = vsub.s32 0, %v5327
  %v5329 = vadd.s32 %v5324, 1
  %vm5330 = vcmp.gt.s32.totalorder %v5329, 0
  %v5331 = vsel %vm5330, %v5329, 0
  %v5332 = vshrl.u32 %v5331, 5
  %v5333 = vand.u32 %v5331, 31
  %v5334 = vsub.s32 32, %v5333
  %v5335 = vshrl.u32 683565275, %v5334
  %v5336 = vshll.u32 683565275, %v5333
  %v5337 = vshrl.u32 2475754826, %v5334
  %v5338 = vor.u32 %v5336, %v5337
  %v5339 = vshll.u32 2475754826, %v5333
  %v5340 = vshrl.u32 2131351028, %v5334
  %v5341 = vor.u32 %v5339, %v5340
  %v5342 = vshll.u32 2131351028, %v5333
  %v5343 = vshrl.u32 2102212464, %v5334
  %v5344 = vor.u32 %v5342, %v5343
  %v5345 = vshll.u32 2102212464, %v5333
  %v5346 = vshrl.u32 920167782, %v5334
  %v5347 = vor.u32 %v5345, %v5346
  %v5348 = vshll.u32 920167782, %v5333
  %v5349 = vshrl.u32 1326507024, %v5334
  %v5350 = vor.u32 %v5348, %v5349
  %vm5351 = vcmp.lt.s32.totalorder %v5332, 1
  %vm5352 = vcmp.lt.s32.totalorder %v5332, 2
  %vm5353 = vcmp.lt.s32.totalorder %v5332, 3
  %vm5354 = vcmp.lt.s32.totalorder %v5332, 4
  %v5355 = vsel %vm5351, %v5335, %v5338
  %v5356 = vsel %vm5354, %v5344, 2102212464
  %v5357 = vsel %vm5353, %v5341, %v5356
  %v5358 = vsel %vm5352, %v5355, %v5357
  %v5359 = vsel %vm5351, %v5338, %v5341
  %v5360 = vsel %vm5354, %v5347, 920167782
  %v5361 = vsel %vm5353, %v5344, %v5360
  %v5362 = vsel %vm5352, %v5359, %v5361
  %v5363 = vsel %vm5351, %v5341, %v5344
  %v5364 = vsel %vm5354, %v5350, 1326507024
  %v5365 = vsel %vm5353, %v5347, %v5364
  %v5366 = vsel %vm5352, %v5363, %v5365
  %v5367 = vshll.u32 %v5327, 8
  %v5368 = vmul.u32.u64.compose %v5367, %v5366
  %v5369 = vextract.low.u32 %v5368
  %v5370 = vextract.high.u32 %v5368
  %v5371 = vmul.u32.u64.compose %v5367, %v5362
  %v5372 = vextract.low.u32 %v5371
  %v5373 = vextract.high.u32 %v5371
  %v5374 = vmul.u32 %v5367, %v5358
  %v5375 = vadd.s32 %v5370, %v5372
  %vm5376 = vc.u32 %v5370, %v5372
  %v5377 = vadd.s32 %v5373, 1
  %v5378 = vsel %vm5376, %v5377, %v5373
  %v5379 = vadd.s32 %v5374, %v5378
  %v5380 = vadd.s32 %v5379, 536870912
  %v5381 = vshrl.u32 %v5380, 30
  %v5382 = vshll.u32 %v5381, 30
  %v5383 = vsub.s32 %v5379, %v5382
  %vm5384 = vcmp.lt.s32.totalorder %v5383, 0
  %v5385 = vsub.s32 0, %v5383
  %v5386 = vsel %vm5384, %v5385, %v5383
  %v5387 = vclz %v5386
  %v5388 = vsub.s32 %v5387, 2
  %vm5389 = vcmp.gt.s32.totalorder 0, %v5388
  %v5390 = vsel %vm5389, 0, %v5388
  %v5391 = vsub.s32 32, %v5390
  %v5392 = vshll.u32 %v5383, %v5390
  %v5393 = vshrl.u32 %v5375, %v5391
  %v5394 = vor.u32 %v5392, %v5393
  %v5395 = vsub.s32 4294967266, %v5390
  %v5396 = vadd.s32 %v5395, 127
  %v5397 = vshll.u32 %v5396, 23
  %v5398 = vor.u32 4788187, %v5397
  %v5399 = vand.u32 2147483647, %v5398
  %v5401 = vcvt.s32.f32 %v5394
  %v5402 = vmul.f32 %v5401, %v5399
  %v5403 = vxor.u32 %v5402, 2147483648
  %v5404 = vsel %vm5321, %v5403, %v5402
  %v5405 = vsub.s32 4, %v5381
  %v5406 = vsel %vm5321, %v5405, %v5381
  %v5407 = vsel %vm5320, %v4903, %v5404
  %v5408 = vsel %vm5320, 0, %v5406
  %v5409 = vcosq.f32.pop %v5407
  %v5410 = vsinq.f32.pop %v5407
  %vm5411 = vweird.f32 %v4903
  %v5412 = vadd.s32 %v5408, 3
  %v5413 = vand.u32 %v5412, 3
  %vm5414 = vcmp.lt.s32.totalorder %v5413, 2
  %vm5415 = vcmp.eq.s32.totalorder %v5413, 0
  %v5416 = vxor.u32 %v5410, 2147483648
  %v5417 = vsel %vm5415, %v5409, %v5416
  %vm5418 = vcmp.eq.s32.totalorder %v5413, 2
  %v5419 = vxor.u32 %v5409, 2147483648
  %v5420 = vsel %vm5418, %v5419, %v5410
  %v5421 = vsel %vm5414, %v5417, %v5420
  %v5422 = vsel %vm5411, nan, %v5421
  %v5423 = vand.u32 2147483647, %v4904
  %vm5424 = vcmp.le.f32.partialorder %v5423, 0.7853982
  %vm5425 = vcmp.lt.s32.totalorder %v4904, 0
  %v5426 = vand.u32 %v4904, 2139095040
  %v5427 = vshrl.u32 %v5426, 23
  %v5428 = vsub.s32 %v5427, 127
  %v5429 = vand.u32 2147483647, %v4904
  %v5430 = vand.u32 %v5429, 8388607
  %v5431 = vor.u32 %v5430, 8388608
  %v5432 = vsub.s32 0, %v5431
  %v5433 = vadd.s32 %v5428, 1
  %vm5434 = vcmp.gt.s32.totalorder %v5433, 0
  %v5435 = vsel %vm5434, %v5433, 0
  %v5436 = vshrl.u32 %v5435, 5
  %v5437 = vand.u32 %v5435, 31
  %v5438 = vsub.s32 32, %v5437
  %v5439 = vshrl.u32 683565275, %v5438
  %v5440 = vshll.u32 683565275, %v5437
  %v5441 = vshrl.u32 2475754826, %v5438
  %v5442 = vor.u32 %v5440, %v5441
  %v5443 = vshll.u32 2475754826, %v5437
  %v5444 = vshrl.u32 2131351028, %v5438
  %v5445 = vor.u32 %v5443, %v5444
  %v5446 = vshll.u32 2131351028, %v5437
  %v5447 = vshrl.u32 2102212464, %v5438
  %v5448 = vor.u32 %v5446, %v5447
  %v5449 = vshll.u32 2102212464, %v5437
  %v5450 = vshrl.u32 920167782, %v5438
  %v5451 = vor.u32 %v5449, %v5450
  %v5452 = vshll.u32 920167782, %v5437
  %v5453 = vshrl.u32 1326507024, %v5438
  %v5454 = vor.u32 %v5452, %v5453
  %vm5455 = vcmp.lt.s32.totalorder %v5436, 1
  %vm5456 = vcmp.lt.s32.totalorder %v5436, 2
  %vm5457 = vcmp.lt.s32.totalorder %v5436, 3
  %vm5458 = vcmp.lt.s32.totalorder %v5436, 4
  %v5459 = vsel %vm5455, %v5439, %v5442
  %v5460 = vsel %vm5458, %v5448, 2102212464
  %v5461 = vsel %vm5457, %v5445, %v5460
  %v5462 = vsel %vm5456, %v5459, %v5461
  %v5463 = vsel %vm5455, %v5442, %v5445
  %v5464 = vsel %vm5458, %v5451, 920167782
  %v5465 = vsel %vm5457, %v5448, %v5464
  %v5466 = vsel %vm5456, %v5463, %v5465
  %v5467 = vsel %vm5455, %v5445, %v5448
  %v5468 = vsel %vm5458, %v5454, 1326507024
  %v5469 = vsel %vm5457, %v5451, %v5468
  %v5470 = vsel %vm5456, %v5467, %v5469
  %v5471 = vshll.u32 %v5431, 8
  %v5472 = vmul.u32.u64.compose %v5471, %v5470
  %v5473 = vextract.low.u32 %v5472
  %v5474 = vextract.high.u32 %v5472
  %v5475 = vmul.u32.u64.compose %v5471, %v5466
  %v5476 = vextract.low.u32 %v5475
  %v5477 = vextract.high.u32 %v5475
  %v5478 = vmul.u32 %v5471, %v5462
  %v5479 = vadd.s32 %v5474, %v5476
  %vm5480 = vc.u32 %v5474, %v5476
  %v5481 = vadd.s32 %v5477, 1
  %v5482 = vsel %vm5480, %v5481, %v5477
  %v5483 = vadd.s32 %v5478, %v5482
  %v5484 = vadd.s32 %v5483, 536870912
  %v5485 = vshrl.u32 %v5484, 30
  %v5486 = vshll.u32 %v5485, 30
  %v5487 = vsub.s32 %v5483, %v5486
  %vm5488 = vcmp.lt.s32.totalorder %v5487, 0
  %v5489 = vsub.s32 0, %v5487
  %v5490 = vsel %vm5488, %v5489, %v5487
  %v5491 = vclz %v5490
  %v5492 = vsub.s32 %v5491, 2
  %vm5493 = vcmp.gt.s32.totalorder 0, %v5492
  %v5494 = vsel %vm5493, 0, %v5492
  %v5495 = vsub.s32 32, %v5494
  %v5496 = vshll.u32 %v5487, %v5494
  %v5497 = vshrl.u32 %v5479, %v5495
  %v5498 = vor.u32 %v5496, %v5497
  %v5499 = vsub.s32 4294967266, %v5494
  %v5500 = vadd.s32 %v5499, 127
  %v5501 = vshll.u32 %v5500, 23
  %v5502 = vor.u32 4788187, %v5501
  %v5503 = vand.u32 2147483647, %v5502
  %v5505 = vcvt.s32.f32 %v5498
  %v5506 = vmul.f32 %v5505, %v5503
  %v5507 = vxor.u32 %v5506, 2147483648
  %v5508 = vsel %vm5425, %v5507, %v5506
  %v5509 = vsub.s32 4, %v5485
  %v5510 = vsel %vm5425, %v5509, %v5485
  %v5511 = vsel %vm5424, %v4904, %v5508
  %v5512 = vsel %vm5424, 0, %v5510
  %v5513 = vcosq.f32.pop %v5511
  %v5514 = vsinq.f32.pop %v5511
  %vm5515 = vweird.f32 %v4904
  %v5516 = vadd.s32 %v5512, 3
  %v5517 = vand.u32 %v5516, 3
  %vm5518 = vcmp.lt.s32.totalorder %v5517, 2
  %vm5519 = vcmp.eq.s32.totalorder %v5517, 0
  %v5520 = vxor.u32 %v5514, 2147483648
  %v5521 = vsel %vm5519, %v5513, %v5520
  %vm5522 = vcmp.eq.s32.totalorder %v5517, 2
  %v5523 = vxor.u32 %v5513, 2147483648
  %v5524 = vsel %vm5522, %v5523, %v5514
  %v5525 = vsel %vm5518, %v5521, %v5524
  %v5526 = vsel %vm5515, nan, %v5525
  %v5527 = vand.u32 2147483647, %v4905
  %vm5528 = vcmp.le.f32.partialorder %v5527, 0.7853982
  %vm5529 = vcmp.lt.s32.totalorder %v4905, 0
  %v5530 = vand.u32 %v4905, 2139095040
  %v5531 = vshrl.u32 %v5530, 23
  %v5532 = vsub.s32 %v5531, 127
  %v5533 = vand.u32 2147483647, %v4905
  %v5534 = vand.u32 %v5533, 8388607
  %v5535 = vor.u32 %v5534, 8388608
  %v5536 = vsub.s32 0, %v5535
  %v5537 = vadd.s32 %v5532, 1
  %vm5538 = vcmp.gt.s32.totalorder %v5537, 0
  %v5539 = vsel %vm5538, %v5537, 0
  %v5540 = vshrl.u32 %v5539, 5
  %v5541 = vand.u32 %v5539, 31
  %v5542 = vsub.s32 32, %v5541
  %v5543 = vshrl.u32 683565275, %v5542
  %v5544 = vshll.u32 683565275, %v5541
  %v5545 = vshrl.u32 2475754826, %v5542
  %v5546 = vor.u32 %v5544, %v5545
  %v5547 = vshll.u32 2475754826, %v5541
  %v5548 = vshrl.u32 2131351028, %v5542
  %v5549 = vor.u32 %v5547, %v5548
  %v5550 = vshll.u32 2131351028, %v5541
  %v5551 = vshrl.u32 2102212464, %v5542
  %v5552 = vor.u32 %v5550, %v5551
  %v5553 = vshll.u32 2102212464, %v5541
  %v5554 = vshrl.u32 920167782, %v5542
  %v5555 = vor.u32 %v5553, %v5554
  %v5556 = vshll.u32 920167782, %v5541
  %v5557 = vshrl.u32 1326507024, %v5542
  %v5558 = vor.u32 %v5556, %v5557
  %vm5559 = vcmp.lt.s32.totalorder %v5540, 1
  %vm5560 = vcmp.lt.s32.totalorder %v5540, 2
  %vm5561 = vcmp.lt.s32.totalorder %v5540, 3
  %vm5562 = vcmp.lt.s32.totalorder %v5540, 4
  %v5563 = vsel %vm5559, %v5543, %v5546
  %v5564 = vsel %vm5562, %v5552, 2102212464
  %v5565 = vsel %vm5561, %v5549, %v5564
  %v5566 = vsel %vm5560, %v5563, %v5565
  %v5567 = vsel %vm5559, %v5546, %v5549
  %v5568 = vsel %vm5562, %v5555, 920167782
  %v5569 = vsel %vm5561, %v5552, %v5568
  %v5570 = vsel %vm5560, %v5567, %v5569
  %v5571 = vsel %vm5559, %v5549, %v5552
  %v5572 = vsel %vm5562, %v5558, 1326507024
  %v5573 = vsel %vm5561, %v5555, %v5572
  %v5574 = vsel %vm5560, %v5571, %v5573
  %v5575 = vshll.u32 %v5535, 8
  %v5576 = vmul.u32.u64.compose %v5575, %v5574
  %v5577 = vextract.low.u32 %v5576
  %v5578 = vextract.high.u32 %v5576
  %v5579 = vmul.u32.u64.compose %v5575, %v5570
  %v5580 = vextract.low.u32 %v5579
  %v5581 = vextract.high.u32 %v5579
  %v5582 = vmul.u32 %v5575, %v5566
  %v5583 = vadd.s32 %v5578, %v5580
  %vm5584 = vc.u32 %v5578, %v5580
  %v5585 = vadd.s32 %v5581, 1
  %v5586 = vsel %vm5584, %v5585, %v5581
  %v5587 = vadd.s32 %v5582, %v5586
  %v5588 = vadd.s32 %v5587, 536870912
  %v5589 = vshrl.u32 %v5588, 30
  %v5590 = vshll.u32 %v5589, 30
  %v5591 = vsub.s32 %v5587, %v5590
  %vm5592 = vcmp.lt.s32.totalorder %v5591, 0
  %v5593 = vsub.s32 0, %v5591
  %v5594 = vsel %vm5592, %v5593, %v5591
  %v5595 = vclz %v5594
  %v5596 = vsub.s32 %v5595, 2
  %vm5597 = vcmp.gt.s32.totalorder 0, %v5596
  %v5598 = vsel %vm5597, 0, %v5596
  %v5599 = vsub.s32 32, %v5598
  %v5600 = vshll.u32 %v5591, %v5598
  %v5601 = vshrl.u32 %v5583, %v5599
  %v5602 = vor.u32 %v5600, %v5601
  %v5603 = vsub.s32 4294967266, %v5598
  %v5604 = vadd.s32 %v5603, 127
  %v5605 = vshll.u32 %v5604, 23
  %v5606 = vor.u32 4788187, %v5605
  %v5607 = vand.u32 2147483647, %v5606
  %v5609 = vcvt.s32.f32 %v5602
  %v5610 = vmul.f32 %v5609, %v5607
  %v5611 = vxor.u32 %v5610, 2147483648
  %v5612 = vsel %vm5529, %v5611, %v5610
  %v5613 = vsub.s32 4, %v5589
  %v5614 = vsel %vm5529, %v5613, %v5589
  %v5615 = vsel %vm5528, %v4905, %v5612
  %v5616 = vsel %vm5528, 0, %v5614
  %v5617 = vcosq.f32.pop %v5615
  %v5618 = vsinq.f32.pop %v5615
  %vm5619 = vweird.f32 %v4905
  %v5620 = vadd.s32 %v5616, 3
  %v5621 = vand.u32 %v5620, 3
  %vm5622 = vcmp.lt.s32.totalorder %v5621, 2
  %vm5623 = vcmp.eq.s32.totalorder %v5621, 0
  %v5624 = vxor.u32 %v5618, 2147483648
  %v5625 = vsel %vm5623, %v5617, %v5624
  %vm5626 = vcmp.eq.s32.totalorder %v5621, 2
  %v5627 = vxor.u32 %v5617, 2147483648
  %v5628 = vsel %vm5626, %v5627, %v5618
  %v5629 = vsel %vm5622, %v5625, %v5628
  %v5630 = vsel %vm5619, nan, %v5629
  %v5631 = vand.u32 2147483647, %v4906
  %vm5632 = vcmp.le.f32.partialorder %v5631, 0.7853982
  %vm5633 = vcmp.lt.s32.totalorder %v4906, 0
  %v5634 = vand.u32 %v4906, 2139095040
  %v5635 = vshrl.u32 %v5634, 23
  %v5636 = vsub.s32 %v5635, 127
  %v5637 = vand.u32 2147483647, %v4906
  %v5638 = vand.u32 %v5637, 8388607
  %v5639 = vor.u32 %v5638, 8388608
  %v5640 = vsub.s32 0, %v5639
  %v5641 = vadd.s32 %v5636, 1
  %vm5642 = vcmp.gt.s32.totalorder %v5641, 0
  %v5643 = vsel %vm5642, %v5641, 0
  %v5644 = vshrl.u32 %v5643, 5
  %v5645 = vand.u32 %v5643, 31
  %v5646 = vsub.s32 32, %v5645
  %v5647 = vshrl.u32 683565275, %v5646
  %v5648 = vshll.u32 683565275, %v5645
  %v5649 = vshrl.u32 2475754826, %v5646
  %v5650 = vor.u32 %v5648, %v5649
  %v5651 = vshll.u32 2475754826, %v5645
  %v5652 = vshrl.u32 2131351028, %v5646
  %v5653 = vor.u32 %v5651, %v5652
  %v5654 = vshll.u32 2131351028, %v5645
  %v5655 = vshrl.u32 2102212464, %v5646
  %v5656 = vor.u32 %v5654, %v5655
  %v5657 = vshll.u32 2102212464, %v5645
  %v5658 = vshrl.u32 920167782, %v5646
  %v5659 = vor.u32 %v5657, %v5658
  %v5660 = vshll.u32 920167782, %v5645
  %v5661 = vshrl.u32 1326507024, %v5646
  %v5662 = vor.u32 %v5660, %v5661
  %vm5663 = vcmp.lt.s32.totalorder %v5644, 1
  %vm5664 = vcmp.lt.s32.totalorder %v5644, 2
  %vm5665 = vcmp.lt.s32.totalorder %v5644, 3
  %vm5666 = vcmp.lt.s32.totalorder %v5644, 4
  %v5667 = vsel %vm5663, %v5647, %v5650
  %v5668 = vsel %vm5666, %v5656, 2102212464
  %v5669 = vsel %vm5665, %v5653, %v5668
  %v5670 = vsel %vm5664, %v5667, %v5669
  %v5671 = vsel %vm5663, %v5650, %v5653
  %v5672 = vsel %vm5666, %v5659, 920167782
  %v5673 = vsel %vm5665, %v5656, %v5672
  %v5674 = vsel %vm5664, %v5671, %v5673
  %v5675 = vsel %vm5663, %v5653, %v5656
  %v5676 = vsel %vm5666, %v5662, 1326507024
  %v5677 = vsel %vm5665, %v5659, %v5676
  %v5678 = vsel %vm5664, %v5675, %v5677
  %v5679 = vshll.u32 %v5639, 8
  %v5680 = vmul.u32.u64.compose %v5679, %v5678
  %v5681 = vextract.low.u32 %v5680
  %v5682 = vextract.high.u32 %v5680
  %v5683 = vmul.u32.u64.compose %v5679, %v5674
  %v5684 = vextract.low.u32 %v5683
  %v5685 = vextract.high.u32 %v5683
  %v5686 = vmul.u32 %v5679, %v5670
  %v5687 = vadd.s32 %v5682, %v5684
  %vm5688 = vc.u32 %v5682, %v5684
  %v5689 = vadd.s32 %v5685, 1
  %v5690 = vsel %vm5688, %v5689, %v5685
  %v5691 = vadd.s32 %v5686, %v5690
  %v5692 = vadd.s32 %v5691, 536870912
  %v5693 = vshrl.u32 %v5692, 30
  %v5694 = vshll.u32 %v5693, 30
  %v5695 = vsub.s32 %v5691, %v5694
  %vm5696 = vcmp.lt.s32.totalorder %v5695, 0
  %v5697 = vsub.s32 0, %v5695
  %v5698 = vsel %vm5696, %v5697, %v5695
  %v5699 = vclz %v5698
  %v5700 = vsub.s32 %v5699, 2
  %vm5701 = vcmp.gt.s32.totalorder 0, %v5700
  %v5702 = vsel %vm5701, 0, %v5700
  %v5703 = vsub.s32 32, %v5702
  %v5704 = vshll.u32 %v5695, %v5702
  %v5705 = vshrl.u32 %v5687, %v5703
  %v5706 = vor.u32 %v5704, %v5705
  %v5707 = vsub.s32 4294967266, %v5702
  %v5708 = vadd.s32 %v5707, 127
  %v5709 = vshll.u32 %v5708, 23
  %v5710 = vor.u32 4788187, %v5709
  %v5711 = vand.u32 2147483647, %v5710
  %v5713 = vcvt.s32.f32 %v5706
  %v5714 = vmul.f32 %v5713, %v5711
  %v5715 = vxor.u32 %v5714, 2147483648
  %v5716 = vsel %vm5633, %v5715, %v5714
  %v5717 = vsub.s32 4, %v5693
  %v5718 = vsel %vm5633, %v5717, %v5693
  %v5719 = vsel %vm5632, %v4906, %v5716
  %v5720 = vsel %vm5632, 0, %v5718
  %v5721 = vcosq.f32.pop %v5719
  %v5722 = vsinq.f32.pop %v5719
  %vm5723 = vweird.f32 %v4906
  %v5724 = vadd.s32 %v5720, 3
  %v5725 = vand.u32 %v5724, 3
  %vm5726 = vcmp.lt.s32.totalorder %v5725, 2
  %vm5727 = vcmp.eq.s32.totalorder %v5725, 0
  %v5728 = vxor.u32 %v5722, 2147483648
  %v5729 = vsel %vm5727, %v5721, %v5728
  %vm5730 = vcmp.eq.s32.totalorder %v5725, 2
  %v5731 = vxor.u32 %v5721, 2147483648
  %v5732 = vsel %vm5730, %v5731, %v5722
  %v5733 = vsel %vm5726, %v5729, %v5732
  %v5734 = vsel %vm5723, nan, %v5733
  %v5737 = vrot.slane %v5009, 4
  %v5738 = vrot.slane %v5112, 4
  %v5741 = vmul.f32 %v5009, %v5737
  %v5742 = vmul.f32 %v5112, %v5738
  %v5745 = vrot.slane %v5422, 4
  %v5746 = vrot.slane %v5526, 4
  %v5749 = vmul.f32 %v5009, %v5745
  %v5750 = vmul.f32 %v5112, %v5746
  %v5751 = vsub.f32 0.0, %v5749
  %v5752 = vsub.f32 0.0, %v5750
  %v5753 = vmul.f32 %v5422, %v5737
  %v5754 = vmul.f32 %v5526, %v5738
  %v5755 = vmul.f32 %v5422, %v5745
  %v5756 = vmul.f32 %v5526, %v5746
  %v5757 = vmul.f32 %v5215, %v5741
  %v5758 = vmul.f32 %v5318, %v5742
  %v5759 = vmul.f32 %v5630, %v5755
  %v5760 = vmul.f32 %v5734, %v5756
  %v5761 = vadd.f32 %v5757, %v5759
  %v5762 = vadd.f32 %v5758, %v5760
  %v5763 = vmul.f32 %v5215, %v5751
  %v5764 = vmul.f32 %v5318, %v5752
  %v5765 = vmul.f32 %v5630, %v5753
  %v5766 = vmul.f32 %v5734, %v5754
  %v5767 = vsub.f32 %v5763, %v5765
  %v5768 = vsub.f32 %v5764, %v5766
  %v5769 = vmul.f32 %v5630, %v5751
  %v5770 = vmul.f32 %v5734, %v5752
  %v5771 = vmul.f32 %v5215, %v5753
  %v5772 = vmul.f32 %v5318, %v5754
  %v5773 = vadd.f32 %v5769, %v5771
  %v5774 = vadd.f32 %v5770, %v5772
  %v5775 = vmul.f32 %v5215, %v5755
  %v5776 = vmul.f32 %v5318, %v5756
  %v5777 = vmul.f32 %v5630, %v5741
  %v5778 = vmul.f32 %v5734, %v5742
  %v5779 = vsub.f32 %v5775, %v5777
  %v5780 = vsub.f32 %v5776, %v5778
  %v5783 = vrot.slane %v5761, 4
  %v5784 = vrot.slane %v5762, 4
  %v5787 = vmul.f32 %v5215, %v5783
  %v5788 = vmul.f32 %v5318, %v5784
  %v5791 = vrot.slane %v5773, 4
  %v5792 = vrot.slane %v5774, 4
  %v5795 = vmul.f32 %v5630, %v5791
  %v5796 = vmul.f32 %v5734, %v5792
  %v5797 = vsub.f32 %v5787, %v5795
  %v5798 = vsub.f32 %v5788, %v5796
  %v5801 = vrot.slane %v5767, 4
  %v5802 = vrot.slane %v5768, 4
  %v5805 = vmul.f32 %v5215, %v5801
  %v5806 = vmul.f32 %v5318, %v5802
  %v5809 = vrot.slane %v5779, 4
  %v5810 = vrot.slane %v5780, 4
  %v5813 = vmul.f32 %v5630, %v5809
  %v5814 = vmul.f32 %v5734, %v5810
  %v5815 = vsub.f32 %v5805, %v5813
  %v5816 = vsub.f32 %v5806, %v5814
  %v5817 = vmul.f32 %v5630, %v5783
  %v5818 = vmul.f32 %v5734, %v5784
  %v5819 = vmul.f32 %v5215, %v5791
  %v5820 = vmul.f32 %v5318, %v5792
  %v5821 = vadd.f32 %v5817, %v5819
  %v5822 = vadd.f32 %v5818, %v5820
  %v5823 = vmul.f32 %v5630, %v5801
  %v5824 = vmul.f32 %v5734, %v5802
  %v5825 = vmul.f32 %v5215, %v5809
  %v5826 = vmul.f32 %v5318, %v5810
  %v5827 = vadd.f32 %v5823, %v5825
  %v5828 = vadd.f32 %v5824, %v5826
  %v5829 = vlaneseq
  %v5830 = vshrl.u32 %v5829, 7
  %v5831 = vsub.s32 4, %v5830
  %v5832 = vrot.slane %v5821, %v5831
  %v5833 = vlaneseq
  %v5834 = vshrl.u32 %v5833, 7
  %v5835 = vsub.s32 4, %v5834
  %v5836 = vrot.slane %v5822, %v5835
  %v5837 = vlaneseq
  %v5838 = vshrl.u32 %v5837, 7
  %v5839 = vsub.s32 4, %v5838
  %v5840 = vrot.slane %v5797, %v5839
  %v5841 = vlaneseq
  %v5842 = vshrl.u32 %v5841, 7
  %v5843 = vsub.s32 4, %v5842
  %v5844 = vrot.slane %v5798, %v5843
  %v5845 = vsel %vm1800, %v5832, %v5840
  %v5846 = vsel %vm1800, %v5836, %v5844
  %v5847 = vsel %vm1801, %v5832, %v5840
  %v5848 = vsel %vm1801, %v5836, %v5844
  %v5849 = vlaneseq
  %v5850 = vshrl.u32 %v5849, 7
  %v5851 = vsub.s32 4, %v5850
  %v5852 = vrot.slane %v5827, %v5851
  %v5853 = vlaneseq
  %v5854 = vshrl.u32 %v5853, 7
  %v5855 = vsub.s32 4, %v5854
  %v5856 = vrot.slane %v5828, %v5855
  %v5857 = vlaneseq
  %v5858 = vshrl.u32 %v5857, 7
  %v5859 = vsub.s32 4, %v5858
  %v5860 = vrot.slane %v5815, %v5859
  %v5861 = vlaneseq
  %v5862 = vshrl.u32 %v5861, 7
  %v5863 = vsub.s32 4, %v5862
  %v5864 = vrot.slane %v5816, %v5863
  %v5865 = vsel %vm1800, %v5852, %v5860
  %v5866 = vsel %vm1800, %v5856, %v5864
  %v5867 = vsel %vm1801, %v5852, %v5860
  %v5868 = vsel %vm1801, %v5856, %v5864
  %v5869 = vlaneseq
  %v5870 = vshrl.u32 %v5869, 7
  %v5871 = vsub.s32 5, %v5870
  %v5872 = vrot.slane %v5821, %v5871
  %v5873 = vlaneseq
  %v5874 = vshrl.u32 %v5873, 7
  %v5875 = vsub.s32 5, %v5874
  %v5876 = vrot.slane %v5822, %v5875
  %v5877 = vlaneseq
  %v5878 = vshrl.u32 %v5877, 7
  %v5879 = vsub.s32 5, %v5878
  %v5880 = vrot.slane %v5797, %v5879
  %v5881 = vlaneseq
  %v5882 = vshrl.u32 %v5881, 7
  %v5883 = vsub.s32 5, %v5882
  %v5884 = vrot.slane %v5798, %v5883
  %v5885 = vsel %vm1844, %v5872, %v5880
  %v5886 = vsel %vm1844, %v5876, %v5884
  %v5887 = vsel %vm1845, %v5872, %v5880
  %v5888 = vsel %vm1845, %v5876, %v5884
  %v5889 = vlaneseq
  %v5890 = vshrl.u32 %v5889, 7
  %v5891 = vsub.s32 5, %v5890
  %v5892 = vrot.slane %v5827, %v5891
  %v5893 = vlaneseq
  %v5894 = vshrl.u32 %v5893, 7
  %v5895 = vsub.s32 5, %v5894
  %v5896 = vrot.slane %v5828, %v5895
  %v5897 = vlaneseq
  %v5898 = vshrl.u32 %v5897, 7
  %v5899 = vsub.s32 5, %v5898
  %v5900 = vrot.slane %v5815, %v5899
  %v5901 = vlaneseq
  %v5902 = vshrl.u32 %v5901, 7
  %v5903 = vsub.s32 5, %v5902
  %v5904 = vrot.slane %v5816, %v5903
  %v5905 = vsel %vm1844, %v5892, %v5900
  %v5906 = vsel %vm1844, %v5896, %v5904
  %v5907 = vsel %vm1845, %v5892, %v5900
  %v5908 = vsel %vm1845, %v5896, %v5904
  %v5909 = vmul.f32 %v5845, %v5885
  %v5910 = vmul.f32 %v5846, %v5886
  %v5911 = vmul.f32 %v5847, %v5887
  %v5912 = vmul.f32 %v5848, %v5888
  %v5913 = vmul.f32 %v5865, %v5905
  %v5914 = vmul.f32 %v5866, %v5906
  %v5915 = vmul.f32 %v5867, %v5907
  %v5916 = vmul.f32 %v5868, %v5908
  %v5917 = vsub.f32 %v5909, %v5913
  %v5918 = vsub.f32 %v5910, %v5914
  %v5919 = vsub.f32 %v5911, %v5915
  %v5920 = vsub.f32 %v5912, %v5916
  %v5921 = vmul.f32 %v5845, %v5905
  %v5922 = vmul.f32 %v5846, %v5906
  %v5923 = vmul.f32 %v5847, %v5907
  %v5924 = vmul.f32 %v5848, %v5908
  %v5925 = vmul.f32 %v5865, %v5885
  %v5926 = vmul.f32 %v5866, %v5886
  %v5927 = vmul.f32 %v5867, %v5887
  %v5928 = vmul.f32 %v5868, %v5888
  %v5929 = vadd.f32 %v5921, %v5925
  %v5930 = vadd.f32 %v5922, %v5926
  %v5931 = vadd.f32 %v5923, %v5927
  %v5932 = vadd.f32 %v5924, %v5928
  %v5933 = vlaneseq
  %v5934 = vshrl.u32 %v5933, 7
  %v5935 = vsub.s32 6, %v5934
  %v5936 = vrot.slane %v5821, %v5935
  %v5937 = vlaneseq
  %v5938 = vshrl.u32 %v5937, 7
  %v5939 = vsub.s32 6, %v5938
  %v5940 = vrot.slane %v5822, %v5939
  %v5941 = vlaneseq
  %v5942 = vshrl.u32 %v5941, 7
  %v5943 = vsub.s32 6, %v5942
  %v5944 = vrot.slane %v5797, %v5943
  %v5945 = vlaneseq
  %v5946 = vshrl.u32 %v5945, 7
  %v5947 = vsub.s32 6, %v5946
  %v5948 = vrot.slane %v5798, %v5947
  %v5949 = vsel %vm1912, %v5936, %v5944
  %v5950 = vsel %vm1912, %v5940, %v5948
  %v5951 = vsel %vm1913, %v5936, %v5944
  %v5952 = vsel %vm1913, %v5940, %v5948
  %v5953 = vlaneseq
  %v5954 = vshrl.u32 %v5953, 7
  %v5955 = vsub.s32 6, %v5954
  %v5956 = vrot.slane %v5827, %v5955
  %v5957 = vlaneseq
  %v5958 = vshrl.u32 %v5957, 7
  %v5959 = vsub.s32 6, %v5958
  %v5960 = vrot.slane %v5828, %v5959
  %v5961 = vlaneseq
  %v5962 = vshrl.u32 %v5961, 7
  %v5963 = vsub.s32 6, %v5962
  %v5964 = vrot.slane %v5815, %v5963
  %v5965 = vlaneseq
  %v5966 = vshrl.u32 %v5965, 7
  %v5967 = vsub.s32 6, %v5966
  %v5968 = vrot.slane %v5816, %v5967
  %v5969 = vsel %vm1912, %v5956, %v5964
  %v5970 = vsel %vm1912, %v5960, %v5968
  %v5971 = vsel %vm1913, %v5956, %v5964
  %v5972 = vsel %vm1913, %v5960, %v5968
  %v5973 = vmul.f32 %v5917, %v5949
  %v5974 = vmul.f32 %v5918, %v5950
  %v5975 = vmul.f32 %v5919, %v5951
  %v5976 = vmul.f32 %v5920, %v5952
  %v5977 = vmul.f32 %v5929, %v5969
  %v5978 = vmul.f32 %v5930, %v5970
  %v5979 = vmul.f32 %v5931, %v5971
  %v5980 = vmul.f32 %v5932, %v5972
  %v5981 = vsub.f32 %v5973, %v5977
  %v5982 = vsub.f32 %v5974, %v5978
  %v5983 = vsub.f32 %v5975, %v5979
  %v5984 = vsub.f32 %v5976, %v5980
  %v5985 = vmul.f32 %v5917, %v5969
  %v5986 = vmul.f32 %v5918, %v5970
  %v5987 = vmul.f32 %v5919, %v5971
  %v5988 = vmul.f32 %v5920, %v5972
  %v5989 = vmul.f32 %v5929, %v5949
  %v5990 = vmul.f32 %v5930, %v5950
  %v5991 = vmul.f32 %v5931, %v5951
  %v5992 = vmul.f32 %v5932, %v5952
  %v5993 = vadd.f32 %v5985, %v5989
  %v5994 = vadd.f32 %v5986, %v5990
  %v5995 = vadd.f32 %v5987, %v5991
  %v5996 = vadd.f32 %v5988, %v5992
  %v5997 = vlaneseq
  %v5998 = vshrl.u32 %v5997, 7
  %v5999 = vsub.s32 7, %v5998
  %v6000 = vrot.slane %v5821, %v5999
  %v6001 = vlaneseq
  %v6002 = vshrl.u32 %v6001, 7
  %v6003 = vsub.s32 7, %v6002
  %v6004 = vrot.slane %v5822, %v6003
  %v6005 = vlaneseq
  %v6006 = vshrl.u32 %v6005, 7
  %v6007 = vsub.s32 7, %v6006
  %v6008 = vrot.slane %v5797, %v6007
  %v6009 = vlaneseq
  %v6010 = vshrl.u32 %v6009, 7
  %v6011 = vsub.s32 7, %v6010
  %v6012 = vrot.slane %v5798, %v6011
  %v6013 = vsel %vm1980, %v6000, %v6008
  %v6014 = vsel %vm1980, %v6004, %v6012
  %v6015 = vsel %vm1981, %v6000, %v6008
  %v6016 = vsel %vm1981, %v6004, %v6012
  %v6017 = vlaneseq
  %v6018 = vshrl.u32 %v6017, 7
  %v6019 = vsub.s32 7, %v6018
  %v6020 = vrot.slane %v5827, %v6019
  %v6021 = vlaneseq
  %v6022 = vshrl.u32 %v6021, 7
  %v6023 = vsub.s32 7, %v6022
  %v6024 = vrot.slane %v5828, %v6023
  %v6025 = vlaneseq
  %v6026 = vshrl.u32 %v6025, 7
  %v6027 = vsub.s32 7, %v6026
  %v6028 = vrot.slane %v5815, %v6027
  %v6029 = vlaneseq
  %v6030 = vshrl.u32 %v6029, 7
  %v6031 = vsub.s32 7, %v6030
  %v6032 = vrot.slane %v5816, %v6031
  %v6033 = vsel %vm1980, %v6020, %v6028
  %v6034 = vsel %vm1980, %v6024, %v6032
  %v6035 = vsel %vm1981, %v6020, %v6028
  %v6036 = vsel %vm1981, %v6024, %v6032
  %v6037 = vmul.f32 %v5981, %v6013
  %v6038 = vmul.f32 %v5982, %v6014
  %v6039 = vmul.f32 %v5983, %v6015
  %v6040 = vmul.f32 %v5984, %v6016
  %v6041 = vmul.f32 %v5993, %v6033
  %v6042 = vmul.f32 %v5994, %v6034
  %v6043 = vmul.f32 %v5995, %v6035
  %v6044 = vmul.f32 %v5996, %v6036
  %v6045 = vsub.f32 %v6037, %v6041
  %v6046 = vsub.f32 %v6038, %v6042
  %v6047 = vsub.f32 %v6039, %v6043
  %v6048 = vsub.f32 %v6040, %v6044
  %v6049 = vmul.f32 %v5981, %v6033
  %v6050 = vmul.f32 %v5982, %v6034
  %v6051 = vmul.f32 %v5983, %v6035
  %v6052 = vmul.f32 %v5984, %v6036
  %v6053 = vmul.f32 %v5993, %v6013
  %v6054 = vmul.f32 %v5994, %v6014
  %v6055 = vmul.f32 %v5995, %v6015
  %v6056 = vmul.f32 %v5996, %v6016
  %v6057 = vadd.f32 %v6049, %v6053
  %v6058 = vadd.f32 %v6050, %v6054
  %v6059 = vadd.f32 %v6051, %v6055
  %v6060 = vadd.f32 %v6052, %v6056
  %6061 = vmatprep.subr.mxu0 0.0
  %6062 = vmatpush1.msra.mxu0 0.0
  %6063 = vmatprep.subr.mxu0 0.0
  %6064 = vmatpush1.msra.mxu0 0.0
  %6065 = vmatprep.subr.mxu0 0.0
  %6066 = vmatpush1.msra.mxu0 0.0
  %6067 = vmatprep.subr.mxu0 0.0
  %6068 = vmatpush1.msra.mxu0 0.0
  %6069 = vmatprep.subr.mxu0 0.0
  %6070 = vmatpush1.msra.mxu0 0.0
  %6071 = vmatprep.subr.mxu0 0.0
  %6072 = vmatpush1.msra.mxu0 0.0
  %6073 = vmatprep.subr.mxu0 0.0
  %6074 = vmatpush1.msra.mxu0 0.0
  %6075 = vmatprep.subr.mxu0 0.0
  %6076 = vmatpush1.msra.mxu0 0.0
  %6077 = vmatprep.subr.mxu0 0.0
  %6078 = vmatpush1.msra.mxu0 0.0
  %6079 = vmatprep.subr.mxu0 0.0
  %6080 = vmatpush1.msra.mxu0 0.0
  %6081 = vmatprep.subr.mxu0 0.0
  %6082 = vmatpush1.msra.mxu0 0.0
  %6083 = vmatprep.subr.mxu0 0.0
  %6084 = vmatpush1.msra.mxu0 0.0
  %6085 = vmatprep.subr.mxu0 %v6060
  %6086 = vmatpush1.msra.mxu0 %v6059
  %6087 = vmatprep.subr.mxu0 %v6058
  %6088 = vmatpush1.msra.mxu0 %v6057
  %6089 = vmatprep.subr.mxu0 %v6048
  %6090 = vmatpush1.msra.mxu0 %v6047
  %6091 = vmatprep.subr.mxu0 %v6046
  %6092 = vmatpush1.msra.mxu0 %v6045
  %6093 = vmatprep.subr.mxu0 0.0
  %6094 = vmatpush2.msra.mxu0 0.0
  %6095 = vmatprep.subr.mxu0 0.0
  %6096 = vmatpush2.msra.mxu0 0.0
  %6097 = vmatprep.subr.mxu0 0.0
  %6098 = vmatpush2.msra.mxu0 0.0
  %6099 = vmatprep.subr.mxu0 0.0
  %6100 = vmatpush2.msra.mxu0 0.0
  %6101 = vmatprep.subr.mxu0 0.0
  %6102 = vmatpush2.msra.mxu0 0.0
  %6103 = vmatprep.subr.mxu0 0.0
  %6104 = vmatpush2.msra.mxu0 0.0
  %6105 = vmatprep.subr.mxu0 0.0
  %6106 = vmatpush2.msra.mxu0 0.0
  %6107 = vmatprep.subr.mxu0 0.0
  %6108 = vmatpush2.msra.mxu0 0.0
  %6109 = vmatprep.subr.mxu0 0.0
  %6110 = vmatpush2.msra.mxu0 0.0
  %6111 = vmatprep.subr.mxu0 0.0
  %6112 = vmatpush2.msra.mxu0 0.0
  %6113 = vmatprep.subr.mxu0 0.0
  %6114 = vmatpush2.msra.mxu0 0.0
  %6115 = vmatprep.subr.mxu0 0.0
  %6116 = vmatpush2.msra.mxu0 0.0
  %6117 = vmatprep.subr.mxu0 0.0
  %6118 = vmatpush2.msra.mxu0 0.0
  %6119 = vmatprep.subr.mxu0 0.0
  %6120 = vmatpush2.msra.mxu0 0.0
  %6121 = vmatprep.subr.mxu0 0.0
  %6122 = vmatpush2.msra.mxu0 0.0
  %6123 = vmatprep.subr.mxu0 0.0
  %6124 = vmatpush2.msra.mxu0 0.0
  %6125 = vmatprep.mubr.f32.mxu0 0.0
  %6126 = vmatmul.mubr.f32.gmra.mxu0 %v2048
  %v6127 = vpop.f32.mrf.mxu0
  %v6128 = vadd.f32 0.0, %v6127
  %v6129 = vpop.f32.mrf.mxu0
  %v6130 = vadd.f32 0.0, %v6129
  %6131 = vmatprep.mubr.f32.mxu0 0.0
  %6132 = vmatmul.mubr.f32.gmra.mxu0 %v2051
  %v6133 = vpop.f32.mrf.mxu0
  %v6134 = vadd.f32 0.0, %v6133
  %v6135 = vpop.f32.mrf.mxu0
  %v6136 = vadd.f32 0.0, %v6135
  %6137 = vmatprep.mubr.f32.mxu0 0.0
  %6138 = vmatmul.mubr.f32.gmra.mxu0 %v2054
  %v6139 = vpop.f32.mrf.mxu0
  %v6140 = vadd.f32 0.0, %v6139
  %v6141 = vpop.f32.mrf.mxu0
  %v6142 = vadd.f32 0.0, %v6141
  %6143 = vmatprep.mubr.f32.mxu0 0.0
  %6144 = vmatmul.mubr.f32.gmra.mxu0 %v2057
  %v6145 = vpop.f32.mrf.mxu0
  %v6146 = vadd.f32 0.0, %v6145
  %v6147 = vpop.f32.mrf.mxu0
  %v6148 = vadd.f32 0.0, %v6147
  %6149 = vdwg.mxu0
  %v6150 = vmul.f32 %v6128, %v6128
  %v6151 = vmul.f32 %v6130, %v6130
  %v6152 = vmul.f32 %v6134, %v6134
  %v6153 = vmul.f32 %v6136, %v6136
  %v6154 = vmul.f32 %v6140, %v6140
  %v6155 = vmul.f32 %v6142, %v6142
  %v6156 = vmul.f32 %v6146, %v6146
  %v6157 = vmul.f32 %v6148, %v6148
  %6158 = vmatprep.subr.mxu0 0.0
  %6159 = vmatpush1.msra.mxu0 0.0
  %6160 = vmatprep.subr.mxu0 0.0
  %6161 = vmatpush1.msra.mxu0 0.0
  %6162 = vmatprep.subr.mxu0 0.0
  %6163 = vmatpush1.msra.mxu0 0.0
  %6164 = vmatprep.subr.mxu0 0.0
  %6165 = vmatpush1.msra.mxu0 0.0
  %6166 = vmatprep.subr.mxu0 0.0
  %6167 = vmatpush1.msra.mxu0 0.0
  %6168 = vmatprep.subr.mxu0 0.0
  %6169 = vmatpush1.msra.mxu0 0.0
  %6170 = vmatprep.subr.mxu0 0.0
  %6171 = vmatpush1.msra.mxu0 0.0
  %6172 = vmatprep.subr.mxu0 0.0
  %6173 = vmatpush1.msra.mxu0 0.0
  %6174 = vmatprep.subr.mxu0 0.0
  %6175 = vmatpush1.msra.mxu0 0.0
  %6176 = vmatprep.subr.mxu0 0.0
  %6177 = vmatpush1.msra.mxu0 0.0
  %6178 = vmatprep.subr.mxu0 0.0
  %6179 = vmatpush1.msra.mxu0 0.0
  %6180 = vmatprep.subr.mxu0 0.0
  %6181 = vmatpush1.msra.mxu0 0.0
  %6182 = vmatprep.subr.mxu0 %v6157
  %6183 = vmatpush1.msra.mxu0 %v6156
  %6184 = vmatprep.subr.mxu0 %v6155
  %6185 = vmatpush1.msra.mxu0 %v6154
  %6186 = vmatprep.subr.mxu0 %v6153
  %6187 = vmatpush1.msra.mxu0 %v6152
  %6188 = vmatprep.subr.mxu0 %v6151
  %6189 = vmatpush1.msra.mxu0 %v6150
  %6190 = vmatprep.subr.mxu0 0.0
  %6191 = vmatpush2.msra.mxu0 0.0
  %6192 = vmatprep.subr.mxu0 0.0
  %6193 = vmatpush2.msra.mxu0 0.0
  %6194 = vmatprep.subr.mxu0 0.0
  %6195 = vmatpush2.msra.mxu0 0.0
  %6196 = vmatprep.subr.mxu0 0.0
  %6197 = vmatpush2.msra.mxu0 0.0
  %6198 = vmatprep.subr.mxu0 0.0
  %6199 = vmatpush2.msra.mxu0 0.0
  %6200 = vmatprep.subr.mxu0 0.0
  %6201 = vmatpush2.msra.mxu0 0.0
  %6202 = vmatprep.subr.mxu0 0.0
  %6203 = vmatpush2.msra.mxu0 0.0
  %6204 = vmatprep.subr.mxu0 0.0
  %6205 = vmatpush2.msra.mxu0 0.0
  %6206 = vmatprep.subr.mxu0 0.0
  %6207 = vmatpush2.msra.mxu0 0.0
  %6208 = vmatprep.subr.mxu0 0.0
  %6209 = vmatpush2.msra.mxu0 0.0
  %6210 = vmatprep.subr.mxu0 0.0
  %6211 = vmatpush2.msra.mxu0 0.0
  %6212 = vmatprep.subr.mxu0 0.0
  %6213 = vmatpush2.msra.mxu0 0.0
  %6214 = vmatprep.subr.mxu0 0.0
  %6215 = vmatpush2.msra.mxu0 0.0
  %6216 = vmatprep.subr.mxu0 0.0
  %6217 = vmatpush2.msra.mxu0 0.0
  %6218 = vmatprep.subr.mxu0 0.0
  %6219 = vmatpush2.msra.mxu0 0.0
  %6220 = vmatprep.subr.mxu0 0.0
  %6221 = vmatpush2.msra.mxu0 0.0
  %6222 = vmatprep.mubr.f32.mxu0 0.0
  %6223 = vmatmul.mubr.f32.gmra.mxu0 %v2157
  %v6224 = vpop.f32.mrf.mxu0
  %v6225 = vadd.f32 0.0, %v6224
  %v6226 = vpop.f32.mrf.mxu0
  %v6227 = vadd.f32 0.0, %v6226
  %6228 = vmatprep.mubr.f32.mxu0 0.0
  %6229 = vmatmul.mubr.f32.gmra.mxu0 %v2160
  %v6230 = vpop.f32.mrf.mxu0
  %v6231 = vadd.f32 0.0, %v6230
  %v6232 = vpop.f32.mrf.mxu0
  %v6233 = vadd.f32 0.0, %v6232
  %6234 = vdwg.mxu0
  %v6235 = vadd.f32 %v6225, %v833
  %v6236 = vadd.f32 %v6227, %v834
  %v6237 = vadd.f32 %v6231, %v835
  %v6238 = vadd.f32 %v6233, %v836
  %v6239 = vmul.f32 %v6235, 0.5
  %v6240 = vmul.f32 %v6236, 0.5
  %v6241 = vmul.f32 %v6237, 0.5
  %v6242 = vmul.f32 %v6238, 0.5
  %v6243 = vand.u32 2147483647, %v6239
  %vm6244 = vcmp.le.f32.partialorder %v6243, 0.7853982
  %vm6245 = vcmp.lt.s32.totalorder %v6239, 0
  %v6246 = vand.u32 %v6239, 2139095040
  %v6247 = vshrl.u32 %v6246, 23
  %v6248 = vsub.s32 %v6247, 127
  %v6249 = vand.u32 2147483647, %v6239
  %v6250 = vand.u32 %v6249, 8388607
  %v6251 = vor.u32 %v6250, 8388608
  %v6252 = vsub.s32 0, %v6251
  %v6253 = vadd.s32 %v6248, 1
  %vm6254 = vcmp.gt.s32.totalorder %v6253, 0
  %v6255 = vsel %vm6254, %v6253, 0
  %v6256 = vshrl.u32 %v6255, 5
  %v6257 = vand.u32 %v6255, 31
  %v6258 = vsub.s32 32, %v6257
  %v6259 = vshrl.u32 683565275, %v6258
  %v6260 = vshll.u32 683565275, %v6257
  %v6261 = vshrl.u32 2475754826, %v6258
  %v6262 = vor.u32 %v6260, %v6261
  %v6263 = vshll.u32 2475754826, %v6257
  %v6264 = vshrl.u32 2131351028, %v6258
  %v6265 = vor.u32 %v6263, %v6264
  %v6266 = vshll.u32 2131351028, %v6257
  %v6267 = vshrl.u32 2102212464, %v6258
  %v6268 = vor.u32 %v6266, %v6267
  %v6269 = vshll.u32 2102212464, %v6257
  %v6270 = vshrl.u32 920167782, %v6258
  %v6271 = vor.u32 %v6269, %v6270
  %v6272 = vshll.u32 920167782, %v6257
  %v6273 = vshrl.u32 1326507024, %v6258
  %v6274 = vor.u32 %v6272, %v6273
  %vm6275 = vcmp.lt.s32.totalorder %v6256, 1
  %vm6276 = vcmp.lt.s32.totalorder %v6256, 2
  %vm6277 = vcmp.lt.s32.totalorder %v6256, 3
  %vm6278 = vcmp.lt.s32.totalorder %v6256, 4
  %v6279 = vsel %vm6275, %v6259, %v6262
  %v6280 = vsel %vm6278, %v6268, 2102212464
  %v6281 = vsel %vm6277, %v6265, %v6280
  %v6282 = vsel %vm6276, %v6279, %v6281
  %v6283 = vsel %vm6275, %v6262, %v6265
  %v6284 = vsel %vm6278, %v6271, 920167782
  %v6285 = vsel %vm6277, %v6268, %v6284
  %v6286 = vsel %vm6276, %v6283, %v6285
  %v6287 = vsel %vm6275, %v6265, %v6268
  %v6288 = vsel %vm6278, %v6274, 1326507024
  %v6289 = vsel %vm6277, %v6271, %v6288
  %v6290 = vsel %vm6276, %v6287, %v6289
  %v6291 = vshll.u32 %v6251, 8
  %v6292 = vmul.u32.u64.compose %v6291, %v6290
  %v6293 = vextract.low.u32 %v6292
  %v6294 = vextract.high.u32 %v6292
  %v6295 = vmul.u32.u64.compose %v6291, %v6286
  %v6296 = vextract.low.u32 %v6295
  %v6297 = vextract.high.u32 %v6295
  %v6298 = vmul.u32 %v6291, %v6282
  %v6299 = vadd.s32 %v6294, %v6296
  %vm6300 = vc.u32 %v6294, %v6296
  %v6301 = vadd.s32 %v6297, 1
  %v6302 = vsel %vm6300, %v6301, %v6297
  %v6303 = vadd.s32 %v6298, %v6302
  %v6304 = vadd.s32 %v6303, 536870912
  %v6305 = vshrl.u32 %v6304, 30
  %v6306 = vshll.u32 %v6305, 30
  %v6307 = vsub.s32 %v6303, %v6306
  %vm6308 = vcmp.lt.s32.totalorder %v6307, 0
  %v6309 = vsub.s32 0, %v6307
  %v6310 = vsel %vm6308, %v6309, %v6307
  %v6311 = vclz %v6310
  %v6312 = vsub.s32 %v6311, 2
  %vm6313 = vcmp.gt.s32.totalorder 0, %v6312
  %v6314 = vsel %vm6313, 0, %v6312
  %v6315 = vsub.s32 32, %v6314
  %v6316 = vshll.u32 %v6307, %v6314
  %v6317 = vshrl.u32 %v6299, %v6315
  %v6318 = vor.u32 %v6316, %v6317
  %v6319 = vsub.s32 4294967266, %v6314
  %v6320 = vadd.s32 %v6319, 127
  %v6321 = vshll.u32 %v6320, 23
  %v6322 = vor.u32 4788187, %v6321
  %v6323 = vand.u32 2147483647, %v6322
  %v6325 = vcvt.s32.f32 %v6318
  %v6326 = vmul.f32 %v6325, %v6323
  %v6327 = vxor.u32 %v6326, 2147483648
  %v6328 = vsel %vm6245, %v6327, %v6326
  %v6329 = vsub.s32 4, %v6305
  %v6330 = vsel %vm6245, %v6329, %v6305
  %v6331 = vsel %vm6244, %v6239, %v6328
  %v6332 = vsel %vm6244, 0, %v6330
  %v6333 = vcosq.f32.pop %v6331
  %v6334 = vsinq.f32.pop %v6331
  %vm6335 = vweird.f32 %v6239
  %v6336 = vand.u32 %v6332, 3
  %vm6337 = vcmp.lt.s32.totalorder %v6336, 2
  %vm6338 = vcmp.eq.s32.totalorder %v6336, 0
  %v6339 = vxor.u32 %v6334, 2147483648
  %v6340 = vsel %vm6338, %v6333, %v6339
  %vm6341 = vcmp.eq.s32.totalorder %v6336, 2
  %v6342 = vxor.u32 %v6333, 2147483648
  %v6343 = vsel %vm6341, %v6342, %v6334
  %v6344 = vsel %vm6337, %v6340, %v6343
  %v6345 = vsel %vm6335, nan, %v6344
  %v6346 = vand.u32 2147483647, %v6240
  %vm6347 = vcmp.le.f32.partialorder %v6346, 0.7853982
  %vm6348 = vcmp.lt.s32.totalorder %v6240, 0
  %v6349 = vand.u32 %v6240, 2139095040
  %v6350 = vshrl.u32 %v6349, 23
  %v6351 = vsub.s32 %v6350, 127
  %v6352 = vand.u32 2147483647, %v6240
  %v6353 = vand.u32 %v6352, 8388607
  %v6354 = vor.u32 %v6353, 8388608
  %v6355 = vsub.s32 0, %v6354
  %v6356 = vadd.s32 %v6351, 1
  %vm6357 = vcmp.gt.s32.totalorder %v6356, 0
  %v6358 = vsel %vm6357, %v6356, 0
  %v6359 = vshrl.u32 %v6358, 5
  %v6360 = vand.u32 %v6358, 31
  %v6361 = vsub.s32 32, %v6360
  %v6362 = vshrl.u32 683565275, %v6361
  %v6363 = vshll.u32 683565275, %v6360
  %v6364 = vshrl.u32 2475754826, %v6361
  %v6365 = vor.u32 %v6363, %v6364
  %v6366 = vshll.u32 2475754826, %v6360
  %v6367 = vshrl.u32 2131351028, %v6361
  %v6368 = vor.u32 %v6366, %v6367
  %v6369 = vshll.u32 2131351028, %v6360
  %v6370 = vshrl.u32 2102212464, %v6361
  %v6371 = vor.u32 %v6369, %v6370
  %v6372 = vshll.u32 2102212464, %v6360
  %v6373 = vshrl.u32 920167782, %v6361
  %v6374 = vor.u32 %v6372, %v6373
  %v6375 = vshll.u32 920167782, %v6360
  %v6376 = vshrl.u32 1326507024, %v6361
  %v6377 = vor.u32 %v6375, %v6376
  %vm6378 = vcmp.lt.s32.totalorder %v6359, 1
  %vm6379 = vcmp.lt.s32.totalorder %v6359, 2
  %vm6380 = vcmp.lt.s32.totalorder %v6359, 3
  %vm6381 = vcmp.lt.s32.totalorder %v6359, 4
  %v6382 = vsel %vm6378, %v6362, %v6365
  %v6383 = vsel %vm6381, %v6371, 2102212464
  %v6384 = vsel %vm6380, %v6368, %v6383
  %v6385 = vsel %vm6379, %v6382, %v6384
  %v6386 = vsel %vm6378, %v6365, %v6368
  %v6387 = vsel %vm6381, %v6374, 920167782
  %v6388 = vsel %vm6380, %v6371, %v6387
  %v6389 = vsel %vm6379, %v6386, %v6388
  %v6390 = vsel %vm6378, %v6368, %v6371
  %v6391 = vsel %vm6381, %v6377, 1326507024
  %v6392 = vsel %vm6380, %v6374, %v6391
  %v6393 = vsel %vm6379, %v6390, %v6392
  %v6394 = vshll.u32 %v6354, 8
  %v6395 = vmul.u32.u64.compose %v6394, %v6393
  %v6396 = vextract.low.u32 %v6395
  %v6397 = vextract.high.u32 %v6395
  %v6398 = vmul.u32.u64.compose %v6394, %v6389
  %v6399 = vextract.low.u32 %v6398
  %v6400 = vextract.high.u32 %v6398
  %v6401 = vmul.u32 %v6394, %v6385
  %v6402 = vadd.s32 %v6397, %v6399
  %vm6403 = vc.u32 %v6397, %v6399
  %v6404 = vadd.s32 %v6400, 1
  %v6405 = vsel %vm6403, %v6404, %v6400
  %v6406 = vadd.s32 %v6401, %v6405
  %v6407 = vadd.s32 %v6406, 536870912
  %v6408 = vshrl.u32 %v6407, 30
  %v6409 = vshll.u32 %v6408, 30
  %v6410 = vsub.s32 %v6406, %v6409
  %vm6411 = vcmp.lt.s32.totalorder %v6410, 0
  %v6412 = vsub.s32 0, %v6410
  %v6413 = vsel %vm6411, %v6412, %v6410
  %v6414 = vclz %v6413
  %v6415 = vsub.s32 %v6414, 2
  %vm6416 = vcmp.gt.s32.totalorder 0, %v6415
  %v6417 = vsel %vm6416, 0, %v6415
  %v6418 = vsub.s32 32, %v6417
  %v6419 = vshll.u32 %v6410, %v6417
  %v6420 = vshrl.u32 %v6402, %v6418
  %v6421 = vor.u32 %v6419, %v6420
  %v6422 = vsub.s32 4294967266, %v6417
  %v6423 = vadd.s32 %v6422, 127
  %v6424 = vshll.u32 %v6423, 23
  %v6425 = vor.u32 4788187, %v6424
  %v6426 = vand.u32 2147483647, %v6425
  %v6428 = vcvt.s32.f32 %v6421
  %v6429 = vmul.f32 %v6428, %v6426
  %v6430 = vxor.u32 %v6429, 2147483648
  %v6431 = vsel %vm6348, %v6430, %v6429
  %v6432 = vsub.s32 4, %v6408
  %v6433 = vsel %vm6348, %v6432, %v6408
  %v6434 = vsel %vm6347, %v6240, %v6431
  %v6435 = vsel %vm6347, 0, %v6433
  %v6436 = vcosq.f32.pop %v6434
  %v6437 = vsinq.f32.pop %v6434
  %vm6438 = vweird.f32 %v6240
  %v6439 = vand.u32 %v6435, 3
  %vm6440 = vcmp.lt.s32.totalorder %v6439, 2
  %vm6441 = vcmp.eq.s32.totalorder %v6439, 0
  %v6442 = vxor.u32 %v6437, 2147483648
  %v6443 = vsel %vm6441, %v6436, %v6442
  %vm6444 = vcmp.eq.s32.totalorder %v6439, 2
  %v6445 = vxor.u32 %v6436, 2147483648
  %v6446 = vsel %vm6444, %v6445, %v6437
  %v6447 = vsel %vm6440, %v6443, %v6446
  %v6448 = vsel %vm6438, nan, %v6447
  %v6449 = vand.u32 2147483647, %v6241
  %vm6450 = vcmp.le.f32.partialorder %v6449, 0.7853982
  %vm6451 = vcmp.lt.s32.totalorder %v6241, 0
  %v6452 = vand.u32 %v6241, 2139095040
  %v6453 = vshrl.u32 %v6452, 23
  %v6454 = vsub.s32 %v6453, 127
  %v6455 = vand.u32 2147483647, %v6241
  %v6456 = vand.u32 %v6455, 8388607
  %v6457 = vor.u32 %v6456, 8388608
  %v6458 = vsub.s32 0, %v6457
  %v6459 = vadd.s32 %v6454, 1
  %vm6460 = vcmp.gt.s32.totalorder %v6459, 0
  %v6461 = vsel %vm6460, %v6459, 0
  %v6462 = vshrl.u32 %v6461, 5
  %v6463 = vand.u32 %v6461, 31
  %v6464 = vsub.s32 32, %v6463
  %v6465 = vshrl.u32 683565275, %v6464
  %v6466 = vshll.u32 683565275, %v6463
  %v6467 = vshrl.u32 2475754826, %v6464
  %v6468 = vor.u32 %v6466, %v6467
  %v6469 = vshll.u32 2475754826, %v6463
  %v6470 = vshrl.u32 2131351028, %v6464
  %v6471 = vor.u32 %v6469, %v6470
  %v6472 = vshll.u32 2131351028, %v6463
  %v6473 = vshrl.u32 2102212464, %v6464
  %v6474 = vor.u32 %v6472, %v6473
  %v6475 = vshll.u32 2102212464, %v6463
  %v6476 = vshrl.u32 920167782, %v6464
  %v6477 = vor.u32 %v6475, %v6476
  %v6478 = vshll.u32 920167782, %v6463
  %v6479 = vshrl.u32 1326507024, %v6464
  %v6480 = vor.u32 %v6478, %v6479
  %vm6481 = vcmp.lt.s32.totalorder %v6462, 1
  %vm6482 = vcmp.lt.s32.totalorder %v6462, 2
  %vm6483 = vcmp.lt.s32.totalorder %v6462, 3
  %vm6484 = vcmp.lt.s32.totalorder %v6462, 4
  %v6485 = vsel %vm6481, %v6465, %v6468
  %v6486 = vsel %vm6484, %v6474, 2102212464
  %v6487 = vsel %vm6483, %v6471, %v6486
  %v6488 = vsel %vm6482, %v6485, %v6487
  %v6489 = vsel %vm6481, %v6468, %v6471
  %v6490 = vsel %vm6484, %v6477, 920167782
  %v6491 = vsel %vm6483, %v6474, %v6490
  %v6492 = vsel %vm6482, %v6489, %v6491
  %v6493 = vsel %vm6481, %v6471, %v6474
  %v6494 = vsel %vm6484, %v6480, 1326507024
  %v6495 = vsel %vm6483, %v6477, %v6494
  %v6496 = vsel %vm6482, %v6493, %v6495
  %v6497 = vshll.u32 %v6457, 8
  %v6498 = vmul.u32.u64.compose %v6497, %v6496
  %v6499 = vextract.low.u32 %v6498
  %v6500 = vextract.high.u32 %v6498
  %v6501 = vmul.u32.u64.compose %v6497, %v6492
  %v6502 = vextract.low.u32 %v6501
  %v6503 = vextract.high.u32 %v6501
  %v6504 = vmul.u32 %v6497, %v6488
  %v6505 = vadd.s32 %v6500, %v6502
  %vm6506 = vc.u32 %v6500, %v6502
  %v6507 = vadd.s32 %v6503, 1
  %v6508 = vsel %vm6506, %v6507, %v6503
  %v6509 = vadd.s32 %v6504, %v6508
  %v6510 = vadd.s32 %v6509, 536870912
  %v6511 = vshrl.u32 %v6510, 30
  %v6512 = vshll.u32 %v6511, 30
  %v6513 = vsub.s32 %v6509, %v6512
  %vm6514 = vcmp.lt.s32.totalorder %v6513, 0
  %v6515 = vsub.s32 0, %v6513
  %v6516 = vsel %vm6514, %v6515, %v6513
  %v6517 = vclz %v6516
  %v6518 = vsub.s32 %v6517, 2
  %vm6519 = vcmp.gt.s32.totalorder 0, %v6518
  %v6520 = vsel %vm6519, 0, %v6518
  %v6521 = vsub.s32 32, %v6520
  %v6522 = vshll.u32 %v6513, %v6520
  %v6523 = vshrl.u32 %v6505, %v6521
  %v6524 = vor.u32 %v6522, %v6523
  %v6525 = vsub.s32 4294967266, %v6520
  %v6526 = vadd.s32 %v6525, 127
  %v6527 = vshll.u32 %v6526, 23
  %v6528 = vor.u32 4788187, %v6527
  %v6529 = vand.u32 2147483647, %v6528
  %v6531 = vcvt.s32.f32 %v6524
  %v6532 = vmul.f32 %v6531, %v6529
  %v6533 = vxor.u32 %v6532, 2147483648
  %v6534 = vsel %vm6451, %v6533, %v6532
  %v6535 = vsub.s32 4, %v6511
  %v6536 = vsel %vm6451, %v6535, %v6511
  %v6537 = vsel %vm6450, %v6241, %v6534
  %v6538 = vsel %vm6450, 0, %v6536
  %v6539 = vcosq.f32.pop %v6537
  %v6540 = vsinq.f32.pop %v6537
  %vm6541 = vweird.f32 %v6241
  %v6542 = vand.u32 %v6538, 3
  %vm6543 = vcmp.lt.s32.totalorder %v6542, 2
  %vm6544 = vcmp.eq.s32.totalorder %v6542, 0
  %v6545 = vxor.u32 %v6540, 2147483648
  %v6546 = vsel %vm6544, %v6539, %v6545
  %vm6547 = vcmp.eq.s32.totalorder %v6542, 2
  %v6548 = vxor.u32 %v6539, 2147483648
  %v6549 = vsel %vm6547, %v6548, %v6540
  %v6550 = vsel %vm6543, %v6546, %v6549
  %v6551 = vsel %vm6541, nan, %v6550
  %v6552 = vand.u32 2147483647, %v6242
  %vm6553 = vcmp.le.f32.partialorder %v6552, 0.7853982
  %vm6554 = vcmp.lt.s32.totalorder %v6242, 0
  %v6555 = vand.u32 %v6242, 2139095040
  %v6556 = vshrl.u32 %v6555, 23
  %v6557 = vsub.s32 %v6556, 127
  %v6558 = vand.u32 2147483647, %v6242
  %v6559 = vand.u32 %v6558, 8388607
  %v6560 = vor.u32 %v6559, 8388608
  %v6561 = vsub.s32 0, %v6560
  %v6562 = vadd.s32 %v6557, 1
  %vm6563 = vcmp.gt.s32.totalorder %v6562, 0
  %v6564 = vsel %vm6563, %v6562, 0
  %v6565 = vshrl.u32 %v6564, 5
  %v6566 = vand.u32 %v6564, 31
  %v6567 = vsub.s32 32, %v6566
  %v6568 = vshrl.u32 683565275, %v6567
  %v6569 = vshll.u32 683565275, %v6566
  %v6570 = vshrl.u32 2475754826, %v6567
  %v6571 = vor.u32 %v6569, %v6570
  %v6572 = vshll.u32 2475754826, %v6566
  %v6573 = vshrl.u32 2131351028, %v6567
  %v6574 = vor.u32 %v6572, %v6573
  %v6575 = vshll.u32 2131351028, %v6566
  %v6576 = vshrl.u32 2102212464, %v6567
  %v6577 = vor.u32 %v6575, %v6576
  %v6578 = vshll.u32 2102212464, %v6566
  %v6579 = vshrl.u32 920167782, %v6567
  %v6580 = vor.u32 %v6578, %v6579
  %v6581 = vshll.u32 920167782, %v6566
  %v6582 = vshrl.u32 1326507024, %v6567
  %v6583 = vor.u32 %v6581, %v6582
  %vm6584 = vcmp.lt.s32.totalorder %v6565, 1
  %vm6585 = vcmp.lt.s32.totalorder %v6565, 2
  %vm6586 = vcmp.lt.s32.totalorder %v6565, 3
  %vm6587 = vcmp.lt.s32.totalorder %v6565, 4
  %v6588 = vsel %vm6584, %v6568, %v6571
  %v6589 = vsel %vm6587, %v6577, 2102212464
  %v6590 = vsel %vm6586, %v6574, %v6589
  %v6591 = vsel %vm6585, %v6588, %v6590
  %v6592 = vsel %vm6584, %v6571, %v6574
  %v6593 = vsel %vm6587, %v6580, 920167782
  %v6594 = vsel %vm6586, %v6577, %v6593
  %v6595 = vsel %vm6585, %v6592, %v6594
  %v6596 = vsel %vm6584, %v6574, %v6577
  %v6597 = vsel %vm6587, %v6583, 1326507024
  %v6598 = vsel %vm6586, %v6580, %v6597
  %v6599 = vsel %vm6585, %v6596, %v6598
  %v6600 = vshll.u32 %v6560, 8
  %v6601 = vmul.u32.u64.compose %v6600, %v6599
  %v6602 = vextract.low.u32 %v6601
  %v6603 = vextract.high.u32 %v6601
  %v6604 = vmul.u32.u64.compose %v6600, %v6595
  %v6605 = vextract.low.u32 %v6604
  %v6606 = vextract.high.u32 %v6604
  %v6607 = vmul.u32 %v6600, %v6591
  %v6608 = vadd.s32 %v6603, %v6605
  %vm6609 = vc.u32 %v6603, %v6605
  %v6610 = vadd.s32 %v6606, 1
  %v6611 = vsel %vm6609, %v6610, %v6606
  %v6612 = vadd.s32 %v6607, %v6611
  %v6613 = vadd.s32 %v6612, 536870912
  %v6614 = vshrl.u32 %v6613, 30
  %v6615 = vshll.u32 %v6614, 30
  %v6616 = vsub.s32 %v6612, %v6615
  %vm6617 = vcmp.lt.s32.totalorder %v6616, 0
  %v6618 = vsub.s32 0, %v6616
  %v6619 = vsel %vm6617, %v6618, %v6616
  %v6620 = vclz %v6619
  %v6621 = vsub.s32 %v6620, 2
  %vm6622 = vcmp.gt.s32.totalorder 0, %v6621
  %v6623 = vsel %vm6622, 0, %v6621
  %v6624 = vsub.s32 32, %v6623
  %v6625 = vshll.u32 %v6616, %v6623
  %v6626 = vshrl.u32 %v6608, %v6624
  %v6627 = vor.u32 %v6625, %v6626
  %v6628 = vsub.s32 4294967266, %v6623
  %v6629 = vadd.s32 %v6628, 127
  %v6630 = vshll.u32 %v6629, 23
  %v6631 = vor.u32 4788187, %v6630
  %v6632 = vand.u32 2147483647, %v6631
  %v6634 = vcvt.s32.f32 %v6627
  %v6635 = vmul.f32 %v6634, %v6632
  %v6636 = vxor.u32 %v6635, 2147483648
  %v6637 = vsel %vm6554, %v6636, %v6635
  %v6638 = vsub.s32 4, %v6614
  %v6639 = vsel %vm6554, %v6638, %v6614
  %v6640 = vsel %vm6553, %v6242, %v6637
  %v6641 = vsel %vm6553, 0, %v6639
  %v6642 = vcosq.f32.pop %v6640
  %v6643 = vsinq.f32.pop %v6640
  %vm6644 = vweird.f32 %v6242
  %v6645 = vand.u32 %v6641, 3
  %vm6646 = vcmp.lt.s32.totalorder %v6645, 2
  %vm6647 = vcmp.eq.s32.totalorder %v6645, 0
  %v6648 = vxor.u32 %v6643, 2147483648
  %v6649 = vsel %vm6647, %v6642, %v6648
  %vm6650 = vcmp.eq.s32.totalorder %v6645, 2
  %v6651 = vxor.u32 %v6642, 2147483648
  %v6652 = vsel %vm6650, %v6651, %v6643
  %v6653 = vsel %vm6646, %v6649, %v6652
  %v6654 = vsel %vm6644, nan, %v6653
  %v6655 = vand.u32 2147483647, %v6239
  %vm6656 = vcmp.le.f32.partialorder %v6655, 0.7853982
  %vm6657 = vcmp.lt.s32.totalorder %v6239, 0
  %v6658 = vand.u32 %v6239, 2139095040
  %v6659 = vshrl.u32 %v6658, 23
  %v6660 = vsub.s32 %v6659, 127
  %v6661 = vand.u32 2147483647, %v6239
  %v6662 = vand.u32 %v6661, 8388607
  %v6663 = vor.u32 %v6662, 8388608
  %v6664 = vsub.s32 0, %v6663
  %v6665 = vadd.s32 %v6660, 1
  %vm6666 = vcmp.gt.s32.totalorder %v6665, 0
  %v6667 = vsel %vm6666, %v6665, 0
  %v6668 = vshrl.u32 %v6667, 5
  %v6669 = vand.u32 %v6667, 31
  %v6670 = vsub.s32 32, %v6669
  %v6671 = vshrl.u32 683565275, %v6670
  %v6672 = vshll.u32 683565275, %v6669
  %v6673 = vshrl.u32 2475754826, %v6670
  %v6674 = vor.u32 %v6672, %v6673
  %v6675 = vshll.u32 2475754826, %v6669
  %v6676 = vshrl.u32 2131351028, %v6670
  %v6677 = vor.u32 %v6675, %v6676
  %v6678 = vshll.u32 2131351028, %v6669
  %v6679 = vshrl.u32 2102212464, %v6670
  %v6680 = vor.u32 %v6678, %v6679
  %v6681 = vshll.u32 2102212464, %v6669
  %v6682 = vshrl.u32 920167782, %v6670
  %v6683 = vor.u32 %v6681, %v6682
  %v6684 = vshll.u32 920167782, %v6669
  %v6685 = vshrl.u32 1326507024, %v6670
  %v6686 = vor.u32 %v6684, %v6685
  %vm6687 = vcmp.lt.s32.totalorder %v6668, 1
  %vm6688 = vcmp.lt.s32.totalorder %v6668, 2
  %vm6689 = vcmp.lt.s32.totalorder %v6668, 3
  %vm6690 = vcmp.lt.s32.totalorder %v6668, 4
  %v6691 = vsel %vm6687, %v6671, %v6674
  %v6692 = vsel %vm6690, %v6680, 2102212464
  %v6693 = vsel %vm6689, %v6677, %v6692
  %v6694 = vsel %vm6688, %v6691, %v6693
  %v6695 = vsel %vm6687, %v6674, %v6677
  %v6696 = vsel %vm6690, %v6683, 920167782
  %v6697 = vsel %vm6689, %v6680, %v6696
  %v6698 = vsel %vm6688, %v6695, %v6697
  %v6699 = vsel %vm6687, %v6677, %v6680
  %v6700 = vsel %vm6690, %v6686, 1326507024
  %v6701 = vsel %vm6689, %v6683, %v6700
  %v6702 = vsel %vm6688, %v6699, %v6701
  %v6703 = vshll.u32 %v6663, 8
  %v6704 = vmul.u32.u64.compose %v6703, %v6702
  %v6705 = vextract.low.u32 %v6704
  %v6706 = vextract.high.u32 %v6704
  %v6707 = vmul.u32.u64.compose %v6703, %v6698
  %v6708 = vextract.low.u32 %v6707
  %v6709 = vextract.high.u32 %v6707
  %v6710 = vmul.u32 %v6703, %v6694
  %v6711 = vadd.s32 %v6706, %v6708
  %vm6712 = vc.u32 %v6706, %v6708
  %v6713 = vadd.s32 %v6709, 1
  %v6714 = vsel %vm6712, %v6713, %v6709
  %v6715 = vadd.s32 %v6710, %v6714
  %v6716 = vadd.s32 %v6715, 536870912
  %v6717 = vshrl.u32 %v6716, 30
  %v6718 = vshll.u32 %v6717, 30
  %v6719 = vsub.s32 %v6715, %v6718
  %vm6720 = vcmp.lt.s32.totalorder %v6719, 0
  %v6721 = vsub.s32 0, %v6719
  %v6722 = vsel %vm6720, %v6721, %v6719
  %v6723 = vclz %v6722
  %v6724 = vsub.s32 %v6723, 2
  %vm6725 = vcmp.gt.s32.totalorder 0, %v6724
  %v6726 = vsel %vm6725, 0, %v6724
  %v6727 = vsub.s32 32, %v6726
  %v6728 = vshll.u32 %v6719, %v6726
  %v6729 = vshrl.u32 %v6711, %v6727
  %v6730 = vor.u32 %v6728, %v6729
  %v6731 = vsub.s32 4294967266, %v6726
  %v6732 = vadd.s32 %v6731, 127
  %v6733 = vshll.u32 %v6732, 23
  %v6734 = vor.u32 4788187, %v6733
  %v6735 = vand.u32 2147483647, %v6734
  %v6737 = vcvt.s32.f32 %v6730
  %v6738 = vmul.f32 %v6737, %v6735
  %v6739 = vxor.u32 %v6738, 2147483648
  %v6740 = vsel %vm6657, %v6739, %v6738
  %v6741 = vsub.s32 4, %v6717
  %v6742 = vsel %vm6657, %v6741, %v6717
  %v6743 = vsel %vm6656, %v6239, %v6740
  %v6744 = vsel %vm6656, 0, %v6742
  %v6745 = vcosq.f32.pop %v6743
  %v6746 = vsinq.f32.pop %v6743
  %vm6747 = vweird.f32 %v6239
  %v6748 = vadd.s32 %v6744, 3
  %v6749 = vand.u32 %v6748, 3
  %vm6750 = vcmp.lt.s32.totalorder %v6749, 2
  %vm6751 = vcmp.eq.s32.totalorder %v6749, 0
  %v6752 = vxor.u32 %v6746, 2147483648
  %v6753 = vsel %vm6751, %v6745, %v6752
  %vm6754 = vcmp.eq.s32.totalorder %v6749, 2
  %v6755 = vxor.u32 %v6745, 2147483648
  %v6756 = vsel %vm6754, %v6755, %v6746
  %v6757 = vsel %vm6750, %v6753, %v6756
  %v6758 = vsel %vm6747, nan, %v6757
  %v6759 = vand.u32 2147483647, %v6240
  %vm6760 = vcmp.le.f32.partialorder %v6759, 0.7853982
  %vm6761 = vcmp.lt.s32.totalorder %v6240, 0
  %v6762 = vand.u32 %v6240, 2139095040
  %v6763 = vshrl.u32 %v6762, 23
  %v6764 = vsub.s32 %v6763, 127
  %v6765 = vand.u32 2147483647, %v6240
  %v6766 = vand.u32 %v6765, 8388607
  %v6767 = vor.u32 %v6766, 8388608
  %v6768 = vsub.s32 0, %v6767
  %v6769 = vadd.s32 %v6764, 1
  %vm6770 = vcmp.gt.s32.totalorder %v6769, 0
  %v6771 = vsel %vm6770, %v6769, 0
  %v6772 = vshrl.u32 %v6771, 5
  %v6773 = vand.u32 %v6771, 31
  %v6774 = vsub.s32 32, %v6773
  %v6775 = vshrl.u32 683565275, %v6774
  %v6776 = vshll.u32 683565275, %v6773
  %v6777 = vshrl.u32 2475754826, %v6774
  %v6778 = vor.u32 %v6776, %v6777
  %v6779 = vshll.u32 2475754826, %v6773
  %v6780 = vshrl.u32 2131351028, %v6774
  %v6781 = vor.u32 %v6779, %v6780
  %v6782 = vshll.u32 2131351028, %v6773
  %v6783 = vshrl.u32 2102212464, %v6774
  %v6784 = vor.u32 %v6782, %v6783
  %v6785 = vshll.u32 2102212464, %v6773
  %v6786 = vshrl.u32 920167782, %v6774
  %v6787 = vor.u32 %v6785, %v6786
  %v6788 = vshll.u32 920167782, %v6773
  %v6789 = vshrl.u32 1326507024, %v6774
  %v6790 = vor.u32 %v6788, %v6789
  %vm6791 = vcmp.lt.s32.totalorder %v6772, 1
  %vm6792 = vcmp.lt.s32.totalorder %v6772, 2
  %vm6793 = vcmp.lt.s32.totalorder %v6772, 3
  %vm6794 = vcmp.lt.s32.totalorder %v6772, 4
  %v6795 = vsel %vm6791, %v6775, %v6778
  %v6796 = vsel %vm6794, %v6784, 2102212464
  %v6797 = vsel %vm6793, %v6781, %v6796
  %v6798 = vsel %vm6792, %v6795, %v6797
  %v6799 = vsel %vm6791, %v6778, %v6781
  %v6800 = vsel %vm6794, %v6787, 920167782
  %v6801 = vsel %vm6793, %v6784, %v6800
  %v6802 = vsel %vm6792, %v6799, %v6801
  %v6803 = vsel %vm6791, %v6781, %v6784
  %v6804 = vsel %vm6794, %v6790, 1326507024
  %v6805 = vsel %vm6793, %v6787, %v6804
  %v6806 = vsel %vm6792, %v6803, %v6805
  %v6807 = vshll.u32 %v6767, 8
  %v6808 = vmul.u32.u64.compose %v6807, %v6806
  %v6809 = vextract.low.u32 %v6808
  %v6810 = vextract.high.u32 %v6808
  %v6811 = vmul.u32.u64.compose %v6807, %v6802
  %v6812 = vextract.low.u32 %v6811
  %v6813 = vextract.high.u32 %v6811
  %v6814 = vmul.u32 %v6807, %v6798
  %v6815 = vadd.s32 %v6810, %v6812
  %vm6816 = vc.u32 %v6810, %v6812
  %v6817 = vadd.s32 %v6813, 1
  %v6818 = vsel %vm6816, %v6817, %v6813
  %v6819 = vadd.s32 %v6814, %v6818
  %v6820 = vadd.s32 %v6819, 536870912
  %v6821 = vshrl.u32 %v6820, 30
  %v6822 = vshll.u32 %v6821, 30
  %v6823 = vsub.s32 %v6819, %v6822
  %vm6824 = vcmp.lt.s32.totalorder %v6823, 0
  %v6825 = vsub.s32 0, %v6823
  %v6826 = vsel %vm6824, %v6825, %v6823
  %v6827 = vclz %v6826
  %v6828 = vsub.s32 %v6827, 2
  %vm6829 = vcmp.gt.s32.totalorder 0, %v6828
  %v6830 = vsel %vm6829, 0, %v6828
  %v6831 = vsub.s32 32, %v6830
  %v6832 = vshll.u32 %v6823, %v6830
  %v6833 = vshrl.u32 %v6815, %v6831
  %v6834 = vor.u32 %v6832, %v6833
  %v6835 = vsub.s32 4294967266, %v6830
  %v6836 = vadd.s32 %v6835, 127
  %v6837 = vshll.u32 %v6836, 23
  %v6838 = vor.u32 4788187, %v6837
  %v6839 = vand.u32 2147483647, %v6838
  %v6841 = vcvt.s32.f32 %v6834
  %v6842 = vmul.f32 %v6841, %v6839
  %v6843 = vxor.u32 %v6842, 2147483648
  %v6844 = vsel %vm6761, %v6843, %v6842
  %v6845 = vsub.s32 4, %v6821
  %v6846 = vsel %vm6761, %v6845, %v6821
  %v6847 = vsel %vm6760, %v6240, %v6844
  %v6848 = vsel %vm6760, 0, %v6846
  %v6849 = vcosq.f32.pop %v6847
  %v6850 = vsinq.f32.pop %v6847
  %vm6851 = vweird.f32 %v6240
  %v6852 = vadd.s32 %v6848, 3
  %v6853 = vand.u32 %v6852, 3
  %vm6854 = vcmp.lt.s32.totalorder %v6853, 2
  %vm6855 = vcmp.eq.s32.totalorder %v6853, 0
  %v6856 = vxor.u32 %v6850, 2147483648
  %v6857 = vsel %vm6855, %v6849, %v6856
  %vm6858 = vcmp.eq.s32.totalorder %v6853, 2
  %v6859 = vxor.u32 %v6849, 2147483648
  %v6860 = vsel %vm6858, %v6859, %v6850
  %v6861 = vsel %vm6854, %v6857, %v6860
  %v6862 = vsel %vm6851, nan, %v6861
  %v6863 = vand.u32 2147483647, %v6241
  %vm6864 = vcmp.le.f32.partialorder %v6863, 0.7853982
  %vm6865 = vcmp.lt.s32.totalorder %v6241, 0
  %v6866 = vand.u32 %v6241, 2139095040
  %v6867 = vshrl.u32 %v6866, 23
  %v6868 = vsub.s32 %v6867, 127
  %v6869 = vand.u32 2147483647, %v6241
  %v6870 = vand.u32 %v6869, 8388607
  %v6871 = vor.u32 %v6870, 8388608
  %v6872 = vsub.s32 0, %v6871
  %v6873 = vadd.s32 %v6868, 1
  %vm6874 = vcmp.gt.s32.totalorder %v6873, 0
  %v6875 = vsel %vm6874, %v6873, 0
  %v6876 = vshrl.u32 %v6875, 5
  %v6877 = vand.u32 %v6875, 31
  %v6878 = vsub.s32 32, %v6877
  %v6879 = vshrl.u32 683565275, %v6878
  %v6880 = vshll.u32 683565275, %v6877
  %v6881 = vshrl.u32 2475754826, %v6878
  %v6882 = vor.u32 %v6880, %v6881
  %v6883 = vshll.u32 2475754826, %v6877
  %v6884 = vshrl.u32 2131351028, %v6878
  %v6885 = vor.u32 %v6883, %v6884
  %v6886 = vshll.u32 2131351028, %v6877
  %v6887 = vshrl.u32 2102212464, %v6878
  %v6888 = vor.u32 %v6886, %v6887
  %v6889 = vshll.u32 2102212464, %v6877
  %v6890 = vshrl.u32 920167782, %v6878
  %v6891 = vor.u32 %v6889, %v6890
  %v6892 = vshll.u32 920167782, %v6877
  %v6893 = vshrl.u32 1326507024, %v6878
  %v6894 = vor.u32 %v6892, %v6893
  %vm6895 = vcmp.lt.s32.totalorder %v6876, 1
  %vm6896 = vcmp.lt.s32.totalorder %v6876, 2
  %vm6897 = vcmp.lt.s32.totalorder %v6876, 3
  %vm6898 = vcmp.lt.s32.totalorder %v6876, 4
  %v6899 = vsel %vm6895, %v6879, %v6882
  %v6900 = vsel %vm6898, %v6888, 2102212464
  %v6901 = vsel %vm6897, %v6885, %v6900
  %v6902 = vsel %vm6896, %v6899, %v6901
  %v6903 = vsel %vm6895, %v6882, %v6885
  %v6904 = vsel %vm6898, %v6891, 920167782
  %v6905 = vsel %vm6897, %v6888, %v6904
  %v6906 = vsel %vm6896, %v6903, %v6905
  %v6907 = vsel %vm6895, %v6885, %v6888
  %v6908 = vsel %vm6898, %v6894, 1326507024
  %v6909 = vsel %vm6897, %v6891, %v6908
  %v6910 = vsel %vm6896, %v6907, %v6909
  %v6911 = vshll.u32 %v6871, 8
  %v6912 = vmul.u32.u64.compose %v6911, %v6910
  %v6913 = vextract.low.u32 %v6912
  %v6914 = vextract.high.u32 %v6912
  %v6915 = vmul.u32.u64.compose %v6911, %v6906
  %v6916 = vextract.low.u32 %v6915
  %v6917 = vextract.high.u32 %v6915
  %v6918 = vmul.u32 %v6911, %v6902
  %v6919 = vadd.s32 %v6914, %v6916
  %vm6920 = vc.u32 %v6914, %v6916
  %v6921 = vadd.s32 %v6917, 1
  %v6922 = vsel %vm6920, %v6921, %v6917
  %v6923 = vadd.s32 %v6918, %v6922
  %v6924 = vadd.s32 %v6923, 536870912
  %v6925 = vshrl.u32 %v6924, 30
  %v6926 = vshll.u32 %v6925, 30
  %v6927 = vsub.s32 %v6923, %v6926
  %vm6928 = vcmp.lt.s32.totalorder %v6927, 0
  %v6929 = vsub.s32 0, %v6927
  %v6930 = vsel %vm6928, %v6929, %v6927
  %v6931 = vclz %v6930
  %v6932 = vsub.s32 %v6931, 2
  %vm6933 = vcmp.gt.s32.totalorder 0, %v6932
  %v6934 = vsel %vm6933, 0, %v6932
  %v6935 = vsub.s32 32, %v6934
  %v6936 = vshll.u32 %v6927, %v6934
  %v6937 = vshrl.u32 %v6919, %v6935
  %v6938 = vor.u32 %v6936, %v6937
  %v6939 = vsub.s32 4294967266, %v6934
  %v6940 = vadd.s32 %v6939, 127
  %v6941 = vshll.u32 %v6940, 23
  %v6942 = vor.u32 4788187, %v6941
  %v6943 = vand.u32 2147483647, %v6942
  %v6945 = vcvt.s32.f32 %v6938
  %v6946 = vmul.f32 %v6945, %v6943
  %v6947 = vxor.u32 %v6946, 2147483648
  %v6948 = vsel %vm6865, %v6947, %v6946
  %v6949 = vsub.s32 4, %v6925
  %v6950 = vsel %vm6865, %v6949, %v6925
  %v6951 = vsel %vm6864, %v6241, %v6948
  %v6952 = vsel %vm6864, 0, %v6950
  %v6953 = vcosq.f32.pop %v6951
  %v6954 = vsinq.f32.pop %v6951
  %vm6955 = vweird.f32 %v6241
  %v6956 = vadd.s32 %v6952, 3
  %v6957 = vand.u32 %v6956, 3
  %vm6958 = vcmp.lt.s32.totalorder %v6957, 2
  %vm6959 = vcmp.eq.s32.totalorder %v6957, 0
  %v6960 = vxor.u32 %v6954, 2147483648
  %v6961 = vsel %vm6959, %v6953, %v6960
  %vm6962 = vcmp.eq.s32.totalorder %v6957, 2
  %v6963 = vxor.u32 %v6953, 2147483648
  %v6964 = vsel %vm6962, %v6963, %v6954
  %v6965 = vsel %vm6958, %v6961, %v6964
  %v6966 = vsel %vm6955, nan, %v6965
  %v6967 = vand.u32 2147483647, %v6242
  %vm6968 = vcmp.le.f32.partialorder %v6967, 0.7853982
  %vm6969 = vcmp.lt.s32.totalorder %v6242, 0
  %v6970 = vand.u32 %v6242, 2139095040
  %v6971 = vshrl.u32 %v6970, 23
  %v6972 = vsub.s32 %v6971, 127
  %v6973 = vand.u32 2147483647, %v6242
  %v6974 = vand.u32 %v6973, 8388607
  %v6975 = vor.u32 %v6974, 8388608
  %v6976 = vsub.s32 0, %v6975
  %v6977 = vadd.s32 %v6972, 1
  %vm6978 = vcmp.gt.s32.totalorder %v6977, 0
  %v6979 = vsel %vm6978, %v6977, 0
  %v6980 = vshrl.u32 %v6979, 5
  %v6981 = vand.u32 %v6979, 31
  %v6982 = vsub.s32 32, %v6981
  %v6983 = vshrl.u32 683565275, %v6982
  %v6984 = vshll.u32 683565275, %v6981
  %v6985 = vshrl.u32 2475754826, %v6982
  %v6986 = vor.u32 %v6984, %v6985
  %v6987 = vshll.u32 2475754826, %v6981
  %v6988 = vshrl.u32 2131351028, %v6982
  %v6989 = vor.u32 %v6987, %v6988
  %v6990 = vshll.u32 2131351028, %v6981
  %v6991 = vshrl.u32 2102212464, %v6982
  %v6992 = vor.u32 %v6990, %v6991
  %v6993 = vshll.u32 2102212464, %v6981
  %v6994 = vshrl.u32 920167782, %v6982
  %v6995 = vor.u32 %v6993, %v6994
  %v6996 = vshll.u32 920167782, %v6981
  %v6997 = vshrl.u32 1326507024, %v6982
  %v6998 = vor.u32 %v6996, %v6997
  %vm6999 = vcmp.lt.s32.totalorder %v6980, 1
  %vm7000 = vcmp.lt.s32.totalorder %v6980, 2
  %vm7001 = vcmp.lt.s32.totalorder %v6980, 3
  %vm7002 = vcmp.lt.s32.totalorder %v6980, 4
  %v7003 = vsel %vm6999, %v6983, %v6986
  %v7004 = vsel %vm7002, %v6992, 2102212464
  %v7005 = vsel %vm7001, %v6989, %v7004
  %v7006 = vsel %vm7000, %v7003, %v7005
  %v7007 = vsel %vm6999, %v6986, %v6989
  %v7008 = vsel %vm7002, %v6995, 920167782
  %v7009 = vsel %vm7001, %v6992, %v7008
  %v7010 = vsel %vm7000, %v7007, %v7009
  %v7011 = vsel %vm6999, %v6989, %v6992
  %v7012 = vsel %vm7002, %v6998, 1326507024
  %v7013 = vsel %vm7001, %v6995, %v7012
  %v7014 = vsel %vm7000, %v7011, %v7013
  %v7015 = vshll.u32 %v6975, 8
  %v7016 = vmul.u32.u64.compose %v7015, %v7014
  %v7017 = vextract.low.u32 %v7016
  %v7018 = vextract.high.u32 %v7016
  %v7019 = vmul.u32.u64.compose %v7015, %v7010
  %v7020 = vextract.low.u32 %v7019
  %v7021 = vextract.high.u32 %v7019
  %v7022 = vmul.u32 %v7015, %v7006
  %v7023 = vadd.s32 %v7018, %v7020
  %vm7024 = vc.u32 %v7018, %v7020
  %v7025 = vadd.s32 %v7021, 1
  %v7026 = vsel %vm7024, %v7025, %v7021
  %v7027 = vadd.s32 %v7022, %v7026
  %v7028 = vadd.s32 %v7027, 536870912
  %v7029 = vshrl.u32 %v7028, 30
  %v7030 = vshll.u32 %v7029, 30
  %v7031 = vsub.s32 %v7027, %v7030
  %vm7032 = vcmp.lt.s32.totalorder %v7031, 0
  %v7033 = vsub.s32 0, %v7031
  %v7034 = vsel %vm7032, %v7033, %v7031
  %v7035 = vclz %v7034
  %v7036 = vsub.s32 %v7035, 2
  %vm7037 = vcmp.gt.s32.totalorder 0, %v7036
  %v7038 = vsel %vm7037, 0, %v7036
  %v7039 = vsub.s32 32, %v7038
  %v7040 = vshll.u32 %v7031, %v7038
  %v7041 = vshrl.u32 %v7023, %v7039
  %v7042 = vor.u32 %v7040, %v7041
  %v7043 = vsub.s32 4294967266, %v7038
  %v7044 = vadd.s32 %v7043, 127
  %v7045 = vshll.u32 %v7044, 23
  %v7046 = vor.u32 4788187, %v7045
  %v7047 = vand.u32 2147483647, %v7046
  %v7049 = vcvt.s32.f32 %v7042
  %v7050 = vmul.f32 %v7049, %v7047
  %v7051 = vxor.u32 %v7050, 2147483648
  %v7052 = vsel %vm6969, %v7051, %v7050
  %v7053 = vsub.s32 4, %v7029
  %v7054 = vsel %vm6969, %v7053, %v7029
  %v7055 = vsel %vm6968, %v6242, %v7052
  %v7056 = vsel %vm6968, 0, %v7054
  %v7057 = vcosq.f32.pop %v7055
  %v7058 = vsinq.f32.pop %v7055
  %vm7059 = vweird.f32 %v6242
  %v7060 = vadd.s32 %v7056, 3
  %v7061 = vand.u32 %v7060, 3
  %vm7062 = vcmp.lt.s32.totalorder %v7061, 2
  %vm7063 = vcmp.eq.s32.totalorder %v7061, 0
  %v7064 = vxor.u32 %v7058, 2147483648
  %v7065 = vsel %vm7063, %v7057, %v7064
  %vm7066 = vcmp.eq.s32.totalorder %v7061, 2
  %v7067 = vxor.u32 %v7057, 2147483648
  %v7068 = vsel %vm7066, %v7067, %v7058
  %v7069 = vsel %vm7062, %v7065, %v7068
  %v7070 = vsel %vm7059, nan, %v7069
  %v7073 = vrot.slane %v6345, 4
  %v7074 = vrot.slane %v6448, 4
  %v7077 = vmul.f32 %v6345, %v7073
  %v7078 = vmul.f32 %v6448, %v7074
  %v7081 = vrot.slane %v6758, 4
  %v7082 = vrot.slane %v6862, 4
  %v7085 = vmul.f32 %v6345, %v7081
  %v7086 = vmul.f32 %v6448, %v7082
  %v7087 = vsub.f32 0.0, %v7085
  %v7088 = vsub.f32 0.0, %v7086
  %v7089 = vmul.f32 %v6758, %v7073
  %v7090 = vmul.f32 %v6862, %v7074
  %v7091 = vmul.f32 %v6758, %v7081
  %v7092 = vmul.f32 %v6862, %v7082
  %v7093 = vmul.f32 %v6551, %v7077
  %v7094 = vmul.f32 %v6654, %v7078
  %v7095 = vmul.f32 %v6966, %v7091
  %v7096 = vmul.f32 %v7070, %v7092
  %v7097 = vadd.f32 %v7093, %v7095
  %v7098 = vadd.f32 %v7094, %v7096
  %v7099 = vmul.f32 %v6551, %v7087
  %v7100 = vmul.f32 %v6654, %v7088
  %v7101 = vmul.f32 %v6966, %v7089
  %v7102 = vmul.f32 %v7070, %v7090
  %v7103 = vsub.f32 %v7099, %v7101
  %v7104 = vsub.f32 %v7100, %v7102
  %v7105 = vmul.f32 %v6966, %v7087
  %v7106 = vmul.f32 %v7070, %v7088
  %v7107 = vmul.f32 %v6551, %v7089
  %v7108 = vmul.f32 %v6654, %v7090
  %v7109 = vadd.f32 %v7105, %v7107
  %v7110 = vadd.f32 %v7106, %v7108
  %v7111 = vmul.f32 %v6551, %v7091
  %v7112 = vmul.f32 %v6654, %v7092
  %v7113 = vmul.f32 %v6966, %v7077
  %v7114 = vmul.f32 %v7070, %v7078
  %v7115 = vsub.f32 %v7111, %v7113
  %v7116 = vsub.f32 %v7112, %v7114
  %v7119 = vrot.slane %v7097, 4
  %v7120 = vrot.slane %v7098, 4
  %v7123 = vmul.f32 %v6551, %v7119
  %v7124 = vmul.f32 %v6654, %v7120
  %v7127 = vrot.slane %v7109, 4
  %v7128 = vrot.slane %v7110, 4
  %v7131 = vmul.f32 %v6966, %v7127
  %v7132 = vmul.f32 %v7070, %v7128
  %v7133 = vsub.f32 %v7123, %v7131
  %v7134 = vsub.f32 %v7124, %v7132
  %v7137 = vrot.slane %v7103, 4
  %v7138 = vrot.slane %v7104, 4
  %v7141 = vmul.f32 %v6551, %v7137
  %v7142 = vmul.f32 %v6654, %v7138
  %v7145 = vrot.slane %v7115, 4
  %v7146 = vrot.slane %v7116, 4
  %v7149 = vmul.f32 %v6966, %v7145
  %v7150 = vmul.f32 %v7070, %v7146
  %v7151 = vsub.f32 %v7141, %v7149
  %v7152 = vsub.f32 %v7142, %v7150
  %v7153 = vmul.f32 %v6966, %v7119
  %v7154 = vmul.f32 %v7070, %v7120
  %v7155 = vmul.f32 %v6551, %v7127
  %v7156 = vmul.f32 %v6654, %v7128
  %v7157 = vadd.f32 %v7153, %v7155
  %v7158 = vadd.f32 %v7154, %v7156
  %v7159 = vmul.f32 %v6966, %v7137
  %v7160 = vmul.f32 %v7070, %v7138
  %v7161 = vmul.f32 %v6551, %v7145
  %v7162 = vmul.f32 %v6654, %v7146
  %v7163 = vadd.f32 %v7159, %v7161
  %v7164 = vadd.f32 %v7160, %v7162
  %v7165 = vlaneseq
  %v7166 = vshrl.u32 %v7165, 7
  %v7167 = vsub.s32 4, %v7166
  %v7168 = vrot.slane %v7157, %v7167
  %v7169 = vlaneseq
  %v7170 = vshrl.u32 %v7169, 7
  %v7171 = vsub.s32 4, %v7170
  %v7172 = vrot.slane %v7158, %v7171
  %v7173 = vlaneseq
  %v7174 = vshrl.u32 %v7173, 7
  %v7175 = vsub.s32 4, %v7174
  %v7176 = vrot.slane %v7133, %v7175
  %v7177 = vlaneseq
  %v7178 = vshrl.u32 %v7177, 7
  %v7179 = vsub.s32 4, %v7178
  %v7180 = vrot.slane %v7134, %v7179
  %v7181 = vsel %vm1800, %v7168, %v7176
  %v7182 = vsel %vm1800, %v7172, %v7180
  %v7183 = vsel %vm1801, %v7168, %v7176
  %v7184 = vsel %vm1801, %v7172, %v7180
  %v7185 = vlaneseq
  %v7186 = vshrl.u32 %v7185, 7
  %v7187 = vsub.s32 4, %v7186
  %v7188 = vrot.slane %v7163, %v7187
  %v7189 = vlaneseq
  %v7190 = vshrl.u32 %v7189, 7
  %v7191 = vsub.s32 4, %v7190
  %v7192 = vrot.slane %v7164, %v7191
  %v7193 = vlaneseq
  %v7194 = vshrl.u32 %v7193, 7
  %v7195 = vsub.s32 4, %v7194
  %v7196 = vrot.slane %v7151, %v7195
  %v7197 = vlaneseq
  %v7198 = vshrl.u32 %v7197, 7
  %v7199 = vsub.s32 4, %v7198
  %v7200 = vrot.slane %v7152, %v7199
  %v7201 = vsel %vm1800, %v7188, %v7196
  %v7202 = vsel %vm1800, %v7192, %v7200
  %v7203 = vsel %vm1801, %v7188, %v7196
  %v7204 = vsel %vm1801, %v7192, %v7200
  %v7205 = vlaneseq
  %v7206 = vshrl.u32 %v7205, 7
  %v7207 = vsub.s32 5, %v7206
  %v7208 = vrot.slane %v7157, %v7207
  %v7209 = vlaneseq
  %v7210 = vshrl.u32 %v7209, 7
  %v7211 = vsub.s32 5, %v7210
  %v7212 = vrot.slane %v7158, %v7211
  %v7213 = vlaneseq
  %v7214 = vshrl.u32 %v7213, 7
  %v7215 = vsub.s32 5, %v7214
  %v7216 = vrot.slane %v7133, %v7215
  %v7217 = vlaneseq
  %v7218 = vshrl.u32 %v7217, 7
  %v7219 = vsub.s32 5, %v7218
  %v7220 = vrot.slane %v7134, %v7219
  %v7221 = vsel %vm1844, %v7208, %v7216
  %v7222 = vsel %vm1844, %v7212, %v7220
  %v7223 = vsel %vm1845, %v7208, %v7216
  %v7224 = vsel %vm1845, %v7212, %v7220
  %v7225 = vlaneseq
  %v7226 = vshrl.u32 %v7225, 7
  %v7227 = vsub.s32 5, %v7226
  %v7228 = vrot.slane %v7163, %v7227
  %v7229 = vlaneseq
  %v7230 = vshrl.u32 %v7229, 7
  %v7231 = vsub.s32 5, %v7230
  %v7232 = vrot.slane %v7164, %v7231
  %v7233 = vlaneseq
  %v7234 = vshrl.u32 %v7233, 7
  %v7235 = vsub.s32 5, %v7234
  %v7236 = vrot.slane %v7151, %v7235
  %v7237 = vlaneseq
  %v7238 = vshrl.u32 %v7237, 7
  %v7239 = vsub.s32 5, %v7238
  %v7240 = vrot.slane %v7152, %v7239
  %v7241 = vsel %vm1844, %v7228, %v7236
  %v7242 = vsel %vm1844, %v7232, %v7240
  %v7243 = vsel %vm1845, %v7228, %v7236
  %v7244 = vsel %vm1845, %v7232, %v7240
  %v7245 = vmul.f32 %v7181, %v7221
  %v7246 = vmul.f32 %v7182, %v7222
  %v7247 = vmul.f32 %v7183, %v7223
  %v7248 = vmul.f32 %v7184, %v7224
  %v7249 = vmul.f32 %v7201, %v7241
  %v7250 = vmul.f32 %v7202, %v7242
  %v7251 = vmul.f32 %v7203, %v7243
  %v7252 = vmul.f32 %v7204, %v7244
  %v7253 = vsub.f32 %v7245, %v7249
  %v7254 = vsub.f32 %v7246, %v7250
  %v7255 = vsub.f32 %v7247, %v7251
  %v7256 = vsub.f32 %v7248, %v7252
  %v7257 = vmul.f32 %v7181, %v7241
  %v7258 = vmul.f32 %v7182, %v7242
  %v7259 = vmul.f32 %v7183, %v7243
  %v7260 = vmul.f32 %v7184, %v7244
  %v7261 = vmul.f32 %v7201, %v7221
  %v7262 = vmul.f32 %v7202, %v7222
  %v7263 = vmul.f32 %v7203, %v7223
  %v7264 = vmul.f32 %v7204, %v7224
  %v7265 = vadd.f32 %v7257, %v7261
  %v7266 = vadd.f32 %v7258, %v7262
  %v7267 = vadd.f32 %v7259, %v7263
  %v7268 = vadd.f32 %v7260, %v7264
  %v7269 = vlaneseq
  %v7270 = vshrl.u32 %v7269, 7
  %v7271 = vsub.s32 6, %v7270
  %v7272 = vrot.slane %v7157, %v7271
  %v7273 = vlaneseq
  %v7274 = vshrl.u32 %v7273, 7
  %v7275 = vsub.s32 6, %v7274
  %v7276 = vrot.slane %v7158, %v7275
  %v7277 = vlaneseq
  %v7278 = vshrl.u32 %v7277, 7
  %v7279 = vsub.s32 6, %v7278
  %v7280 = vrot.slane %v7133, %v7279
  %v7281 = vlaneseq
  %v7282 = vshrl.u32 %v7281, 7
  %v7283 = vsub.s32 6, %v7282
  %v7284 = vrot.slane %v7134, %v7283
  %v7285 = vsel %vm1912, %v7272, %v7280
  %v7286 = vsel %vm1912, %v7276, %v7284
  %v7287 = vsel %vm1913, %v7272, %v7280
  %v7288 = vsel %vm1913, %v7276, %v7284
  %v7289 = vlaneseq
  %v7290 = vshrl.u32 %v7289, 7
  %v7291 = vsub.s32 6, %v7290
  %v7292 = vrot.slane %v7163, %v7291
  %v7293 = vlaneseq
  %v7294 = vshrl.u32 %v7293, 7
  %v7295 = vsub.s32 6, %v7294
  %v7296 = vrot.slane %v7164, %v7295
  %v7297 = vlaneseq
  %v7298 = vshrl.u32 %v7297, 7
  %v7299 = vsub.s32 6, %v7298
  %v7300 = vrot.slane %v7151, %v7299
  %v7301 = vlaneseq
  %v7302 = vshrl.u32 %v7301, 7
  %v7303 = vsub.s32 6, %v7302
  %v7304 = vrot.slane %v7152, %v7303
  %v7305 = vsel %vm1912, %v7292, %v7300
  %v7306 = vsel %vm1912, %v7296, %v7304
  %v7307 = vsel %vm1913, %v7292, %v7300
  %v7308 = vsel %vm1913, %v7296, %v7304
  %v7309 = vmul.f32 %v7253, %v7285
  %v7310 = vmul.f32 %v7254, %v7286
  %v7311 = vmul.f32 %v7255, %v7287
  %v7312 = vmul.f32 %v7256, %v7288
  %v7313 = vmul.f32 %v7265, %v7305
  %v7314 = vmul.f32 %v7266, %v7306
  %v7315 = vmul.f32 %v7267, %v7307
  %v7316 = vmul.f32 %v7268, %v7308
  %v7317 = vsub.f32 %v7309, %v7313
  %v7318 = vsub.f32 %v7310, %v7314
  %v7319 = vsub.f32 %v7311, %v7315
  %v7320 = vsub.f32 %v7312, %v7316
  %v7321 = vmul.f32 %v7253, %v7305
  %v7322 = vmul.f32 %v7254, %v7306
  %v7323 = vmul.f32 %v7255, %v7307
  %v7324 = vmul.f32 %v7256, %v7308
  %v7325 = vmul.f32 %v7265, %v7285
  %v7326 = vmul.f32 %v7266, %v7286
  %v7327 = vmul.f32 %v7267, %v7287
  %v7328 = vmul.f32 %v7268, %v7288
  %v7329 = vadd.f32 %v7321, %v7325
  %v7330 = vadd.f32 %v7322, %v7326
  %v7331 = vadd.f32 %v7323, %v7327
  %v7332 = vadd.f32 %v7324, %v7328
  %v7333 = vlaneseq
  %v7334 = vshrl.u32 %v7333, 7
  %v7335 = vsub.s32 7, %v7334
  %v7336 = vrot.slane %v7157, %v7335
  %v7337 = vlaneseq
  %v7338 = vshrl.u32 %v7337, 7
  %v7339 = vsub.s32 7, %v7338
  %v7340 = vrot.slane %v7158, %v7339
  %v7341 = vlaneseq
  %v7342 = vshrl.u32 %v7341, 7
  %v7343 = vsub.s32 7, %v7342
  %v7344 = vrot.slane %v7133, %v7343
  %v7345 = vlaneseq
  %v7346 = vshrl.u32 %v7345, 7
  %v7347 = vsub.s32 7, %v7346
  %v7348 = vrot.slane %v7134, %v7347
  %v7349 = vsel %vm1980, %v7336, %v7344
  %v7350 = vsel %vm1980, %v7340, %v7348
  %v7351 = vsel %vm1981, %v7336, %v7344
  %v7352 = vsel %vm1981, %v7340, %v7348
  %v7353 = vlaneseq
  %v7354 = vshrl.u32 %v7353, 7
  %v7355 = vsub.s32 7, %v7354
  %v7356 = vrot.slane %v7163, %v7355
  %v7357 = vlaneseq
  %v7358 = vshrl.u32 %v7357, 7
  %v7359 = vsub.s32 7, %v7358
  %v7360 = vrot.slane %v7164, %v7359
  %v7361 = vlaneseq
  %v7362 = vshrl.u32 %v7361, 7
  %v7363 = vsub.s32 7, %v7362
  %v7364 = vrot.slane %v7151, %v7363
  %v7365 = vlaneseq
  %v7366 = vshrl.u32 %v7365, 7
  %v7367 = vsub.s32 7, %v7366
  %v7368 = vrot.slane %v7152, %v7367
  %v7369 = vsel %vm1980, %v7356, %v7364
  %v7370 = vsel %vm1980, %v7360, %v7368
  %v7371 = vsel %vm1981, %v7356, %v7364
  %v7372 = vsel %vm1981, %v7360, %v7368
  %v7373 = vmul.f32 %v7317, %v7349
  %v7374 = vmul.f32 %v7318, %v7350
  %v7375 = vmul.f32 %v7319, %v7351
  %v7376 = vmul.f32 %v7320, %v7352
  %v7377 = vmul.f32 %v7329, %v7369
  %v7378 = vmul.f32 %v7330, %v7370
  %v7379 = vmul.f32 %v7331, %v7371
  %v7380 = vmul.f32 %v7332, %v7372
  %v7381 = vsub.f32 %v7373, %v7377
  %v7382 = vsub.f32 %v7374, %v7378
  %v7383 = vsub.f32 %v7375, %v7379
  %v7384 = vsub.f32 %v7376, %v7380
  %v7385 = vmul.f32 %v7317, %v7369
  %v7386 = vmul.f32 %v7318, %v7370
  %v7387 = vmul.f32 %v7319, %v7371
  %v7388 = vmul.f32 %v7320, %v7372
  %v7389 = vmul.f32 %v7329, %v7349
  %v7390 = vmul.f32 %v7330, %v7350
  %v7391 = vmul.f32 %v7331, %v7351
  %v7392 = vmul.f32 %v7332, %v7352
  %v7393 = vadd.f32 %v7385, %v7389
  %v7394 = vadd.f32 %v7386, %v7390
  %v7395 = vadd.f32 %v7387, %v7391
  %v7396 = vadd.f32 %v7388, %v7392
  %7397 = vmatprep.subr.mxu0 0.0
  %7398 = vmatpush1.msra.mxu0 0.0
  %7399 = vmatprep.subr.mxu0 0.0
  %7400 = vmatpush1.msra.mxu0 0.0
  %7401 = vmatprep.subr.mxu0 0.0
  %7402 = vmatpush1.msra.mxu0 0.0
  %7403 = vmatprep.subr.mxu0 0.0
  %7404 = vmatpush1.msra.mxu0 0.0
  %7405 = vmatprep.subr.mxu0 0.0
  %7406 = vmatpush1.msra.mxu0 0.0
  %7407 = vmatprep.subr.mxu0 0.0
  %7408 = vmatpush1.msra.mxu0 0.0
  %7409 = vmatprep.subr.mxu0 0.0
  %7410 = vmatpush1.msra.mxu0 0.0
  %7411 = vmatprep.subr.mxu0 0.0
  %7412 = vmatpush1.msra.mxu0 0.0
  %7413 = vmatprep.subr.mxu0 0.0
  %7414 = vmatpush1.msra.mxu0 0.0
  %7415 = vmatprep.subr.mxu0 0.0
  %7416 = vmatpush1.msra.mxu0 0.0
  %7417 = vmatprep.subr.mxu0 0.0
  %7418 = vmatpush1.msra.mxu0 0.0
  %7419 = vmatprep.subr.mxu0 0.0
  %7420 = vmatpush1.msra.mxu0 0.0
  %7421 = vmatprep.subr.mxu0 %v7396
  %7422 = vmatpush1.msra.mxu0 %v7395
  %7423 = vmatprep.subr.mxu0 %v7394
  %7424 = vmatpush1.msra.mxu0 %v7393
  %7425 = vmatprep.subr.mxu0 %v7384
  %7426 = vmatpush1.msra.mxu0 %v7383
  %7427 = vmatprep.subr.mxu0 %v7382
  %7428 = vmatpush1.msra.mxu0 %v7381
  %7429 = vmatprep.subr.mxu0 0.0
  %7430 = vmatpush2.msra.mxu0 0.0
  %7431 = vmatprep.subr.mxu0 0.0
  %7432 = vmatpush2.msra.mxu0 0.0
  %7433 = vmatprep.subr.mxu0 0.0
  %7434 = vmatpush2.msra.mxu0 0.0
  %7435 = vmatprep.subr.mxu0 0.0
  %7436 = vmatpush2.msra.mxu0 0.0
  %7437 = vmatprep.subr.mxu0 0.0
  %7438 = vmatpush2.msra.mxu0 0.0
  %7439 = vmatprep.subr.mxu0 0.0
  %7440 = vmatpush2.msra.mxu0 0.0
  %7441 = vmatprep.subr.mxu0 0.0
  %7442 = vmatpush2.msra.mxu0 0.0
  %7443 = vmatprep.subr.mxu0 0.0
  %7444 = vmatpush2.msra.mxu0 0.0
  %7445 = vmatprep.subr.mxu0 0.0
  %7446 = vmatpush2.msra.mxu0 0.0
  %7447 = vmatprep.subr.mxu0 0.0
  %7448 = vmatpush2.msra.mxu0 0.0
  %7449 = vmatprep.subr.mxu0 0.0
  %7450 = vmatpush2.msra.mxu0 0.0
  %7451 = vmatprep.subr.mxu0 0.0
  %7452 = vmatpush2.msra.mxu0 0.0
  %7453 = vmatprep.subr.mxu0 0.0
  %7454 = vmatpush2.msra.mxu0 0.0
  %7455 = vmatprep.subr.mxu0 0.0
  %7456 = vmatpush2.msra.mxu0 0.0
  %7457 = vmatprep.subr.mxu0 0.0
  %7458 = vmatpush2.msra.mxu0 0.0
  %7459 = vmatprep.subr.mxu0 0.0
  %7460 = vmatpush2.msra.mxu0 0.0
  %7461 = vmatprep.mubr.f32.mxu0 0.0
  %7462 = vmatmul.mubr.f32.gmra.mxu0 %v2048
  %v7463 = vpop.f32.mrf.mxu0
  %v7464 = vadd.f32 0.0, %v7463
  %v7465 = vpop.f32.mrf.mxu0
  %v7466 = vadd.f32 0.0, %v7465
  %7467 = vmatprep.mubr.f32.mxu0 0.0
  %7468 = vmatmul.mubr.f32.gmra.mxu0 %v2051
  %v7469 = vpop.f32.mrf.mxu0
  %v7470 = vadd.f32 0.0, %v7469
  %v7471 = vpop.f32.mrf.mxu0
  %v7472 = vadd.f32 0.0, %v7471
  %7473 = vmatprep.mubr.f32.mxu0 0.0
  %7474 = vmatmul.mubr.f32.gmra.mxu0 %v2054
  %v7475 = vpop.f32.mrf.mxu0
  %v7476 = vadd.f32 0.0, %v7475
  %v7477 = vpop.f32.mrf.mxu0
  %v7478 = vadd.f32 0.0, %v7477
  %7479 = vmatprep.mubr.f32.mxu0 0.0
  %7480 = vmatmul.mubr.f32.gmra.mxu0 %v2057
  %v7481 = vpop.f32.mrf.mxu0
  %v7482 = vadd.f32 0.0, %v7481
  %v7483 = vpop.f32.mrf.mxu0
  %v7484 = vadd.f32 0.0, %v7483
  %7485 = vdwg.mxu0
  %v7486 = vmul.f32 %v7464, %v7464
  %v7487 = vmul.f32 %v7466, %v7466
  %v7488 = vmul.f32 %v7470, %v7470
  %v7489 = vmul.f32 %v7472, %v7472
  %v7490 = vmul.f32 %v7476, %v7476
  %v7491 = vmul.f32 %v7478, %v7478
  %v7492 = vmul.f32 %v7482, %v7482
  %v7493 = vmul.f32 %v7484, %v7484
  %7494 = vmatprep.subr.mxu0 0.0
  %7495 = vmatpush1.msra.mxu0 0.0
  %7496 = vmatprep.subr.mxu0 0.0
  %7497 = vmatpush1.msra.mxu0 0.0
  %7498 = vmatprep.subr.mxu0 0.0
  %7499 = vmatpush1.msra.mxu0 0.0
  %7500 = vmatprep.subr.mxu0 0.0
  %7501 = vmatpush1.msra.mxu0 0.0
  %7502 = vmatprep.subr.mxu0 0.0
  %7503 = vmatpush1.msra.mxu0 0.0
  %7504 = vmatprep.subr.mxu0 0.0
  %7505 = vmatpush1.msra.mxu0 0.0
  %7506 = vmatprep.subr.mxu0 0.0
  %7507 = vmatpush1.msra.mxu0 0.0
  %7508 = vmatprep.subr.mxu0 0.0
  %7509 = vmatpush1.msra.mxu0 0.0
  %7510 = vmatprep.subr.mxu0 0.0
  %7511 = vmatpush1.msra.mxu0 0.0
  %7512 = vmatprep.subr.mxu0 0.0
  %7513 = vmatpush1.msra.mxu0 0.0
  %7514 = vmatprep.subr.mxu0 0.0
  %7515 = vmatpush1.msra.mxu0 0.0
  %7516 = vmatprep.subr.mxu0 0.0
  %7517 = vmatpush1.msra.mxu0 0.0
  %7518 = vmatprep.subr.mxu0 %v7493
  %7519 = vmatpush1.msra.mxu0 %v7492
  %7520 = vmatprep.subr.mxu0 %v7491
  %7521 = vmatpush1.msra.mxu0 %v7490
  %7522 = vmatprep.subr.mxu0 %v7489
  %7523 = vmatpush1.msra.mxu0 %v7488
  %7524 = vmatprep.subr.mxu0 %v7487
  %7525 = vmatpush1.msra.mxu0 %v7486
  %7526 = vmatprep.subr.mxu0 0.0
  %7527 = vmatpush2.msra.mxu0 0.0
  %7528 = vmatprep.subr.mxu0 0.0
  %7529 = vmatpush2.msra.mxu0 0.0
  %7530 = vmatprep.subr.mxu0 0.0
  %7531 = vmatpush2.msra.mxu0 0.0
  %7532 = vmatprep.subr.mxu0 0.0
  %7533 = vmatpush2.msra.mxu0 0.0
  %7534 = vmatprep.subr.mxu0 0.0
  %7535 = vmatpush2.msra.mxu0 0.0
  %7536 = vmatprep.subr.mxu0 0.0
  %7537 = vmatpush2.msra.mxu0 0.0
  %7538 = vmatprep.subr.mxu0 0.0
  %7539 = vmatpush2.msra.mxu0 0.0
  %7540 = vmatprep.subr.mxu0 0.0
  %7541 = vmatpush2.msra.mxu0 0.0
  %7542 = vmatprep.subr.mxu0 0.0
  %7543 = vmatpush2.msra.mxu0 0.0
  %7544 = vmatprep.subr.mxu0 0.0
  %7545 = vmatpush2.msra.mxu0 0.0
  %7546 = vmatprep.subr.mxu0 0.0
  %7547 = vmatpush2.msra.mxu0 0.0
  %7548 = vmatprep.subr.mxu0 0.0
  %7549 = vmatpush2.msra.mxu0 0.0
  %7550 = vmatprep.subr.mxu0 0.0
  %7551 = vmatpush2.msra.mxu0 0.0
  %7552 = vmatprep.subr.mxu0 0.0
  %7553 = vmatpush2.msra.mxu0 0.0
  %7554 = vmatprep.subr.mxu0 0.0
  %7555 = vmatpush2.msra.mxu0 0.0
  %7556 = vmatprep.subr.mxu0 0.0
  %7557 = vmatpush2.msra.mxu0 0.0
  %7558 = vmatprep.mubr.f32.mxu0 0.0
  %7559 = vmatmul.mubr.f32.gmra.mxu0 %v2157
  %v7560 = vpop.f32.mrf.mxu0
  %v7561 = vadd.f32 0.0, %v7560
  %v7562 = vpop.f32.mrf.mxu0
  %v7563 = vadd.f32 0.0, %v7562
  %7564 = vmatprep.mubr.f32.mxu0 0.0
  %7565 = vmatmul.mubr.f32.gmra.mxu0 %v2160
  %v7566 = vpop.f32.mrf.mxu0
  %v7567 = vadd.f32 0.0, %v7566
  %v7568 = vpop.f32.mrf.mxu0
  %v7569 = vadd.f32 0.0, %v7568
  %7570 = vdwg.mxu0
  %v7571 = vsub.f32 %v7561, %v6225
  %v7572 = vsub.f32 %v7563, %v6227
  %v7573 = vsub.f32 %v7567, %v6231
  %v7574 = vsub.f32 %v7569, %v6233
  %v7575 = vmul.f32 %v7571, %v7571
  %v7576 = vmul.f32 %v7572, %v7572
  %v7577 = vmul.f32 %v7573, %v7573
  %v7578 = vmul.f32 %v7574, %v7574
  %v7579 = vadd.f32 %v7575, %v7577
  %v7580 = vrot.slane %v7579, 4
  %v7581 = vadd.f32 %v7579, %v7580
  %v7582 = vrot.slane %v7581, 2
  %v7583 = vadd.f32 %v7581, %v7582
  %v7584 = vrot.slane %v7583, 1
  %v7585 = vadd.f32 %v7583, %v7584
  %v7586 = vadd.f32 %v7576, %v7578
  %v7587 = vrot.slane %v7586, 4
  %v7588 = vadd.f32 %v7586, %v7587
  %v7589 = vrot.slane %v7588, 2
  %v7590 = vadd.f32 %v7588, %v7589
  %v7591 = vrot.slane %v7590, 1
  %v7592 = vadd.f32 %v7590, %v7591
  %v7593 = vrsqrt.pop %v7585
  %v7594 = vmul.f32 %v7585, %v7593
  %vm7595 = vcmp.eq.f32.partialorder %v7585, inf
  %v7596 = vsel %vm7595, %v7585, %v7594
  %vm7597 = vcmp.eq.f32.partialorder %v7585, 0.0
  %v7598 = vand.u32 %v7585, 2147483648
  %v7599 = vsel %vm7597, %v7598, %v7596
  %v7600 = vrsqrt.pop %v7592
  %v7601 = vmul.f32 %v7592, %v7600
  %vm7602 = vcmp.eq.f32.partialorder %v7592, inf
  %v7603 = vsel %vm7602, %v7592, %v7601
  %vm7604 = vcmp.eq.f32.partialorder %v7592, 0.0
  %v7605 = vand.u32 %v7592, 2147483648
  %v7606 = vsel %vm7604, %v7605, %v7603
  %v7607 = vmul.f32 %v6225, %v6225
  %v7608 = vmul.f32 %v6227, %v6227
  %v7609 = vmul.f32 %v6231, %v6231
  %v7610 = vmul.f32 %v6233, %v6233
  %v7611 = vadd.f32 %v7607, %v7609
  %v7612 = vrot.slane %v7611, 4
  %v7613 = vadd.f32 %v7611, %v7612
  %v7614 = vrot.slane %v7613, 2
  %v7615 = vadd.f32 %v7613, %v7614
  %v7616 = vrot.slane %v7615, 1
  %v7617 = vadd.f32 %v7615, %v7616
  %v7618 = vadd.f32 %v7608, %v7610
  %v7619 = vrot.slane %v7618, 4
  %v7620 = vadd.f32 %v7618, %v7619
  %v7621 = vrot.slane %v7620, 2
  %v7622 = vadd.f32 %v7620, %v7621
  %v7623 = vrot.slane %v7622, 1
  %v7624 = vadd.f32 %v7622, %v7623
  %v7625 = vrsqrt.pop %v7617
  %v7626 = vmul.f32 %v7617, %v7625
  %vm7627 = vcmp.eq.f32.partialorder %v7617, inf
  %v7628 = vsel %vm7627, %v7617, %v7626
  %vm7629 = vcmp.eq.f32.partialorder %v7617, 0.0
  %v7630 = vand.u32 %v7617, 2147483648
  %v7631 = vsel %vm7629, %v7630, %v7628
  %v7632 = vrsqrt.pop %v7624
  %v7633 = vmul.f32 %v7624, %v7632
  %vm7634 = vcmp.eq.f32.partialorder %v7624, inf
  %v7635 = vsel %vm7634, %v7624, %v7633
  %vm7636 = vcmp.eq.f32.partialorder %v7624, 0.0
  %v7637 = vand.u32 %v7624, 2147483648
  %v7638 = vsel %vm7636, %v7637, %v7635
  %v7639 = vadd.f32 %v7631, 1e-09
  %v7640 = vadd.f32 %v7638, 1e-09
  %v7641 = vrcp.pop %v7639
  %v7642 = vmul.f32 %v7599, %v7641
  %v7643 = vrcp.pop %v7640
  %v7644 = vmul.f32 %v7606, %v7643
  %v7647 = vcombine.low %v7642, %v7644
  %v7649 = vunpack.c.l.s4 1966171168
  %v7650 = vunpack.c.0.s8 %v7649
  %v7651 = vlaneseq
  %v7652 = vshrl.u32 %v7651, 7
  %v7653 = vsub.s32 %v7650, %v7652
  %v7654 = vrot.slane %v7647, %v7653
  %v7656 = vunpack.c.l.s4 1966171168
  %v7657 = vunpack.c.0.s8 %v7656
  %v7658 = vlaneseq
  %v7659 = vshrl.u32 %v7658, 7
  %v7660 = vsub.s32 %v7657, %v7659
  %v7661 = vrot.slane %v7654, %v7660
  %v7663 = vlaneseq
  %vm7664 = vcmp.ge.s32.totalorder %v7663, 0
  %vm7665 = vcmp.lt.s32.totalorder %v7663, 256
  %vm7666 = vmand %vm7664, %vm7665
  %7667 = vst.msk [vmem:[%s7] sm:$0x3] %vm7666, %v7661
  %v7668 = vmax.f32 %v6225, 0.0
  %v7669 = vmax.f32 %v6227, 0.0
  %v7670 = vmax.f32 %v6231, 0.0
  %v7671 = vmax.f32 %v6233, 0.0
  %v7672 = vld [vmem:[%s4] sm:$0x3]
  %v7673 = vld [vmem:[%s5] sm:$0x3]
  %7675 = vset.pattern.permute.xlu0 0
  %7676 = vperm.xlu0 %7675, %v7673
  %v7677 = vpop.permute.xlu0 %7676
  %v7680 = vsel %vm657, %v7672, 0
  %7682 = vmatprep.subr.mxu0 0.0
  %7683 = vmatpush1.msra.mxu0 0.0
  %7684 = vmatprep.subr.mxu0 0.0
  %7685 = vmatpush1.msra.mxu0 0.0
  %7686 = vmatprep.subr.mxu0 0.0
  %7687 = vmatpush1.msra.mxu0 0.0
  %7688 = vmatprep.subr.mxu0 0.0
  %7689 = vmatpush1.msra.mxu0 0.0
  %7690 = vmatprep.subr.mxu0 0.0
  %7691 = vmatpush1.msra.mxu0 0.0
  %7692 = vmatprep.subr.mxu0 0.0
  %7693 = vmatpush1.msra.mxu0 0.0
  %7694 = vmatprep.subr.mxu0 0.0
  %7695 = vmatpush1.msra.mxu0 0.0
  %7696 = vmatprep.subr.mxu0 0.0
  %7697 = vmatpush1.msra.mxu0 0.0
  %7698 = vmatprep.subr.mxu0 0.0
  %7699 = vmatpush1.msra.mxu0 0.0
  %7700 = vmatprep.subr.mxu0 0.0
  %7701 = vmatpush1.msra.mxu0 0.0
  %7702 = vmatprep.subr.mxu0 0.0
  %7703 = vmatpush1.msra.mxu0 0.0
  %7704 = vmatprep.subr.mxu0 0.0
  %7705 = vmatpush1.msra.mxu0 0.0
  %7706 = vmatprep.subr.mxu0 0.0
  %7707 = vmatpush1.msra.mxu0 0.0
  %7708 = vmatprep.subr.mxu0 0.0
  %7709 = vmatpush1.msra.mxu0 0.0
  %7710 = vmatprep.subr.mxu0 %v7671
  %7711 = vmatpush1.msra.mxu0 %v7670
  %7712 = vmatprep.subr.mxu0 %v7669
  %7713 = vmatpush1.msra.mxu0 %v7668
  %7714 = vmatprep.subr.mxu0 0.0
  %7715 = vmatpush2.msra.mxu0 0.0
  %7716 = vmatprep.subr.mxu0 0.0
  %7717 = vmatpush2.msra.mxu0 0.0
  %7718 = vmatprep.subr.mxu0 0.0
  %7719 = vmatpush2.msra.mxu0 0.0
  %7720 = vmatprep.subr.mxu0 0.0
  %7721 = vmatpush2.msra.mxu0 0.0
  %7722 = vmatprep.subr.mxu0 0.0
  %7723 = vmatpush2.msra.mxu0 0.0
  %7724 = vmatprep.subr.mxu0 0.0
  %7725 = vmatpush2.msra.mxu0 0.0
  %7726 = vmatprep.subr.mxu0 0.0
  %7727 = vmatpush2.msra.mxu0 0.0
  %7728 = vmatprep.subr.mxu0 0.0
  %7729 = vmatpush2.msra.mxu0 0.0
  %7730 = vmatprep.subr.mxu0 0.0
  %7731 = vmatpush2.msra.mxu0 0.0
  %7732 = vmatprep.subr.mxu0 0.0
  %7733 = vmatpush2.msra.mxu0 0.0
  %7734 = vmatprep.subr.mxu0 0.0
  %7735 = vmatpush2.msra.mxu0 0.0
  %7736 = vmatprep.subr.mxu0 0.0
  %7737 = vmatpush2.msra.mxu0 0.0
  %7738 = vmatprep.subr.mxu0 0.0
  %7739 = vmatpush2.msra.mxu0 0.0
  %7740 = vmatprep.subr.mxu0 0.0
  %7741 = vmatpush2.msra.mxu0 0.0
  %7742 = vmatprep.subr.mxu0 0.0
  %7743 = vmatpush2.msra.mxu0 0.0
  %7744 = vmatprep.subr.mxu0 0.0
  %7745 = vmatpush2.msra.mxu0 0.0
  %7746 = vmatprep.mubr.f32.mxu0 0.0
  %7747 = vmatmul.mubr.f32.gmra.mxu0 %v7680
  %v7748 = vpop.f32.mrf.mxu0
  %v7749 = vadd.f32 %v7677, %v7748
  %v7750 = vpop.f32.mrf.mxu0
  %v7751 = vadd.f32 %v7677, %v7750
  %7752 = vdwg.mxu0
  %vm7753 = vcmask 1041408
  %v7754 = vsel %vm7753, %v7749, -inf
  %v7755 = vrot.slane %v7754, 4
  %v7756 = vmax.f32 %v7754, %v7755
  %v7757 = vrot.slane %v7756, 2
  %v7758 = vmax.f32 %v7756, %v7757
  %v7759 = vrot.slane %v7758, 1
  %v7760 = vmax.f32 %v7758, %v7759
  %v7761 = vsel %vm7753, %v7751, -inf
  %v7762 = vrot.slane %v7761, 4
  %v7763 = vmax.f32 %v7761, %v7762
  %v7764 = vrot.slane %v7763, 2
  %v7765 = vmax.f32 %v7763, %v7764
  %v7766 = vrot.slane %v7765, 1
  %v7767 = vmax.f32 %v7765, %v7766
  %v7768 = vsub.f32 %v7749, %v7760
  %v7769 = vsub.f32 %v7751, %v7767
  %v7770 = vmul.f32 %v7768, 1.442695
  %v7771 = vpow.pop %v7770
  %v7772 = vmul.f32 %v7769, 1.442695
  %v7773 = vpow.pop %v7772
  %v7774 = vsel %vm7753, %v7771, 0.0
  %v7775 = vrot.slane %v7774, 4
  %v7776 = vadd.f32 %v7774, %v7775
  %v7777 = vrot.slane %v7776, 2
  %v7778 = vadd.f32 %v7776, %v7777
  %v7779 = vrot.slane %v7778, 1
  %v7780 = vadd.f32 %v7778, %v7779
  %v7781 = vsel %vm7753, %v7773, 0.0
  %v7782 = vrot.slane %v7781, 4
  %v7783 = vadd.f32 %v7781, %v7782
  %v7784 = vrot.slane %v7783, 2
  %v7785 = vadd.f32 %v7783, %v7784
  %v7786 = vrot.slane %v7785, 1
  %v7787 = vadd.f32 %v7785, %v7786
  %v7788 = vlog2.pop %v7780
  %v7789 = vmul.f32 %v7788, 0.6931472
  %v7790 = vlog2.pop %v7787
  %v7791 = vmul.f32 %v7790, 0.6931472
  %v7792 = vadd.f32 %v7760, %v7789
  %v7793 = vadd.f32 %v7767, %v7791
  %v7794 = vsub.f32 %v7749, %v7792
  %v7795 = vsub.f32 %v7751, %v7793
  %v7798 = vcombine.low %v7794, %v7795
  %v7800 = vunpack.c.l.s4 1983009808
  %v7801 = vunpack.c.0.s8 %v7800
  %v7802 = vlaneseq
  %v7803 = vshrl.u32 %v7802, 7
  %v7804 = vsub.s32 %v7801, %v7803
  %v7805 = vrot.slane %v7798, %v7804
  %7807 = vst [vmem:[%s6] sm:$0xf] %v7805
  // Predicated region
  $region26: #{qdeq_forward.1} parent=0 // pred_check
    _
  $region27: #{qdeq_forward.1} parent=0 // pred_check_branch
    %7809 = sbr.rel (0) target = $region29
  $region28: #{qdeq_forward.1} parent=0 // pred_region
    _
  $region29: #{qdeq_forward.1} parent=0 // pred_fallthru
    _
  // Predicated region
  $region30: #{qdeq_forward.1} parent=0 // pred_check
    _
  $region31: #{qdeq_forward.1} parent=0 // pred_check_branch
    %7811 = sbr.rel (0) target = $region33
  $region32: #{qdeq_forward.1} parent=0 // pred_region
    _
  $region33: #{qdeq_forward.1} parent=0 // pred_fallthru
    _
  // Predicated region
  $region34: #{qdeq_forward.1} parent=0 // pred_check
    _
  $region35: #{qdeq_forward.1} parent=0 // pred_check_branch
    %7813 = sbr.rel (0) target = $region37
  $region36: #{qdeq_forward.1} parent=0 // pred_region
    _
  $region37: #{qdeq_forward.1} parent=0 // pred_fallthru
    _
  // Predicated region
  $region38: #{qdeq_forward.1} parent=0 // pred_check
    _
  $region39: #{qdeq_forward.1} parent=0 // pred_check_branch
    %7815 = sbr.rel (0) target = $region41
  $region40: #{qdeq_forward.1} parent=0 // pred_region
    _
  $region41: #{qdeq_forward.1} parent=0 // pred_fallthru
    _

</llo_original>
